<compile_context>
chip_gen: v6e
topology: v6e:2x2x1
jax: 0.10.0
libtpu: 0.0.40
codegen_flags: <defaults>
</compile_context>

<pallas_src>
import functools

import numpy as np
import jax
import jax.numpy as jnp
from jax.experimental import pallas as pl
from jax.experimental.pallas import tpu as pltpu


# --------------------------------------------------------------------------
# Kernel
# --------------------------------------------------------------------------
def _window_attention_kernel(x_ref, wqkv_ref, wp_ref, bp_ref, bias_ref,
                             o_ref, o_scratch, *, num_heads, head_dim, win_n):
    """Fused window attention for one block of windows.

    x_ref    : (TM, C)   TM = TB windows * win_n tokens, C = H * D
    wqkv_ref : (C, 3C)   fused, pre-transposed QKV weight (scale folded into q)
    wp_ref   : (C, C)    pre-transposed output-projection weight
    bp_ref   : (1, C)    output-projection bias (f32)
    bias_ref : (H, N, N) relative-position bias (f32)
    o_ref    : (TM, C)
    o_scratch: (TM, C)   f32 VMEM slab holding concat_h(attn_h @ v_h)
    """
    TM, C = x_ref.shape
    H, D, N = num_heads, head_dim, win_n
    TB = TM // N
    mxu_dtype = x_ref.dtype        # bf16 on the low-precision path, else f32

    # One fused, lane-dense QKV projection; f32 accumulation on the MXU.
    qkv = jnp.dot(x_ref[...], wqkv_ref[...],
                  preferred_element_type=jnp.float32)          # (TM, 3C)

    for h in range(H):             # H is small -> static unroll is fine
        q = qkv[:, 0 * C + h * D:0 * C + (h + 1) * D]
        k = qkv[:, 1 * C + h * D:1 * C + (h + 1) * D]
        v = qkv[:, 2 * C + h * D:2 * C + (h + 1) * D]
        q3 = q.reshape(TB, N, D).astype(mxu_dtype)
        k3 = k.reshape(TB, N, D).astype(mxu_dtype)
        v3 = v.reshape(TB, N, D).astype(mxu_dtype)

        # attention scores per window (TB, N, N); scale already folded into Wq
        s = jnp.einsum('bnd,bmd->bnm', q3, k3,
                       preferred_element_type=jnp.float32)
        s = s + bias_ref[h][None, :, :]

        # numerically stable softmax over keys (kept in f32 even on the bf16
        # path: v5e has no bf16 VPU/EUP)
        s = s - jnp.max(s, axis=-1, keepdims=True)
        p = jnp.exp(s)
        inv = pl.reciprocal(jnp.sum(p, axis=-1, keepdims=True), approx=False)
        p = p * inv

        o = jnp.einsum('bnm,bmd->bnd', p.astype(mxu_dtype), v3,
                       preferred_element_type=jnp.float32)      # (TB, N, D)

        # drop this head's output into its column slab of the scratch
        o_scratch[:, h * D:(h + 1) * D] = o.reshape(TM, D)

    # One full-depth output projection of the concatenated heads.
    out = jnp.dot(o_scratch[...].astype(mxu_dtype), wp_ref[...],
                  preferred_element_type=jnp.float32)
    o_ref[...] = (out + bp_ref[...]).astype(o_ref.dtype)


# --------------------------------------------------------------------------
# Wrapper
# --------------------------------------------------------------------------
def _pick_windows_per_block(B, N, C, itemsize):
    """Aim for ~1024 activation rows per grid step (tiny blocks are dominated
    by per-step overhead and reach <30% of HBM roofline), capped so the
    per-step VMEM footprint stays inside every generation's scoped-VMEM
    default (v7x has only 64 MiB physical / 32 MiB default scoped)."""
    budget = 20 << 20
    tb = max(1, min(B, max(1, 1024 // N)))

    def footprint(tb_):
        tm = tb_ * N
        # 2x-buffered x + out blocks, qkv intermediate, f32 scratch slab,
        # per-head scores / outputs (rough upper bound).
        return (itemsize * tm * (2 * C + 2 * C + 3 * C)
                + 4 * tm * (C + C) + 4 * tb_ * N * N)

    while tb > 1 and footprint(tb) > budget:
        tb = max(1, tb // 2)
    # Second-minor block dim must be a multiple of 8 unless the block spans
    # the full array.
    while tb < B and (tb * N) % 8 != 0:
        tb += 1
    return tb


def window_attention_forward(x, w_qkv, w_proj, b_proj, rel_bias, num_heads, *,
                             windows_per_block=None, compute_dtype=None):
    """x: (B, N, C); w_qkv: (3C, C); w_proj: (C, C); b_proj: (C,);
    rel_bias: (H, N, N). Returns (B, N, C)."""
    B, N, C = x.shape
    H = num_heads
    D = C // H
    scale = float(D) ** -0.5
    out_dtype = x.dtype

    # ---- one-time weight re-layout (tiny; outside the hot path) ----
    wqkv_t = jnp.transpose(w_qkv)                               # (C, 3C)
    wqkv_t = wqkv_t.at[:, :C].multiply(scale)                   # fold q scale
    wp = jnp.transpose(w_proj)                                  # (C, C)
    bp = b_proj.reshape(1, C).astype(jnp.float32)
    bias = rel_bias.astype(jnp.float32)

    if compute_dtype is not None:          # optional bf16 HBM-traffic path
        x = x.astype(compute_dtype)
        wqkv_t = wqkv_t.astype(compute_dtype)
        wp = wp.astype(compute_dtype)

    itemsize = jnp.dtype(x.dtype).itemsize
    tb = windows_per_block or _pick_windows_per_block(B, N, C, itemsize)
    tb = max(1, min(tb, B))
    B_pad = ((B + tb - 1) // tb) * tb
    xp = x if B_pad == B else jnp.pad(x, ((0, B_pad - B), (0, 0), (0, 0)))
    x2d = xp.reshape(B_pad * N, C)          # contiguous view, no relayout
    TM = tb * N
    grid = (B_pad * N // TM,)

    # Advisory cost: small flops, bandwidth-dominated.
    flops = int(2 * B * N * C * 3 * C          # fused qkv projection
                + 2 * 2 * B * H * N * N * D    # q@k^T and attn@v
                + 2 * B * N * C * C)           # output projection
    bytes_accessed = int(itemsize * (B * N * C + 3 * C * C + C * C)
                         + jnp.dtype(out_dtype).itemsize * B * N * C
                         + 4 * (C + H * N * N))

    kernel = functools.partial(_window_attention_kernel, num_heads=H,
                               head_dim=D, win_n=N)

    out2d = pl.pallas_call(
        kernel,
        out_shape=jax.ShapeDtypeStruct((B_pad * N, C), out_dtype),
        grid_spec=pltpu.PrefetchScalarGridSpec(
            num_scalar_prefetch=0,
            grid=grid,
            in_specs=[
                pl.BlockSpec((TM, C), lambda i: (i, 0)),        # activations
                pl.BlockSpec((C, 3 * C), lambda i: (0, 0)),     # Wqkv (const)
                pl.BlockSpec((C, C), lambda i: (0, 0)),         # Wproj (const)
                pl.BlockSpec((1, C), lambda i: (0, 0)),         # proj bias
                pl.BlockSpec((H, N, N), lambda i: (0, 0, 0)),   # rel-pos bias
            ],
            out_specs=pl.BlockSpec((TM, C), lambda i: (i, 0)),
            scratch_shapes=[pltpu.VMEM((TM, C), jnp.float32)],
        ),
        compiler_params=pltpu.CompilerParams(
            dimension_semantics=("parallel",),
            vmem_limit_bytes=32 * 1024 * 1024),
        cost_estimate=pl.CostEstimate(flops=flops,
                                      transcendentals=int(B * H * N * N),
                                      bytes_accessed=bytes_accessed),
    )(x2d, wqkv_t, wp, bp, bias)

    return out2d[:B * N].reshape(B, N, C)


# --------------------------------------------------------------------------
# Reference (pure JAX, mirrors the PyTorch module) and test harness
# --------------------------------------------------------------------------
def _relative_position_index(window_size):
    ws = window_size
    coords = np.stack(np.meshgrid(np.arange(ws), np.arange(ws), indexing='ij'))
    coords_flatten = coords.reshape(2, -1)                      # (2, N)
    rel = coords_flatten[:, :, None] - coords_flatten[:, None, :]
    rel = rel.transpose(1, 2, 0).astype(np.int32)               # (N, N, 2)
    rel[..., 0] += ws - 1
    rel[..., 1] += ws - 1
    rel[..., 0] *= 2 * ws - 1
    return rel.sum(-1)                                          # (N, N)


def window_attention_ref(x, w_qkv, w_proj, b_proj, bias_table, rel_index,
                         num_heads):
    B, N, C = x.shape
    H = num_heads
    D = C // H
    scale = float(D) ** -0.5
    qkv = x @ w_qkv.T
    q, k, v = jnp.split(qkv, 3, axis=-1)

    def split_heads(t):
        return t.reshape(B, N, H, D).transpose(0, 2, 1, 3)

    q, k, v = split_heads(q), split_heads(k), split_heads(v)
    attn = (q @ jnp.swapaxes(k, -1, -2)) * scale
    rel_bias = bias_table[rel_index.reshape(-1)].reshape(N, N, H)
    rel_bias = jnp.transpose(rel_bias, (2, 0, 1))
    attn = attn + rel_bias[None]
    attn = jax.nn.softmax(attn, axis=-1)
    out = (attn @ v).transpose(0, 2, 1, 3).reshape(B, N, C)
    return out @ w_proj.T + b_proj


if __name__ == "__main__":
    key = jax.random.PRNGKey(0)
    kx, kqkv, kp, kb, kt = jax.random.split(key, 5)

    dim, num_heads, window_size = 32, 4, 4
    N = window_size * window_size          # tokens per window = 16
    B = 8                                  # batch * num_windows

    x = jax.random.normal(kx, (B, N, dim), dtype=jnp.float32)
    w_qkv = jax.random.normal(kqkv, (3 * dim, dim), dtype=jnp.float32) * 0.05
    w_proj = jax.random.normal(kp, (dim, dim), dtype=jnp.float32) * 0.05
    b_proj = jax.random.normal(kb, (dim,), dtype=jnp.float32) * 0.05
    bias_table = jax.random.normal(
        kt, ((2 * window_size - 1) ** 2, num_heads), dtype=jnp.float32) * 0.02

    # The relative-position-index gather is a static registered buffer in
    # PyTorch; fold it into an (H, N, N) bias once in the wrapper.
    rel_index = jnp.asarray(_relative_position_index(window_size))
    rel_bias = bias_table[rel_index.reshape(-1)].reshape(N, N, num_heads)
    rel_bias = jnp.transpose(rel_bias, (2, 0, 1))               # (H, N, N)

    out = window_attention_forward(x, w_qkv, w_proj, b_proj, rel_bias,
                                   num_heads)
    jax.block_until_ready(out)

    ref = window_attention_ref(x, w_qkv, w_proj, b_proj, bias_table, rel_index,
                               num_heads)
    assert out.shape == (B, N, dim)
    max_err = float(jnp.max(jnp.abs(out - ref)))
    assert max_err < 1e-4, f"max abs err {max_err}"

    print("KERNEL_OK")
</pallas_src>

<mosaic_0001>
module attributes {stable_mosaic.version = 11 : i64} {
  func.func @_window_attention_kernel(%arg0: i32, %arg1: memref<128x32xf32, #tpu.memory_space<vmem>>, %arg2: memref<32x96xf32, #tpu.memory_space<vmem>>, %arg3: memref<32x32xf32, #tpu.memory_space<vmem>>, %arg4: memref<1x32xf32, #tpu.memory_space<vmem>>, %arg5: memref<4x16x16xf32, #tpu.memory_space<vmem>>, %arg6: memref<128x32xf32, #tpu.memory_space<vmem>>, %arg7: memref<128x32xf32, #tpu.memory_space<vmem>>) attributes {dimension_semantics = [#tpu.dimension_semantics<parallel>], iteration_bounds = array<i64: 1>, scalar_prefetch = 0 : i64, scratch_operands = 1 : i64, tpu.core_type = #tpu.core_type<tc>, window_params = [{transform_indices = @transform_0, window_bounds = array<i64: 128, 32>}, {pipeline_mode = #tpu.pipeline_mode<synchronous>, transform_indices = @transform_1, window_bounds = array<i64: 32, 96>}, {pipeline_mode = #tpu.pipeline_mode<synchronous>, transform_indices = @transform_2, window_bounds = array<i64: 32, 32>}, {pipeline_mode = #tpu.pipeline_mode<synchronous>, transform_indices = @transform_3, window_bounds = array<i64: 1, 32>}, {pipeline_mode = #tpu.pipeline_mode<synchronous>, transform_indices = @transform_4, window_bounds = array<i64: 4, 16, 16>}, {transform_indices = @transform_5, window_bounds = array<i64: 128, 32>}]} {
    %c0 = arith.constant 0 : index
    %c0_0 = arith.constant 0 : index
    %0 = vector.load %arg1[%c0, %c0_0] : memref<128x32xf32, #tpu.memory_space<vmem>>, vector<128x32xf32>
    %c0_1 = arith.constant 0 : index
    %c0_2 = arith.constant 0 : index
    %1 = vector.load %arg2[%c0_1, %c0_2] : memref<32x96xf32, #tpu.memory_space<vmem>>, vector<32x96xf32>
    %cst = arith.constant dense<0.000000e+00> : vector<128x96xf32>
    %2 = tpu.matmul %0, %1, %cst {dimension_numbers = #tpu.dot_dimension_numbers<[1], [0], [0], [1], [0, 0, 1, 1], [], []>} : vector<128x32xf32>, vector<32x96xf32>, vector<128x96xf32> -> vector<128x96xf32>
    %3 = vector.extract_strided_slice %2 {offsets = [0, 0], sizes = [128, 8], strides = [1, 1]} : vector<128x96xf32> to vector<128x8xf32>
    %4 = vector.extract_strided_slice %2 {offsets = [0, 32], sizes = [128, 8], strides = [1, 1]} : vector<128x96xf32> to vector<128x8xf32>
    %5 = vector.extract_strided_slice %2 {offsets = [0, 64], sizes = [128, 8], strides = [1, 1]} : vector<128x96xf32> to vector<128x8xf32>
    %6 = vector.shape_cast %3 : vector<128x8xf32> to vector<8x16x8xf32>
    %7 = vector.shape_cast %4 : vector<128x8xf32> to vector<8x16x8xf32>
    %8 = vector.shape_cast %5 : vector<128x8xf32> to vector<8x16x8xf32>
    "tpu.trace_start"() <{level = 10 : i32, message = "bnd,bmd->bnm"}> : () -> ()
    %cst_3 = arith.constant dense<0.000000e+00> : vector<8x16x16xf32>
    %9 = tpu.matmul %6, %7, %cst_3 {dimension_numbers = #tpu.dot_dimension_numbers<[2], [2], [1], [1], [0, 0, 0, 1, 1, 1], [0], [0]>} : vector<8x16x8xf32>, vector<8x16x8xf32>, vector<8x16x16xf32> -> vector<8x16x16xf32>
    "tpu.trace_stop"() : () -> ()
    %c0_4 = arith.constant 0 : index
    %c0_5 = arith.constant 0 : index
    %c0_6 = arith.constant 0 : index
    %10 = vector.load %arg5[%c0_4, %c0_5, %c0_6] : memref<4x16x16xf32, #tpu.memory_space<vmem>>, vector<1x16x16xf32>
    %11 = vector.shape_cast %10 : vector<1x16x16xf32> to vector<16x16xf32>
    %12 = vector.shape_cast %11 : vector<16x16xf32> to vector<1x16x16xf32>
    %13 = vector.broadcast %12 : vector<1x16x16xf32> to vector<8x16x16xf32>
    %14 = arith.addf %9, %13 : vector<8x16x16xf32>
    %cst_7 = arith.constant dense<0xFF800000> : vector<8x16xf32>
    %15 = vector.multi_reduction <maximumf>, %14, %cst_7 [2] : vector<8x16x16xf32> to vector<8x16xf32>
    %16 = vector.shape_cast %15 : vector<8x16xf32> to vector<8x16x1xf32>
    %17 = vector.broadcast %16 : vector<8x16x1xf32> to vector<8x16x16xf32>
    %18 = arith.subf %14, %17 : vector<8x16x16xf32>
    %19 = math.exp %18 : vector<8x16x16xf32>
    %cst_8 = arith.constant dense<0.000000e+00> : vector<8x16xf32>
    %20 = vector.multi_reduction <add>, %19, %cst_8 [2] : vector<8x16x16xf32> to vector<8x16xf32>
    %21 = vector.shape_cast %20 : vector<8x16xf32> to vector<8x16x1xf32>
    %22 = tpu.reciprocal %21 : vector<8x16x1xf32> -> vector<8x16x1xf32>
    %23 = vector.broadcast %22 : vector<8x16x1xf32> to vector<8x16x16xf32>
    %24 = arith.mulf %19, %23 : vector<8x16x16xf32>
    "tpu.trace_start"() <{level = 10 : i32, message = "bnm,bmd->bnd"}> : () -> ()
    %cst_9 = arith.constant dense<0.000000e+00> : vector<8x16x8xf32>
    %25 = tpu.matmul %24, %8, %cst_9 {dimension_numbers = #tpu.dot_dimension_numbers<[2], [1], [1], [2], [0, 0, 0, 1, 1, 2], [0], [0]>} : vector<8x16x16xf32>, vector<8x16x8xf32>, vector<8x16x8xf32> -> vector<8x16x8xf32>
    "tpu.trace_stop"() : () -> ()
    %26 = vector.shape_cast %25 : vector<8x16x8xf32> to vector<128x8xf32>
    %c0_10 = arith.constant 0 : index
    %c0_11 = arith.constant 0 : index
    %27 = vector.load %arg7[%c0_10, %c0_11] : memref<128x32xf32, #tpu.memory_space<vmem>>, vector<128x8xf32>
    tpu.vector_store %arg7[%c0_10, %c0_11], %26 {strides = array<i32>} : memref<128x32xf32, #tpu.memory_space<vmem>>, vector<128x8xf32>,
    %28 = vector.extract_strided_slice %2 {offsets = [0, 8], sizes = [128, 8], strides = [1, 1]} : vector<128x96xf32> to vector<128x8xf32>
    %29 = vector.extract_strided_slice %2 {offsets = [0, 40], sizes = [128, 8], strides = [1, 1]} : vector<128x96xf32> to vector<128x8xf32>
    %30 = vector.extract_strided_slice %2 {offsets = [0, 72], sizes = [128, 8], strides = [1, 1]} : vector<128x96xf32> to vector<128x8xf32>
    %31 = vector.shape_cast %28 : vector<128x8xf32> to vector<8x16x8xf32>
    %32 = vector.shape_cast %29 : vector<128x8xf32> to vector<8x16x8xf32>
    %33 = vector.shape_cast %30 : vector<128x8xf32> to vector<8x16x8xf32>
    "tpu.trace_start"() <{level = 10 : i32, message = "bnd,bmd->bnm"}> : () -> ()
    %cst_12 = arith.constant dense<0.000000e+00> : vector<8x16x16xf32>
    %34 = tpu.matmul %31, %32, %cst_12 {dimension_numbers = #tpu.dot_dimension_numbers<[2], [2], [1], [1], [0, 0, 0, 1, 1, 1], [0], [0]>} : vector<8x16x8xf32>, vector<8x16x8xf32>, vector<8x16x16xf32> -> vector<8x16x16xf32>
    "tpu.trace_stop"() : () -> ()
    %c1 = arith.constant 1 : index
    %c0_13 = arith.constant 0 : index
    %c0_14 = arith.constant 0 : index
    %35 = vector.load %arg5[%c1, %c0_13, %c0_14] : memref<4x16x16xf32, #tpu.memory_space<vmem>>, vector<1x16x16xf32>
    %36 = vector.shape_cast %35 : vector<1x16x16xf32> to vector<16x16xf32>
    %37 = vector.shape_cast %36 : vector<16x16xf32> to vector<1x16x16xf32>
    %38 = vector.broadcast %37 : vector<1x16x16xf32> to vector<8x16x16xf32>
    %39 = arith.addf %34, %38 : vector<8x16x16xf32>
    %cst_15 = arith.constant dense<0xFF800000> : vector<8x16xf32>
    %40 = vector.multi_reduction <maximumf>, %39, %cst_15 [2] : vector<8x16x16xf32> to vector<8x16xf32>
    %41 = vector.shape_cast %40 : vector<8x16xf32> to vector<8x16x1xf32>
    %42 = vector.broadcast %41 : vector<8x16x1xf32> to vector<8x16x16xf32>
    %43 = arith.subf %39, %42 : vector<8x16x16xf32>
    %44 = math.exp %43 : vector<8x16x16xf32>
    %cst_16 = arith.constant dense<0.000000e+00> : vector<8x16xf32>
    %45 = vector.multi_reduction <add>, %44, %cst_16 [2] : vector<8x16x16xf32> to vector<8x16xf32>
    %46 = vector.shape_cast %45 : vector<8x16xf32> to vector<8x16x1xf32>
    %47 = tpu.reciprocal %46 : vector<8x16x1xf32> -> vector<8x16x1xf32>
    %48 = vector.broadcast %47 : vector<8x16x1xf32> to vector<8x16x16xf32>
    %49 = arith.mulf %44, %48 : vector<8x16x16xf32>
    "tpu.trace_start"() <{level = 10 : i32, message = "bnm,bmd->bnd"}> : () -> ()
    %cst_17 = arith.constant dense<0.000000e+00> : vector<8x16x8xf32>
    %50 = tpu.matmul %49, %33, %cst_17 {dimension_numbers = #tpu.dot_dimension_numbers<[2], [1], [1], [2], [0, 0, 0, 1, 1, 2], [0], [0]>} : vector<8x16x16xf32>, vector<8x16x8xf32>, vector<8x16x8xf32> -> vector<8x16x8xf32>
    "tpu.trace_stop"() : () -> ()
    %51 = vector.shape_cast %50 : vector<8x16x8xf32> to vector<128x8xf32>
    %c0_18 = arith.constant 0 : index
    %c8 = arith.constant 8 : index
    %52 = vector.load %arg7[%c0_18, %c8] : memref<128x32xf32, #tpu.memory_space<vmem>>, vector<128x8xf32>
    tpu.vector_store %arg7[%c0_18, %c8], %51 {strides = array<i32>} : memref<128x32xf32, #tpu.memory_space<vmem>>, vector<128x8xf32>,
    %53 = vector.extract_strided_slice %2 {offsets = [0, 16], sizes = [128, 8], strides = [1, 1]} : vector<128x96xf32> to vector<128x8xf32>
    %54 = vector.extract_strided_slice %2 {offsets = [0, 48], sizes = [128, 8], strides = [1, 1]} : vector<128x96xf32> to vector<128x8xf32>
    %55 = vector.extract_strided_slice %2 {offsets = [0, 80], sizes = [128, 8], strides = [1, 1]} : vector<128x96xf32> to vector<128x8xf32>
    %56 = vector.shape_cast %53 : vector<128x8xf32> to vector<8x16x8xf32>
    %57 = vector.shape_cast %54 : vector<128x8xf32> to vector<8x16x8xf32>
    %58 = vector.shape_cast %55 : vector<128x8xf32> to vector<8x16x8xf32>
    "tpu.trace_start"() <{level = 10 : i32, message = "bnd,bmd->bnm"}> : () -> ()
    %cst_19 = arith.constant dense<0.000000e+00> : vector<8x16x16xf32>
    %59 = tpu.matmul %56, %57, %cst_19 {dimension_numbers = #tpu.dot_dimension_numbers<[2], [2], [1], [1], [0, 0, 0, 1, 1, 1], [0], [0]>} : vector<8x16x8xf32>, vector<8x16x8xf32>, vector<8x16x16xf32> -> vector<8x16x16xf32>
    "tpu.trace_stop"() : () -> ()
    %c2 = arith.constant 2 : index
    %c0_20 = arith.constant 0 : index
    %c0_21 = arith.constant 0 : index
    %60 = vector.load %arg5[%c2, %c0_20, %c0_21] : memref<4x16x16xf32, #tpu.memory_space<vmem>>, vector<1x16x16xf32>
    %61 = vector.shape_cast %60 : vector<1x16x16xf32> to vector<16x16xf32>
    %62 = vector.shape_cast %61 : vector<16x16xf32> to vector<1x16x16xf32>
    %63 = vector.broadcast %62 : vector<1x16x16xf32> to vector<8x16x16xf32>
    %64 = arith.addf %59, %63 : vector<8x16x16xf32>
    %cst_22 = arith.constant dense<0xFF800000> : vector<8x16xf32>
    %65 = vector.multi_reduction <maximumf>, %64, %cst_22 [2] : vector<8x16x16xf32> to vector<8x16xf32>
    %66 = vector.shape_cast %65 : vector<8x16xf32> to vector<8x16x1xf32>
    %67 = vector.broadcast %66 : vector<8x16x1xf32> to vector<8x16x16xf32>
    %68 = arith.subf %64, %67 : vector<8x16x16xf32>
    %69 = math.exp %68 : vector<8x16x16xf32>
    %cst_23 = arith.constant dense<0.000000e+00> : vector<8x16xf32>
    %70 = vector.multi_reduction <add>, %69, %cst_23 [2] : vector<8x16x16xf32> to vector<8x16xf32>
    %71 = vector.shape_cast %70 : vector<8x16xf32> to vector<8x16x1xf32>
    %72 = tpu.reciprocal %71 : vector<8x16x1xf32> -> vector<8x16x1xf32>
    %73 = vector.broadcast %72 : vector<8x16x1xf32> to vector<8x16x16xf32>
    %74 = arith.mulf %69, %73 : vector<8x16x16xf32>
    "tpu.trace_start"() <{level = 10 : i32, message = "bnm,bmd->bnd"}> : () -> ()
    %cst_24 = arith.constant dense<0.000000e+00> : vector<8x16x8xf32>
    %75 = tpu.matmul %74, %58, %cst_24 {dimension_numbers = #tpu.dot_dimension_numbers<[2], [1], [1], [2], [0, 0, 0, 1, 1, 2], [0], [0]>} : vector<8x16x16xf32>, vector<8x16x8xf32>, vector<8x16x8xf32> -> vector<8x16x8xf32>
    "tpu.trace_stop"() : () -> ()
    %76 = vector.shape_cast %75 : vector<8x16x8xf32> to vector<128x8xf32>
    %c0_25 = arith.constant 0 : index
    %c16 = arith.constant 16 : index
    %77 = vector.load %arg7[%c0_25, %c16] : memref<128x32xf32, #tpu.memory_space<vmem>>, vector<128x8xf32>
    tpu.vector_store %arg7[%c0_25, %c16], %76 {strides = array<i32>} : memref<128x32xf32, #tpu.memory_space<vmem>>, vector<128x8xf32>,
    %78 = vector.extract_strided_slice %2 {offsets = [0, 24], sizes = [128, 8], strides = [1, 1]} : vector<128x96xf32> to vector<128x8xf32>
    %79 = vector.extract_strided_slice %2 {offsets = [0, 56], sizes = [128, 8], strides = [1, 1]} : vector<128x96xf32> to vector<128x8xf32>
    %80 = vector.extract_strided_slice %2 {offsets = [0, 88], sizes = [128, 8], strides = [1, 1]} : vector<128x96xf32> to vector<128x8xf32>
    %81 = vector.shape_cast %78 : vector<128x8xf32> to vector<8x16x8xf32>
    %82 = vector.shape_cast %79 : vector<128x8xf32> to vector<8x16x8xf32>
    %83 = vector.shape_cast %80 : vector<128x8xf32> to vector<8x16x8xf32>
    "tpu.trace_start"() <{level = 10 : i32, message = "bnd,bmd->bnm"}> : () -> ()
    %cst_26 = arith.constant dense<0.000000e+00> : vector<8x16x16xf32>
    %84 = tpu.matmul %81, %82, %cst_26 {dimension_numbers = #tpu.dot_dimension_numbers<[2], [2], [1], [1], [0, 0, 0, 1, 1, 1], [0], [0]>} : vector<8x16x8xf32>, vector<8x16x8xf32>, vector<8x16x16xf32> -> vector<8x16x16xf32>
    "tpu.trace_stop"() : () -> ()
    %c3 = arith.constant 3 : index
    %c0_27 = arith.constant 0 : index
    %c0_28 = arith.constant 0 : index
    %85 = vector.load %arg5[%c3, %c0_27, %c0_28] : memref<4x16x16xf32, #tpu.memory_space<vmem>>, vector<1x16x16xf32>
    %86 = vector.shape_cast %85 : vector<1x16x16xf32> to vector<16x16xf32>
    %87 = vector.shape_cast %86 : vector<16x16xf32> to vector<1x16x16xf32>
    %88 = vector.broadcast %87 : vector<1x16x16xf32> to vector<8x16x16xf32>
    %89 = arith.addf %84, %88 : vector<8x16x16xf32>
    %cst_29 = arith.constant dense<0xFF800000> : vector<8x16xf32>
    %90 = vector.multi_reduction <maximumf>, %89, %cst_29 [2] : vector<8x16x16xf32> to vector<8x16xf32>
    %91 = vector.shape_cast %90 : vector<8x16xf32> to vector<8x16x1xf32>
    %92 = vector.broadcast %91 : vector<8x16x1xf32> to vector<8x16x16xf32>
    %93 = arith.subf %89, %92 : vector<8x16x16xf32>
    %94 = math.exp %93 : vector<8x16x16xf32>
    %cst_30 = arith.constant dense<0.000000e+00> : vector<8x16xf32>
    %95 = vector.multi_reduction <add>, %94, %cst_30 [2] : vector<8x16x16xf32> to vector<8x16xf32>
    %96 = vector.shape_cast %95 : vector<8x16xf32> to vector<8x16x1xf32>
    %97 = tpu.reciprocal %96 : vector<8x16x1xf32> -> vector<8x16x1xf32>
    %98 = vector.broadcast %97 : vector<8x16x1xf32> to vector<8x16x16xf32>
    %99 = arith.mulf %94, %98 : vector<8x16x16xf32>
    "tpu.trace_start"() <{level = 10 : i32, message = "bnm,bmd->bnd"}> : () -> ()
    %cst_31 = arith.constant dense<0.000000e+00> : vector<8x16x8xf32>
    %100 = tpu.matmul %99, %83, %cst_31 {dimension_numbers = #tpu.dot_dimension_numbers<[2], [1], [1], [2], [0, 0, 0, 1, 1, 2], [0], [0]>} : vector<8x16x16xf32>, vector<8x16x8xf32>, vector<8x16x8xf32> -> vector<8x16x8xf32>
    "tpu.trace_stop"() : () -> ()
    %101 = vector.shape_cast %100 : vector<8x16x8xf32> to vector<128x8xf32>
    %c0_32 = arith.constant 0 : index
    %c24 = arith.constant 24 : index
    %102 = vector.load %arg7[%c0_32, %c24] : memref<128x32xf32, #tpu.memory_space<vmem>>, vector<128x8xf32>
    tpu.vector_store %arg7[%c0_32, %c24], %101 {strides = array<i32>} : memref<128x32xf32, #tpu.memory_space<vmem>>, vector<128x8xf32>,
    %c0_33 = arith.constant 0 : index
    %c0_34 = arith.constant 0 : index
    %103 = vector.load %arg7[%c0_33, %c0_34] : memref<128x32xf32, #tpu.memory_space<vmem>>, vector<128x32xf32>
    %c0_35 = arith.constant 0 : index
    %c0_36 = arith.constant 0 : index
    %104 = vector.load %arg3[%c0_35, %c0_36] : memref<32x32xf32, #tpu.memory_space<vmem>>, vector<32x32xf32>
    %cst_37 = arith.constant dense<0.000000e+00> : vector<128x32xf32>
    %105 = tpu.matmul %103, %104, %cst_37 {dimension_numbers = #tpu.dot_dimension_numbers<[1], [0], [0], [1], [0, 0, 1, 1], [], []>} : vector<128x32xf32>, vector<32x32xf32>, vector<128x32xf32> -> vector<128x32xf32>
    %c0_38 = arith.constant 0 : index
    %c0_39 = arith.constant 0 : index
    %106 = vector.load %arg4[%c0_38, %c0_39] : memref<1x32xf32, #tpu.memory_space<vmem>>, vector<1x32xf32>
    %107 = vector.broadcast %106 : vector<1x32xf32> to vector<128x32xf32>
    %108 = arith.addf %105, %107 : vector<128x32xf32>
    %c0_40 = arith.constant 0 : index
    %c0_41 = arith.constant 0 : index
    %109 = vector.load %arg6[%c0_40, %c0_41] : memref<128x32xf32, #tpu.memory_space<vmem>>, vector<128x32xf32>
    tpu.vector_store %arg6[%c0_40, %c0_41], %108 {strides = array<i32>} : memref<128x32xf32, #tpu.memory_space<vmem>>, vector<128x32xf32>,
    return
  }
  func.func @transform_0(%arg0: i32) -> (i32, i32) {
    %c0_i32 = arith.constant 0 : i32
    %c0_i32_0 = arith.constant 0 : i32
    return %arg0, %c0_i32 : i32, i32
  }
  func.func @transform_1(%arg0: i32) -> (i32, i32) {
    %c0_i32 = arith.constant 0 : i32
    %c0_i32_0 = arith.constant 0 : i32
    %c0_i32_1 = arith.constant 0 : i32
    return %c0_i32, %c0_i32_0 : i32, i32
  }
  func.func @transform_2(%arg0: i32) -> (i32, i32) {
    %c0_i32 = arith.constant 0 : i32
    %c0_i32_0 = arith.constant 0 : i32
    %c0_i32_1 = arith.constant 0 : i32
    return %c0_i32, %c0_i32_0 : i32, i32
  }
  func.func @transform_3(%arg0: i32) -> (i32, i32) {
    %c0_i32 = arith.constant 0 : i32
    %c0_i32_0 = arith.constant 0 : i32
    %c0_i32_1 = arith.constant 0 : i32
    return %c0_i32, %c0_i32_0 : i32, i32
  }
  func.func @transform_4(%arg0: i32) -> (i32, i32, i32) {
    %c0_i32 = arith.constant 0 : i32
    %c0_i32_0 = arith.constant 0 : i32
    %c0_i32_1 = arith.constant 0 : i32
    %c0_i32_2 = arith.constant 0 : i32
    return %c0_i32, %c0_i32_0, %c0_i32_1 : i32, i32, i32
  }
  func.func @transform_5(%arg0: i32) -> (i32, i32) {
    %c0_i32 = arith.constant 0 : i32
    %c0_i32_0 = arith.constant 0 : i32
    return %arg0, %c0_i32 : i32, i32
  }
}

</mosaic_0001>

<llo_original>
// kernel: tpu_custom_call.1
$region0: #{tpu_custom_call.1}
  #allocation0 [shape = 'u32[]', space=smem, size = 0x4, offset = 0x4, fixed_abs, tag = 'smem constant byte address 0x4 - core index']
  #allocation1 [shape = 'u32[144,128]{1,0:T(1,128)}', space=vmem, size = 0x12000, scoped, tag = 'internal scratch']
  #allocation2 [shape = 'f32[128,32]{1,0:T(8,128)}', space=vmem, size = 0x10000, scoped, tag = 'scratch operand']
  %s0 = inlined_call_operand.vmem [shape: f32[128,32], index: 0, kind: input, shape index: {}]
  %s1 = inlined_call_operand.vmem [shape: f32[32,96], index: 1, kind: input, shape index: {}]
  %s2 = inlined_call_operand.vmem [shape: f32[32,32], index: 2, kind: input, shape index: {}]
  %s3 = inlined_call_operand.vmem [shape: f32[1,32], index: 3, kind: input, shape index: {}]
  %s4 = inlined_call_operand.vmem [shape: f32[4,16,16], index: 4, kind: input, shape index: {}]
  %s5 = inlined_call_operand.vmem [shape: f32[128,32], index: 5, kind: output, shape index: {}]
  %s6 = sld [smem:[#allocation0]]
  $region30: #{tpu_custom_call.1} parent=0
    _
  %s8 = ssub.s32 1, %s6
  %s9 = scalar_select 0, %s8, %s6
  // Predicated region
  $region2: #{tpu_custom_call.1} parent=0 // pred_check
    _
  $region3: #{tpu_custom_call.1} parent=0 // pred_check_branch
    %11 = sbr.rel (0) target = $region5
  $region4: #{tpu_custom_call.1} parent=0 // pred_region
    _
  $region5: #{tpu_custom_call.1} parent=0 // pred_fallthru
    _
  // Predicated region
  $region6: #{tpu_custom_call.1} parent=0 // pred_check
    _
  $region7: #{tpu_custom_call.1} parent=0 // pred_check_branch
    %13 = sbr.rel (0) target = $region9
  $region8: #{tpu_custom_call.1} parent=0 // pred_region
    _
  $region9: #{tpu_custom_call.1} parent=0 // pred_fallthru
    _
  // Predicated region
  $region10: #{tpu_custom_call.1} parent=0 // pred_check
    _
  $region11: #{tpu_custom_call.1} parent=0 // pred_check_branch
    %15 = sbr.rel (0) target = $region13
  $region12: #{tpu_custom_call.1} parent=0 // pred_region
    _
  $region13: #{tpu_custom_call.1} parent=0 // pred_fallthru
    _
  // Predicated region
  $region14: #{tpu_custom_call.1} parent=0 // pred_check
    _
  $region15: #{tpu_custom_call.1} parent=0 // pred_check_branch
    %17 = sbr.rel (0) target = $region17
  $region16: #{tpu_custom_call.1} parent=0 // pred_region
    _
  $region17: #{tpu_custom_call.1} parent=0 // pred_fallthru
    _
  // Predicated region
  $region18: #{tpu_custom_call.1} parent=0 // pred_check
    _
  $region19: #{tpu_custom_call.1} parent=0 // pred_check_branch
    %19 = sbr.rel (0) target = $region21
  $region20: #{tpu_custom_call.1} parent=0 // pred_region
    _
  $region21: #{tpu_custom_call.1} parent=0 // pred_fallthru
    _
  %v20 = vld [vmem:[%s0] sm:$0xff]
  %v21 = vld [vmem:[%s0 + $0x8] sm:$0xff]
  %v22 = vld [vmem:[%s0 + $0x10] sm:$0xff]
  %v23 = vld [vmem:[%s0 + $0x18] sm:$0xff]
  %v24 = vld [vmem:[%s0 + $0x20] sm:$0xff]
  %v25 = vld [vmem:[%s0 + $0x28] sm:$0xff]
  %v26 = vld [vmem:[%s0 + $0x30] sm:$0xff]
  %v27 = vld [vmem:[%s0 + $0x38] sm:$0xff]
  %v28 = vld [vmem:[%s0 + $0x40] sm:$0xff]
  %v29 = vld [vmem:[%s0 + $0x48] sm:$0xff]
  %v30 = vld [vmem:[%s0 + $0x50] sm:$0xff]
  %v31 = vld [vmem:[%s0 + $0x58] sm:$0xff]
  %v32 = vld [vmem:[%s0 + $0x60] sm:$0xff]
  %v33 = vld [vmem:[%s0 + $0x68] sm:$0xff]
  %v34 = vld [vmem:[%s0 + $0x70] sm:$0xff]
  %v35 = vld [vmem:[%s0 + $0x78] sm:$0xff]
  %v36 = vld [vmem:[%s1] sm:$0xff]
  %v37 = vld [vmem:[%s1 + $0x8] sm:$0xff]
  %v38 = vld [vmem:[%s1 + $0x10] sm:$0xff]
  %v39 = vld [vmem:[%s1 + $0x18] sm:$0xff]
  %vm40 = vcmask 261120
  %v42 = vsel %vm40, %v20, 0
  %v45 = vsel %vm40, %v21, 0
  %v48 = vsel %vm40, %v22, 0
  %v51 = vsel %vm40, %v23, 0
  %v54 = vsel %vm40, %v24, 0
  %v57 = vsel %vm40, %v25, 0
  %v60 = vsel %vm40, %v26, 0
  %v63 = vsel %vm40, %v27, 0
  %v66 = vsel %vm40, %v28, 0
  %v69 = vsel %vm40, %v29, 0
  %v72 = vsel %vm40, %v30, 0
  %v75 = vsel %vm40, %v31, 0
  %v78 = vsel %vm40, %v32, 0
  %v81 = vsel %vm40, %v33, 0
  %v84 = vsel %vm40, %v34, 0
  %v87 = vsel %vm40, %v35, 0
  %89 = vmatprep.subr.mxu0 0.0
  %90 = vmatpush1.msra.mxu0 0.0
  %91 = vmatprep.subr.mxu0 0.0
  %92 = vmatpush1.msra.mxu0 0.0
  %93 = vmatprep.subr.mxu0 0.0
  %94 = vmatpush1.msra.mxu0 0.0
  %95 = vmatprep.subr.mxu0 0.0
  %96 = vmatpush1.msra.mxu0 0.0
  %97 = vmatprep.subr.mxu0 0.0
  %98 = vmatpush1.msra.mxu0 0.0
  %99 = vmatprep.subr.mxu0 0.0
  %100 = vmatpush1.msra.mxu0 0.0
  %101 = vmatprep.subr.mxu0 0.0
  %102 = vmatpush1.msra.mxu0 0.0
  %103 = vmatprep.subr.mxu0 0.0
  %104 = vmatpush1.msra.mxu0 0.0
  %105 = vmatprep.subr.mxu0 0.0
  %106 = vmatpush1.msra.mxu0 0.0
  %107 = vmatprep.subr.mxu0 0.0
  %108 = vmatpush1.msra.mxu0 0.0
  %109 = vmatprep.subr.mxu0 0.0
  %110 = vmatpush1.msra.mxu0 0.0
  %111 = vmatprep.subr.mxu0 0.0
  %112 = vmatpush1.msra.mxu0 0.0
  %113 = vmatprep.subr.mxu0 0.0
  %114 = vmatpush1.msra.mxu0 %v39
  %115 = vmatprep.subr.mxu0 0.0
  %116 = vmatpush1.msra.mxu0 %v38
  %117 = vmatprep.subr.mxu0 0.0
  %118 = vmatpush1.msra.mxu0 %v37
  %119 = vmatprep.subr.mxu0 0.0
  %120 = vmatpush1.msra.mxu0 %v36
  %121 = vmatprep.subr.mxu0 0.0
  %122 = vmatpush2.msra.mxu0 0.0
  %123 = vmatprep.subr.mxu0 0.0
  %124 = vmatpush2.msra.mxu0 0.0
  %125 = vmatprep.subr.mxu0 0.0
  %126 = vmatpush2.msra.mxu0 0.0
  %127 = vmatprep.subr.mxu0 0.0
  %128 = vmatpush2.msra.mxu0 0.0
  %129 = vmatprep.subr.mxu0 0.0
  %130 = vmatpush2.msra.mxu0 0.0
  %131 = vmatprep.subr.mxu0 0.0
  %132 = vmatpush2.msra.mxu0 0.0
  %133 = vmatprep.subr.mxu0 0.0
  %134 = vmatpush2.msra.mxu0 0.0
  %135 = vmatprep.subr.mxu0 0.0
  %136 = vmatpush2.msra.mxu0 0.0
  %137 = vmatprep.subr.mxu0 0.0
  %138 = vmatpush2.msra.mxu0 0.0
  %139 = vmatprep.subr.mxu0 0.0
  %140 = vmatpush2.msra.mxu0 0.0
  %141 = vmatprep.subr.mxu0 0.0
  %142 = vmatpush2.msra.mxu0 0.0
  %143 = vmatprep.subr.mxu0 0.0
  %144 = vmatpush2.msra.mxu0 0.0
  %145 = vmatprep.subr.mxu0 0.0
  %146 = vmatpush2.msra.mxu0 0.0
  %147 = vmatprep.subr.mxu0 0.0
  %148 = vmatpush2.msra.mxu0 0.0
  %149 = vmatprep.subr.mxu0 0.0
  %150 = vmatpush2.msra.mxu0 0.0
  %151 = vmatprep.subr.mxu0 0.0
  %152 = vmatpush2.msra.mxu0 0.0
  %153 = vmatprep.mubr.f32.mxu0 0.0
  %154 = vmatmul.mubr.f32.gmra.mxu0 %v42
  %v155 = vpop.f32.mrf.mxu0
  %v156 = vadd.f32 0.0, %v155
  %v157 = vpop.f32.mrf.mxu0
  %158 = vmatprep.mubr.f32.mxu0 0.0
  %159 = vmatmul.mubr.f32.gmra.mxu0 %v45
  %v160 = vpop.f32.mrf.mxu0
  %v161 = vadd.f32 0.0, %v160
  %v162 = vpop.f32.mrf.mxu0
  %163 = vmatprep.mubr.f32.mxu0 0.0
  %164 = vmatmul.mubr.f32.gmra.mxu0 %v48
  %v165 = vpop.f32.mrf.mxu0
  %v166 = vadd.f32 0.0, %v165
  %v167 = vpop.f32.mrf.mxu0
  %168 = vmatprep.mubr.f32.mxu0 0.0
  %169 = vmatmul.mubr.f32.gmra.mxu0 %v51
  %v170 = vpop.f32.mrf.mxu0
  %v171 = vadd.f32 0.0, %v170
  %v172 = vpop.f32.mrf.mxu0
  %173 = vmatprep.mubr.f32.mxu0 0.0
  %174 = vmatmul.mubr.f32.gmra.mxu0 %v54
  %v175 = vpop.f32.mrf.mxu0
  %v176 = vadd.f32 0.0, %v175
  %v177 = vpop.f32.mrf.mxu0
  %178 = vmatprep.mubr.f32.mxu0 0.0
  %179 = vmatmul.mubr.f32.gmra.mxu0 %v57
  %v180 = vpop.f32.mrf.mxu0
  %v181 = vadd.f32 0.0, %v180
  %v182 = vpop.f32.mrf.mxu0
  %183 = vmatprep.mubr.f32.mxu0 0.0
  %184 = vmatmul.mubr.f32.gmra.mxu0 %v60
  %v185 = vpop.f32.mrf.mxu0
  %v186 = vadd.f32 0.0, %v185
  %v187 = vpop.f32.mrf.mxu0
  %188 = vmatprep.mubr.f32.mxu0 0.0
  %189 = vmatmul.mubr.f32.gmra.mxu0 %v63
  %v190 = vpop.f32.mrf.mxu0
  %v191 = vadd.f32 0.0, %v190
  %v192 = vpop.f32.mrf.mxu0
  %193 = vmatprep.mubr.f32.mxu0 0.0
  %194 = vmatmul.mubr.f32.gmra.mxu0 %v66
  %v195 = vpop.f32.mrf.mxu0
  %v196 = vadd.f32 0.0, %v195
  %v197 = vpop.f32.mrf.mxu0
  %198 = vmatprep.mubr.f32.mxu0 0.0
  %199 = vmatmul.mubr.f32.gmra.mxu0 %v69
  %v200 = vpop.f32.mrf.mxu0
  %v201 = vadd.f32 0.0, %v200
  %v202 = vpop.f32.mrf.mxu0
  %203 = vmatprep.mubr.f32.mxu0 0.0
  %204 = vmatmul.mubr.f32.gmra.mxu0 %v72
  %v205 = vpop.f32.mrf.mxu0
  %v206 = vadd.f32 0.0, %v205
  %v207 = vpop.f32.mrf.mxu0
  %208 = vmatprep.mubr.f32.mxu0 0.0
  %209 = vmatmul.mubr.f32.gmra.mxu0 %v75
  %v210 = vpop.f32.mrf.mxu0
  %v211 = vadd.f32 0.0, %v210
  %v212 = vpop.f32.mrf.mxu0
  %213 = vmatprep.mubr.f32.mxu0 0.0
  %214 = vmatmul.mubr.f32.gmra.mxu0 %v78
  %v215 = vpop.f32.mrf.mxu0
  %v216 = vadd.f32 0.0, %v215
  %v217 = vpop.f32.mrf.mxu0
  %218 = vmatprep.mubr.f32.mxu0 0.0
  %219 = vmatmul.mubr.f32.gmra.mxu0 %v81
  %v220 = vpop.f32.mrf.mxu0
  %v221 = vadd.f32 0.0, %v220
  %v222 = vpop.f32.mrf.mxu0
  %223 = vmatprep.mubr.f32.mxu0 0.0
  %224 = vmatmul.mubr.f32.gmra.mxu0 %v84
  %v225 = vpop.f32.mrf.mxu0
  %v226 = vadd.f32 0.0, %v225
  %v227 = vpop.f32.mrf.mxu0
  %228 = vmatprep.mubr.f32.mxu0 0.0
  %229 = vmatmul.mubr.f32.gmra.mxu0 %v87
  %v230 = vpop.f32.mrf.mxu0
  %v231 = vadd.f32 0.0, %v230
  %v232 = vpop.f32.mrf.mxu0
  %233 = vdwg.mxu0
  %v234 = vld [vmem:[%s4] sm:$0xff]
  %v235 = vld [vmem:[%s4 + $0x8] sm:$0xff]
  %238 = vrot.lane.b32.xlu0 %v156, 96
  %v239 = vpop.permute.xlu0 %238
  %240 = vrot.lane.b32.xlu0 %v161, 96
  %v241 = vpop.permute.xlu0 %240
  %vm242 = vcmask 64512
  %v243 = vsel %vm242, %v156, 0
  %v245 = vsel %vm242, %v161, 0
  %v247 = vsel %vm242, %v239, 0
  %v249 = vsel %vm242, %v241, 0
  %251 = vmatprep.subr.mxu0 0.0
  %252 = vmatpush1.xpose.msra.mxu0 0.0
  %253 = vmatprep.subr.mxu0 0.0
  %254 = vmatpush1.xpose.msra.mxu0 0.0
  %255 = vmatprep.subr.mxu0 0.0
  %256 = vmatpush1.xpose.msra.mxu0 0.0
  %257 = vmatprep.subr.mxu0 0.0
  %258 = vmatpush1.xpose.msra.mxu0 0.0
  %259 = vmatprep.subr.mxu0 0.0
  %260 = vmatpush1.xpose.msra.mxu0 0.0
  %261 = vmatprep.subr.mxu0 0.0
  %262 = vmatpush1.xpose.msra.mxu0 0.0
  %263 = vmatprep.subr.mxu0 0.0
  %264 = vmatpush1.xpose.msra.mxu0 0.0
  %265 = vmatprep.subr.mxu0 0.0
  %266 = vmatpush1.xpose.msra.mxu0 0.0
  %267 = vmatprep.subr.mxu0 0.0
  %268 = vmatpush1.xpose.msra.mxu0 0.0
  %269 = vmatprep.subr.mxu0 0.0
  %270 = vmatpush1.xpose.msra.mxu0 0.0
  %271 = vmatprep.subr.mxu0 0.0
  %272 = vmatpush1.xpose.msra.mxu0 0.0
  %273 = vmatprep.subr.mxu0 0.0
  %274 = vmatpush1.xpose.msra.mxu0 0.0
  %275 = vmatprep.subr.mxu0 0.0
  %276 = vmatpush1.xpose.msra.mxu0 0.0
  %277 = vmatprep.subr.mxu0 0.0
  %278 = vmatpush1.xpose.msra.mxu0 0.0
  %279 = vmatprep.subr.mxu0 0.0
  %280 = vmatpush1.xpose.msra.mxu0 %v249
  %281 = vmatprep.subr.mxu0 0.0
  %282 = vmatpush1.xpose.msra.mxu0 %v247
  %283 = vmatprep.subr.mxu0 0.0
  %284 = vmatpush2.xpose.msra.mxu0 0.0
  %285 = vmatprep.subr.mxu0 0.0
  %286 = vmatpush2.xpose.msra.mxu0 0.0
  %287 = vmatprep.subr.mxu0 0.0
  %288 = vmatpush2.xpose.msra.mxu0 0.0
  %289 = vmatprep.subr.mxu0 0.0
  %290 = vmatpush2.xpose.msra.mxu0 0.0
  %291 = vmatprep.subr.mxu0 0.0
  %292 = vmatpush2.xpose.msra.mxu0 0.0
  %293 = vmatprep.subr.mxu0 0.0
  %294 = vmatpush2.xpose.msra.mxu0 0.0
  %295 = vmatprep.subr.mxu0 0.0
  %296 = vmatpush2.xpose.msra.mxu0 0.0
  %297 = vmatprep.subr.mxu0 0.0
  %298 = vmatpush2.xpose.msra.mxu0 0.0
  %299 = vmatprep.subr.mxu0 0.0
  %300 = vmatpush2.xpose.msra.mxu0 0.0
  %301 = vmatprep.subr.mxu0 0.0
  %302 = vmatpush2.xpose.msra.mxu0 0.0
  %303 = vmatprep.subr.mxu0 0.0
  %304 = vmatpush2.xpose.msra.mxu0 0.0
  %305 = vmatprep.subr.mxu0 0.0
  %306 = vmatpush2.xpose.msra.mxu0 0.0
  %307 = vmatprep.subr.mxu0 0.0
  %308 = vmatpush2.xpose.msra.mxu0 0.0
  %309 = vmatprep.subr.mxu0 0.0
  %310 = vmatpush2.xpose.msra.mxu0 0.0
  %311 = vmatprep.subr.mxu0 0.0
  %312 = vmatpush2.xpose.msra.mxu0 0.0
  %313 = vmatprep.subr.mxu0 0.0
  %314 = vmatpush2.xpose.msra.mxu0 0.0
  %315 = vmatprep.mubr.f32.mxu0 0.0
  %316 = vmatmul.mubr.f32.gmra.mxu0 %v243
  %v317 = vpop.f32.mrf.mxu0
  %v318 = vadd.f32 %v234, %v317
  %v319 = vpop.f32.mrf.mxu0
  %320 = vmatprep.mubr.f32.mxu0 0.0
  %321 = vmatmul.mubr.f32.gmra.mxu0 %v245
  %v322 = vpop.f32.mrf.mxu0
  %v323 = vadd.f32 %v235, %v322
  %v324 = vpop.f32.mrf.mxu0
  %325 = vdwg.mxu0
  %328 = vrot.lane.b32.xlu0 %v166, 96
  %v329 = vpop.permute.xlu0 %328
  %330 = vrot.lane.b32.xlu0 %v171, 96
  %v331 = vpop.permute.xlu0 %330
  %v332 = vsel %vm242, %v166, 0
  %v334 = vsel %vm242, %v171, 0
  %v336 = vsel %vm242, %v329, 0
  %v338 = vsel %vm242, %v331, 0
  %340 = vmatprep.subr.mxu0 0.0
  %341 = vmatpush1.xpose.msra.mxu0 0.0
  %342 = vmatprep.subr.mxu0 0.0
  %343 = vmatpush1.xpose.msra.mxu0 0.0
  %344 = vmatprep.subr.mxu0 0.0
  %345 = vmatpush1.xpose.msra.mxu0 0.0
  %346 = vmatprep.subr.mxu0 0.0
  %347 = vmatpush1.xpose.msra.mxu0 0.0
  %348 = vmatprep.subr.mxu0 0.0
  %349 = vmatpush1.xpose.msra.mxu0 0.0
  %350 = vmatprep.subr.mxu0 0.0
  %351 = vmatpush1.xpose.msra.mxu0 0.0
  %352 = vmatprep.subr.mxu0 0.0
  %353 = vmatpush1.xpose.msra.mxu0 0.0
  %354 = vmatprep.subr.mxu0 0.0
  %355 = vmatpush1.xpose.msra.mxu0 0.0
  %356 = vmatprep.subr.mxu0 0.0
  %357 = vmatpush1.xpose.msra.mxu0 0.0
  %358 = vmatprep.subr.mxu0 0.0
  %359 = vmatpush1.xpose.msra.mxu0 0.0
  %360 = vmatprep.subr.mxu0 0.0
  %361 = vmatpush1.xpose.msra.mxu0 0.0
  %362 = vmatprep.subr.mxu0 0.0
  %363 = vmatpush1.xpose.msra.mxu0 0.0
  %364 = vmatprep.subr.mxu0 0.0
  %365 = vmatpush1.xpose.msra.mxu0 0.0
  %366 = vmatprep.subr.mxu0 0.0
  %367 = vmatpush1.xpose.msra.mxu0 0.0
  %368 = vmatprep.subr.mxu0 0.0
  %369 = vmatpush1.xpose.msra.mxu0 %v338
  %370 = vmatprep.subr.mxu0 0.0
  %371 = vmatpush1.xpose.msra.mxu0 %v336
  %372 = vmatprep.subr.mxu0 0.0
  %373 = vmatpush2.xpose.msra.mxu0 0.0
  %374 = vmatprep.subr.mxu0 0.0
  %375 = vmatpush2.xpose.msra.mxu0 0.0
  %376 = vmatprep.subr.mxu0 0.0
  %377 = vmatpush2.xpose.msra.mxu0 0.0
  %378 = vmatprep.subr.mxu0 0.0
  %379 = vmatpush2.xpose.msra.mxu0 0.0
  %380 = vmatprep.subr.mxu0 0.0
  %381 = vmatpush2.xpose.msra.mxu0 0.0
  %382 = vmatprep.subr.mxu0 0.0
  %383 = vmatpush2.xpose.msra.mxu0 0.0
  %384 = vmatprep.subr.mxu0 0.0
  %385 = vmatpush2.xpose.msra.mxu0 0.0
  %386 = vmatprep.subr.mxu0 0.0
  %387 = vmatpush2.xpose.msra.mxu0 0.0
  %388 = vmatprep.subr.mxu0 0.0
  %389 = vmatpush2.xpose.msra.mxu0 0.0
  %390 = vmatprep.subr.mxu0 0.0
  %391 = vmatpush2.xpose.msra.mxu0 0.0
  %392 = vmatprep.subr.mxu0 0.0
  %393 = vmatpush2.xpose.msra.mxu0 0.0
  %394 = vmatprep.subr.mxu0 0.0
  %395 = vmatpush2.xpose.msra.mxu0 0.0
  %396 = vmatprep.subr.mxu0 0.0
  %397 = vmatpush2.xpose.msra.mxu0 0.0
  %398 = vmatprep.subr.mxu0 0.0
  %399 = vmatpush2.xpose.msra.mxu0 0.0
  %400 = vmatprep.subr.mxu0 0.0
  %401 = vmatpush2.xpose.msra.mxu0 0.0
  %402 = vmatprep.subr.mxu0 0.0
  %403 = vmatpush2.xpose.msra.mxu0 0.0
  %404 = vmatprep.mubr.f32.mxu0 0.0
  %405 = vmatmul.mubr.f32.gmra.mxu0 %v332
  %v406 = vpop.f32.mrf.mxu0
  %v407 = vadd.f32 %v234, %v406
  %v408 = vpop.f32.mrf.mxu0
  %409 = vmatprep.mubr.f32.mxu0 0.0
  %410 = vmatmul.mubr.f32.gmra.mxu0 %v334
  %v411 = vpop.f32.mrf.mxu0
  %v412 = vadd.f32 %v235, %v411
  %v413 = vpop.f32.mrf.mxu0
  %414 = vdwg.mxu0
  %417 = vrot.lane.b32.xlu0 %v176, 96
  %v418 = vpop.permute.xlu0 %417
  %419 = vrot.lane.b32.xlu0 %v181, 96
  %v420 = vpop.permute.xlu0 %419
  %v421 = vsel %vm242, %v176, 0
  %v423 = vsel %vm242, %v181, 0
  %v425 = vsel %vm242, %v418, 0
  %v427 = vsel %vm242, %v420, 0
  %429 = vmatprep.subr.mxu0 0.0
  %430 = vmatpush1.xpose.msra.mxu0 0.0
  %431 = vmatprep.subr.mxu0 0.0
  %432 = vmatpush1.xpose.msra.mxu0 0.0
  %433 = vmatprep.subr.mxu0 0.0
  %434 = vmatpush1.xpose.msra.mxu0 0.0
  %435 = vmatprep.subr.mxu0 0.0
  %436 = vmatpush1.xpose.msra.mxu0 0.0
  %437 = vmatprep.subr.mxu0 0.0
  %438 = vmatpush1.xpose.msra.mxu0 0.0
  %439 = vmatprep.subr.mxu0 0.0
  %440 = vmatpush1.xpose.msra.mxu0 0.0
  %441 = vmatprep.subr.mxu0 0.0
  %442 = vmatpush1.xpose.msra.mxu0 0.0
  %443 = vmatprep.subr.mxu0 0.0
  %444 = vmatpush1.xpose.msra.mxu0 0.0
  %445 = vmatprep.subr.mxu0 0.0
  %446 = vmatpush1.xpose.msra.mxu0 0.0
  %447 = vmatprep.subr.mxu0 0.0
  %448 = vmatpush1.xpose.msra.mxu0 0.0
  %449 = vmatprep.subr.mxu0 0.0
  %450 = vmatpush1.xpose.msra.mxu0 0.0
  %451 = vmatprep.subr.mxu0 0.0
  %452 = vmatpush1.xpose.msra.mxu0 0.0
  %453 = vmatprep.subr.mxu0 0.0
  %454 = vmatpush1.xpose.msra.mxu0 0.0
  %455 = vmatprep.subr.mxu0 0.0
  %456 = vmatpush1.xpose.msra.mxu0 0.0
  %457 = vmatprep.subr.mxu0 0.0
  %458 = vmatpush1.xpose.msra.mxu0 %v427
  %459 = vmatprep.subr.mxu0 0.0
  %460 = vmatpush1.xpose.msra.mxu0 %v425
  %461 = vmatprep.subr.mxu0 0.0
  %462 = vmatpush2.xpose.msra.mxu0 0.0
  %463 = vmatprep.subr.mxu0 0.0
  %464 = vmatpush2.xpose.msra.mxu0 0.0
  %465 = vmatprep.subr.mxu0 0.0
  %466 = vmatpush2.xpose.msra.mxu0 0.0
  %467 = vmatprep.subr.mxu0 0.0
  %468 = vmatpush2.xpose.msra.mxu0 0.0
  %469 = vmatprep.subr.mxu0 0.0
  %470 = vmatpush2.xpose.msra.mxu0 0.0
  %471 = vmatprep.subr.mxu0 0.0
  %472 = vmatpush2.xpose.msra.mxu0 0.0
  %473 = vmatprep.subr.mxu0 0.0
  %474 = vmatpush2.xpose.msra.mxu0 0.0
  %475 = vmatprep.subr.mxu0 0.0
  %476 = vmatpush2.xpose.msra.mxu0 0.0
  %477 = vmatprep.subr.mxu0 0.0
  %478 = vmatpush2.xpose.msra.mxu0 0.0
  %479 = vmatprep.subr.mxu0 0.0
  %480 = vmatpush2.xpose.msra.mxu0 0.0
  %481 = vmatprep.subr.mxu0 0.0
  %482 = vmatpush2.xpose.msra.mxu0 0.0
  %483 = vmatprep.subr.mxu0 0.0
  %484 = vmatpush2.xpose.msra.mxu0 0.0
  %485 = vmatprep.subr.mxu0 0.0
  %486 = vmatpush2.xpose.msra.mxu0 0.0
  %487 = vmatprep.subr.mxu0 0.0
  %488 = vmatpush2.xpose.msra.mxu0 0.0
  %489 = vmatprep.subr.mxu0 0.0
  %490 = vmatpush2.xpose.msra.mxu0 0.0
  %491 = vmatprep.subr.mxu0 0.0
  %492 = vmatpush2.xpose.msra.mxu0 0.0
  %493 = vmatprep.mubr.f32.mxu0 0.0
  %494 = vmatmul.mubr.f32.gmra.mxu0 %v421
  %v495 = vpop.f32.mrf.mxu0
  %v496 = vadd.f32 %v234, %v495
  %v497 = vpop.f32.mrf.mxu0
  %498 = vmatprep.mubr.f32.mxu0 0.0
  %499 = vmatmul.mubr.f32.gmra.mxu0 %v423
  %v500 = vpop.f32.mrf.mxu0
  %v501 = vadd.f32 %v235, %v500
  %v502 = vpop.f32.mrf.mxu0
  %503 = vdwg.mxu0
  %506 = vrot.lane.b32.xlu0 %v186, 96
  %v507 = vpop.permute.xlu0 %506
  %508 = vrot.lane.b32.xlu0 %v191, 96
  %v509 = vpop.permute.xlu0 %508
  %v510 = vsel %vm242, %v186, 0
  %v512 = vsel %vm242, %v191, 0
  %v514 = vsel %vm242, %v507, 0
  %v516 = vsel %vm242, %v509, 0
  %518 = vmatprep.subr.mxu0 0.0
  %519 = vmatpush1.xpose.msra.mxu0 0.0
  %520 = vmatprep.subr.mxu0 0.0
  %521 = vmatpush1.xpose.msra.mxu0 0.0
  %522 = vmatprep.subr.mxu0 0.0
  %523 = vmatpush1.xpose.msra.mxu0 0.0
  %524 = vmatprep.subr.mxu0 0.0
  %525 = vmatpush1.xpose.msra.mxu0 0.0
  %526 = vmatprep.subr.mxu0 0.0
  %527 = vmatpush1.xpose.msra.mxu0 0.0
  %528 = vmatprep.subr.mxu0 0.0
  %529 = vmatpush1.xpose.msra.mxu0 0.0
  %530 = vmatprep.subr.mxu0 0.0
  %531 = vmatpush1.xpose.msra.mxu0 0.0
  %532 = vmatprep.subr.mxu0 0.0
  %533 = vmatpush1.xpose.msra.mxu0 0.0
  %534 = vmatprep.subr.mxu0 0.0
  %535 = vmatpush1.xpose.msra.mxu0 0.0
  %536 = vmatprep.subr.mxu0 0.0
  %537 = vmatpush1.xpose.msra.mxu0 0.0
  %538 = vmatprep.subr.mxu0 0.0
  %539 = vmatpush1.xpose.msra.mxu0 0.0
  %540 = vmatprep.subr.mxu0 0.0
  %541 = vmatpush1.xpose.msra.mxu0 0.0
  %542 = vmatprep.subr.mxu0 0.0
  %543 = vmatpush1.xpose.msra.mxu0 0.0
  %544 = vmatprep.subr.mxu0 0.0
  %545 = vmatpush1.xpose.msra.mxu0 0.0
  %546 = vmatprep.subr.mxu0 0.0
  %547 = vmatpush1.xpose.msra.mxu0 %v516
  %548 = vmatprep.subr.mxu0 0.0
  %549 = vmatpush1.xpose.msra.mxu0 %v514
  %550 = vmatprep.subr.mxu0 0.0
  %551 = vmatpush2.xpose.msra.mxu0 0.0
  %552 = vmatprep.subr.mxu0 0.0
  %553 = vmatpush2.xpose.msra.mxu0 0.0
  %554 = vmatprep.subr.mxu0 0.0
  %555 = vmatpush2.xpose.msra.mxu0 0.0
  %556 = vmatprep.subr.mxu0 0.0
  %557 = vmatpush2.xpose.msra.mxu0 0.0
  %558 = vmatprep.subr.mxu0 0.0
  %559 = vmatpush2.xpose.msra.mxu0 0.0
  %560 = vmatprep.subr.mxu0 0.0
  %561 = vmatpush2.xpose.msra.mxu0 0.0
  %562 = vmatprep.subr.mxu0 0.0
  %563 = vmatpush2.xpose.msra.mxu0 0.0
  %564 = vmatprep.subr.mxu0 0.0
  %565 = vmatpush2.xpose.msra.mxu0 0.0
  %566 = vmatprep.subr.mxu0 0.0
  %567 = vmatpush2.xpose.msra.mxu0 0.0
  %568 = vmatprep.subr.mxu0 0.0
  %569 = vmatpush2.xpose.msra.mxu0 0.0
  %570 = vmatprep.subr.mxu0 0.0
  %571 = vmatpush2.xpose.msra.mxu0 0.0
  %572 = vmatprep.subr.mxu0 0.0
  %573 = vmatpush2.xpose.msra.mxu0 0.0
  %574 = vmatprep.subr.mxu0 0.0
  %575 = vmatpush2.xpose.msra.mxu0 0.0
  %576 = vmatprep.subr.mxu0 0.0
  %577 = vmatpush2.xpose.msra.mxu0 0.0
  %578 = vmatprep.subr.mxu0 0.0
  %579 = vmatpush2.xpose.msra.mxu0 0.0
  %580 = vmatprep.subr.mxu0 0.0
  %581 = vmatpush2.xpose.msra.mxu0 0.0
  %582 = vmatprep.mubr.f32.mxu0 0.0
  %583 = vmatmul.mubr.f32.gmra.mxu0 %v510
  %v584 = vpop.f32.mrf.mxu0
  %v585 = vadd.f32 %v234, %v584
  %v586 = vpop.f32.mrf.mxu0
  %587 = vmatprep.mubr.f32.mxu0 0.0
  %588 = vmatmul.mubr.f32.gmra.mxu0 %v512
  %v589 = vpop.f32.mrf.mxu0
  %v590 = vadd.f32 %v235, %v589
  %v591 = vpop.f32.mrf.mxu0
  %592 = vdwg.mxu0
  %595 = vrot.lane.b32.xlu0 %v196, 96
  %v596 = vpop.permute.xlu0 %595
  %597 = vrot.lane.b32.xlu0 %v201, 96
  %v598 = vpop.permute.xlu0 %597
  %v599 = vsel %vm242, %v196, 0
  %v601 = vsel %vm242, %v201, 0
  %v603 = vsel %vm242, %v596, 0
  %v605 = vsel %vm242, %v598, 0
  %607 = vmatprep.subr.mxu0 0.0
  %608 = vmatpush1.xpose.msra.mxu0 0.0
  %609 = vmatprep.subr.mxu0 0.0
  %610 = vmatpush1.xpose.msra.mxu0 0.0
  %611 = vmatprep.subr.mxu0 0.0
  %612 = vmatpush1.xpose.msra.mxu0 0.0
  %613 = vmatprep.subr.mxu0 0.0
  %614 = vmatpush1.xpose.msra.mxu0 0.0
  %615 = vmatprep.subr.mxu0 0.0
  %616 = vmatpush1.xpose.msra.mxu0 0.0
  %617 = vmatprep.subr.mxu0 0.0
  %618 = vmatpush1.xpose.msra.mxu0 0.0
  %619 = vmatprep.subr.mxu0 0.0
  %620 = vmatpush1.xpose.msra.mxu0 0.0
  %621 = vmatprep.subr.mxu0 0.0
  %622 = vmatpush1.xpose.msra.mxu0 0.0
  %623 = vmatprep.subr.mxu0 0.0
  %624 = vmatpush1.xpose.msra.mxu0 0.0
  %625 = vmatprep.subr.mxu0 0.0
  %626 = vmatpush1.xpose.msra.mxu0 0.0
  %627 = vmatprep.subr.mxu0 0.0
  %628 = vmatpush1.xpose.msra.mxu0 0.0
  %629 = vmatprep.subr.mxu0 0.0
  %630 = vmatpush1.xpose.msra.mxu0 0.0
  %631 = vmatprep.subr.mxu0 0.0
  %632 = vmatpush1.xpose.msra.mxu0 0.0
  %633 = vmatprep.subr.mxu0 0.0
  %634 = vmatpush1.xpose.msra.mxu0 0.0
  %635 = vmatprep.subr.mxu0 0.0
  %636 = vmatpush1.xpose.msra.mxu0 %v605
  %637 = vmatprep.subr.mxu0 0.0
  %638 = vmatpush1.xpose.msra.mxu0 %v603
  %639 = vmatprep.subr.mxu0 0.0
  %640 = vmatpush2.xpose.msra.mxu0 0.0
  %641 = vmatprep.subr.mxu0 0.0
  %642 = vmatpush2.xpose.msra.mxu0 0.0
  %643 = vmatprep.subr.mxu0 0.0
  %644 = vmatpush2.xpose.msra.mxu0 0.0
  %645 = vmatprep.subr.mxu0 0.0
  %646 = vmatpush2.xpose.msra.mxu0 0.0
  %647 = vmatprep.subr.mxu0 0.0
  %648 = vmatpush2.xpose.msra.mxu0 0.0
  %649 = vmatprep.subr.mxu0 0.0
  %650 = vmatpush2.xpose.msra.mxu0 0.0
  %651 = vmatprep.subr.mxu0 0.0
  %652 = vmatpush2.xpose.msra.mxu0 0.0
  %653 = vmatprep.subr.mxu0 0.0
  %654 = vmatpush2.xpose.msra.mxu0 0.0
  %655 = vmatprep.subr.mxu0 0.0
  %656 = vmatpush2.xpose.msra.mxu0 0.0
  %657 = vmatprep.subr.mxu0 0.0
  %658 = vmatpush2.xpose.msra.mxu0 0.0
  %659 = vmatprep.subr.mxu0 0.0
  %660 = vmatpush2.xpose.msra.mxu0 0.0
  %661 = vmatprep.subr.mxu0 0.0
  %662 = vmatpush2.xpose.msra.mxu0 0.0
  %663 = vmatprep.subr.mxu0 0.0
  %664 = vmatpush2.xpose.msra.mxu0 0.0
  %665 = vmatprep.subr.mxu0 0.0
  %666 = vmatpush2.xpose.msra.mxu0 0.0
  %667 = vmatprep.subr.mxu0 0.0
  %668 = vmatpush2.xpose.msra.mxu0 0.0
  %669 = vmatprep.subr.mxu0 0.0
  %670 = vmatpush2.xpose.msra.mxu0 0.0
  %671 = vmatprep.mubr.f32.mxu0 0.0
  %672 = vmatmul.mubr.f32.gmra.mxu0 %v599
  %v673 = vpop.f32.mrf.mxu0
  %v674 = vadd.f32 %v234, %v673
  %v675 = vpop.f32.mrf.mxu0
  %676 = vmatprep.mubr.f32.mxu0 0.0
  %677 = vmatmul.mubr.f32.gmra.mxu0 %v601
  %v678 = vpop.f32.mrf.mxu0
  %v679 = vadd.f32 %v235, %v678
  %v680 = vpop.f32.mrf.mxu0
  %681 = vdwg.mxu0
  %684 = vrot.lane.b32.xlu0 %v206, 96
  %v685 = vpop.permute.xlu0 %684
  %686 = vrot.lane.b32.xlu0 %v211, 96
  %v687 = vpop.permute.xlu0 %686
  %v688 = vsel %vm242, %v206, 0
  %v690 = vsel %vm242, %v211, 0
  %v692 = vsel %vm242, %v685, 0
  %v694 = vsel %vm242, %v687, 0
  %696 = vmatprep.subr.mxu0 0.0
  %697 = vmatpush1.xpose.msra.mxu0 0.0
  %698 = vmatprep.subr.mxu0 0.0
  %699 = vmatpush1.xpose.msra.mxu0 0.0
  %700 = vmatprep.subr.mxu0 0.0
  %701 = vmatpush1.xpose.msra.mxu0 0.0
  %702 = vmatprep.subr.mxu0 0.0
  %703 = vmatpush1.xpose.msra.mxu0 0.0
  %704 = vmatprep.subr.mxu0 0.0
  %705 = vmatpush1.xpose.msra.mxu0 0.0
  %706 = vmatprep.subr.mxu0 0.0
  %707 = vmatpush1.xpose.msra.mxu0 0.0
  %708 = vmatprep.subr.mxu0 0.0
  %709 = vmatpush1.xpose.msra.mxu0 0.0
  %710 = vmatprep.subr.mxu0 0.0
  %711 = vmatpush1.xpose.msra.mxu0 0.0
  %712 = vmatprep.subr.mxu0 0.0
  %713 = vmatpush1.xpose.msra.mxu0 0.0
  %714 = vmatprep.subr.mxu0 0.0
  %715 = vmatpush1.xpose.msra.mxu0 0.0
  %716 = vmatprep.subr.mxu0 0.0
  %717 = vmatpush1.xpose.msra.mxu0 0.0
  %718 = vmatprep.subr.mxu0 0.0
  %719 = vmatpush1.xpose.msra.mxu0 0.0
  %720 = vmatprep.subr.mxu0 0.0
  %721 = vmatpush1.xpose.msra.mxu0 0.0
  %722 = vmatprep.subr.mxu0 0.0
  %723 = vmatpush1.xpose.msra.mxu0 0.0
  %724 = vmatprep.subr.mxu0 0.0
  %725 = vmatpush1.xpose.msra.mxu0 %v694
  %726 = vmatprep.subr.mxu0 0.0
  %727 = vmatpush1.xpose.msra.mxu0 %v692
  %728 = vmatprep.subr.mxu0 0.0
  %729 = vmatpush2.xpose.msra.mxu0 0.0
  %730 = vmatprep.subr.mxu0 0.0
  %731 = vmatpush2.xpose.msra.mxu0 0.0
  %732 = vmatprep.subr.mxu0 0.0
  %733 = vmatpush2.xpose.msra.mxu0 0.0
  %734 = vmatprep.subr.mxu0 0.0
  %735 = vmatpush2.xpose.msra.mxu0 0.0
  %736 = vmatprep.subr.mxu0 0.0
  %737 = vmatpush2.xpose.msra.mxu0 0.0
  %738 = vmatprep.subr.mxu0 0.0
  %739 = vmatpush2.xpose.msra.mxu0 0.0
  %740 = vmatprep.subr.mxu0 0.0
  %741 = vmatpush2.xpose.msra.mxu0 0.0
  %742 = vmatprep.subr.mxu0 0.0
  %743 = vmatpush2.xpose.msra.mxu0 0.0
  %744 = vmatprep.subr.mxu0 0.0
  %745 = vmatpush2.xpose.msra.mxu0 0.0
  %746 = vmatprep.subr.mxu0 0.0
  %747 = vmatpush2.xpose.msra.mxu0 0.0
  %748 = vmatprep.subr.mxu0 0.0
  %749 = vmatpush2.xpose.msra.mxu0 0.0
  %750 = vmatprep.subr.mxu0 0.0
  %751 = vmatpush2.xpose.msra.mxu0 0.0
  %752 = vmatprep.subr.mxu0 0.0
  %753 = vmatpush2.xpose.msra.mxu0 0.0
  %754 = vmatprep.subr.mxu0 0.0
  %755 = vmatpush2.xpose.msra.mxu0 0.0
  %756 = vmatprep.subr.mxu0 0.0
  %757 = vmatpush2.xpose.msra.mxu0 0.0
  %758 = vmatprep.subr.mxu0 0.0
  %759 = vmatpush2.xpose.msra.mxu0 0.0
  %760 = vmatprep.mubr.f32.mxu0 0.0
  %761 = vmatmul.mubr.f32.gmra.mxu0 %v688
  %v762 = vpop.f32.mrf.mxu0
  %v763 = vadd.f32 %v234, %v762
  %v764 = vpop.f32.mrf.mxu0
  %765 = vmatprep.mubr.f32.mxu0 0.0
  %766 = vmatmul.mubr.f32.gmra.mxu0 %v690
  %v767 = vpop.f32.mrf.mxu0
  %v768 = vadd.f32 %v235, %v767
  %v769 = vpop.f32.mrf.mxu0
  %770 = vdwg.mxu0
  %773 = vrot.lane.b32.xlu0 %v216, 96
  %v774 = vpop.permute.xlu0 %773
  %775 = vrot.lane.b32.xlu0 %v221, 96
  %v776 = vpop.permute.xlu0 %775
  %v777 = vsel %vm242, %v216, 0
  %v779 = vsel %vm242, %v221, 0
  %v781 = vsel %vm242, %v774, 0
  %v783 = vsel %vm242, %v776, 0
  %785 = vmatprep.subr.mxu0 0.0
  %786 = vmatpush1.xpose.msra.mxu0 0.0
  %787 = vmatprep.subr.mxu0 0.0
  %788 = vmatpush1.xpose.msra.mxu0 0.0
  %789 = vmatprep.subr.mxu0 0.0
  %790 = vmatpush1.xpose.msra.mxu0 0.0
  %791 = vmatprep.subr.mxu0 0.0
  %792 = vmatpush1.xpose.msra.mxu0 0.0
  %793 = vmatprep.subr.mxu0 0.0
  %794 = vmatpush1.xpose.msra.mxu0 0.0
  %795 = vmatprep.subr.mxu0 0.0
  %796 = vmatpush1.xpose.msra.mxu0 0.0
  %797 = vmatprep.subr.mxu0 0.0
  %798 = vmatpush1.xpose.msra.mxu0 0.0
  %799 = vmatprep.subr.mxu0 0.0
  %800 = vmatpush1.xpose.msra.mxu0 0.0
  %801 = vmatprep.subr.mxu0 0.0
  %802 = vmatpush1.xpose.msra.mxu0 0.0
  %803 = vmatprep.subr.mxu0 0.0
  %804 = vmatpush1.xpose.msra.mxu0 0.0
  %805 = vmatprep.subr.mxu0 0.0
  %806 = vmatpush1.xpose.msra.mxu0 0.0
  %807 = vmatprep.subr.mxu0 0.0
  %808 = vmatpush1.xpose.msra.mxu0 0.0
  %809 = vmatprep.subr.mxu0 0.0
  %810 = vmatpush1.xpose.msra.mxu0 0.0
  %811 = vmatprep.subr.mxu0 0.0
  %812 = vmatpush1.xpose.msra.mxu0 0.0
  %813 = vmatprep.subr.mxu0 0.0
  %814 = vmatpush1.xpose.msra.mxu0 %v783
  %815 = vmatprep.subr.mxu0 0.0
  %816 = vmatpush1.xpose.msra.mxu0 %v781
  %817 = vmatprep.subr.mxu0 0.0
  %818 = vmatpush2.xpose.msra.mxu0 0.0
  %819 = vmatprep.subr.mxu0 0.0
  %820 = vmatpush2.xpose.msra.mxu0 0.0
  %821 = vmatprep.subr.mxu0 0.0
  %822 = vmatpush2.xpose.msra.mxu0 0.0
  %823 = vmatprep.subr.mxu0 0.0
  %824 = vmatpush2.xpose.msra.mxu0 0.0
  %825 = vmatprep.subr.mxu0 0.0
  %826 = vmatpush2.xpose.msra.mxu0 0.0
  %827 = vmatprep.subr.mxu0 0.0
  %828 = vmatpush2.xpose.msra.mxu0 0.0
  %829 = vmatprep.subr.mxu0 0.0
  %830 = vmatpush2.xpose.msra.mxu0 0.0
  %831 = vmatprep.subr.mxu0 0.0
  %832 = vmatpush2.xpose.msra.mxu0 0.0
  %833 = vmatprep.subr.mxu0 0.0
  %834 = vmatpush2.xpose.msra.mxu0 0.0
  %835 = vmatprep.subr.mxu0 0.0
  %836 = vmatpush2.xpose.msra.mxu0 0.0
  %837 = vmatprep.subr.mxu0 0.0
  %838 = vmatpush2.xpose.msra.mxu0 0.0
  %839 = vmatprep.subr.mxu0 0.0
  %840 = vmatpush2.xpose.msra.mxu0 0.0
  %841 = vmatprep.subr.mxu0 0.0
  %842 = vmatpush2.xpose.msra.mxu0 0.0
  %843 = vmatprep.subr.mxu0 0.0
  %844 = vmatpush2.xpose.msra.mxu0 0.0
  %845 = vmatprep.subr.mxu0 0.0
  %846 = vmatpush2.xpose.msra.mxu0 0.0
  %847 = vmatprep.subr.mxu0 0.0
  %848 = vmatpush2.xpose.msra.mxu0 0.0
  %849 = vmatprep.mubr.f32.mxu0 0.0
  %850 = vmatmul.mubr.f32.gmra.mxu0 %v777
  %v851 = vpop.f32.mrf.mxu0
  %v852 = vadd.f32 %v234, %v851
  %v853 = vpop.f32.mrf.mxu0
  %854 = vmatprep.mubr.f32.mxu0 0.0
  %855 = vmatmul.mubr.f32.gmra.mxu0 %v779
  %v856 = vpop.f32.mrf.mxu0
  %v857 = vadd.f32 %v235, %v856
  %v858 = vpop.f32.mrf.mxu0
  %859 = vdwg.mxu0
  %862 = vrot.lane.b32.xlu0 %v226, 96
  %v863 = vpop.permute.xlu0 %862
  %864 = vrot.lane.b32.xlu0 %v231, 96
  %v865 = vpop.permute.xlu0 %864
  %v866 = vsel %vm242, %v226, 0
  %v868 = vsel %vm242, %v231, 0
  %v870 = vsel %vm242, %v863, 0
  %v872 = vsel %vm242, %v865, 0
  %874 = vmatprep.subr.mxu0 0.0
  %875 = vmatpush1.xpose.msra.mxu0 0.0
  %876 = vmatprep.subr.mxu0 0.0
  %877 = vmatpush1.xpose.msra.mxu0 0.0
  %878 = vmatprep.subr.mxu0 0.0
  %879 = vmatpush1.xpose.msra.mxu0 0.0
  %880 = vmatprep.subr.mxu0 0.0
  %881 = vmatpush1.xpose.msra.mxu0 0.0
  %882 = vmatprep.subr.mxu0 0.0
  %883 = vmatpush1.xpose.msra.mxu0 0.0
  %884 = vmatprep.subr.mxu0 0.0
  %885 = vmatpush1.xpose.msra.mxu0 0.0
  %886 = vmatprep.subr.mxu0 0.0
  %887 = vmatpush1.xpose.msra.mxu0 0.0
  %888 = vmatprep.subr.mxu0 0.0
  %889 = vmatpush1.xpose.msra.mxu0 0.0
  %890 = vmatprep.subr.mxu0 0.0
  %891 = vmatpush1.xpose.msra.mxu0 0.0
  %892 = vmatprep.subr.mxu0 0.0
  %893 = vmatpush1.xpose.msra.mxu0 0.0
  %894 = vmatprep.subr.mxu0 0.0
  %895 = vmatpush1.xpose.msra.mxu0 0.0
  %896 = vmatprep.subr.mxu0 0.0
  %897 = vmatpush1.xpose.msra.mxu0 0.0
  %898 = vmatprep.subr.mxu0 0.0
  %899 = vmatpush1.xpose.msra.mxu0 0.0
  %900 = vmatprep.subr.mxu0 0.0
  %901 = vmatpush1.xpose.msra.mxu0 0.0
  %902 = vmatprep.subr.mxu0 0.0
  %903 = vmatpush1.xpose.msra.mxu0 %v872
  %904 = vmatprep.subr.mxu0 0.0
  %905 = vmatpush1.xpose.msra.mxu0 %v870
  %906 = vmatprep.subr.mxu0 0.0
  %907 = vmatpush2.xpose.msra.mxu0 0.0
  %908 = vmatprep.subr.mxu0 0.0
  %909 = vmatpush2.xpose.msra.mxu0 0.0
  %910 = vmatprep.subr.mxu0 0.0
  %911 = vmatpush2.xpose.msra.mxu0 0.0
  %912 = vmatprep.subr.mxu0 0.0
  %913 = vmatpush2.xpose.msra.mxu0 0.0
  %914 = vmatprep.subr.mxu0 0.0
  %915 = vmatpush2.xpose.msra.mxu0 0.0
  %916 = vmatprep.subr.mxu0 0.0
  %917 = vmatpush2.xpose.msra.mxu0 0.0
  %918 = vmatprep.subr.mxu0 0.0
  %919 = vmatpush2.xpose.msra.mxu0 0.0
  %920 = vmatprep.subr.mxu0 0.0
  %921 = vmatpush2.xpose.msra.mxu0 0.0
  %922 = vmatprep.subr.mxu0 0.0
  %923 = vmatpush2.xpose.msra.mxu0 0.0
  %924 = vmatprep.subr.mxu0 0.0
  %925 = vmatpush2.xpose.msra.mxu0 0.0
  %926 = vmatprep.subr.mxu0 0.0
  %927 = vmatpush2.xpose.msra.mxu0 0.0
  %928 = vmatprep.subr.mxu0 0.0
  %929 = vmatpush2.xpose.msra.mxu0 0.0
  %930 = vmatprep.subr.mxu0 0.0
  %931 = vmatpush2.xpose.msra.mxu0 0.0
  %932 = vmatprep.subr.mxu0 0.0
  %933 = vmatpush2.xpose.msra.mxu0 0.0
  %934 = vmatprep.subr.mxu0 0.0
  %935 = vmatpush2.xpose.msra.mxu0 0.0
  %936 = vmatprep.subr.mxu0 0.0
  %937 = vmatpush2.xpose.msra.mxu0 0.0
  %938 = vmatprep.mubr.f32.mxu0 0.0
  %939 = vmatmul.mubr.f32.gmra.mxu0 %v866
  %v940 = vpop.f32.mrf.mxu0
  %v941 = vadd.f32 %v234, %v940
  %v942 = vpop.f32.mrf.mxu0
  %943 = vmatprep.mubr.f32.mxu0 0.0
  %944 = vmatmul.mubr.f32.gmra.mxu0 %v868
  %v945 = vpop.f32.mrf.mxu0
  %v946 = vadd.f32 %v235, %v945
  %v947 = vpop.f32.mrf.mxu0
  %948 = vdwg.mxu0
  %vm949 = vcmask 130048
  %v950 = vsel %vm949, %v318, -inf
  %951 = vmax.xlane.f32.xlu0 %v950
  %v952 = vpop.xlane.xlu0 %951
  %v953 = vsel %vm949, %v323, -inf
  %954 = vmax.xlane.f32.xlu0 %v953
  %v955 = vpop.xlane.xlu0 %954
  %v956 = vsel %vm949, %v407, -inf
  %957 = vmax.xlane.f32.xlu0 %v956
  %v958 = vpop.xlane.xlu0 %957
  %v959 = vsel %vm949, %v412, -inf
  %960 = vmax.xlane.f32.xlu0 %v959
  %v961 = vpop.xlane.xlu0 %960
  %v962 = vsel %vm949, %v496, -inf
  %963 = vmax.xlane.f32.xlu0 %v962
  %v964 = vpop.xlane.xlu0 %963
  %v965 = vsel %vm949, %v501, -inf
  %966 = vmax.xlane.f32.xlu0 %v965
  %v967 = vpop.xlane.xlu0 %966
  %v968 = vsel %vm949, %v585, -inf
  %969 = vmax.xlane.f32.xlu0 %v968
  %v970 = vpop.xlane.xlu0 %969
  %v971 = vsel %vm949, %v590, -inf
  %972 = vmax.xlane.f32.xlu0 %v971
  %v973 = vpop.xlane.xlu0 %972
  %v974 = vsel %vm949, %v674, -inf
  %975 = vmax.xlane.f32.xlu0 %v974
  %v976 = vpop.xlane.xlu0 %975
  %v977 = vsel %vm949, %v679, -inf
  %978 = vmax.xlane.f32.xlu0 %v977
  %v979 = vpop.xlane.xlu0 %978
  %v980 = vsel %vm949, %v763, -inf
  %981 = vmax.xlane.f32.xlu0 %v980
  %v982 = vpop.xlane.xlu0 %981
  %v983 = vsel %vm949, %v768, -inf
  %984 = vmax.xlane.f32.xlu0 %v983
  %v985 = vpop.xlane.xlu0 %984
  %v986 = vsel %vm949, %v852, -inf
  %987 = vmax.xlane.f32.xlu0 %v986
  %v988 = vpop.xlane.xlu0 %987
  %v989 = vsel %vm949, %v857, -inf
  %990 = vmax.xlane.f32.xlu0 %v989
  %v991 = vpop.xlane.xlu0 %990
  %v992 = vsel %vm949, %v941, -inf
  %993 = vmax.xlane.f32.xlu0 %v992
  %v994 = vpop.xlane.xlu0 %993
  %v995 = vsel %vm949, %v946, -inf
  %996 = vmax.xlane.f32.xlu0 %v995
  %v997 = vpop.xlane.xlu0 %996
  %v998 = vsub.f32 %v318, %v952
  %v999 = vsub.f32 %v323, %v955
  %v1000 = vsub.f32 %v407, %v958
  %v1001 = vsub.f32 %v412, %v961
  %v1002 = vsub.f32 %v496, %v964
  %v1003 = vsub.f32 %v501, %v967
  %v1004 = vsub.f32 %v585, %v970
  %v1005 = vsub.f32 %v590, %v973
  %v1006 = vsub.f32 %v674, %v976
  %v1007 = vsub.f32 %v679, %v979
  %v1008 = vsub.f32 %v763, %v982
  %v1009 = vsub.f32 %v768, %v985
  %v1010 = vsub.f32 %v852, %v988
  %v1011 = vsub.f32 %v857, %v991
  %v1012 = vsub.f32 %v941, %v994
  %v1013 = vsub.f32 %v946, %v997
  %v1014 = vmul.f32 %v998, 1.442695
  %v1015 = vpow.pop %v1014
  %v1016 = vmul.f32 %v999, 1.442695
  %v1017 = vpow.pop %v1016
  %v1018 = vmul.f32 %v1000, 1.442695
  %v1019 = vpow.pop %v1018
  %v1020 = vmul.f32 %v1001, 1.442695
  %v1021 = vpow.pop %v1020
  %v1022 = vmul.f32 %v1002, 1.442695
  %v1023 = vpow.pop %v1022
  %v1024 = vmul.f32 %v1003, 1.442695
  %v1025 = vpow.pop %v1024
  %v1026 = vmul.f32 %v1004, 1.442695
  %v1027 = vpow.pop %v1026
  %v1028 = vmul.f32 %v1005, 1.442695
  %v1029 = vpow.pop %v1028
  %v1030 = vmul.f32 %v1006, 1.442695
  %v1031 = vpow.pop %v1030
  %v1032 = vmul.f32 %v1007, 1.442695
  %v1033 = vpow.pop %v1032
  %v1034 = vmul.f32 %v1008, 1.442695
  %v1035 = vpow.pop %v1034
  %v1036 = vmul.f32 %v1009, 1.442695
  %v1037 = vpow.pop %v1036
  %v1038 = vmul.f32 %v1010, 1.442695
  %v1039 = vpow.pop %v1038
  %v1040 = vmul.f32 %v1011, 1.442695
  %v1041 = vpow.pop %v1040
  %v1042 = vmul.f32 %v1012, 1.442695
  %v1043 = vpow.pop %v1042
  %v1044 = vmul.f32 %v1013, 1.442695
  %v1045 = vpow.pop %v1044
  %v1046 = vsel %vm949, %v1015, 0.0
  %1047 = vadd.xlane.f32.xlu0 %v1046
  %v1048 = vpop.xlane.xlu0 %1047
  %v1049 = vsel %vm949, %v1017, 0.0
  %1050 = vadd.xlane.f32.xlu0 %v1049
  %v1051 = vpop.xlane.xlu0 %1050
  %v1052 = vsel %vm949, %v1019, 0.0
  %1053 = vadd.xlane.f32.xlu0 %v1052
  %v1054 = vpop.xlane.xlu0 %1053
  %v1055 = vsel %vm949, %v1021, 0.0
  %1056 = vadd.xlane.f32.xlu0 %v1055
  %v1057 = vpop.xlane.xlu0 %1056
  %v1058 = vsel %vm949, %v1023, 0.0
  %1059 = vadd.xlane.f32.xlu0 %v1058
  %v1060 = vpop.xlane.xlu0 %1059
  %v1061 = vsel %vm949, %v1025, 0.0
  %1062 = vadd.xlane.f32.xlu0 %v1061
  %v1063 = vpop.xlane.xlu0 %1062
  %v1064 = vsel %vm949, %v1027, 0.0
  %1065 = vadd.xlane.f32.xlu0 %v1064
  %v1066 = vpop.xlane.xlu0 %1065
  %v1067 = vsel %vm949, %v1029, 0.0
  %1068 = vadd.xlane.f32.xlu0 %v1067
  %v1069 = vpop.xlane.xlu0 %1068
  %v1070 = vsel %vm949, %v1031, 0.0
  %1071 = vadd.xlane.f32.xlu0 %v1070
  %v1072 = vpop.xlane.xlu0 %1071
  %v1073 = vsel %vm949, %v1033, 0.0
  %1074 = vadd.xlane.f32.xlu0 %v1073
  %v1075 = vpop.xlane.xlu0 %1074
  %v1076 = vsel %vm949, %v1035, 0.0
  %1077 = vadd.xlane.f32.xlu0 %v1076
  %v1078 = vpop.xlane.xlu0 %1077
  %v1079 = vsel %vm949, %v1037, 0.0
  %1080 = vadd.xlane.f32.xlu0 %v1079
  %v1081 = vpop.xlane.xlu0 %1080
  %v1082 = vsel %vm949, %v1039, 0.0
  %1083 = vadd.xlane.f32.xlu0 %v1082
  %v1084 = vpop.xlane.xlu0 %1083
  %v1085 = vsel %vm949, %v1041, 0.0
  %1086 = vadd.xlane.f32.xlu0 %v1085
  %v1087 = vpop.xlane.xlu0 %1086
  %v1088 = vsel %vm949, %v1043, 0.0
  %1089 = vadd.xlane.f32.xlu0 %v1088
  %v1090 = vpop.xlane.xlu0 %1089
  %v1091 = vsel %vm949, %v1045, 0.0
  %1092 = vadd.xlane.f32.xlu0 %v1091
  %v1093 = vpop.xlane.xlu0 %1092
  %v1094 = vrcp.pop %v1048
  %v1095 = vrcp.pop %v1051
  %v1096 = vrcp.pop %v1054
  %v1097 = vrcp.pop %v1057
  %v1098 = vrcp.pop %v1060
  %v1099 = vrcp.pop %v1063
  %v1100 = vrcp.pop %v1066
  %v1101 = vrcp.pop %v1069
  %v1102 = vrcp.pop %v1072
  %v1103 = vrcp.pop %v1075
  %v1104 = vrcp.pop %v1078
  %v1105 = vrcp.pop %v1081
  %v1106 = vrcp.pop %v1084
  %v1107 = vrcp.pop %v1087
  %v1108 = vrcp.pop %v1090
  %v1109 = vrcp.pop %v1093
  %v1110 = vmul.f32 %v1015, %v1094
  %v1111 = vmul.f32 %v1017, %v1095
  %v1112 = vmul.f32 %v1019, %v1096
  %v1113 = vmul.f32 %v1021, %v1097
  %v1114 = vmul.f32 %v1023, %v1098
  %v1115 = vmul.f32 %v1025, %v1099
  %v1116 = vmul.f32 %v1027, %v1100
  %v1117 = vmul.f32 %v1029, %v1101
  %v1118 = vmul.f32 %v1031, %v1102
  %v1119 = vmul.f32 %v1033, %v1103
  %v1120 = vmul.f32 %v1035, %v1104
  %v1121 = vmul.f32 %v1037, %v1105
  %v1122 = vmul.f32 %v1039, %v1106
  %v1123 = vmul.f32 %v1041, %v1107
  %v1124 = vmul.f32 %v1043, %v1108
  %v1125 = vmul.f32 %v1045, %v1109
  %1126 = vrot.lane.b32.xlu0 %v156, 64
  %v1127 = vpop.permute.xlu0 %1126
  %1128 = vrot.lane.b32.xlu0 %v161, 64
  %v1129 = vpop.permute.xlu0 %1128
  %v1133 = vsel %vm949, %v1110, 0
  %v1136 = vsel %vm949, %v1111, 0
  %1138 = vmatprep.subr.mxu0 0.0
  %1139 = vmatpush1.msra.mxu0 0.0
  %1140 = vmatprep.subr.mxu0 0.0
  %1141 = vmatpush1.msra.mxu0 0.0
  %1142 = vmatprep.subr.mxu0 0.0
  %1143 = vmatpush1.msra.mxu0 0.0
  %1144 = vmatprep.subr.mxu0 0.0
  %1145 = vmatpush1.msra.mxu0 0.0
  %1146 = vmatprep.subr.mxu0 0.0
  %1147 = vmatpush1.msra.mxu0 0.0
  %1148 = vmatprep.subr.mxu0 0.0
  %1149 = vmatpush1.msra.mxu0 0.0
  %1150 = vmatprep.subr.mxu0 0.0
  %1151 = vmatpush1.msra.mxu0 0.0
  %1152 = vmatprep.subr.mxu0 0.0
  %1153 = vmatpush1.msra.mxu0 0.0
  %1154 = vmatprep.subr.mxu0 0.0
  %1155 = vmatpush1.msra.mxu0 0.0
  %1156 = vmatprep.subr.mxu0 0.0
  %1157 = vmatpush1.msra.mxu0 0.0
  %1158 = vmatprep.subr.mxu0 0.0
  %1159 = vmatpush1.msra.mxu0 0.0
  %1160 = vmatprep.subr.mxu0 0.0
  %1161 = vmatpush1.msra.mxu0 0.0
  %1162 = vmatprep.subr.mxu0 0.0
  %1163 = vmatpush1.msra.mxu0 0.0
  %1164 = vmatprep.subr.mxu0 0.0
  %1165 = vmatpush1.msra.mxu0 0.0
  %1166 = vmatprep.subr.mxu0 0.0
  %1167 = vmatpush1.msra.mxu0 %v1129
  %1168 = vmatprep.subr.mxu0 0.0
  %1169 = vmatpush1.msra.mxu0 %v1127
  %1170 = vmatprep.subr.mxu0 0.0
  %1171 = vmatpush2.msra.mxu0 0.0
  %1172 = vmatprep.subr.mxu0 0.0
  %1173 = vmatpush2.msra.mxu0 0.0
  %1174 = vmatprep.subr.mxu0 0.0
  %1175 = vmatpush2.msra.mxu0 0.0
  %1176 = vmatprep.subr.mxu0 0.0
  %1177 = vmatpush2.msra.mxu0 0.0
  %1178 = vmatprep.subr.mxu0 0.0
  %1179 = vmatpush2.msra.mxu0 0.0
  %1180 = vmatprep.subr.mxu0 0.0
  %1181 = vmatpush2.msra.mxu0 0.0
  %1182 = vmatprep.subr.mxu0 0.0
  %1183 = vmatpush2.msra.mxu0 0.0
  %1184 = vmatprep.subr.mxu0 0.0
  %1185 = vmatpush2.msra.mxu0 0.0
  %1186 = vmatprep.subr.mxu0 0.0
  %1187 = vmatpush2.msra.mxu0 0.0
  %1188 = vmatprep.subr.mxu0 0.0
  %1189 = vmatpush2.msra.mxu0 0.0
  %1190 = vmatprep.subr.mxu0 0.0
  %1191 = vmatpush2.msra.mxu0 0.0
  %1192 = vmatprep.subr.mxu0 0.0
  %1193 = vmatpush2.msra.mxu0 0.0
  %1194 = vmatprep.subr.mxu0 0.0
  %1195 = vmatpush2.msra.mxu0 0.0
  %1196 = vmatprep.subr.mxu0 0.0
  %1197 = vmatpush2.msra.mxu0 0.0
  %1198 = vmatprep.subr.mxu0 0.0
  %1199 = vmatpush2.msra.mxu0 0.0
  %1200 = vmatprep.subr.mxu0 0.0
  %1201 = vmatpush2.msra.mxu0 0.0
  %1202 = vmatprep.mubr.f32.mxu0 0.0
  %1203 = vmatmul.mubr.f32.gmra.mxu0 %v1133
  %v1204 = vpop.f32.mrf.mxu0
  %v1205 = vadd.f32 0.0, %v1204
  %v1206 = vpop.f32.mrf.mxu0
  %1207 = vmatprep.mubr.f32.mxu0 0.0
  %1208 = vmatmul.mubr.f32.gmra.mxu0 %v1136
  %v1209 = vpop.f32.mrf.mxu0
  %v1210 = vadd.f32 0.0, %v1209
  %v1211 = vpop.f32.mrf.mxu0
  %1212 = vdwg.mxu0
  %1213 = vrot.lane.b32.xlu0 %v166, 64
  %v1214 = vpop.permute.xlu0 %1213
  %1215 = vrot.lane.b32.xlu0 %v171, 64
  %v1216 = vpop.permute.xlu0 %1215
  %v1220 = vsel %vm949, %v1112, 0
  %v1223 = vsel %vm949, %v1113, 0
  %1225 = vmatprep.subr.mxu0 0.0
  %1226 = vmatpush1.msra.mxu0 0.0
  %1227 = vmatprep.subr.mxu0 0.0
  %1228 = vmatpush1.msra.mxu0 0.0
  %1229 = vmatprep.subr.mxu0 0.0
  %1230 = vmatpush1.msra.mxu0 0.0
  %1231 = vmatprep.subr.mxu0 0.0
  %1232 = vmatpush1.msra.mxu0 0.0
  %1233 = vmatprep.subr.mxu0 0.0
  %1234 = vmatpush1.msra.mxu0 0.0
  %1235 = vmatprep.subr.mxu0 0.0
  %1236 = vmatpush1.msra.mxu0 0.0
  %1237 = vmatprep.subr.mxu0 0.0
  %1238 = vmatpush1.msra.mxu0 0.0
  %1239 = vmatprep.subr.mxu0 0.0
  %1240 = vmatpush1.msra.mxu0 0.0
  %1241 = vmatprep.subr.mxu0 0.0
  %1242 = vmatpush1.msra.mxu0 0.0
  %1243 = vmatprep.subr.mxu0 0.0
  %1244 = vmatpush1.msra.mxu0 0.0
  %1245 = vmatprep.subr.mxu0 0.0
  %1246 = vmatpush1.msra.mxu0 0.0
  %1247 = vmatprep.subr.mxu0 0.0
  %1248 = vmatpush1.msra.mxu0 0.0
  %1249 = vmatprep.subr.mxu0 0.0
  %1250 = vmatpush1.msra.mxu0 0.0
  %1251 = vmatprep.subr.mxu0 0.0
  %1252 = vmatpush1.msra.mxu0 0.0
  %1253 = vmatprep.subr.mxu0 0.0
  %1254 = vmatpush1.msra.mxu0 %v1216
  %1255 = vmatprep.subr.mxu0 0.0
  %1256 = vmatpush1.msra.mxu0 %v1214
  %1257 = vmatprep.subr.mxu0 0.0
  %1258 = vmatpush2.msra.mxu0 0.0
  %1259 = vmatprep.subr.mxu0 0.0
  %1260 = vmatpush2.msra.mxu0 0.0
  %1261 = vmatprep.subr.mxu0 0.0
  %1262 = vmatpush2.msra.mxu0 0.0
  %1263 = vmatprep.subr.mxu0 0.0
  %1264 = vmatpush2.msra.mxu0 0.0
  %1265 = vmatprep.subr.mxu0 0.0
  %1266 = vmatpush2.msra.mxu0 0.0
  %1267 = vmatprep.subr.mxu0 0.0
  %1268 = vmatpush2.msra.mxu0 0.0
  %1269 = vmatprep.subr.mxu0 0.0
  %1270 = vmatpush2.msra.mxu0 0.0
  %1271 = vmatprep.subr.mxu0 0.0
  %1272 = vmatpush2.msra.mxu0 0.0
  %1273 = vmatprep.subr.mxu0 0.0
  %1274 = vmatpush2.msra.mxu0 0.0
  %1275 = vmatprep.subr.mxu0 0.0
  %1276 = vmatpush2.msra.mxu0 0.0
  %1277 = vmatprep.subr.mxu0 0.0
  %1278 = vmatpush2.msra.mxu0 0.0
  %1279 = vmatprep.subr.mxu0 0.0
  %1280 = vmatpush2.msra.mxu0 0.0
  %1281 = vmatprep.subr.mxu0 0.0
  %1282 = vmatpush2.msra.mxu0 0.0
  %1283 = vmatprep.subr.mxu0 0.0
  %1284 = vmatpush2.msra.mxu0 0.0
  %1285 = vmatprep.subr.mxu0 0.0
  %1286 = vmatpush2.msra.mxu0 0.0
  %1287 = vmatprep.subr.mxu0 0.0
  %1288 = vmatpush2.msra.mxu0 0.0
  %1289 = vmatprep.mubr.f32.mxu0 0.0
  %1290 = vmatmul.mubr.f32.gmra.mxu0 %v1220
  %v1291 = vpop.f32.mrf.mxu0
  %v1292 = vadd.f32 0.0, %v1291
  %v1293 = vpop.f32.mrf.mxu0
  %1294 = vmatprep.mubr.f32.mxu0 0.0
  %1295 = vmatmul.mubr.f32.gmra.mxu0 %v1223
  %v1296 = vpop.f32.mrf.mxu0
  %v1297 = vadd.f32 0.0, %v1296
  %v1298 = vpop.f32.mrf.mxu0
  %1299 = vdwg.mxu0
  %1300 = vrot.lane.b32.xlu0 %v176, 64
  %v1301 = vpop.permute.xlu0 %1300
  %1302 = vrot.lane.b32.xlu0 %v181, 64
  %v1303 = vpop.permute.xlu0 %1302
  %v1307 = vsel %vm949, %v1114, 0
  %v1310 = vsel %vm949, %v1115, 0
  %1312 = vmatprep.subr.mxu0 0.0
  %1313 = vmatpush1.msra.mxu0 0.0
  %1314 = vmatprep.subr.mxu0 0.0
  %1315 = vmatpush1.msra.mxu0 0.0
  %1316 = vmatprep.subr.mxu0 0.0
  %1317 = vmatpush1.msra.mxu0 0.0
  %1318 = vmatprep.subr.mxu0 0.0
  %1319 = vmatpush1.msra.mxu0 0.0
  %1320 = vmatprep.subr.mxu0 0.0
  %1321 = vmatpush1.msra.mxu0 0.0
  %1322 = vmatprep.subr.mxu0 0.0
  %1323 = vmatpush1.msra.mxu0 0.0
  %1324 = vmatprep.subr.mxu0 0.0
  %1325 = vmatpush1.msra.mxu0 0.0
  %1326 = vmatprep.subr.mxu0 0.0
  %1327 = vmatpush1.msra.mxu0 0.0
  %1328 = vmatprep.subr.mxu0 0.0
  %1329 = vmatpush1.msra.mxu0 0.0
  %1330 = vmatprep.subr.mxu0 0.0
  %1331 = vmatpush1.msra.mxu0 0.0
  %1332 = vmatprep.subr.mxu0 0.0
  %1333 = vmatpush1.msra.mxu0 0.0
  %1334 = vmatprep.subr.mxu0 0.0
  %1335 = vmatpush1.msra.mxu0 0.0
  %1336 = vmatprep.subr.mxu0 0.0
  %1337 = vmatpush1.msra.mxu0 0.0
  %1338 = vmatprep.subr.mxu0 0.0
  %1339 = vmatpush1.msra.mxu0 0.0
  %1340 = vmatprep.subr.mxu0 0.0
  %1341 = vmatpush1.msra.mxu0 %v1303
  %1342 = vmatprep.subr.mxu0 0.0
  %1343 = vmatpush1.msra.mxu0 %v1301
  %1344 = vmatprep.subr.mxu0 0.0
  %1345 = vmatpush2.msra.mxu0 0.0
  %1346 = vmatprep.subr.mxu0 0.0
  %1347 = vmatpush2.msra.mxu0 0.0
  %1348 = vmatprep.subr.mxu0 0.0
  %1349 = vmatpush2.msra.mxu0 0.0
  %1350 = vmatprep.subr.mxu0 0.0
  %1351 = vmatpush2.msra.mxu0 0.0
  %1352 = vmatprep.subr.mxu0 0.0
  %1353 = vmatpush2.msra.mxu0 0.0
  %1354 = vmatprep.subr.mxu0 0.0
  %1355 = vmatpush2.msra.mxu0 0.0
  %1356 = vmatprep.subr.mxu0 0.0
  %1357 = vmatpush2.msra.mxu0 0.0
  %1358 = vmatprep.subr.mxu0 0.0
  %1359 = vmatpush2.msra.mxu0 0.0
  %1360 = vmatprep.subr.mxu0 0.0
  %1361 = vmatpush2.msra.mxu0 0.0
  %1362 = vmatprep.subr.mxu0 0.0
  %1363 = vmatpush2.msra.mxu0 0.0
  %1364 = vmatprep.subr.mxu0 0.0
  %1365 = vmatpush2.msra.mxu0 0.0
  %1366 = vmatprep.subr.mxu0 0.0
  %1367 = vmatpush2.msra.mxu0 0.0
  %1368 = vmatprep.subr.mxu0 0.0
  %1369 = vmatpush2.msra.mxu0 0.0
  %1370 = vmatprep.subr.mxu0 0.0
  %1371 = vmatpush2.msra.mxu0 0.0
  %1372 = vmatprep.subr.mxu0 0.0
  %1373 = vmatpush2.msra.mxu0 0.0
  %1374 = vmatprep.subr.mxu0 0.0
  %1375 = vmatpush2.msra.mxu0 0.0
  %1376 = vmatprep.mubr.f32.mxu0 0.0
  %1377 = vmatmul.mubr.f32.gmra.mxu0 %v1307
  %v1378 = vpop.f32.mrf.mxu0
  %v1379 = vadd.f32 0.0, %v1378
  %v1380 = vpop.f32.mrf.mxu0
  %1381 = vmatprep.mubr.f32.mxu0 0.0
  %1382 = vmatmul.mubr.f32.gmra.mxu0 %v1310
  %v1383 = vpop.f32.mrf.mxu0
  %v1384 = vadd.f32 0.0, %v1383
  %v1385 = vpop.f32.mrf.mxu0
  %1386 = vdwg.mxu0
  %1387 = vrot.lane.b32.xlu0 %v186, 64
  %v1388 = vpop.permute.xlu0 %1387
  %1389 = vrot.lane.b32.xlu0 %v191, 64
  %v1390 = vpop.permute.xlu0 %1389
  %v1394 = vsel %vm949, %v1116, 0
  %v1397 = vsel %vm949, %v1117, 0
  %1399 = vmatprep.subr.mxu0 0.0
  %1400 = vmatpush1.msra.mxu0 0.0
  %1401 = vmatprep.subr.mxu0 0.0
  %1402 = vmatpush1.msra.mxu0 0.0
  %1403 = vmatprep.subr.mxu0 0.0
  %1404 = vmatpush1.msra.mxu0 0.0
  %1405 = vmatprep.subr.mxu0 0.0
  %1406 = vmatpush1.msra.mxu0 0.0
  %1407 = vmatprep.subr.mxu0 0.0
  %1408 = vmatpush1.msra.mxu0 0.0
  %1409 = vmatprep.subr.mxu0 0.0
  %1410 = vmatpush1.msra.mxu0 0.0
  %1411 = vmatprep.subr.mxu0 0.0
  %1412 = vmatpush1.msra.mxu0 0.0
  %1413 = vmatprep.subr.mxu0 0.0
  %1414 = vmatpush1.msra.mxu0 0.0
  %1415 = vmatprep.subr.mxu0 0.0
  %1416 = vmatpush1.msra.mxu0 0.0
  %1417 = vmatprep.subr.mxu0 0.0
  %1418 = vmatpush1.msra.mxu0 0.0
  %1419 = vmatprep.subr.mxu0 0.0
  %1420 = vmatpush1.msra.mxu0 0.0
  %1421 = vmatprep.subr.mxu0 0.0
  %1422 = vmatpush1.msra.mxu0 0.0
  %1423 = vmatprep.subr.mxu0 0.0
  %1424 = vmatpush1.msra.mxu0 0.0
  %1425 = vmatprep.subr.mxu0 0.0
  %1426 = vmatpush1.msra.mxu0 0.0
  %1427 = vmatprep.subr.mxu0 0.0
  %1428 = vmatpush1.msra.mxu0 %v1390
  %1429 = vmatprep.subr.mxu0 0.0
  %1430 = vmatpush1.msra.mxu0 %v1388
  %1431 = vmatprep.subr.mxu0 0.0
  %1432 = vmatpush2.msra.mxu0 0.0
  %1433 = vmatprep.subr.mxu0 0.0
  %1434 = vmatpush2.msra.mxu0 0.0
  %1435 = vmatprep.subr.mxu0 0.0
  %1436 = vmatpush2.msra.mxu0 0.0
  %1437 = vmatprep.subr.mxu0 0.0
  %1438 = vmatpush2.msra.mxu0 0.0
  %1439 = vmatprep.subr.mxu0 0.0
  %1440 = vmatpush2.msra.mxu0 0.0
  %1441 = vmatprep.subr.mxu0 0.0
  %1442 = vmatpush2.msra.mxu0 0.0
  %1443 = vmatprep.subr.mxu0 0.0
  %1444 = vmatpush2.msra.mxu0 0.0
  %1445 = vmatprep.subr.mxu0 0.0
  %1446 = vmatpush2.msra.mxu0 0.0
  %1447 = vmatprep.subr.mxu0 0.0
  %1448 = vmatpush2.msra.mxu0 0.0
  %1449 = vmatprep.subr.mxu0 0.0
  %1450 = vmatpush2.msra.mxu0 0.0
  %1451 = vmatprep.subr.mxu0 0.0
  %1452 = vmatpush2.msra.mxu0 0.0
  %1453 = vmatprep.subr.mxu0 0.0
  %1454 = vmatpush2.msra.mxu0 0.0
  %1455 = vmatprep.subr.mxu0 0.0
  %1456 = vmatpush2.msra.mxu0 0.0
  %1457 = vmatprep.subr.mxu0 0.0
  %1458 = vmatpush2.msra.mxu0 0.0
  %1459 = vmatprep.subr.mxu0 0.0
  %1460 = vmatpush2.msra.mxu0 0.0
  %1461 = vmatprep.subr.mxu0 0.0
  %1462 = vmatpush2.msra.mxu0 0.0
  %1463 = vmatprep.mubr.f32.mxu0 0.0
  %1464 = vmatmul.mubr.f32.gmra.mxu0 %v1394
  %v1465 = vpop.f32.mrf.mxu0
  %v1466 = vadd.f32 0.0, %v1465
  %v1467 = vpop.f32.mrf.mxu0
  %1468 = vmatprep.mubr.f32.mxu0 0.0
  %1469 = vmatmul.mubr.f32.gmra.mxu0 %v1397
  %v1470 = vpop.f32.mrf.mxu0
  %v1471 = vadd.f32 0.0, %v1470
  %v1472 = vpop.f32.mrf.mxu0
  %1473 = vdwg.mxu0
  %1474 = vrot.lane.b32.xlu0 %v196, 64
  %v1475 = vpop.permute.xlu0 %1474
  %1476 = vrot.lane.b32.xlu0 %v201, 64
  %v1477 = vpop.permute.xlu0 %1476
  %v1481 = vsel %vm949, %v1118, 0
  %v1484 = vsel %vm949, %v1119, 0
  %1486 = vmatprep.subr.mxu0 0.0
  %1487 = vmatpush1.msra.mxu0 0.0
  %1488 = vmatprep.subr.mxu0 0.0
  %1489 = vmatpush1.msra.mxu0 0.0
  %1490 = vmatprep.subr.mxu0 0.0
  %1491 = vmatpush1.msra.mxu0 0.0
  %1492 = vmatprep.subr.mxu0 0.0
  %1493 = vmatpush1.msra.mxu0 0.0
  %1494 = vmatprep.subr.mxu0 0.0
  %1495 = vmatpush1.msra.mxu0 0.0
  %1496 = vmatprep.subr.mxu0 0.0
  %1497 = vmatpush1.msra.mxu0 0.0
  %1498 = vmatprep.subr.mxu0 0.0
  %1499 = vmatpush1.msra.mxu0 0.0
  %1500 = vmatprep.subr.mxu0 0.0
  %1501 = vmatpush1.msra.mxu0 0.0
  %1502 = vmatprep.subr.mxu0 0.0
  %1503 = vmatpush1.msra.mxu0 0.0
  %1504 = vmatprep.subr.mxu0 0.0
  %1505 = vmatpush1.msra.mxu0 0.0
  %1506 = vmatprep.subr.mxu0 0.0
  %1507 = vmatpush1.msra.mxu0 0.0
  %1508 = vmatprep.subr.mxu0 0.0
  %1509 = vmatpush1.msra.mxu0 0.0
  %1510 = vmatprep.subr.mxu0 0.0
  %1511 = vmatpush1.msra.mxu0 0.0
  %1512 = vmatprep.subr.mxu0 0.0
  %1513 = vmatpush1.msra.mxu0 0.0
  %1514 = vmatprep.subr.mxu0 0.0
  %1515 = vmatpush1.msra.mxu0 %v1477
  %1516 = vmatprep.subr.mxu0 0.0
  %1517 = vmatpush1.msra.mxu0 %v1475
  %1518 = vmatprep.subr.mxu0 0.0
  %1519 = vmatpush2.msra.mxu0 0.0
  %1520 = vmatprep.subr.mxu0 0.0
  %1521 = vmatpush2.msra.mxu0 0.0
  %1522 = vmatprep.subr.mxu0 0.0
  %1523 = vmatpush2.msra.mxu0 0.0
  %1524 = vmatprep.subr.mxu0 0.0
  %1525 = vmatpush2.msra.mxu0 0.0
  %1526 = vmatprep.subr.mxu0 0.0
  %1527 = vmatpush2.msra.mxu0 0.0
  %1528 = vmatprep.subr.mxu0 0.0
  %1529 = vmatpush2.msra.mxu0 0.0
  %1530 = vmatprep.subr.mxu0 0.0
  %1531 = vmatpush2.msra.mxu0 0.0
  %1532 = vmatprep.subr.mxu0 0.0
  %1533 = vmatpush2.msra.mxu0 0.0
  %1534 = vmatprep.subr.mxu0 0.0
  %1535 = vmatpush2.msra.mxu0 0.0
  %1536 = vmatprep.subr.mxu0 0.0
  %1537 = vmatpush2.msra.mxu0 0.0
  %1538 = vmatprep.subr.mxu0 0.0
  %1539 = vmatpush2.msra.mxu0 0.0
  %1540 = vmatprep.subr.mxu0 0.0
  %1541 = vmatpush2.msra.mxu0 0.0
  %1542 = vmatprep.subr.mxu0 0.0
  %1543 = vmatpush2.msra.mxu0 0.0
  %1544 = vmatprep.subr.mxu0 0.0
  %1545 = vmatpush2.msra.mxu0 0.0
  %1546 = vmatprep.subr.mxu0 0.0
  %1547 = vmatpush2.msra.mxu0 0.0
  %1548 = vmatprep.subr.mxu0 0.0
  %1549 = vmatpush2.msra.mxu0 0.0
  %1550 = vmatprep.mubr.f32.mxu0 0.0
  %1551 = vmatmul.mubr.f32.gmra.mxu0 %v1481
  %v1552 = vpop.f32.mrf.mxu0
  %v1553 = vadd.f32 0.0, %v1552
  %v1554 = vpop.f32.mrf.mxu0
  %1555 = vmatprep.mubr.f32.mxu0 0.0
  %1556 = vmatmul.mubr.f32.gmra.mxu0 %v1484
  %v1557 = vpop.f32.mrf.mxu0
  %v1558 = vadd.f32 0.0, %v1557
  %v1559 = vpop.f32.mrf.mxu0
  %1560 = vdwg.mxu0
  %1561 = vrot.lane.b32.xlu0 %v206, 64
  %v1562 = vpop.permute.xlu0 %1561
  %1563 = vrot.lane.b32.xlu0 %v211, 64
  %v1564 = vpop.permute.xlu0 %1563
  %v1568 = vsel %vm949, %v1120, 0
  %v1571 = vsel %vm949, %v1121, 0
  %1573 = vmatprep.subr.mxu0 0.0
  %1574 = vmatpush1.msra.mxu0 0.0
  %1575 = vmatprep.subr.mxu0 0.0
  %1576 = vmatpush1.msra.mxu0 0.0
  %1577 = vmatprep.subr.mxu0 0.0
  %1578 = vmatpush1.msra.mxu0 0.0
  %1579 = vmatprep.subr.mxu0 0.0
  %1580 = vmatpush1.msra.mxu0 0.0
  %1581 = vmatprep.subr.mxu0 0.0
  %1582 = vmatpush1.msra.mxu0 0.0
  %1583 = vmatprep.subr.mxu0 0.0
  %1584 = vmatpush1.msra.mxu0 0.0
  %1585 = vmatprep.subr.mxu0 0.0
  %1586 = vmatpush1.msra.mxu0 0.0
  %1587 = vmatprep.subr.mxu0 0.0
  %1588 = vmatpush1.msra.mxu0 0.0
  %1589 = vmatprep.subr.mxu0 0.0
  %1590 = vmatpush1.msra.mxu0 0.0
  %1591 = vmatprep.subr.mxu0 0.0
  %1592 = vmatpush1.msra.mxu0 0.0
  %1593 = vmatprep.subr.mxu0 0.0
  %1594 = vmatpush1.msra.mxu0 0.0
  %1595 = vmatprep.subr.mxu0 0.0
  %1596 = vmatpush1.msra.mxu0 0.0
  %1597 = vmatprep.subr.mxu0 0.0
  %1598 = vmatpush1.msra.mxu0 0.0
  %1599 = vmatprep.subr.mxu0 0.0
  %1600 = vmatpush1.msra.mxu0 0.0
  %1601 = vmatprep.subr.mxu0 0.0
  %1602 = vmatpush1.msra.mxu0 %v1564
  %1603 = vmatprep.subr.mxu0 0.0
  %1604 = vmatpush1.msra.mxu0 %v1562
  %1605 = vmatprep.subr.mxu0 0.0
  %1606 = vmatpush2.msra.mxu0 0.0
  %1607 = vmatprep.subr.mxu0 0.0
  %1608 = vmatpush2.msra.mxu0 0.0
  %1609 = vmatprep.subr.mxu0 0.0
  %1610 = vmatpush2.msra.mxu0 0.0
  %1611 = vmatprep.subr.mxu0 0.0
  %1612 = vmatpush2.msra.mxu0 0.0
  %1613 = vmatprep.subr.mxu0 0.0
  %1614 = vmatpush2.msra.mxu0 0.0
  %1615 = vmatprep.subr.mxu0 0.0
  %1616 = vmatpush2.msra.mxu0 0.0
  %1617 = vmatprep.subr.mxu0 0.0
  %1618 = vmatpush2.msra.mxu0 0.0
  %1619 = vmatprep.subr.mxu0 0.0
  %1620 = vmatpush2.msra.mxu0 0.0
  %1621 = vmatprep.subr.mxu0 0.0
  %1622 = vmatpush2.msra.mxu0 0.0
  %1623 = vmatprep.subr.mxu0 0.0
  %1624 = vmatpush2.msra.mxu0 0.0
  %1625 = vmatprep.subr.mxu0 0.0
  %1626 = vmatpush2.msra.mxu0 0.0
  %1627 = vmatprep.subr.mxu0 0.0
  %1628 = vmatpush2.msra.mxu0 0.0
  %1629 = vmatprep.subr.mxu0 0.0
  %1630 = vmatpush2.msra.mxu0 0.0
  %1631 = vmatprep.subr.mxu0 0.0
  %1632 = vmatpush2.msra.mxu0 0.0
  %1633 = vmatprep.subr.mxu0 0.0
  %1634 = vmatpush2.msra.mxu0 0.0
  %1635 = vmatprep.subr.mxu0 0.0
  %1636 = vmatpush2.msra.mxu0 0.0
  %1637 = vmatprep.mubr.f32.mxu0 0.0
  %1638 = vmatmul.mubr.f32.gmra.mxu0 %v1568
  %v1639 = vpop.f32.mrf.mxu0
  %v1640 = vadd.f32 0.0, %v1639
  %v1641 = vpop.f32.mrf.mxu0
  %1642 = vmatprep.mubr.f32.mxu0 0.0
  %1643 = vmatmul.mubr.f32.gmra.mxu0 %v1571
  %v1644 = vpop.f32.mrf.mxu0
  %v1645 = vadd.f32 0.0, %v1644
  %v1646 = vpop.f32.mrf.mxu0
  %1647 = vdwg.mxu0
  %1648 = vrot.lane.b32.xlu0 %v216, 64
  %v1649 = vpop.permute.xlu0 %1648
  %1650 = vrot.lane.b32.xlu0 %v221, 64
  %v1651 = vpop.permute.xlu0 %1650
  %v1655 = vsel %vm949, %v1122, 0
  %v1658 = vsel %vm949, %v1123, 0
  %1660 = vmatprep.subr.mxu0 0.0
  %1661 = vmatpush1.msra.mxu0 0.0
  %1662 = vmatprep.subr.mxu0 0.0
  %1663 = vmatpush1.msra.mxu0 0.0
  %1664 = vmatprep.subr.mxu0 0.0
  %1665 = vmatpush1.msra.mxu0 0.0
  %1666 = vmatprep.subr.mxu0 0.0
  %1667 = vmatpush1.msra.mxu0 0.0
  %1668 = vmatprep.subr.mxu0 0.0
  %1669 = vmatpush1.msra.mxu0 0.0
  %1670 = vmatprep.subr.mxu0 0.0
  %1671 = vmatpush1.msra.mxu0 0.0
  %1672 = vmatprep.subr.mxu0 0.0
  %1673 = vmatpush1.msra.mxu0 0.0
  %1674 = vmatprep.subr.mxu0 0.0
  %1675 = vmatpush1.msra.mxu0 0.0
  %1676 = vmatprep.subr.mxu0 0.0
  %1677 = vmatpush1.msra.mxu0 0.0
  %1678 = vmatprep.subr.mxu0 0.0
  %1679 = vmatpush1.msra.mxu0 0.0
  %1680 = vmatprep.subr.mxu0 0.0
  %1681 = vmatpush1.msra.mxu0 0.0
  %1682 = vmatprep.subr.mxu0 0.0
  %1683 = vmatpush1.msra.mxu0 0.0
  %1684 = vmatprep.subr.mxu0 0.0
  %1685 = vmatpush1.msra.mxu0 0.0
  %1686 = vmatprep.subr.mxu0 0.0
  %1687 = vmatpush1.msra.mxu0 0.0
  %1688 = vmatprep.subr.mxu0 0.0
  %1689 = vmatpush1.msra.mxu0 %v1651
  %1690 = vmatprep.subr.mxu0 0.0
  %1691 = vmatpush1.msra.mxu0 %v1649
  %1692 = vmatprep.subr.mxu0 0.0
  %1693 = vmatpush2.msra.mxu0 0.0
  %1694 = vmatprep.subr.mxu0 0.0
  %1695 = vmatpush2.msra.mxu0 0.0
  %1696 = vmatprep.subr.mxu0 0.0
  %1697 = vmatpush2.msra.mxu0 0.0
  %1698 = vmatprep.subr.mxu0 0.0
  %1699 = vmatpush2.msra.mxu0 0.0
  %1700 = vmatprep.subr.mxu0 0.0
  %1701 = vmatpush2.msra.mxu0 0.0
  %1702 = vmatprep.subr.mxu0 0.0
  %1703 = vmatpush2.msra.mxu0 0.0
  %1704 = vmatprep.subr.mxu0 0.0
  %1705 = vmatpush2.msra.mxu0 0.0
  %1706 = vmatprep.subr.mxu0 0.0
  %1707 = vmatpush2.msra.mxu0 0.0
  %1708 = vmatprep.subr.mxu0 0.0
  %1709 = vmatpush2.msra.mxu0 0.0
  %1710 = vmatprep.subr.mxu0 0.0
  %1711 = vmatpush2.msra.mxu0 0.0
  %1712 = vmatprep.subr.mxu0 0.0
  %1713 = vmatpush2.msra.mxu0 0.0
  %1714 = vmatprep.subr.mxu0 0.0
  %1715 = vmatpush2.msra.mxu0 0.0
  %1716 = vmatprep.subr.mxu0 0.0
  %1717 = vmatpush2.msra.mxu0 0.0
  %1718 = vmatprep.subr.mxu0 0.0
  %1719 = vmatpush2.msra.mxu0 0.0
  %1720 = vmatprep.subr.mxu0 0.0
  %1721 = vmatpush2.msra.mxu0 0.0
  %1722 = vmatprep.subr.mxu0 0.0
  %1723 = vmatpush2.msra.mxu0 0.0
  %1724 = vmatprep.mubr.f32.mxu0 0.0
  %1725 = vmatmul.mubr.f32.gmra.mxu0 %v1655
  %v1726 = vpop.f32.mrf.mxu0
  %v1727 = vadd.f32 0.0, %v1726
  %v1728 = vpop.f32.mrf.mxu0
  %1729 = vmatprep.mubr.f32.mxu0 0.0
  %1730 = vmatmul.mubr.f32.gmra.mxu0 %v1658
  %v1731 = vpop.f32.mrf.mxu0
  %v1732 = vadd.f32 0.0, %v1731
  %v1733 = vpop.f32.mrf.mxu0
  %1734 = vdwg.mxu0
  %1735 = vrot.lane.b32.xlu0 %v226, 64
  %v1736 = vpop.permute.xlu0 %1735
  %1737 = vrot.lane.b32.xlu0 %v231, 64
  %v1738 = vpop.permute.xlu0 %1737
  %v1742 = vsel %vm949, %v1124, 0
  %v1745 = vsel %vm949, %v1125, 0
  %1747 = vmatprep.subr.mxu0 0.0
  %1748 = vmatpush1.msra.mxu0 0.0
  %1749 = vmatprep.subr.mxu0 0.0
  %1750 = vmatpush1.msra.mxu0 0.0
  %1751 = vmatprep.subr.mxu0 0.0
  %1752 = vmatpush1.msra.mxu0 0.0
  %1753 = vmatprep.subr.mxu0 0.0
  %1754 = vmatpush1.msra.mxu0 0.0
  %1755 = vmatprep.subr.mxu0 0.0
  %1756 = vmatpush1.msra.mxu0 0.0
  %1757 = vmatprep.subr.mxu0 0.0
  %1758 = vmatpush1.msra.mxu0 0.0
  %1759 = vmatprep.subr.mxu0 0.0
  %1760 = vmatpush1.msra.mxu0 0.0
  %1761 = vmatprep.subr.mxu0 0.0
  %1762 = vmatpush1.msra.mxu0 0.0
  %1763 = vmatprep.subr.mxu0 0.0
  %1764 = vmatpush1.msra.mxu0 0.0
  %1765 = vmatprep.subr.mxu0 0.0
  %1766 = vmatpush1.msra.mxu0 0.0
  %1767 = vmatprep.subr.mxu0 0.0
  %1768 = vmatpush1.msra.mxu0 0.0
  %1769 = vmatprep.subr.mxu0 0.0
  %1770 = vmatpush1.msra.mxu0 0.0
  %1771 = vmatprep.subr.mxu0 0.0
  %1772 = vmatpush1.msra.mxu0 0.0
  %1773 = vmatprep.subr.mxu0 0.0
  %1774 = vmatpush1.msra.mxu0 0.0
  %1775 = vmatprep.subr.mxu0 0.0
  %1776 = vmatpush1.msra.mxu0 %v1738
  %1777 = vmatprep.subr.mxu0 0.0
  %1778 = vmatpush1.msra.mxu0 %v1736
  %1779 = vmatprep.subr.mxu0 0.0
  %1780 = vmatpush2.msra.mxu0 0.0
  %1781 = vmatprep.subr.mxu0 0.0
  %1782 = vmatpush2.msra.mxu0 0.0
  %1783 = vmatprep.subr.mxu0 0.0
  %1784 = vmatpush2.msra.mxu0 0.0
  %1785 = vmatprep.subr.mxu0 0.0
  %1786 = vmatpush2.msra.mxu0 0.0
  %1787 = vmatprep.subr.mxu0 0.0
  %1788 = vmatpush2.msra.mxu0 0.0
  %1789 = vmatprep.subr.mxu0 0.0
  %1790 = vmatpush2.msra.mxu0 0.0
  %1791 = vmatprep.subr.mxu0 0.0
  %1792 = vmatpush2.msra.mxu0 0.0
  %1793 = vmatprep.subr.mxu0 0.0
  %1794 = vmatpush2.msra.mxu0 0.0
  %1795 = vmatprep.subr.mxu0 0.0
  %1796 = vmatpush2.msra.mxu0 0.0
  %1797 = vmatprep.subr.mxu0 0.0
  %1798 = vmatpush2.msra.mxu0 0.0
  %1799 = vmatprep.subr.mxu0 0.0
  %1800 = vmatpush2.msra.mxu0 0.0
  %1801 = vmatprep.subr.mxu0 0.0
  %1802 = vmatpush2.msra.mxu0 0.0
  %1803 = vmatprep.subr.mxu0 0.0
  %1804 = vmatpush2.msra.mxu0 0.0
  %1805 = vmatprep.subr.mxu0 0.0
  %1806 = vmatpush2.msra.mxu0 0.0
  %1807 = vmatprep.subr.mxu0 0.0
  %1808 = vmatpush2.msra.mxu0 0.0
  %1809 = vmatprep.subr.mxu0 0.0
  %1810 = vmatpush2.msra.mxu0 0.0
  %1811 = vmatprep.mubr.f32.mxu0 0.0
  %1812 = vmatmul.mubr.f32.gmra.mxu0 %v1742
  %v1813 = vpop.f32.mrf.mxu0
  %v1814 = vadd.f32 0.0, %v1813
  %v1815 = vpop.f32.mrf.mxu0
  %1816 = vmatprep.mubr.f32.mxu0 0.0
  %1817 = vmatmul.mubr.f32.gmra.mxu0 %v1745
  %v1818 = vpop.f32.mrf.mxu0
  %v1819 = vadd.f32 0.0, %v1818
  %v1820 = vpop.f32.mrf.mxu0
  %1821 = vdwg.mxu0
  %1822 = vst.msk [vmem:[#allocation2] sm:$0xff] %vm242, %v1205
  %1823 = vst.msk [vmem:[#allocation2 + $0x8] sm:$0xff] %vm242, %v1210
  %1824 = vst.msk [vmem:[#allocation2 + $0x10] sm:$0xff] %vm242, %v1292
  %1825 = vst.msk [vmem:[#allocation2 + $0x18] sm:$0xff] %vm242, %v1297
  %1826 = vst.msk [vmem:[#allocation2 + $0x20] sm:$0xff] %vm242, %v1379
  %1827 = vst.msk [vmem:[#allocation2 + $0x28] sm:$0xff] %vm242, %v1384
  %1828 = vst.msk [vmem:[#allocation2 + $0x30] sm:$0xff] %vm242, %v1466
  %1829 = vst.msk [vmem:[#allocation2 + $0x38] sm:$0xff] %vm242, %v1471
  %1830 = vst.msk [vmem:[#allocation2 + $0x40] sm:$0xff] %vm242, %v1553
  %1831 = vst.msk [vmem:[#allocation2 + $0x48] sm:$0xff] %vm242, %v1558
  %1832 = vst.msk [vmem:[#allocation2 + $0x50] sm:$0xff] %vm242, %v1640
  %1833 = vst.msk [vmem:[#allocation2 + $0x58] sm:$0xff] %vm242, %v1645
  %1834 = vst.msk [vmem:[#allocation2 + $0x60] sm:$0xff] %vm242, %v1727
  %1835 = vst.msk [vmem:[#allocation2 + $0x68] sm:$0xff] %vm242, %v1732
  %1836 = vst.msk [vmem:[#allocation2 + $0x70] sm:$0xff] %vm242, %v1814
  %1837 = vst.msk [vmem:[#allocation2 + $0x78] sm:$0xff] %vm242, %v1819
  %s1838 = scalar_lea.vmem %s4, 16
  %v1839 = vld [vmem:[%s1838] sm:$0xff]
  %v1840 = vld [vmem:[%s1838 + $0x8] sm:$0xff]
  %1841 = vrot.lane.b32.xlu0 %v156, 120
  %v1842 = vpop.permute.xlu0 %1841
  %1843 = vrot.lane.b32.xlu0 %v161, 120
  %v1844 = vpop.permute.xlu0 %1843
  %1845 = vrot.lane.b32.xlu0 %v156, 88
  %v1846 = vpop.permute.xlu0 %1845
  %1847 = vrot.lane.b32.xlu0 %v161, 88
  %v1848 = vpop.permute.xlu0 %1847
  %v1849 = vsel %vm242, %v1842, 0
  %v1851 = vsel %vm242, %v1844, 0
  %v1853 = vsel %vm242, %v1846, 0
  %v1855 = vsel %vm242, %v1848, 0
  %1857 = vmatprep.subr.mxu0 0.0
  %1858 = vmatpush1.xpose.msra.mxu0 0.0
  %1859 = vmatprep.subr.mxu0 0.0
  %1860 = vmatpush1.xpose.msra.mxu0 0.0
  %1861 = vmatprep.subr.mxu0 0.0
  %1862 = vmatpush1.xpose.msra.mxu0 0.0
  %1863 = vmatprep.subr.mxu0 0.0
  %1864 = vmatpush1.xpose.msra.mxu0 0.0
  %1865 = vmatprep.subr.mxu0 0.0
  %1866 = vmatpush1.xpose.msra.mxu0 0.0
  %1867 = vmatprep.subr.mxu0 0.0
  %1868 = vmatpush1.xpose.msra.mxu0 0.0
  %1869 = vmatprep.subr.mxu0 0.0
  %1870 = vmatpush1.xpose.msra.mxu0 0.0
  %1871 = vmatprep.subr.mxu0 0.0
  %1872 = vmatpush1.xpose.msra.mxu0 0.0
  %1873 = vmatprep.subr.mxu0 0.0
  %1874 = vmatpush1.xpose.msra.mxu0 0.0
  %1875 = vmatprep.subr.mxu0 0.0
  %1876 = vmatpush1.xpose.msra.mxu0 0.0
  %1877 = vmatprep.subr.mxu0 0.0
  %1878 = vmatpush1.xpose.msra.mxu0 0.0
  %1879 = vmatprep.subr.mxu0 0.0
  %1880 = vmatpush1.xpose.msra.mxu0 0.0
  %1881 = vmatprep.subr.mxu0 0.0
  %1882 = vmatpush1.xpose.msra.mxu0 0.0
  %1883 = vmatprep.subr.mxu0 0.0
  %1884 = vmatpush1.xpose.msra.mxu0 0.0
  %1885 = vmatprep.subr.mxu0 0.0
  %1886 = vmatpush1.xpose.msra.mxu0 %v1855
  %1887 = vmatprep.subr.mxu0 0.0
  %1888 = vmatpush1.xpose.msra.mxu0 %v1853
  %1889 = vmatprep.subr.mxu0 0.0
  %1890 = vmatpush2.xpose.msra.mxu0 0.0
  %1891 = vmatprep.subr.mxu0 0.0
  %1892 = vmatpush2.xpose.msra.mxu0 0.0
  %1893 = vmatprep.subr.mxu0 0.0
  %1894 = vmatpush2.xpose.msra.mxu0 0.0
  %1895 = vmatprep.subr.mxu0 0.0
  %1896 = vmatpush2.xpose.msra.mxu0 0.0
  %1897 = vmatprep.subr.mxu0 0.0
  %1898 = vmatpush2.xpose.msra.mxu0 0.0
  %1899 = vmatprep.subr.mxu0 0.0
  %1900 = vmatpush2.xpose.msra.mxu0 0.0
  %1901 = vmatprep.subr.mxu0 0.0
  %1902 = vmatpush2.xpose.msra.mxu0 0.0
  %1903 = vmatprep.subr.mxu0 0.0
  %1904 = vmatpush2.xpose.msra.mxu0 0.0
  %1905 = vmatprep.subr.mxu0 0.0
  %1906 = vmatpush2.xpose.msra.mxu0 0.0
  %1907 = vmatprep.subr.mxu0 0.0
  %1908 = vmatpush2.xpose.msra.mxu0 0.0
  %1909 = vmatprep.subr.mxu0 0.0
  %1910 = vmatpush2.xpose.msra.mxu0 0.0
  %1911 = vmatprep.subr.mxu0 0.0
  %1912 = vmatpush2.xpose.msra.mxu0 0.0
  %1913 = vmatprep.subr.mxu0 0.0
  %1914 = vmatpush2.xpose.msra.mxu0 0.0
  %1915 = vmatprep.subr.mxu0 0.0
  %1916 = vmatpush2.xpose.msra.mxu0 0.0
  %1917 = vmatprep.subr.mxu0 0.0
  %1918 = vmatpush2.xpose.msra.mxu0 0.0
  %1919 = vmatprep.subr.mxu0 0.0
  %1920 = vmatpush2.xpose.msra.mxu0 0.0
  %1921 = vmatprep.mubr.f32.mxu0 0.0
  %1922 = vmatmul.mubr.f32.gmra.mxu0 %v1849
  %v1923 = vpop.f32.mrf.mxu0
  %v1924 = vadd.f32 %v1839, %v1923
  %v1925 = vpop.f32.mrf.mxu0
  %1926 = vmatprep.mubr.f32.mxu0 0.0
  %1927 = vmatmul.mubr.f32.gmra.mxu0 %v1851
  %v1928 = vpop.f32.mrf.mxu0
  %v1929 = vadd.f32 %v1840, %v1928
  %v1930 = vpop.f32.mrf.mxu0
  %1931 = vdwg.mxu0
  %1932 = vrot.lane.b32.xlu0 %v166, 120
  %v1933 = vpop.permute.xlu0 %1932
  %1934 = vrot.lane.b32.xlu0 %v171, 120
  %v1935 = vpop.permute.xlu0 %1934
  %1936 = vrot.lane.b32.xlu0 %v166, 88
  %v1937 = vpop.permute.xlu0 %1936
  %1938 = vrot.lane.b32.xlu0 %v171, 88
  %v1939 = vpop.permute.xlu0 %1938
  %v1940 = vsel %vm242, %v1933, 0
  %v1942 = vsel %vm242, %v1935, 0
  %v1944 = vsel %vm242, %v1937, 0
  %v1946 = vsel %vm242, %v1939, 0
  %1948 = vmatprep.subr.mxu0 0.0
  %1949 = vmatpush1.xpose.msra.mxu0 0.0
  %1950 = vmatprep.subr.mxu0 0.0
  %1951 = vmatpush1.xpose.msra.mxu0 0.0
  %1952 = vmatprep.subr.mxu0 0.0
  %1953 = vmatpush1.xpose.msra.mxu0 0.0
  %1954 = vmatprep.subr.mxu0 0.0
  %1955 = vmatpush1.xpose.msra.mxu0 0.0
  %1956 = vmatprep.subr.mxu0 0.0
  %1957 = vmatpush1.xpose.msra.mxu0 0.0
  %1958 = vmatprep.subr.mxu0 0.0
  %1959 = vmatpush1.xpose.msra.mxu0 0.0
  %1960 = vmatprep.subr.mxu0 0.0
  %1961 = vmatpush1.xpose.msra.mxu0 0.0
  %1962 = vmatprep.subr.mxu0 0.0
  %1963 = vmatpush1.xpose.msra.mxu0 0.0
  %1964 = vmatprep.subr.mxu0 0.0
  %1965 = vmatpush1.xpose.msra.mxu0 0.0
  %1966 = vmatprep.subr.mxu0 0.0
  %1967 = vmatpush1.xpose.msra.mxu0 0.0
  %1968 = vmatprep.subr.mxu0 0.0
  %1969 = vmatpush1.xpose.msra.mxu0 0.0
  %1970 = vmatprep.subr.mxu0 0.0
  %1971 = vmatpush1.xpose.msra.mxu0 0.0
  %1972 = vmatprep.subr.mxu0 0.0
  %1973 = vmatpush1.xpose.msra.mxu0 0.0
  %1974 = vmatprep.subr.mxu0 0.0
  %1975 = vmatpush1.xpose.msra.mxu0 0.0
  %1976 = vmatprep.subr.mxu0 0.0
  %1977 = vmatpush1.xpose.msra.mxu0 %v1946
  %1978 = vmatprep.subr.mxu0 0.0
  %1979 = vmatpush1.xpose.msra.mxu0 %v1944
  %1980 = vmatprep.subr.mxu0 0.0
  %1981 = vmatpush2.xpose.msra.mxu0 0.0
  %1982 = vmatprep.subr.mxu0 0.0
  %1983 = vmatpush2.xpose.msra.mxu0 0.0
  %1984 = vmatprep.subr.mxu0 0.0
  %1985 = vmatpush2.xpose.msra.mxu0 0.0
  %1986 = vmatprep.subr.mxu0 0.0
  %1987 = vmatpush2.xpose.msra.mxu0 0.0
  %1988 = vmatprep.subr.mxu0 0.0
  %1989 = vmatpush2.xpose.msra.mxu0 0.0
  %1990 = vmatprep.subr.mxu0 0.0
  %1991 = vmatpush2.xpose.msra.mxu0 0.0
  %1992 = vmatprep.subr.mxu0 0.0
  %1993 = vmatpush2.xpose.msra.mxu0 0.0
  %1994 = vmatprep.subr.mxu0 0.0
  %1995 = vmatpush2.xpose.msra.mxu0 0.0
  %1996 = vmatprep.subr.mxu0 0.0
  %1997 = vmatpush2.xpose.msra.mxu0 0.0
  %1998 = vmatprep.subr.mxu0 0.0
  %1999 = vmatpush2.xpose.msra.mxu0 0.0
  %2000 = vmatprep.subr.mxu0 0.0
  %2001 = vmatpush2.xpose.msra.mxu0 0.0
  %2002 = vmatprep.subr.mxu0 0.0
  %2003 = vmatpush2.xpose.msra.mxu0 0.0
  %2004 = vmatprep.subr.mxu0 0.0
  %2005 = vmatpush2.xpose.msra.mxu0 0.0
  %2006 = vmatprep.subr.mxu0 0.0
  %2007 = vmatpush2.xpose.msra.mxu0 0.0
  %2008 = vmatprep.subr.mxu0 0.0
  %2009 = vmatpush2.xpose.msra.mxu0 0.0
  %2010 = vmatprep.subr.mxu0 0.0
  %2011 = vmatpush2.xpose.msra.mxu0 0.0
  %2012 = vmatprep.mubr.f32.mxu0 0.0
  %2013 = vmatmul.mubr.f32.gmra.mxu0 %v1940
  %v2014 = vpop.f32.mrf.mxu0
  %v2015 = vadd.f32 %v1839, %v2014
  %v2016 = vpop.f32.mrf.mxu0
  %2017 = vmatprep.mubr.f32.mxu0 0.0
  %2018 = vmatmul.mubr.f32.gmra.mxu0 %v1942
  %v2019 = vpop.f32.mrf.mxu0
  %v2020 = vadd.f32 %v1840, %v2019
  %v2021 = vpop.f32.mrf.mxu0
  %2022 = vdwg.mxu0
  %2023 = vrot.lane.b32.xlu0 %v176, 120
  %v2024 = vpop.permute.xlu0 %2023
  %2025 = vrot.lane.b32.xlu0 %v181, 120
  %v2026 = vpop.permute.xlu0 %2025
  %2027 = vrot.lane.b32.xlu0 %v176, 88
  %v2028 = vpop.permute.xlu0 %2027
  %2029 = vrot.lane.b32.xlu0 %v181, 88
  %v2030 = vpop.permute.xlu0 %2029
  %v2031 = vsel %vm242, %v2024, 0
  %v2033 = vsel %vm242, %v2026, 0
  %v2035 = vsel %vm242, %v2028, 0
  %v2037 = vsel %vm242, %v2030, 0
  %2039 = vmatprep.subr.mxu0 0.0
  %2040 = vmatpush1.xpose.msra.mxu0 0.0
  %2041 = vmatprep.subr.mxu0 0.0
  %2042 = vmatpush1.xpose.msra.mxu0 0.0
  %2043 = vmatprep.subr.mxu0 0.0
  %2044 = vmatpush1.xpose.msra.mxu0 0.0
  %2045 = vmatprep.subr.mxu0 0.0
  %2046 = vmatpush1.xpose.msra.mxu0 0.0
  %2047 = vmatprep.subr.mxu0 0.0
  %2048 = vmatpush1.xpose.msra.mxu0 0.0
  %2049 = vmatprep.subr.mxu0 0.0
  %2050 = vmatpush1.xpose.msra.mxu0 0.0
  %2051 = vmatprep.subr.mxu0 0.0
  %2052 = vmatpush1.xpose.msra.mxu0 0.0
  %2053 = vmatprep.subr.mxu0 0.0
  %2054 = vmatpush1.xpose.msra.mxu0 0.0
  %2055 = vmatprep.subr.mxu0 0.0
  %2056 = vmatpush1.xpose.msra.mxu0 0.0
  %2057 = vmatprep.subr.mxu0 0.0
  %2058 = vmatpush1.xpose.msra.mxu0 0.0
  %2059 = vmatprep.subr.mxu0 0.0
  %2060 = vmatpush1.xpose.msra.mxu0 0.0
  %2061 = vmatprep.subr.mxu0 0.0
  %2062 = vmatpush1.xpose.msra.mxu0 0.0
  %2063 = vmatprep.subr.mxu0 0.0
  %2064 = vmatpush1.xpose.msra.mxu0 0.0
  %2065 = vmatprep.subr.mxu0 0.0
  %2066 = vmatpush1.xpose.msra.mxu0 0.0
  %2067 = vmatprep.subr.mxu0 0.0
  %2068 = vmatpush1.xpose.msra.mxu0 %v2037
  %2069 = vmatprep.subr.mxu0 0.0
  %2070 = vmatpush1.xpose.msra.mxu0 %v2035
  %2071 = vmatprep.subr.mxu0 0.0
  %2072 = vmatpush2.xpose.msra.mxu0 0.0
  %2073 = vmatprep.subr.mxu0 0.0
  %2074 = vmatpush2.xpose.msra.mxu0 0.0
  %2075 = vmatprep.subr.mxu0 0.0
  %2076 = vmatpush2.xpose.msra.mxu0 0.0
  %2077 = vmatprep.subr.mxu0 0.0
  %2078 = vmatpush2.xpose.msra.mxu0 0.0
  %2079 = vmatprep.subr.mxu0 0.0
  %2080 = vmatpush2.xpose.msra.mxu0 0.0
  %2081 = vmatprep.subr.mxu0 0.0
  %2082 = vmatpush2.xpose.msra.mxu0 0.0
  %2083 = vmatprep.subr.mxu0 0.0
  %2084 = vmatpush2.xpose.msra.mxu0 0.0
  %2085 = vmatprep.subr.mxu0 0.0
  %2086 = vmatpush2.xpose.msra.mxu0 0.0
  %2087 = vmatprep.subr.mxu0 0.0
  %2088 = vmatpush2.xpose.msra.mxu0 0.0
  %2089 = vmatprep.subr.mxu0 0.0
  %2090 = vmatpush2.xpose.msra.mxu0 0.0
  %2091 = vmatprep.subr.mxu0 0.0
  %2092 = vmatpush2.xpose.msra.mxu0 0.0
  %2093 = vmatprep.subr.mxu0 0.0
  %2094 = vmatpush2.xpose.msra.mxu0 0.0
  %2095 = vmatprep.subr.mxu0 0.0
  %2096 = vmatpush2.xpose.msra.mxu0 0.0
  %2097 = vmatprep.subr.mxu0 0.0
  %2098 = vmatpush2.xpose.msra.mxu0 0.0
  %2099 = vmatprep.subr.mxu0 0.0
  %2100 = vmatpush2.xpose.msra.mxu0 0.0
  %2101 = vmatprep.subr.mxu0 0.0
  %2102 = vmatpush2.xpose.msra.mxu0 0.0
  %2103 = vmatprep.mubr.f32.mxu0 0.0
  %2104 = vmatmul.mubr.f32.gmra.mxu0 %v2031
  %v2105 = vpop.f32.mrf.mxu0
  %v2106 = vadd.f32 %v1839, %v2105
  %v2107 = vpop.f32.mrf.mxu0
  %2108 = vmatprep.mubr.f32.mxu0 0.0
  %2109 = vmatmul.mubr.f32.gmra.mxu0 %v2033
  %v2110 = vpop.f32.mrf.mxu0
  %v2111 = vadd.f32 %v1840, %v2110
  %v2112 = vpop.f32.mrf.mxu0
  %2113 = vdwg.mxu0
  %2114 = vrot.lane.b32.xlu0 %v186, 120
  %v2115 = vpop.permute.xlu0 %2114
  %2116 = vrot.lane.b32.xlu0 %v191, 120
  %v2117 = vpop.permute.xlu0 %2116
  %2118 = vrot.lane.b32.xlu0 %v186, 88
  %v2119 = vpop.permute.xlu0 %2118
  %2120 = vrot.lane.b32.xlu0 %v191, 88
  %v2121 = vpop.permute.xlu0 %2120
  %v2122 = vsel %vm242, %v2115, 0
  %v2124 = vsel %vm242, %v2117, 0
  %v2126 = vsel %vm242, %v2119, 0
  %v2128 = vsel %vm242, %v2121, 0
  %2130 = vmatprep.subr.mxu0 0.0
  %2131 = vmatpush1.xpose.msra.mxu0 0.0
  %2132 = vmatprep.subr.mxu0 0.0
  %2133 = vmatpush1.xpose.msra.mxu0 0.0
  %2134 = vmatprep.subr.mxu0 0.0
  %2135 = vmatpush1.xpose.msra.mxu0 0.0
  %2136 = vmatprep.subr.mxu0 0.0
  %2137 = vmatpush1.xpose.msra.mxu0 0.0
  %2138 = vmatprep.subr.mxu0 0.0
  %2139 = vmatpush1.xpose.msra.mxu0 0.0
  %2140 = vmatprep.subr.mxu0 0.0
  %2141 = vmatpush1.xpose.msra.mxu0 0.0
  %2142 = vmatprep.subr.mxu0 0.0
  %2143 = vmatpush1.xpose.msra.mxu0 0.0
  %2144 = vmatprep.subr.mxu0 0.0
  %2145 = vmatpush1.xpose.msra.mxu0 0.0
  %2146 = vmatprep.subr.mxu0 0.0
  %2147 = vmatpush1.xpose.msra.mxu0 0.0
  %2148 = vmatprep.subr.mxu0 0.0
  %2149 = vmatpush1.xpose.msra.mxu0 0.0
  %2150 = vmatprep.subr.mxu0 0.0
  %2151 = vmatpush1.xpose.msra.mxu0 0.0
  %2152 = vmatprep.subr.mxu0 0.0
  %2153 = vmatpush1.xpose.msra.mxu0 0.0
  %2154 = vmatprep.subr.mxu0 0.0
  %2155 = vmatpush1.xpose.msra.mxu0 0.0
  %2156 = vmatprep.subr.mxu0 0.0
  %2157 = vmatpush1.xpose.msra.mxu0 0.0
  %2158 = vmatprep.subr.mxu0 0.0
  %2159 = vmatpush1.xpose.msra.mxu0 %v2128
  %2160 = vmatprep.subr.mxu0 0.0
  %2161 = vmatpush1.xpose.msra.mxu0 %v2126
  %2162 = vmatprep.subr.mxu0 0.0
  %2163 = vmatpush2.xpose.msra.mxu0 0.0
  %2164 = vmatprep.subr.mxu0 0.0
  %2165 = vmatpush2.xpose.msra.mxu0 0.0
  %2166 = vmatprep.subr.mxu0 0.0
  %2167 = vmatpush2.xpose.msra.mxu0 0.0
  %2168 = vmatprep.subr.mxu0 0.0
  %2169 = vmatpush2.xpose.msra.mxu0 0.0
  %2170 = vmatprep.subr.mxu0 0.0
  %2171 = vmatpush2.xpose.msra.mxu0 0.0
  %2172 = vmatprep.subr.mxu0 0.0
  %2173 = vmatpush2.xpose.msra.mxu0 0.0
  %2174 = vmatprep.subr.mxu0 0.0
  %2175 = vmatpush2.xpose.msra.mxu0 0.0
  %2176 = vmatprep.subr.mxu0 0.0
  %2177 = vmatpush2.xpose.msra.mxu0 0.0
  %2178 = vmatprep.subr.mxu0 0.0
  %2179 = vmatpush2.xpose.msra.mxu0 0.0
  %2180 = vmatprep.subr.mxu0 0.0
  %2181 = vmatpush2.xpose.msra.mxu0 0.0
  %2182 = vmatprep.subr.mxu0 0.0
  %2183 = vmatpush2.xpose.msra.mxu0 0.0
  %2184 = vmatprep.subr.mxu0 0.0
  %2185 = vmatpush2.xpose.msra.mxu0 0.0
  %2186 = vmatprep.subr.mxu0 0.0
  %2187 = vmatpush2.xpose.msra.mxu0 0.0
  %2188 = vmatprep.subr.mxu0 0.0
  %2189 = vmatpush2.xpose.msra.mxu0 0.0
  %2190 = vmatprep.subr.mxu0 0.0
  %2191 = vmatpush2.xpose.msra.mxu0 0.0
  %2192 = vmatprep.subr.mxu0 0.0
  %2193 = vmatpush2.xpose.msra.mxu0 0.0
  %2194 = vmatprep.mubr.f32.mxu0 0.0
  %2195 = vmatmul.mubr.f32.gmra.mxu0 %v2122
  %v2196 = vpop.f32.mrf.mxu0
  %v2197 = vadd.f32 %v1839, %v2196
  %v2198 = vpop.f32.mrf.mxu0
  %2199 = vmatprep.mubr.f32.mxu0 0.0
  %2200 = vmatmul.mubr.f32.gmra.mxu0 %v2124
  %v2201 = vpop.f32.mrf.mxu0
  %v2202 = vadd.f32 %v1840, %v2201
  %v2203 = vpop.f32.mrf.mxu0
  %2204 = vdwg.mxu0
  %2205 = vrot.lane.b32.xlu0 %v196, 120
  %v2206 = vpop.permute.xlu0 %2205
  %2207 = vrot.lane.b32.xlu0 %v201, 120
  %v2208 = vpop.permute.xlu0 %2207
  %2209 = vrot.lane.b32.xlu0 %v196, 88
  %v2210 = vpop.permute.xlu0 %2209
  %2211 = vrot.lane.b32.xlu0 %v201, 88
  %v2212 = vpop.permute.xlu0 %2211
  %v2213 = vsel %vm242, %v2206, 0
  %v2215 = vsel %vm242, %v2208, 0
  %v2217 = vsel %vm242, %v2210, 0
  %v2219 = vsel %vm242, %v2212, 0
  %2221 = vmatprep.subr.mxu0 0.0
  %2222 = vmatpush1.xpose.msra.mxu0 0.0
  %2223 = vmatprep.subr.mxu0 0.0
  %2224 = vmatpush1.xpose.msra.mxu0 0.0
  %2225 = vmatprep.subr.mxu0 0.0
  %2226 = vmatpush1.xpose.msra.mxu0 0.0
  %2227 = vmatprep.subr.mxu0 0.0
  %2228 = vmatpush1.xpose.msra.mxu0 0.0
  %2229 = vmatprep.subr.mxu0 0.0
  %2230 = vmatpush1.xpose.msra.mxu0 0.0
  %2231 = vmatprep.subr.mxu0 0.0
  %2232 = vmatpush1.xpose.msra.mxu0 0.0
  %2233 = vmatprep.subr.mxu0 0.0
  %2234 = vmatpush1.xpose.msra.mxu0 0.0
  %2235 = vmatprep.subr.mxu0 0.0
  %2236 = vmatpush1.xpose.msra.mxu0 0.0
  %2237 = vmatprep.subr.mxu0 0.0
  %2238 = vmatpush1.xpose.msra.mxu0 0.0
  %2239 = vmatprep.subr.mxu0 0.0
  %2240 = vmatpush1.xpose.msra.mxu0 0.0
  %2241 = vmatprep.subr.mxu0 0.0
  %2242 = vmatpush1.xpose.msra.mxu0 0.0
  %2243 = vmatprep.subr.mxu0 0.0
  %2244 = vmatpush1.xpose.msra.mxu0 0.0
  %2245 = vmatprep.subr.mxu0 0.0
  %2246 = vmatpush1.xpose.msra.mxu0 0.0
  %2247 = vmatprep.subr.mxu0 0.0
  %2248 = vmatpush1.xpose.msra.mxu0 0.0
  %2249 = vmatprep.subr.mxu0 0.0
  %2250 = vmatpush1.xpose.msra.mxu0 %v2219
  %2251 = vmatprep.subr.mxu0 0.0
  %2252 = vmatpush1.xpose.msra.mxu0 %v2217
  %2253 = vmatprep.subr.mxu0 0.0
  %2254 = vmatpush2.xpose.msra.mxu0 0.0
  %2255 = vmatprep.subr.mxu0 0.0
  %2256 = vmatpush2.xpose.msra.mxu0 0.0
  %2257 = vmatprep.subr.mxu0 0.0
  %2258 = vmatpush2.xpose.msra.mxu0 0.0
  %2259 = vmatprep.subr.mxu0 0.0
  %2260 = vmatpush2.xpose.msra.mxu0 0.0
  %2261 = vmatprep.subr.mxu0 0.0
  %2262 = vmatpush2.xpose.msra.mxu0 0.0
  %2263 = vmatprep.subr.mxu0 0.0
  %2264 = vmatpush2.xpose.msra.mxu0 0.0
  %2265 = vmatprep.subr.mxu0 0.0
  %2266 = vmatpush2.xpose.msra.mxu0 0.0
  %2267 = vmatprep.subr.mxu0 0.0
  %2268 = vmatpush2.xpose.msra.mxu0 0.0
  %2269 = vmatprep.subr.mxu0 0.0
  %2270 = vmatpush2.xpose.msra.mxu0 0.0
  %2271 = vmatprep.subr.mxu0 0.0
  %2272 = vmatpush2.xpose.msra.mxu0 0.0
  %2273 = vmatprep.subr.mxu0 0.0
  %2274 = vmatpush2.xpose.msra.mxu0 0.0
  %2275 = vmatprep.subr.mxu0 0.0
  %2276 = vmatpush2.xpose.msra.mxu0 0.0
  %2277 = vmatprep.subr.mxu0 0.0
  %2278 = vmatpush2.xpose.msra.mxu0 0.0
  %2279 = vmatprep.subr.mxu0 0.0
  %2280 = vmatpush2.xpose.msra.mxu0 0.0
  %2281 = vmatprep.subr.mxu0 0.0
  %2282 = vmatpush2.xpose.msra.mxu0 0.0
  %2283 = vmatprep.subr.mxu0 0.0
  %2284 = vmatpush2.xpose.msra.mxu0 0.0
  %2285 = vmatprep.mubr.f32.mxu0 0.0
  %2286 = vmatmul.mubr.f32.gmra.mxu0 %v2213
  %v2287 = vpop.f32.mrf.mxu0
  %v2288 = vadd.f32 %v1839, %v2287
  %v2289 = vpop.f32.mrf.mxu0
  %2290 = vmatprep.mubr.f32.mxu0 0.0
  %2291 = vmatmul.mubr.f32.gmra.mxu0 %v2215
  %v2292 = vpop.f32.mrf.mxu0
  %v2293 = vadd.f32 %v1840, %v2292
  %v2294 = vpop.f32.mrf.mxu0
  %2295 = vdwg.mxu0
  %2296 = vrot.lane.b32.xlu0 %v206, 120
  %v2297 = vpop.permute.xlu0 %2296
  %2298 = vrot.lane.b32.xlu0 %v211, 120
  %v2299 = vpop.permute.xlu0 %2298
  %2300 = vrot.lane.b32.xlu0 %v206, 88
  %v2301 = vpop.permute.xlu0 %2300
  %2302 = vrot.lane.b32.xlu0 %v211, 88
  %v2303 = vpop.permute.xlu0 %2302
  %v2304 = vsel %vm242, %v2297, 0
  %v2306 = vsel %vm242, %v2299, 0
  %v2308 = vsel %vm242, %v2301, 0
  %v2310 = vsel %vm242, %v2303, 0
  %2312 = vmatprep.subr.mxu0 0.0
  %2313 = vmatpush1.xpose.msra.mxu0 0.0
  %2314 = vmatprep.subr.mxu0 0.0
  %2315 = vmatpush1.xpose.msra.mxu0 0.0
  %2316 = vmatprep.subr.mxu0 0.0
  %2317 = vmatpush1.xpose.msra.mxu0 0.0
  %2318 = vmatprep.subr.mxu0 0.0
  %2319 = vmatpush1.xpose.msra.mxu0 0.0
  %2320 = vmatprep.subr.mxu0 0.0
  %2321 = vmatpush1.xpose.msra.mxu0 0.0
  %2322 = vmatprep.subr.mxu0 0.0
  %2323 = vmatpush1.xpose.msra.mxu0 0.0
  %2324 = vmatprep.subr.mxu0 0.0
  %2325 = vmatpush1.xpose.msra.mxu0 0.0
  %2326 = vmatprep.subr.mxu0 0.0
  %2327 = vmatpush1.xpose.msra.mxu0 0.0
  %2328 = vmatprep.subr.mxu0 0.0
  %2329 = vmatpush1.xpose.msra.mxu0 0.0
  %2330 = vmatprep.subr.mxu0 0.0
  %2331 = vmatpush1.xpose.msra.mxu0 0.0
  %2332 = vmatprep.subr.mxu0 0.0
  %2333 = vmatpush1.xpose.msra.mxu0 0.0
  %2334 = vmatprep.subr.mxu0 0.0
  %2335 = vmatpush1.xpose.msra.mxu0 0.0
  %2336 = vmatprep.subr.mxu0 0.0
  %2337 = vmatpush1.xpose.msra.mxu0 0.0
  %2338 = vmatprep.subr.mxu0 0.0
  %2339 = vmatpush1.xpose.msra.mxu0 0.0
  %2340 = vmatprep.subr.mxu0 0.0
  %2341 = vmatpush1.xpose.msra.mxu0 %v2310
  %2342 = vmatprep.subr.mxu0 0.0
  %2343 = vmatpush1.xpose.msra.mxu0 %v2308
  %2344 = vmatprep.subr.mxu0 0.0
  %2345 = vmatpush2.xpose.msra.mxu0 0.0
  %2346 = vmatprep.subr.mxu0 0.0
  %2347 = vmatpush2.xpose.msra.mxu0 0.0
  %2348 = vmatprep.subr.mxu0 0.0
  %2349 = vmatpush2.xpose.msra.mxu0 0.0
  %2350 = vmatprep.subr.mxu0 0.0
  %2351 = vmatpush2.xpose.msra.mxu0 0.0
  %2352 = vmatprep.subr.mxu0 0.0
  %2353 = vmatpush2.xpose.msra.mxu0 0.0
  %2354 = vmatprep.subr.mxu0 0.0
  %2355 = vmatpush2.xpose.msra.mxu0 0.0
  %2356 = vmatprep.subr.mxu0 0.0
  %2357 = vmatpush2.xpose.msra.mxu0 0.0
  %2358 = vmatprep.subr.mxu0 0.0
  %2359 = vmatpush2.xpose.msra.mxu0 0.0
  %2360 = vmatprep.subr.mxu0 0.0
  %2361 = vmatpush2.xpose.msra.mxu0 0.0
  %2362 = vmatprep.subr.mxu0 0.0
  %2363 = vmatpush2.xpose.msra.mxu0 0.0
  %2364 = vmatprep.subr.mxu0 0.0
  %2365 = vmatpush2.xpose.msra.mxu0 0.0
  %2366 = vmatprep.subr.mxu0 0.0
  %2367 = vmatpush2.xpose.msra.mxu0 0.0
  %2368 = vmatprep.subr.mxu0 0.0
  %2369 = vmatpush2.xpose.msra.mxu0 0.0
  %2370 = vmatprep.subr.mxu0 0.0
  %2371 = vmatpush2.xpose.msra.mxu0 0.0
  %2372 = vmatprep.subr.mxu0 0.0
  %2373 = vmatpush2.xpose.msra.mxu0 0.0
  %2374 = vmatprep.subr.mxu0 0.0
  %2375 = vmatpush2.xpose.msra.mxu0 0.0
  %2376 = vmatprep.mubr.f32.mxu0 0.0
  %2377 = vmatmul.mubr.f32.gmra.mxu0 %v2304
  %v2378 = vpop.f32.mrf.mxu0
  %v2379 = vadd.f32 %v1839, %v2378
  %v2380 = vpop.f32.mrf.mxu0
  %2381 = vmatprep.mubr.f32.mxu0 0.0
  %2382 = vmatmul.mubr.f32.gmra.mxu0 %v2306
  %v2383 = vpop.f32.mrf.mxu0
  %v2384 = vadd.f32 %v1840, %v2383
  %v2385 = vpop.f32.mrf.mxu0
  %2386 = vdwg.mxu0
  %2387 = vrot.lane.b32.xlu0 %v216, 120
  %v2388 = vpop.permute.xlu0 %2387
  %2389 = vrot.lane.b32.xlu0 %v221, 120
  %v2390 = vpop.permute.xlu0 %2389
  %2391 = vrot.lane.b32.xlu0 %v216, 88
  %v2392 = vpop.permute.xlu0 %2391
  %2393 = vrot.lane.b32.xlu0 %v221, 88
  %v2394 = vpop.permute.xlu0 %2393
  %v2395 = vsel %vm242, %v2388, 0
  %v2397 = vsel %vm242, %v2390, 0
  %v2399 = vsel %vm242, %v2392, 0
  %v2401 = vsel %vm242, %v2394, 0
  %2403 = vmatprep.subr.mxu0 0.0
  %2404 = vmatpush1.xpose.msra.mxu0 0.0
  %2405 = vmatprep.subr.mxu0 0.0
  %2406 = vmatpush1.xpose.msra.mxu0 0.0
  %2407 = vmatprep.subr.mxu0 0.0
  %2408 = vmatpush1.xpose.msra.mxu0 0.0
  %2409 = vmatprep.subr.mxu0 0.0
  %2410 = vmatpush1.xpose.msra.mxu0 0.0
  %2411 = vmatprep.subr.mxu0 0.0
  %2412 = vmatpush1.xpose.msra.mxu0 0.0
  %2413 = vmatprep.subr.mxu0 0.0
  %2414 = vmatpush1.xpose.msra.mxu0 0.0
  %2415 = vmatprep.subr.mxu0 0.0
  %2416 = vmatpush1.xpose.msra.mxu0 0.0
  %2417 = vmatprep.subr.mxu0 0.0
  %2418 = vmatpush1.xpose.msra.mxu0 0.0
  %2419 = vmatprep.subr.mxu0 0.0
  %2420 = vmatpush1.xpose.msra.mxu0 0.0
  %2421 = vmatprep.subr.mxu0 0.0
  %2422 = vmatpush1.xpose.msra.mxu0 0.0
  %2423 = vmatprep.subr.mxu0 0.0
  %2424 = vmatpush1.xpose.msra.mxu0 0.0
  %2425 = vmatprep.subr.mxu0 0.0
  %2426 = vmatpush1.xpose.msra.mxu0 0.0
  %2427 = vmatprep.subr.mxu0 0.0
  %2428 = vmatpush1.xpose.msra.mxu0 0.0
  %2429 = vmatprep.subr.mxu0 0.0
  %2430 = vmatpush1.xpose.msra.mxu0 0.0
  %2431 = vmatprep.subr.mxu0 0.0
  %2432 = vmatpush1.xpose.msra.mxu0 %v2401
  %2433 = vmatprep.subr.mxu0 0.0
  %2434 = vmatpush1.xpose.msra.mxu0 %v2399
  %2435 = vmatprep.subr.mxu0 0.0
  %2436 = vmatpush2.xpose.msra.mxu0 0.0
  %2437 = vmatprep.subr.mxu0 0.0
  %2438 = vmatpush2.xpose.msra.mxu0 0.0
  %2439 = vmatprep.subr.mxu0 0.0
  %2440 = vmatpush2.xpose.msra.mxu0 0.0
  %2441 = vmatprep.subr.mxu0 0.0
  %2442 = vmatpush2.xpose.msra.mxu0 0.0
  %2443 = vmatprep.subr.mxu0 0.0
  %2444 = vmatpush2.xpose.msra.mxu0 0.0
  %2445 = vmatprep.subr.mxu0 0.0
  %2446 = vmatpush2.xpose.msra.mxu0 0.0
  %2447 = vmatprep.subr.mxu0 0.0
  %2448 = vmatpush2.xpose.msra.mxu0 0.0
  %2449 = vmatprep.subr.mxu0 0.0
  %2450 = vmatpush2.xpose.msra.mxu0 0.0
  %2451 = vmatprep.subr.mxu0 0.0
  %2452 = vmatpush2.xpose.msra.mxu0 0.0
  %2453 = vmatprep.subr.mxu0 0.0
  %2454 = vmatpush2.xpose.msra.mxu0 0.0
  %2455 = vmatprep.subr.mxu0 0.0
  %2456 = vmatpush2.xpose.msra.mxu0 0.0
  %2457 = vmatprep.subr.mxu0 0.0
  %2458 = vmatpush2.xpose.msra.mxu0 0.0
  %2459 = vmatprep.subr.mxu0 0.0
  %2460 = vmatpush2.xpose.msra.mxu0 0.0
  %2461 = vmatprep.subr.mxu0 0.0
  %2462 = vmatpush2.xpose.msra.mxu0 0.0
  %2463 = vmatprep.subr.mxu0 0.0
  %2464 = vmatpush2.xpose.msra.mxu0 0.0
  %2465 = vmatprep.subr.mxu0 0.0
  %2466 = vmatpush2.xpose.msra.mxu0 0.0
  %2467 = vmatprep.mubr.f32.mxu0 0.0
  %2468 = vmatmul.mubr.f32.gmra.mxu0 %v2395
  %v2469 = vpop.f32.mrf.mxu0
  %v2470 = vadd.f32 %v1839, %v2469
  %v2471 = vpop.f32.mrf.mxu0
  %2472 = vmatprep.mubr.f32.mxu0 0.0
  %2473 = vmatmul.mubr.f32.gmra.mxu0 %v2397
  %v2474 = vpop.f32.mrf.mxu0
  %v2475 = vadd.f32 %v1840, %v2474
  %v2476 = vpop.f32.mrf.mxu0
  %2477 = vdwg.mxu0
  %2478 = vrot.lane.b32.xlu0 %v226, 120
  %v2479 = vpop.permute.xlu0 %2478
  %2480 = vrot.lane.b32.xlu0 %v231, 120
  %v2481 = vpop.permute.xlu0 %2480
  %2482 = vrot.lane.b32.xlu0 %v226, 88
  %v2483 = vpop.permute.xlu0 %2482
  %2484 = vrot.lane.b32.xlu0 %v231, 88
  %v2485 = vpop.permute.xlu0 %2484
  %v2486 = vsel %vm242, %v2479, 0
  %v2488 = vsel %vm242, %v2481, 0
  %v2490 = vsel %vm242, %v2483, 0
  %v2492 = vsel %vm242, %v2485, 0
  %2494 = vmatprep.subr.mxu0 0.0
  %2495 = vmatpush1.xpose.msra.mxu0 0.0
  %2496 = vmatprep.subr.mxu0 0.0
  %2497 = vmatpush1.xpose.msra.mxu0 0.0
  %2498 = vmatprep.subr.mxu0 0.0
  %2499 = vmatpush1.xpose.msra.mxu0 0.0
  %2500 = vmatprep.subr.mxu0 0.0
  %2501 = vmatpush1.xpose.msra.mxu0 0.0
  %2502 = vmatprep.subr.mxu0 0.0
  %2503 = vmatpush1.xpose.msra.mxu0 0.0
  %2504 = vmatprep.subr.mxu0 0.0
  %2505 = vmatpush1.xpose.msra.mxu0 0.0
  %2506 = vmatprep.subr.mxu0 0.0
  %2507 = vmatpush1.xpose.msra.mxu0 0.0
  %2508 = vmatprep.subr.mxu0 0.0
  %2509 = vmatpush1.xpose.msra.mxu0 0.0
  %2510 = vmatprep.subr.mxu0 0.0
  %2511 = vmatpush1.xpose.msra.mxu0 0.0
  %2512 = vmatprep.subr.mxu0 0.0
  %2513 = vmatpush1.xpose.msra.mxu0 0.0
  %2514 = vmatprep.subr.mxu0 0.0
  %2515 = vmatpush1.xpose.msra.mxu0 0.0
  %2516 = vmatprep.subr.mxu0 0.0
  %2517 = vmatpush1.xpose.msra.mxu0 0.0
  %2518 = vmatprep.subr.mxu0 0.0
  %2519 = vmatpush1.xpose.msra.mxu0 0.0
  %2520 = vmatprep.subr.mxu0 0.0
  %2521 = vmatpush1.xpose.msra.mxu0 0.0
  %2522 = vmatprep.subr.mxu0 0.0
  %2523 = vmatpush1.xpose.msra.mxu0 %v2492
  %2524 = vmatprep.subr.mxu0 0.0
  %2525 = vmatpush1.xpose.msra.mxu0 %v2490
  %2526 = vmatprep.subr.mxu0 0.0
  %2527 = vmatpush2.xpose.msra.mxu0 0.0
  %2528 = vmatprep.subr.mxu0 0.0
  %2529 = vmatpush2.xpose.msra.mxu0 0.0
  %2530 = vmatprep.subr.mxu0 0.0
  %2531 = vmatpush2.xpose.msra.mxu0 0.0
  %2532 = vmatprep.subr.mxu0 0.0
  %2533 = vmatpush2.xpose.msra.mxu0 0.0
  %2534 = vmatprep.subr.mxu0 0.0
  %2535 = vmatpush2.xpose.msra.mxu0 0.0
  %2536 = vmatprep.subr.mxu0 0.0
  %2537 = vmatpush2.xpose.msra.mxu0 0.0
  %2538 = vmatprep.subr.mxu0 0.0
  %2539 = vmatpush2.xpose.msra.mxu0 0.0
  %2540 = vmatprep.subr.mxu0 0.0
  %2541 = vmatpush2.xpose.msra.mxu0 0.0
  %2542 = vmatprep.subr.mxu0 0.0
  %2543 = vmatpush2.xpose.msra.mxu0 0.0
  %2544 = vmatprep.subr.mxu0 0.0
  %2545 = vmatpush2.xpose.msra.mxu0 0.0
  %2546 = vmatprep.subr.mxu0 0.0
  %2547 = vmatpush2.xpose.msra.mxu0 0.0
  %2548 = vmatprep.subr.mxu0 0.0
  %2549 = vmatpush2.xpose.msra.mxu0 0.0
  %2550 = vmatprep.subr.mxu0 0.0
  %2551 = vmatpush2.xpose.msra.mxu0 0.0
  %2552 = vmatprep.subr.mxu0 0.0
  %2553 = vmatpush2.xpose.msra.mxu0 0.0
  %2554 = vmatprep.subr.mxu0 0.0
  %2555 = vmatpush2.xpose.msra.mxu0 0.0
  %2556 = vmatprep.subr.mxu0 0.0
  %2557 = vmatpush2.xpose.msra.mxu0 0.0
  %2558 = vmatprep.mubr.f32.mxu0 0.0
  %2559 = vmatmul.mubr.f32.gmra.mxu0 %v2486
  %v2560 = vpop.f32.mrf.mxu0
  %v2561 = vadd.f32 %v1839, %v2560
  %v2562 = vpop.f32.mrf.mxu0
  %2563 = vmatprep.mubr.f32.mxu0 0.0
  %2564 = vmatmul.mubr.f32.gmra.mxu0 %v2488
  %v2565 = vpop.f32.mrf.mxu0
  %v2566 = vadd.f32 %v1840, %v2565
  %v2567 = vpop.f32.mrf.mxu0
  %2568 = vdwg.mxu0
  %v2569 = vsel %vm949, %v1924, -inf
  %2570 = vmax.xlane.f32.xlu0 %v2569
  %v2571 = vpop.xlane.xlu0 %2570
  %v2572 = vsel %vm949, %v1929, -inf
  %2573 = vmax.xlane.f32.xlu0 %v2572
  %v2574 = vpop.xlane.xlu0 %2573
  %v2575 = vsel %vm949, %v2015, -inf
  %2576 = vmax.xlane.f32.xlu0 %v2575
  %v2577 = vpop.xlane.xlu0 %2576
  %v2578 = vsel %vm949, %v2020, -inf
  %2579 = vmax.xlane.f32.xlu0 %v2578
  %v2580 = vpop.xlane.xlu0 %2579
  %v2581 = vsel %vm949, %v2106, -inf
  %2582 = vmax.xlane.f32.xlu0 %v2581
  %v2583 = vpop.xlane.xlu0 %2582
  %v2584 = vsel %vm949, %v2111, -inf
  %2585 = vmax.xlane.f32.xlu0 %v2584
  %v2586 = vpop.xlane.xlu0 %2585
  %v2587 = vsel %vm949, %v2197, -inf
  %2588 = vmax.xlane.f32.xlu0 %v2587
  %v2589 = vpop.xlane.xlu0 %2588
  %v2590 = vsel %vm949, %v2202, -inf
  %2591 = vmax.xlane.f32.xlu0 %v2590
  %v2592 = vpop.xlane.xlu0 %2591
  %v2593 = vsel %vm949, %v2288, -inf
  %2594 = vmax.xlane.f32.xlu0 %v2593
  %v2595 = vpop.xlane.xlu0 %2594
  %v2596 = vsel %vm949, %v2293, -inf
  %2597 = vmax.xlane.f32.xlu0 %v2596
  %v2598 = vpop.xlane.xlu0 %2597
  %v2599 = vsel %vm949, %v2379, -inf
  %2600 = vmax.xlane.f32.xlu0 %v2599
  %v2601 = vpop.xlane.xlu0 %2600
  %v2602 = vsel %vm949, %v2384, -inf
  %2603 = vmax.xlane.f32.xlu0 %v2602
  %v2604 = vpop.xlane.xlu0 %2603
  %v2605 = vsel %vm949, %v2470, -inf
  %2606 = vmax.xlane.f32.xlu0 %v2605
  %v2607 = vpop.xlane.xlu0 %2606
  %v2608 = vsel %vm949, %v2475, -inf
  %2609 = vmax.xlane.f32.xlu0 %v2608
  %v2610 = vpop.xlane.xlu0 %2609
  %v2611 = vsel %vm949, %v2561, -inf
  %2612 = vmax.xlane.f32.xlu0 %v2611
  %v2613 = vpop.xlane.xlu0 %2612
  %v2614 = vsel %vm949, %v2566, -inf
  %2615 = vmax.xlane.f32.xlu0 %v2614
  %v2616 = vpop.xlane.xlu0 %2615
  %v2617 = vsub.f32 %v1924, %v2571
  %v2618 = vsub.f32 %v1929, %v2574
  %v2619 = vsub.f32 %v2015, %v2577
  %v2620 = vsub.f32 %v2020, %v2580
  %v2621 = vsub.f32 %v2106, %v2583
  %v2622 = vsub.f32 %v2111, %v2586
  %v2623 = vsub.f32 %v2197, %v2589
  %v2624 = vsub.f32 %v2202, %v2592
  %v2625 = vsub.f32 %v2288, %v2595
  %v2626 = vsub.f32 %v2293, %v2598
  %v2627 = vsub.f32 %v2379, %v2601
  %v2628 = vsub.f32 %v2384, %v2604
  %v2629 = vsub.f32 %v2470, %v2607
  %v2630 = vsub.f32 %v2475, %v2610
  %v2631 = vsub.f32 %v2561, %v2613
  %v2632 = vsub.f32 %v2566, %v2616
  %v2633 = vmul.f32 %v2617, 1.442695
  %v2634 = vpow.pop %v2633
  %v2635 = vmul.f32 %v2618, 1.442695
  %v2636 = vpow.pop %v2635
  %v2637 = vmul.f32 %v2619, 1.442695
  %v2638 = vpow.pop %v2637
  %v2639 = vmul.f32 %v2620, 1.442695
  %v2640 = vpow.pop %v2639
  %v2641 = vmul.f32 %v2621, 1.442695
  %v2642 = vpow.pop %v2641
  %v2643 = vmul.f32 %v2622, 1.442695
  %v2644 = vpow.pop %v2643
  %v2645 = vmul.f32 %v2623, 1.442695
  %v2646 = vpow.pop %v2645
  %v2647 = vmul.f32 %v2624, 1.442695
  %v2648 = vpow.pop %v2647
  %v2649 = vmul.f32 %v2625, 1.442695
  %v2650 = vpow.pop %v2649
  %v2651 = vmul.f32 %v2626, 1.442695
  %v2652 = vpow.pop %v2651
  %v2653 = vmul.f32 %v2627, 1.442695
  %v2654 = vpow.pop %v2653
  %v2655 = vmul.f32 %v2628, 1.442695
  %v2656 = vpow.pop %v2655
  %v2657 = vmul.f32 %v2629, 1.442695
  %v2658 = vpow.pop %v2657
  %v2659 = vmul.f32 %v2630, 1.442695
  %v2660 = vpow.pop %v2659
  %v2661 = vmul.f32 %v2631, 1.442695
  %v2662 = vpow.pop %v2661
  %v2663 = vmul.f32 %v2632, 1.442695
  %v2664 = vpow.pop %v2663
  %v2665 = vsel %vm949, %v2634, 0.0
  %2666 = vadd.xlane.f32.xlu0 %v2665
  %v2667 = vpop.xlane.xlu0 %2666
  %v2668 = vsel %vm949, %v2636, 0.0
  %2669 = vadd.xlane.f32.xlu0 %v2668
  %v2670 = vpop.xlane.xlu0 %2669
  %v2671 = vsel %vm949, %v2638, 0.0
  %2672 = vadd.xlane.f32.xlu0 %v2671
  %v2673 = vpop.xlane.xlu0 %2672
  %v2674 = vsel %vm949, %v2640, 0.0
  %2675 = vadd.xlane.f32.xlu0 %v2674
  %v2676 = vpop.xlane.xlu0 %2675
  %v2677 = vsel %vm949, %v2642, 0.0
  %2678 = vadd.xlane.f32.xlu0 %v2677
  %v2679 = vpop.xlane.xlu0 %2678
  %v2680 = vsel %vm949, %v2644, 0.0
  %2681 = vadd.xlane.f32.xlu0 %v2680
  %v2682 = vpop.xlane.xlu0 %2681
  %v2683 = vsel %vm949, %v2646, 0.0
  %2684 = vadd.xlane.f32.xlu0 %v2683
  %v2685 = vpop.xlane.xlu0 %2684
  %v2686 = vsel %vm949, %v2648, 0.0
  %2687 = vadd.xlane.f32.xlu0 %v2686
  %v2688 = vpop.xlane.xlu0 %2687
  %v2689 = vsel %vm949, %v2650, 0.0
  %2690 = vadd.xlane.f32.xlu0 %v2689
  %v2691 = vpop.xlane.xlu0 %2690
  %v2692 = vsel %vm949, %v2652, 0.0
  %2693 = vadd.xlane.f32.xlu0 %v2692
  %v2694 = vpop.xlane.xlu0 %2693
  %v2695 = vsel %vm949, %v2654, 0.0
  %2696 = vadd.xlane.f32.xlu0 %v2695
  %v2697 = vpop.xlane.xlu0 %2696
  %v2698 = vsel %vm949, %v2656, 0.0
  %2699 = vadd.xlane.f32.xlu0 %v2698
  %v2700 = vpop.xlane.xlu0 %2699
  %v2701 = vsel %vm949, %v2658, 0.0
  %2702 = vadd.xlane.f32.xlu0 %v2701
  %v2703 = vpop.xlane.xlu0 %2702
  %v2704 = vsel %vm949, %v2660, 0.0
  %2705 = vadd.xlane.f32.xlu0 %v2704
  %v2706 = vpop.xlane.xlu0 %2705
  %v2707 = vsel %vm949, %v2662, 0.0
  %2708 = vadd.xlane.f32.xlu0 %v2707
  %v2709 = vpop.xlane.xlu0 %2708
  %v2710 = vsel %vm949, %v2664, 0.0
  %2711 = vadd.xlane.f32.xlu0 %v2710
  %v2712 = vpop.xlane.xlu0 %2711
  %v2713 = vrcp.pop %v2667
  %v2714 = vrcp.pop %v2670
  %v2715 = vrcp.pop %v2673
  %v2716 = vrcp.pop %v2676
  %v2717 = vrcp.pop %v2679
  %v2718 = vrcp.pop %v2682
  %v2719 = vrcp.pop %v2685
  %v2720 = vrcp.pop %v2688
  %v2721 = vrcp.pop %v2691
  %v2722 = vrcp.pop %v2694
  %v2723 = vrcp.pop %v2697
  %v2724 = vrcp.pop %v2700
  %v2725 = vrcp.pop %v2703
  %v2726 = vrcp.pop %v2706
  %v2727 = vrcp.pop %v2709
  %v2728 = vrcp.pop %v2712
  %v2729 = vmul.f32 %v2634, %v2713
  %v2730 = vmul.f32 %v2636, %v2714
  %v2731 = vmul.f32 %v2638, %v2715
  %v2732 = vmul.f32 %v2640, %v2716
  %v2733 = vmul.f32 %v2642, %v2717
  %v2734 = vmul.f32 %v2644, %v2718
  %v2735 = vmul.f32 %v2646, %v2719
  %v2736 = vmul.f32 %v2648, %v2720
  %v2737 = vmul.f32 %v2650, %v2721
  %v2738 = vmul.f32 %v2652, %v2722
  %v2739 = vmul.f32 %v2654, %v2723
  %v2740 = vmul.f32 %v2656, %v2724
  %v2741 = vmul.f32 %v2658, %v2725
  %v2742 = vmul.f32 %v2660, %v2726
  %v2743 = vmul.f32 %v2662, %v2727
  %v2744 = vmul.f32 %v2664, %v2728
  %2745 = vrot.lane.b32.xlu0 %v156, 56
  %v2746 = vpop.permute.xlu0 %2745
  %2747 = vrot.lane.b32.xlu0 %v161, 56
  %v2748 = vpop.permute.xlu0 %2747
  %v2752 = vsel %vm949, %v2729, 0
  %v2755 = vsel %vm949, %v2730, 0
  %2757 = vmatprep.subr.mxu0 0.0
  %2758 = vmatpush1.msra.mxu0 0.0
  %2759 = vmatprep.subr.mxu0 0.0
  %2760 = vmatpush1.msra.mxu0 0.0
  %2761 = vmatprep.subr.mxu0 0.0
  %2762 = vmatpush1.msra.mxu0 0.0
  %2763 = vmatprep.subr.mxu0 0.0
  %2764 = vmatpush1.msra.mxu0 0.0
  %2765 = vmatprep.subr.mxu0 0.0
  %2766 = vmatpush1.msra.mxu0 0.0
  %2767 = vmatprep.subr.mxu0 0.0
  %2768 = vmatpush1.msra.mxu0 0.0
  %2769 = vmatprep.subr.mxu0 0.0
  %2770 = vmatpush1.msra.mxu0 0.0
  %2771 = vmatprep.subr.mxu0 0.0
  %2772 = vmatpush1.msra.mxu0 0.0
  %2773 = vmatprep.subr.mxu0 0.0
  %2774 = vmatpush1.msra.mxu0 0.0
  %2775 = vmatprep.subr.mxu0 0.0
  %2776 = vmatpush1.msra.mxu0 0.0
  %2777 = vmatprep.subr.mxu0 0.0
  %2778 = vmatpush1.msra.mxu0 0.0
  %2779 = vmatprep.subr.mxu0 0.0
  %2780 = vmatpush1.msra.mxu0 0.0
  %2781 = vmatprep.subr.mxu0 0.0
  %2782 = vmatpush1.msra.mxu0 0.0
  %2783 = vmatprep.subr.mxu0 0.0
  %2784 = vmatpush1.msra.mxu0 0.0
  %2785 = vmatprep.subr.mxu0 0.0
  %2786 = vmatpush1.msra.mxu0 %v2748
  %2787 = vmatprep.subr.mxu0 0.0
  %2788 = vmatpush1.msra.mxu0 %v2746
  %2789 = vmatprep.subr.mxu0 0.0
  %2790 = vmatpush2.msra.mxu0 0.0
  %2791 = vmatprep.subr.mxu0 0.0
  %2792 = vmatpush2.msra.mxu0 0.0
  %2793 = vmatprep.subr.mxu0 0.0
  %2794 = vmatpush2.msra.mxu0 0.0
  %2795 = vmatprep.subr.mxu0 0.0
  %2796 = vmatpush2.msra.mxu0 0.0
  %2797 = vmatprep.subr.mxu0 0.0
  %2798 = vmatpush2.msra.mxu0 0.0
  %2799 = vmatprep.subr.mxu0 0.0
  %2800 = vmatpush2.msra.mxu0 0.0
  %2801 = vmatprep.subr.mxu0 0.0
  %2802 = vmatpush2.msra.mxu0 0.0
  %2803 = vmatprep.subr.mxu0 0.0
  %2804 = vmatpush2.msra.mxu0 0.0
  %2805 = vmatprep.subr.mxu0 0.0
  %2806 = vmatpush2.msra.mxu0 0.0
  %2807 = vmatprep.subr.mxu0 0.0
  %2808 = vmatpush2.msra.mxu0 0.0
  %2809 = vmatprep.subr.mxu0 0.0
  %2810 = vmatpush2.msra.mxu0 0.0
  %2811 = vmatprep.subr.mxu0 0.0
  %2812 = vmatpush2.msra.mxu0 0.0
  %2813 = vmatprep.subr.mxu0 0.0
  %2814 = vmatpush2.msra.mxu0 0.0
  %2815 = vmatprep.subr.mxu0 0.0
  %2816 = vmatpush2.msra.mxu0 0.0
  %2817 = vmatprep.subr.mxu0 0.0
  %2818 = vmatpush2.msra.mxu0 0.0
  %2819 = vmatprep.subr.mxu0 0.0
  %2820 = vmatpush2.msra.mxu0 0.0
  %2821 = vmatprep.mubr.f32.mxu0 0.0
  %2822 = vmatmul.mubr.f32.gmra.mxu0 %v2752
  %v2823 = vpop.f32.mrf.mxu0
  %v2824 = vadd.f32 0.0, %v2823
  %v2825 = vpop.f32.mrf.mxu0
  %2826 = vmatprep.mubr.f32.mxu0 0.0
  %2827 = vmatmul.mubr.f32.gmra.mxu0 %v2755
  %v2828 = vpop.f32.mrf.mxu0
  %v2829 = vadd.f32 0.0, %v2828
  %v2830 = vpop.f32.mrf.mxu0
  %2831 = vdwg.mxu0
  %2832 = vrot.lane.b32.xlu0 %v166, 56
  %v2833 = vpop.permute.xlu0 %2832
  %2834 = vrot.lane.b32.xlu0 %v171, 56
  %v2835 = vpop.permute.xlu0 %2834
  %v2839 = vsel %vm949, %v2731, 0
  %v2842 = vsel %vm949, %v2732, 0
  %2844 = vmatprep.subr.mxu0 0.0
  %2845 = vmatpush1.msra.mxu0 0.0
  %2846 = vmatprep.subr.mxu0 0.0
  %2847 = vmatpush1.msra.mxu0 0.0
  %2848 = vmatprep.subr.mxu0 0.0
  %2849 = vmatpush1.msra.mxu0 0.0
  %2850 = vmatprep.subr.mxu0 0.0
  %2851 = vmatpush1.msra.mxu0 0.0
  %2852 = vmatprep.subr.mxu0 0.0
  %2853 = vmatpush1.msra.mxu0 0.0
  %2854 = vmatprep.subr.mxu0 0.0
  %2855 = vmatpush1.msra.mxu0 0.0
  %2856 = vmatprep.subr.mxu0 0.0
  %2857 = vmatpush1.msra.mxu0 0.0
  %2858 = vmatprep.subr.mxu0 0.0
  %2859 = vmatpush1.msra.mxu0 0.0
  %2860 = vmatprep.subr.mxu0 0.0
  %2861 = vmatpush1.msra.mxu0 0.0
  %2862 = vmatprep.subr.mxu0 0.0
  %2863 = vmatpush1.msra.mxu0 0.0
  %2864 = vmatprep.subr.mxu0 0.0
  %2865 = vmatpush1.msra.mxu0 0.0
  %2866 = vmatprep.subr.mxu0 0.0
  %2867 = vmatpush1.msra.mxu0 0.0
  %2868 = vmatprep.subr.mxu0 0.0
  %2869 = vmatpush1.msra.mxu0 0.0
  %2870 = vmatprep.subr.mxu0 0.0
  %2871 = vmatpush1.msra.mxu0 0.0
  %2872 = vmatprep.subr.mxu0 0.0
  %2873 = vmatpush1.msra.mxu0 %v2835
  %2874 = vmatprep.subr.mxu0 0.0
  %2875 = vmatpush1.msra.mxu0 %v2833
  %2876 = vmatprep.subr.mxu0 0.0
  %2877 = vmatpush2.msra.mxu0 0.0
  %2878 = vmatprep.subr.mxu0 0.0
  %2879 = vmatpush2.msra.mxu0 0.0
  %2880 = vmatprep.subr.mxu0 0.0
  %2881 = vmatpush2.msra.mxu0 0.0
  %2882 = vmatprep.subr.mxu0 0.0
  %2883 = vmatpush2.msra.mxu0 0.0
  %2884 = vmatprep.subr.mxu0 0.0
  %2885 = vmatpush2.msra.mxu0 0.0
  %2886 = vmatprep.subr.mxu0 0.0
  %2887 = vmatpush2.msra.mxu0 0.0
  %2888 = vmatprep.subr.mxu0 0.0
  %2889 = vmatpush2.msra.mxu0 0.0
  %2890 = vmatprep.subr.mxu0 0.0
  %2891 = vmatpush2.msra.mxu0 0.0
  %2892 = vmatprep.subr.mxu0 0.0
  %2893 = vmatpush2.msra.mxu0 0.0
  %2894 = vmatprep.subr.mxu0 0.0
  %2895 = vmatpush2.msra.mxu0 0.0
  %2896 = vmatprep.subr.mxu0 0.0
  %2897 = vmatpush2.msra.mxu0 0.0
  %2898 = vmatprep.subr.mxu0 0.0
  %2899 = vmatpush2.msra.mxu0 0.0
  %2900 = vmatprep.subr.mxu0 0.0
  %2901 = vmatpush2.msra.mxu0 0.0
  %2902 = vmatprep.subr.mxu0 0.0
  %2903 = vmatpush2.msra.mxu0 0.0
  %2904 = vmatprep.subr.mxu0 0.0
  %2905 = vmatpush2.msra.mxu0 0.0
  %2906 = vmatprep.subr.mxu0 0.0
  %2907 = vmatpush2.msra.mxu0 0.0
  %2908 = vmatprep.mubr.f32.mxu0 0.0
  %2909 = vmatmul.mubr.f32.gmra.mxu0 %v2839
  %v2910 = vpop.f32.mrf.mxu0
  %v2911 = vadd.f32 0.0, %v2910
  %v2912 = vpop.f32.mrf.mxu0
  %2913 = vmatprep.mubr.f32.mxu0 0.0
  %2914 = vmatmul.mubr.f32.gmra.mxu0 %v2842
  %v2915 = vpop.f32.mrf.mxu0
  %v2916 = vadd.f32 0.0, %v2915
  %v2917 = vpop.f32.mrf.mxu0
  %2918 = vdwg.mxu0
  %2919 = vrot.lane.b32.xlu0 %v176, 56
  %v2920 = vpop.permute.xlu0 %2919
  %2921 = vrot.lane.b32.xlu0 %v181, 56
  %v2922 = vpop.permute.xlu0 %2921
  %v2926 = vsel %vm949, %v2733, 0
  %v2929 = vsel %vm949, %v2734, 0
  %2931 = vmatprep.subr.mxu0 0.0
  %2932 = vmatpush1.msra.mxu0 0.0
  %2933 = vmatprep.subr.mxu0 0.0
  %2934 = vmatpush1.msra.mxu0 0.0
  %2935 = vmatprep.subr.mxu0 0.0
  %2936 = vmatpush1.msra.mxu0 0.0
  %2937 = vmatprep.subr.mxu0 0.0
  %2938 = vmatpush1.msra.mxu0 0.0
  %2939 = vmatprep.subr.mxu0 0.0
  %2940 = vmatpush1.msra.mxu0 0.0
  %2941 = vmatprep.subr.mxu0 0.0
  %2942 = vmatpush1.msra.mxu0 0.0
  %2943 = vmatprep.subr.mxu0 0.0
  %2944 = vmatpush1.msra.mxu0 0.0
  %2945 = vmatprep.subr.mxu0 0.0
  %2946 = vmatpush1.msra.mxu0 0.0
  %2947 = vmatprep.subr.mxu0 0.0
  %2948 = vmatpush1.msra.mxu0 0.0
  %2949 = vmatprep.subr.mxu0 0.0
  %2950 = vmatpush1.msra.mxu0 0.0
  %2951 = vmatprep.subr.mxu0 0.0
  %2952 = vmatpush1.msra.mxu0 0.0
  %2953 = vmatprep.subr.mxu0 0.0
  %2954 = vmatpush1.msra.mxu0 0.0
  %2955 = vmatprep.subr.mxu0 0.0
  %2956 = vmatpush1.msra.mxu0 0.0
  %2957 = vmatprep.subr.mxu0 0.0
  %2958 = vmatpush1.msra.mxu0 0.0
  %2959 = vmatprep.subr.mxu0 0.0
  %2960 = vmatpush1.msra.mxu0 %v2922
  %2961 = vmatprep.subr.mxu0 0.0
  %2962 = vmatpush1.msra.mxu0 %v2920
  %2963 = vmatprep.subr.mxu0 0.0
  %2964 = vmatpush2.msra.mxu0 0.0
  %2965 = vmatprep.subr.mxu0 0.0
  %2966 = vmatpush2.msra.mxu0 0.0
  %2967 = vmatprep.subr.mxu0 0.0
  %2968 = vmatpush2.msra.mxu0 0.0
  %2969 = vmatprep.subr.mxu0 0.0
  %2970 = vmatpush2.msra.mxu0 0.0
  %2971 = vmatprep.subr.mxu0 0.0
  %2972 = vmatpush2.msra.mxu0 0.0
  %2973 = vmatprep.subr.mxu0 0.0
  %2974 = vmatpush2.msra.mxu0 0.0
  %2975 = vmatprep.subr.mxu0 0.0
  %2976 = vmatpush2.msra.mxu0 0.0
  %2977 = vmatprep.subr.mxu0 0.0
  %2978 = vmatpush2.msra.mxu0 0.0
  %2979 = vmatprep.subr.mxu0 0.0
  %2980 = vmatpush2.msra.mxu0 0.0
  %2981 = vmatprep.subr.mxu0 0.0
  %2982 = vmatpush2.msra.mxu0 0.0
  %2983 = vmatprep.subr.mxu0 0.0
  %2984 = vmatpush2.msra.mxu0 0.0
  %2985 = vmatprep.subr.mxu0 0.0
  %2986 = vmatpush2.msra.mxu0 0.0
  %2987 = vmatprep.subr.mxu0 0.0
  %2988 = vmatpush2.msra.mxu0 0.0
  %2989 = vmatprep.subr.mxu0 0.0
  %2990 = vmatpush2.msra.mxu0 0.0
  %2991 = vmatprep.subr.mxu0 0.0
  %2992 = vmatpush2.msra.mxu0 0.0
  %2993 = vmatprep.subr.mxu0 0.0
  %2994 = vmatpush2.msra.mxu0 0.0
  %2995 = vmatprep.mubr.f32.mxu0 0.0
  %2996 = vmatmul.mubr.f32.gmra.mxu0 %v2926
  %v2997 = vpop.f32.mrf.mxu0
  %v2998 = vadd.f32 0.0, %v2997
  %v2999 = vpop.f32.mrf.mxu0
  %3000 = vmatprep.mubr.f32.mxu0 0.0
  %3001 = vmatmul.mubr.f32.gmra.mxu0 %v2929
  %v3002 = vpop.f32.mrf.mxu0
  %v3003 = vadd.f32 0.0, %v3002
  %v3004 = vpop.f32.mrf.mxu0
  %3005 = vdwg.mxu0
  %3006 = vrot.lane.b32.xlu0 %v186, 56
  %v3007 = vpop.permute.xlu0 %3006
  %3008 = vrot.lane.b32.xlu0 %v191, 56
  %v3009 = vpop.permute.xlu0 %3008
  %v3013 = vsel %vm949, %v2735, 0
  %v3016 = vsel %vm949, %v2736, 0
  %3018 = vmatprep.subr.mxu0 0.0
  %3019 = vmatpush1.msra.mxu0 0.0
  %3020 = vmatprep.subr.mxu0 0.0
  %3021 = vmatpush1.msra.mxu0 0.0
  %3022 = vmatprep.subr.mxu0 0.0
  %3023 = vmatpush1.msra.mxu0 0.0
  %3024 = vmatprep.subr.mxu0 0.0
  %3025 = vmatpush1.msra.mxu0 0.0
  %3026 = vmatprep.subr.mxu0 0.0
  %3027 = vmatpush1.msra.mxu0 0.0
  %3028 = vmatprep.subr.mxu0 0.0
  %3029 = vmatpush1.msra.mxu0 0.0
  %3030 = vmatprep.subr.mxu0 0.0
  %3031 = vmatpush1.msra.mxu0 0.0
  %3032 = vmatprep.subr.mxu0 0.0
  %3033 = vmatpush1.msra.mxu0 0.0
  %3034 = vmatprep.subr.mxu0 0.0
  %3035 = vmatpush1.msra.mxu0 0.0
  %3036 = vmatprep.subr.mxu0 0.0
  %3037 = vmatpush1.msra.mxu0 0.0
  %3038 = vmatprep.subr.mxu0 0.0
  %3039 = vmatpush1.msra.mxu0 0.0
  %3040 = vmatprep.subr.mxu0 0.0
  %3041 = vmatpush1.msra.mxu0 0.0
  %3042 = vmatprep.subr.mxu0 0.0
  %3043 = vmatpush1.msra.mxu0 0.0
  %3044 = vmatprep.subr.mxu0 0.0
  %3045 = vmatpush1.msra.mxu0 0.0
  %3046 = vmatprep.subr.mxu0 0.0
  %3047 = vmatpush1.msra.mxu0 %v3009
  %3048 = vmatprep.subr.mxu0 0.0
  %3049 = vmatpush1.msra.mxu0 %v3007
  %3050 = vmatprep.subr.mxu0 0.0
  %3051 = vmatpush2.msra.mxu0 0.0
  %3052 = vmatprep.subr.mxu0 0.0
  %3053 = vmatpush2.msra.mxu0 0.0
  %3054 = vmatprep.subr.mxu0 0.0
  %3055 = vmatpush2.msra.mxu0 0.0
  %3056 = vmatprep.subr.mxu0 0.0
  %3057 = vmatpush2.msra.mxu0 0.0
  %3058 = vmatprep.subr.mxu0 0.0
  %3059 = vmatpush2.msra.mxu0 0.0
  %3060 = vmatprep.subr.mxu0 0.0
  %3061 = vmatpush2.msra.mxu0 0.0
  %3062 = vmatprep.subr.mxu0 0.0
  %3063 = vmatpush2.msra.mxu0 0.0
  %3064 = vmatprep.subr.mxu0 0.0
  %3065 = vmatpush2.msra.mxu0 0.0
  %3066 = vmatprep.subr.mxu0 0.0
  %3067 = vmatpush2.msra.mxu0 0.0
  %3068 = vmatprep.subr.mxu0 0.0
  %3069 = vmatpush2.msra.mxu0 0.0
  %3070 = vmatprep.subr.mxu0 0.0
  %3071 = vmatpush2.msra.mxu0 0.0
  %3072 = vmatprep.subr.mxu0 0.0
  %3073 = vmatpush2.msra.mxu0 0.0
  %3074 = vmatprep.subr.mxu0 0.0
  %3075 = vmatpush2.msra.mxu0 0.0
  %3076 = vmatprep.subr.mxu0 0.0
  %3077 = vmatpush2.msra.mxu0 0.0
  %3078 = vmatprep.subr.mxu0 0.0
  %3079 = vmatpush2.msra.mxu0 0.0
  %3080 = vmatprep.subr.mxu0 0.0
  %3081 = vmatpush2.msra.mxu0 0.0
  %3082 = vmatprep.mubr.f32.mxu0 0.0
  %3083 = vmatmul.mubr.f32.gmra.mxu0 %v3013
  %v3084 = vpop.f32.mrf.mxu0
  %v3085 = vadd.f32 0.0, %v3084
  %v3086 = vpop.f32.mrf.mxu0
  %3087 = vmatprep.mubr.f32.mxu0 0.0
  %3088 = vmatmul.mubr.f32.gmra.mxu0 %v3016
  %v3089 = vpop.f32.mrf.mxu0
  %v3090 = vadd.f32 0.0, %v3089
  %v3091 = vpop.f32.mrf.mxu0
  %3092 = vdwg.mxu0
  %3093 = vrot.lane.b32.xlu0 %v196, 56
  %v3094 = vpop.permute.xlu0 %3093
  %3095 = vrot.lane.b32.xlu0 %v201, 56
  %v3096 = vpop.permute.xlu0 %3095
  %v3100 = vsel %vm949, %v2737, 0
  %v3103 = vsel %vm949, %v2738, 0
  %3105 = vmatprep.subr.mxu0 0.0
  %3106 = vmatpush1.msra.mxu0 0.0
  %3107 = vmatprep.subr.mxu0 0.0
  %3108 = vmatpush1.msra.mxu0 0.0
  %3109 = vmatprep.subr.mxu0 0.0
  %3110 = vmatpush1.msra.mxu0 0.0
  %3111 = vmatprep.subr.mxu0 0.0
  %3112 = vmatpush1.msra.mxu0 0.0
  %3113 = vmatprep.subr.mxu0 0.0
  %3114 = vmatpush1.msra.mxu0 0.0
  %3115 = vmatprep.subr.mxu0 0.0
  %3116 = vmatpush1.msra.mxu0 0.0
  %3117 = vmatprep.subr.mxu0 0.0
  %3118 = vmatpush1.msra.mxu0 0.0
  %3119 = vmatprep.subr.mxu0 0.0
  %3120 = vmatpush1.msra.mxu0 0.0
  %3121 = vmatprep.subr.mxu0 0.0
  %3122 = vmatpush1.msra.mxu0 0.0
  %3123 = vmatprep.subr.mxu0 0.0
  %3124 = vmatpush1.msra.mxu0 0.0
  %3125 = vmatprep.subr.mxu0 0.0
  %3126 = vmatpush1.msra.mxu0 0.0
  %3127 = vmatprep.subr.mxu0 0.0
  %3128 = vmatpush1.msra.mxu0 0.0
  %3129 = vmatprep.subr.mxu0 0.0
  %3130 = vmatpush1.msra.mxu0 0.0
  %3131 = vmatprep.subr.mxu0 0.0
  %3132 = vmatpush1.msra.mxu0 0.0
  %3133 = vmatprep.subr.mxu0 0.0
  %3134 = vmatpush1.msra.mxu0 %v3096
  %3135 = vmatprep.subr.mxu0 0.0
  %3136 = vmatpush1.msra.mxu0 %v3094
  %3137 = vmatprep.subr.mxu0 0.0
  %3138 = vmatpush2.msra.mxu0 0.0
  %3139 = vmatprep.subr.mxu0 0.0
  %3140 = vmatpush2.msra.mxu0 0.0
  %3141 = vmatprep.subr.mxu0 0.0
  %3142 = vmatpush2.msra.mxu0 0.0
  %3143 = vmatprep.subr.mxu0 0.0
  %3144 = vmatpush2.msra.mxu0 0.0
  %3145 = vmatprep.subr.mxu0 0.0
  %3146 = vmatpush2.msra.mxu0 0.0
  %3147 = vmatprep.subr.mxu0 0.0
  %3148 = vmatpush2.msra.mxu0 0.0
  %3149 = vmatprep.subr.mxu0 0.0
  %3150 = vmatpush2.msra.mxu0 0.0
  %3151 = vmatprep.subr.mxu0 0.0
  %3152 = vmatpush2.msra.mxu0 0.0
  %3153 = vmatprep.subr.mxu0 0.0
  %3154 = vmatpush2.msra.mxu0 0.0
  %3155 = vmatprep.subr.mxu0 0.0
  %3156 = vmatpush2.msra.mxu0 0.0
  %3157 = vmatprep.subr.mxu0 0.0
  %3158 = vmatpush2.msra.mxu0 0.0
  %3159 = vmatprep.subr.mxu0 0.0
  %3160 = vmatpush2.msra.mxu0 0.0
  %3161 = vmatprep.subr.mxu0 0.0
  %3162 = vmatpush2.msra.mxu0 0.0
  %3163 = vmatprep.subr.mxu0 0.0
  %3164 = vmatpush2.msra.mxu0 0.0
  %3165 = vmatprep.subr.mxu0 0.0
  %3166 = vmatpush2.msra.mxu0 0.0
  %3167 = vmatprep.subr.mxu0 0.0
  %3168 = vmatpush2.msra.mxu0 0.0
  %3169 = vmatprep.mubr.f32.mxu0 0.0
  %3170 = vmatmul.mubr.f32.gmra.mxu0 %v3100
  %v3171 = vpop.f32.mrf.mxu0
  %v3172 = vadd.f32 0.0, %v3171
  %v3173 = vpop.f32.mrf.mxu0
  %3174 = vmatprep.mubr.f32.mxu0 0.0
  %3175 = vmatmul.mubr.f32.gmra.mxu0 %v3103
  %v3176 = vpop.f32.mrf.mxu0
  %v3177 = vadd.f32 0.0, %v3176
  %v3178 = vpop.f32.mrf.mxu0
  %3179 = vdwg.mxu0
  %3180 = vrot.lane.b32.xlu0 %v206, 56
  %v3181 = vpop.permute.xlu0 %3180
  %3182 = vrot.lane.b32.xlu0 %v211, 56
  %v3183 = vpop.permute.xlu0 %3182
  %v3187 = vsel %vm949, %v2739, 0
  %v3190 = vsel %vm949, %v2740, 0
  %3192 = vmatprep.subr.mxu0 0.0
  %3193 = vmatpush1.msra.mxu0 0.0
  %3194 = vmatprep.subr.mxu0 0.0
  %3195 = vmatpush1.msra.mxu0 0.0
  %3196 = vmatprep.subr.mxu0 0.0
  %3197 = vmatpush1.msra.mxu0 0.0
  %3198 = vmatprep.subr.mxu0 0.0
  %3199 = vmatpush1.msra.mxu0 0.0
  %3200 = vmatprep.subr.mxu0 0.0
  %3201 = vmatpush1.msra.mxu0 0.0
  %3202 = vmatprep.subr.mxu0 0.0
  %3203 = vmatpush1.msra.mxu0 0.0
  %3204 = vmatprep.subr.mxu0 0.0
  %3205 = vmatpush1.msra.mxu0 0.0
  %3206 = vmatprep.subr.mxu0 0.0
  %3207 = vmatpush1.msra.mxu0 0.0
  %3208 = vmatprep.subr.mxu0 0.0
  %3209 = vmatpush1.msra.mxu0 0.0
  %3210 = vmatprep.subr.mxu0 0.0
  %3211 = vmatpush1.msra.mxu0 0.0
  %3212 = vmatprep.subr.mxu0 0.0
  %3213 = vmatpush1.msra.mxu0 0.0
  %3214 = vmatprep.subr.mxu0 0.0
  %3215 = vmatpush1.msra.mxu0 0.0
  %3216 = vmatprep.subr.mxu0 0.0
  %3217 = vmatpush1.msra.mxu0 0.0
  %3218 = vmatprep.subr.mxu0 0.0
  %3219 = vmatpush1.msra.mxu0 0.0
  %3220 = vmatprep.subr.mxu0 0.0
  %3221 = vmatpush1.msra.mxu0 %v3183
  %3222 = vmatprep.subr.mxu0 0.0
  %3223 = vmatpush1.msra.mxu0 %v3181
  %3224 = vmatprep.subr.mxu0 0.0
  %3225 = vmatpush2.msra.mxu0 0.0
  %3226 = vmatprep.subr.mxu0 0.0
  %3227 = vmatpush2.msra.mxu0 0.0
  %3228 = vmatprep.subr.mxu0 0.0
  %3229 = vmatpush2.msra.mxu0 0.0
  %3230 = vmatprep.subr.mxu0 0.0
  %3231 = vmatpush2.msra.mxu0 0.0
  %3232 = vmatprep.subr.mxu0 0.0
  %3233 = vmatpush2.msra.mxu0 0.0
  %3234 = vmatprep.subr.mxu0 0.0
  %3235 = vmatpush2.msra.mxu0 0.0
  %3236 = vmatprep.subr.mxu0 0.0
  %3237 = vmatpush2.msra.mxu0 0.0
  %3238 = vmatprep.subr.mxu0 0.0
  %3239 = vmatpush2.msra.mxu0 0.0
  %3240 = vmatprep.subr.mxu0 0.0
  %3241 = vmatpush2.msra.mxu0 0.0
  %3242 = vmatprep.subr.mxu0 0.0
  %3243 = vmatpush2.msra.mxu0 0.0
  %3244 = vmatprep.subr.mxu0 0.0
  %3245 = vmatpush2.msra.mxu0 0.0
  %3246 = vmatprep.subr.mxu0 0.0
  %3247 = vmatpush2.msra.mxu0 0.0
  %3248 = vmatprep.subr.mxu0 0.0
  %3249 = vmatpush2.msra.mxu0 0.0
  %3250 = vmatprep.subr.mxu0 0.0
  %3251 = vmatpush2.msra.mxu0 0.0
  %3252 = vmatprep.subr.mxu0 0.0
  %3253 = vmatpush2.msra.mxu0 0.0
  %3254 = vmatprep.subr.mxu0 0.0
  %3255 = vmatpush2.msra.mxu0 0.0
  %3256 = vmatprep.mubr.f32.mxu0 0.0
  %3257 = vmatmul.mubr.f32.gmra.mxu0 %v3187
  %v3258 = vpop.f32.mrf.mxu0
  %v3259 = vadd.f32 0.0, %v3258
  %v3260 = vpop.f32.mrf.mxu0
  %3261 = vmatprep.mubr.f32.mxu0 0.0
  %3262 = vmatmul.mubr.f32.gmra.mxu0 %v3190
  %v3263 = vpop.f32.mrf.mxu0
  %v3264 = vadd.f32 0.0, %v3263
  %v3265 = vpop.f32.mrf.mxu0
  %3266 = vdwg.mxu0
  %3267 = vrot.lane.b32.xlu0 %v216, 56
  %v3268 = vpop.permute.xlu0 %3267
  %3269 = vrot.lane.b32.xlu0 %v221, 56
  %v3270 = vpop.permute.xlu0 %3269
  %v3274 = vsel %vm949, %v2741, 0
  %v3277 = vsel %vm949, %v2742, 0
  %3279 = vmatprep.subr.mxu0 0.0
  %3280 = vmatpush1.msra.mxu0 0.0
  %3281 = vmatprep.subr.mxu0 0.0
  %3282 = vmatpush1.msra.mxu0 0.0
  %3283 = vmatprep.subr.mxu0 0.0
  %3284 = vmatpush1.msra.mxu0 0.0
  %3285 = vmatprep.subr.mxu0 0.0
  %3286 = vmatpush1.msra.mxu0 0.0
  %3287 = vmatprep.subr.mxu0 0.0
  %3288 = vmatpush1.msra.mxu0 0.0
  %3289 = vmatprep.subr.mxu0 0.0
  %3290 = vmatpush1.msra.mxu0 0.0
  %3291 = vmatprep.subr.mxu0 0.0
  %3292 = vmatpush1.msra.mxu0 0.0
  %3293 = vmatprep.subr.mxu0 0.0
  %3294 = vmatpush1.msra.mxu0 0.0
  %3295 = vmatprep.subr.mxu0 0.0
  %3296 = vmatpush1.msra.mxu0 0.0
  %3297 = vmatprep.subr.mxu0 0.0
  %3298 = vmatpush1.msra.mxu0 0.0
  %3299 = vmatprep.subr.mxu0 0.0
  %3300 = vmatpush1.msra.mxu0 0.0
  %3301 = vmatprep.subr.mxu0 0.0
  %3302 = vmatpush1.msra.mxu0 0.0
  %3303 = vmatprep.subr.mxu0 0.0
  %3304 = vmatpush1.msra.mxu0 0.0
  %3305 = vmatprep.subr.mxu0 0.0
  %3306 = vmatpush1.msra.mxu0 0.0
  %3307 = vmatprep.subr.mxu0 0.0
  %3308 = vmatpush1.msra.mxu0 %v3270
  %3309 = vmatprep.subr.mxu0 0.0
  %3310 = vmatpush1.msra.mxu0 %v3268
  %3311 = vmatprep.subr.mxu0 0.0
  %3312 = vmatpush2.msra.mxu0 0.0
  %3313 = vmatprep.subr.mxu0 0.0
  %3314 = vmatpush2.msra.mxu0 0.0
  %3315 = vmatprep.subr.mxu0 0.0
  %3316 = vmatpush2.msra.mxu0 0.0
  %3317 = vmatprep.subr.mxu0 0.0
  %3318 = vmatpush2.msra.mxu0 0.0
  %3319 = vmatprep.subr.mxu0 0.0
  %3320 = vmatpush2.msra.mxu0 0.0
  %3321 = vmatprep.subr.mxu0 0.0
  %3322 = vmatpush2.msra.mxu0 0.0
  %3323 = vmatprep.subr.mxu0 0.0
  %3324 = vmatpush2.msra.mxu0 0.0
  %3325 = vmatprep.subr.mxu0 0.0
  %3326 = vmatpush2.msra.mxu0 0.0
  %3327 = vmatprep.subr.mxu0 0.0
  %3328 = vmatpush2.msra.mxu0 0.0
  %3329 = vmatprep.subr.mxu0 0.0
  %3330 = vmatpush2.msra.mxu0 0.0
  %3331 = vmatprep.subr.mxu0 0.0
  %3332 = vmatpush2.msra.mxu0 0.0
  %3333 = vmatprep.subr.mxu0 0.0
  %3334 = vmatpush2.msra.mxu0 0.0
  %3335 = vmatprep.subr.mxu0 0.0
  %3336 = vmatpush2.msra.mxu0 0.0
  %3337 = vmatprep.subr.mxu0 0.0
  %3338 = vmatpush2.msra.mxu0 0.0
  %3339 = vmatprep.subr.mxu0 0.0
  %3340 = vmatpush2.msra.mxu0 0.0
  %3341 = vmatprep.subr.mxu0 0.0
  %3342 = vmatpush2.msra.mxu0 0.0
  %3343 = vmatprep.mubr.f32.mxu0 0.0
  %3344 = vmatmul.mubr.f32.gmra.mxu0 %v3274
  %v3345 = vpop.f32.mrf.mxu0
  %v3346 = vadd.f32 0.0, %v3345
  %v3347 = vpop.f32.mrf.mxu0
  %3348 = vmatprep.mubr.f32.mxu0 0.0
  %3349 = vmatmul.mubr.f32.gmra.mxu0 %v3277
  %v3350 = vpop.f32.mrf.mxu0
  %v3351 = vadd.f32 0.0, %v3350
  %v3352 = vpop.f32.mrf.mxu0
  %3353 = vdwg.mxu0
  %3354 = vrot.lane.b32.xlu0 %v226, 56
  %v3355 = vpop.permute.xlu0 %3354
  %3356 = vrot.lane.b32.xlu0 %v231, 56
  %v3357 = vpop.permute.xlu0 %3356
  %v3361 = vsel %vm949, %v2743, 0
  %v3364 = vsel %vm949, %v2744, 0
  %3366 = vmatprep.subr.mxu0 0.0
  %3367 = vmatpush1.msra.mxu0 0.0
  %3368 = vmatprep.subr.mxu0 0.0
  %3369 = vmatpush1.msra.mxu0 0.0
  %3370 = vmatprep.subr.mxu0 0.0
  %3371 = vmatpush1.msra.mxu0 0.0
  %3372 = vmatprep.subr.mxu0 0.0
  %3373 = vmatpush1.msra.mxu0 0.0
  %3374 = vmatprep.subr.mxu0 0.0
  %3375 = vmatpush1.msra.mxu0 0.0
  %3376 = vmatprep.subr.mxu0 0.0
  %3377 = vmatpush1.msra.mxu0 0.0
  %3378 = vmatprep.subr.mxu0 0.0
  %3379 = vmatpush1.msra.mxu0 0.0
  %3380 = vmatprep.subr.mxu0 0.0
  %3381 = vmatpush1.msra.mxu0 0.0
  %3382 = vmatprep.subr.mxu0 0.0
  %3383 = vmatpush1.msra.mxu0 0.0
  %3384 = vmatprep.subr.mxu0 0.0
  %3385 = vmatpush1.msra.mxu0 0.0
  %3386 = vmatprep.subr.mxu0 0.0
  %3387 = vmatpush1.msra.mxu0 0.0
  %3388 = vmatprep.subr.mxu0 0.0
  %3389 = vmatpush1.msra.mxu0 0.0
  %3390 = vmatprep.subr.mxu0 0.0
  %3391 = vmatpush1.msra.mxu0 0.0
  %3392 = vmatprep.subr.mxu0 0.0
  %3393 = vmatpush1.msra.mxu0 0.0
  %3394 = vmatprep.subr.mxu0 0.0
  %3395 = vmatpush1.msra.mxu0 %v3357
  %3396 = vmatprep.subr.mxu0 0.0
  %3397 = vmatpush1.msra.mxu0 %v3355
  %3398 = vmatprep.subr.mxu0 0.0
  %3399 = vmatpush2.msra.mxu0 0.0
  %3400 = vmatprep.subr.mxu0 0.0
  %3401 = vmatpush2.msra.mxu0 0.0
  %3402 = vmatprep.subr.mxu0 0.0
  %3403 = vmatpush2.msra.mxu0 0.0
  %3404 = vmatprep.subr.mxu0 0.0
  %3405 = vmatpush2.msra.mxu0 0.0
  %3406 = vmatprep.subr.mxu0 0.0
  %3407 = vmatpush2.msra.mxu0 0.0
  %3408 = vmatprep.subr.mxu0 0.0
  %3409 = vmatpush2.msra.mxu0 0.0
  %3410 = vmatprep.subr.mxu0 0.0
  %3411 = vmatpush2.msra.mxu0 0.0
  %3412 = vmatprep.subr.mxu0 0.0
  %3413 = vmatpush2.msra.mxu0 0.0
  %3414 = vmatprep.subr.mxu0 0.0
  %3415 = vmatpush2.msra.mxu0 0.0
  %3416 = vmatprep.subr.mxu0 0.0
  %3417 = vmatpush2.msra.mxu0 0.0
  %3418 = vmatprep.subr.mxu0 0.0
  %3419 = vmatpush2.msra.mxu0 0.0
  %3420 = vmatprep.subr.mxu0 0.0
  %3421 = vmatpush2.msra.mxu0 0.0
  %3422 = vmatprep.subr.mxu0 0.0
  %3423 = vmatpush2.msra.mxu0 0.0
  %3424 = vmatprep.subr.mxu0 0.0
  %3425 = vmatpush2.msra.mxu0 0.0
  %3426 = vmatprep.subr.mxu0 0.0
  %3427 = vmatpush2.msra.mxu0 0.0
  %3428 = vmatprep.subr.mxu0 0.0
  %3429 = vmatpush2.msra.mxu0 0.0
  %3430 = vmatprep.mubr.f32.mxu0 0.0
  %3431 = vmatmul.mubr.f32.gmra.mxu0 %v3361
  %v3432 = vpop.f32.mrf.mxu0
  %v3433 = vadd.f32 0.0, %v3432
  %v3434 = vpop.f32.mrf.mxu0
  %3435 = vmatprep.mubr.f32.mxu0 0.0
  %3436 = vmatmul.mubr.f32.gmra.mxu0 %v3364
  %v3437 = vpop.f32.mrf.mxu0
  %v3438 = vadd.f32 0.0, %v3437
  %v3439 = vpop.f32.mrf.mxu0
  %3440 = vdwg.mxu0
  %3457 = vrot.lane.b32.xlu0 %v2824, 8
  %v3458 = vpop.permute.xlu0 %3457
  %3459 = vrot.lane.b32.xlu0 %v2829, 8
  %v3460 = vpop.permute.xlu0 %3459
  %3461 = vrot.lane.b32.xlu0 %v2911, 8
  %v3462 = vpop.permute.xlu0 %3461
  %3463 = vrot.lane.b32.xlu0 %v2916, 8
  %v3464 = vpop.permute.xlu0 %3463
  %3465 = vrot.lane.b32.xlu0 %v2998, 8
  %v3466 = vpop.permute.xlu0 %3465
  %3467 = vrot.lane.b32.xlu0 %v3003, 8
  %v3468 = vpop.permute.xlu0 %3467
  %3469 = vrot.lane.b32.xlu0 %v3085, 8
  %v3470 = vpop.permute.xlu0 %3469
  %3471 = vrot.lane.b32.xlu0 %v3090, 8
  %v3472 = vpop.permute.xlu0 %3471
  %3473 = vrot.lane.b32.xlu0 %v3172, 8
  %v3474 = vpop.permute.xlu0 %3473
  %3475 = vrot.lane.b32.xlu0 %v3177, 8
  %v3476 = vpop.permute.xlu0 %3475
  %3477 = vrot.lane.b32.xlu0 %v3259, 8
  %v3478 = vpop.permute.xlu0 %3477
  %3479 = vrot.lane.b32.xlu0 %v3264, 8
  %v3480 = vpop.permute.xlu0 %3479
  %3481 = vrot.lane.b32.xlu0 %v3346, 8
  %v3482 = vpop.permute.xlu0 %3481
  %3483 = vrot.lane.b32.xlu0 %v3351, 8
  %v3484 = vpop.permute.xlu0 %3483
  %3485 = vrot.lane.b32.xlu0 %v3433, 8
  %v3486 = vpop.permute.xlu0 %3485
  %3487 = vrot.lane.b32.xlu0 %v3438, 8
  %v3488 = vpop.permute.xlu0 %3487
  %vm3505 = vcmask 130112
  %3506 = vst.msk [vmem:[#allocation2] sm:$0xff] %vm3505, %v3458
  %3507 = vst.msk [vmem:[#allocation2 + $0x8] sm:$0xff] %vm3505, %v3460
  %3508 = vst.msk [vmem:[#allocation2 + $0x10] sm:$0xff] %vm3505, %v3462
  %3509 = vst.msk [vmem:[#allocation2 + $0x18] sm:$0xff] %vm3505, %v3464
  %3510 = vst.msk [vmem:[#allocation2 + $0x20] sm:$0xff] %vm3505, %v3466
  %3511 = vst.msk [vmem:[#allocation2 + $0x28] sm:$0xff] %vm3505, %v3468
  %3512 = vst.msk [vmem:[#allocation2 + $0x30] sm:$0xff] %vm3505, %v3470
  %3513 = vst.msk [vmem:[#allocation2 + $0x38] sm:$0xff] %vm3505, %v3472
  %3514 = vst.msk [vmem:[#allocation2 + $0x40] sm:$0xff] %vm3505, %v3474
  %3515 = vst.msk [vmem:[#allocation2 + $0x48] sm:$0xff] %vm3505, %v3476
  %3516 = vst.msk [vmem:[#allocation2 + $0x50] sm:$0xff] %vm3505, %v3478
  %3517 = vst.msk [vmem:[#allocation2 + $0x58] sm:$0xff] %vm3505, %v3480
  %3518 = vst.msk [vmem:[#allocation2 + $0x60] sm:$0xff] %vm3505, %v3482
  %3519 = vst.msk [vmem:[#allocation2 + $0x68] sm:$0xff] %vm3505, %v3484
  %3520 = vst.msk [vmem:[#allocation2 + $0x70] sm:$0xff] %vm3505, %v3486
  %3521 = vst.msk [vmem:[#allocation2 + $0x78] sm:$0xff] %vm3505, %v3488
  %s3522 = scalar_lea.vmem %s4, 32
  %v3523 = vld [vmem:[%s3522] sm:$0xff]
  %v3524 = vld [vmem:[%s3522 + $0x8] sm:$0xff]
  %3525 = vrot.lane.b32.xlu0 %v156, 112
  %v3526 = vpop.permute.xlu0 %3525
  %3527 = vrot.lane.b32.xlu0 %v161, 112
  %v3528 = vpop.permute.xlu0 %3527
  %3529 = vrot.lane.b32.xlu0 %v156, 80
  %v3530 = vpop.permute.xlu0 %3529
  %3531 = vrot.lane.b32.xlu0 %v161, 80
  %v3532 = vpop.permute.xlu0 %3531
  %v3533 = vsel %vm242, %v3526, 0
  %v3535 = vsel %vm242, %v3528, 0
  %v3537 = vsel %vm242, %v3530, 0
  %v3539 = vsel %vm242, %v3532, 0
  %3541 = vmatprep.subr.mxu0 0.0
  %3542 = vmatpush1.xpose.msra.mxu0 0.0
  %3543 = vmatprep.subr.mxu0 0.0
  %3544 = vmatpush1.xpose.msra.mxu0 0.0
  %3545 = vmatprep.subr.mxu0 0.0
  %3546 = vmatpush1.xpose.msra.mxu0 0.0
  %3547 = vmatprep.subr.mxu0 0.0
  %3548 = vmatpush1.xpose.msra.mxu0 0.0
  %3549 = vmatprep.subr.mxu0 0.0
  %3550 = vmatpush1.xpose.msra.mxu0 0.0
  %3551 = vmatprep.subr.mxu0 0.0
  %3552 = vmatpush1.xpose.msra.mxu0 0.0
  %3553 = vmatprep.subr.mxu0 0.0
  %3554 = vmatpush1.xpose.msra.mxu0 0.0
  %3555 = vmatprep.subr.mxu0 0.0
  %3556 = vmatpush1.xpose.msra.mxu0 0.0
  %3557 = vmatprep.subr.mxu0 0.0
  %3558 = vmatpush1.xpose.msra.mxu0 0.0
  %3559 = vmatprep.subr.mxu0 0.0
  %3560 = vmatpush1.xpose.msra.mxu0 0.0
  %3561 = vmatprep.subr.mxu0 0.0
  %3562 = vmatpush1.xpose.msra.mxu0 0.0
  %3563 = vmatprep.subr.mxu0 0.0
  %3564 = vmatpush1.xpose.msra.mxu0 0.0
  %3565 = vmatprep.subr.mxu0 0.0
  %3566 = vmatpush1.xpose.msra.mxu0 0.0
  %3567 = vmatprep.subr.mxu0 0.0
  %3568 = vmatpush1.xpose.msra.mxu0 0.0
  %3569 = vmatprep.subr.mxu0 0.0
  %3570 = vmatpush1.xpose.msra.mxu0 %v3539
  %3571 = vmatprep.subr.mxu0 0.0
  %3572 = vmatpush1.xpose.msra.mxu0 %v3537
  %3573 = vmatprep.subr.mxu0 0.0
  %3574 = vmatpush2.xpose.msra.mxu0 0.0
  %3575 = vmatprep.subr.mxu0 0.0
  %3576 = vmatpush2.xpose.msra.mxu0 0.0
  %3577 = vmatprep.subr.mxu0 0.0
  %3578 = vmatpush2.xpose.msra.mxu0 0.0
  %3579 = vmatprep.subr.mxu0 0.0
  %3580 = vmatpush2.xpose.msra.mxu0 0.0
  %3581 = vmatprep.subr.mxu0 0.0
  %3582 = vmatpush2.xpose.msra.mxu0 0.0
  %3583 = vmatprep.subr.mxu0 0.0
  %3584 = vmatpush2.xpose.msra.mxu0 0.0
  %3585 = vmatprep.subr.mxu0 0.0
  %3586 = vmatpush2.xpose.msra.mxu0 0.0
  %3587 = vmatprep.subr.mxu0 0.0
  %3588 = vmatpush2.xpose.msra.mxu0 0.0
  %3589 = vmatprep.subr.mxu0 0.0
  %3590 = vmatpush2.xpose.msra.mxu0 0.0
  %3591 = vmatprep.subr.mxu0 0.0
  %3592 = vmatpush2.xpose.msra.mxu0 0.0
  %3593 = vmatprep.subr.mxu0 0.0
  %3594 = vmatpush2.xpose.msra.mxu0 0.0
  %3595 = vmatprep.subr.mxu0 0.0
  %3596 = vmatpush2.xpose.msra.mxu0 0.0
  %3597 = vmatprep.subr.mxu0 0.0
  %3598 = vmatpush2.xpose.msra.mxu0 0.0
  %3599 = vmatprep.subr.mxu0 0.0
  %3600 = vmatpush2.xpose.msra.mxu0 0.0
  %3601 = vmatprep.subr.mxu0 0.0
  %3602 = vmatpush2.xpose.msra.mxu0 0.0
  %3603 = vmatprep.subr.mxu0 0.0
  %3604 = vmatpush2.xpose.msra.mxu0 0.0
  %3605 = vmatprep.mubr.f32.mxu0 0.0
  %3606 = vmatmul.mubr.f32.gmra.mxu0 %v3533
  %v3607 = vpop.f32.mrf.mxu0
  %v3608 = vadd.f32 %v3523, %v3607
  %v3609 = vpop.f32.mrf.mxu0
  %3610 = vmatprep.mubr.f32.mxu0 0.0
  %3611 = vmatmul.mubr.f32.gmra.mxu0 %v3535
  %v3612 = vpop.f32.mrf.mxu0
  %v3613 = vadd.f32 %v3524, %v3612
  %v3614 = vpop.f32.mrf.mxu0
  %3615 = vdwg.mxu0
  %3616 = vrot.lane.b32.xlu0 %v166, 112
  %v3617 = vpop.permute.xlu0 %3616
  %3618 = vrot.lane.b32.xlu0 %v171, 112
  %v3619 = vpop.permute.xlu0 %3618
  %3620 = vrot.lane.b32.xlu0 %v166, 80
  %v3621 = vpop.permute.xlu0 %3620
  %3622 = vrot.lane.b32.xlu0 %v171, 80
  %v3623 = vpop.permute.xlu0 %3622
  %v3624 = vsel %vm242, %v3617, 0
  %v3626 = vsel %vm242, %v3619, 0
  %v3628 = vsel %vm242, %v3621, 0
  %v3630 = vsel %vm242, %v3623, 0
  %3632 = vmatprep.subr.mxu0 0.0
  %3633 = vmatpush1.xpose.msra.mxu0 0.0
  %3634 = vmatprep.subr.mxu0 0.0
  %3635 = vmatpush1.xpose.msra.mxu0 0.0
  %3636 = vmatprep.subr.mxu0 0.0
  %3637 = vmatpush1.xpose.msra.mxu0 0.0
  %3638 = vmatprep.subr.mxu0 0.0
  %3639 = vmatpush1.xpose.msra.mxu0 0.0
  %3640 = vmatprep.subr.mxu0 0.0
  %3641 = vmatpush1.xpose.msra.mxu0 0.0
  %3642 = vmatprep.subr.mxu0 0.0
  %3643 = vmatpush1.xpose.msra.mxu0 0.0
  %3644 = vmatprep.subr.mxu0 0.0
  %3645 = vmatpush1.xpose.msra.mxu0 0.0
  %3646 = vmatprep.subr.mxu0 0.0
  %3647 = vmatpush1.xpose.msra.mxu0 0.0
  %3648 = vmatprep.subr.mxu0 0.0
  %3649 = vmatpush1.xpose.msra.mxu0 0.0
  %3650 = vmatprep.subr.mxu0 0.0
  %3651 = vmatpush1.xpose.msra.mxu0 0.0
  %3652 = vmatprep.subr.mxu0 0.0
  %3653 = vmatpush1.xpose.msra.mxu0 0.0
  %3654 = vmatprep.subr.mxu0 0.0
  %3655 = vmatpush1.xpose.msra.mxu0 0.0
  %3656 = vmatprep.subr.mxu0 0.0
  %3657 = vmatpush1.xpose.msra.mxu0 0.0
  %3658 = vmatprep.subr.mxu0 0.0
  %3659 = vmatpush1.xpose.msra.mxu0 0.0
  %3660 = vmatprep.subr.mxu0 0.0
  %3661 = vmatpush1.xpose.msra.mxu0 %v3630
  %3662 = vmatprep.subr.mxu0 0.0
  %3663 = vmatpush1.xpose.msra.mxu0 %v3628
  %3664 = vmatprep.subr.mxu0 0.0
  %3665 = vmatpush2.xpose.msra.mxu0 0.0
  %3666 = vmatprep.subr.mxu0 0.0
  %3667 = vmatpush2.xpose.msra.mxu0 0.0
  %3668 = vmatprep.subr.mxu0 0.0
  %3669 = vmatpush2.xpose.msra.mxu0 0.0
  %3670 = vmatprep.subr.mxu0 0.0
  %3671 = vmatpush2.xpose.msra.mxu0 0.0
  %3672 = vmatprep.subr.mxu0 0.0
  %3673 = vmatpush2.xpose.msra.mxu0 0.0
  %3674 = vmatprep.subr.mxu0 0.0
  %3675 = vmatpush2.xpose.msra.mxu0 0.0
  %3676 = vmatprep.subr.mxu0 0.0
  %3677 = vmatpush2.xpose.msra.mxu0 0.0
  %3678 = vmatprep.subr.mxu0 0.0
  %3679 = vmatpush2.xpose.msra.mxu0 0.0
  %3680 = vmatprep.subr.mxu0 0.0
  %3681 = vmatpush2.xpose.msra.mxu0 0.0
  %3682 = vmatprep.subr.mxu0 0.0
  %3683 = vmatpush2.xpose.msra.mxu0 0.0
  %3684 = vmatprep.subr.mxu0 0.0
  %3685 = vmatpush2.xpose.msra.mxu0 0.0
  %3686 = vmatprep.subr.mxu0 0.0
  %3687 = vmatpush2.xpose.msra.mxu0 0.0
  %3688 = vmatprep.subr.mxu0 0.0
  %3689 = vmatpush2.xpose.msra.mxu0 0.0
  %3690 = vmatprep.subr.mxu0 0.0
  %3691 = vmatpush2.xpose.msra.mxu0 0.0
  %3692 = vmatprep.subr.mxu0 0.0
  %3693 = vmatpush2.xpose.msra.mxu0 0.0
  %3694 = vmatprep.subr.mxu0 0.0
  %3695 = vmatpush2.xpose.msra.mxu0 0.0
  %3696 = vmatprep.mubr.f32.mxu0 0.0
  %3697 = vmatmul.mubr.f32.gmra.mxu0 %v3624
  %v3698 = vpop.f32.mrf.mxu0
  %v3699 = vadd.f32 %v3523, %v3698
  %v3700 = vpop.f32.mrf.mxu0
  %3701 = vmatprep.mubr.f32.mxu0 0.0
  %3702 = vmatmul.mubr.f32.gmra.mxu0 %v3626
  %v3703 = vpop.f32.mrf.mxu0
  %v3704 = vadd.f32 %v3524, %v3703
  %v3705 = vpop.f32.mrf.mxu0
  %3706 = vdwg.mxu0
  %3707 = vrot.lane.b32.xlu0 %v176, 112
  %v3708 = vpop.permute.xlu0 %3707
  %3709 = vrot.lane.b32.xlu0 %v181, 112
  %v3710 = vpop.permute.xlu0 %3709
  %3711 = vrot.lane.b32.xlu0 %v176, 80
  %v3712 = vpop.permute.xlu0 %3711
  %3713 = vrot.lane.b32.xlu0 %v181, 80
  %v3714 = vpop.permute.xlu0 %3713
  %v3715 = vsel %vm242, %v3708, 0
  %v3717 = vsel %vm242, %v3710, 0
  %v3719 = vsel %vm242, %v3712, 0
  %v3721 = vsel %vm242, %v3714, 0
  %3723 = vmatprep.subr.mxu0 0.0
  %3724 = vmatpush1.xpose.msra.mxu0 0.0
  %3725 = vmatprep.subr.mxu0 0.0
  %3726 = vmatpush1.xpose.msra.mxu0 0.0
  %3727 = vmatprep.subr.mxu0 0.0
  %3728 = vmatpush1.xpose.msra.mxu0 0.0
  %3729 = vmatprep.subr.mxu0 0.0
  %3730 = vmatpush1.xpose.msra.mxu0 0.0
  %3731 = vmatprep.subr.mxu0 0.0
  %3732 = vmatpush1.xpose.msra.mxu0 0.0
  %3733 = vmatprep.subr.mxu0 0.0
  %3734 = vmatpush1.xpose.msra.mxu0 0.0
  %3735 = vmatprep.subr.mxu0 0.0
  %3736 = vmatpush1.xpose.msra.mxu0 0.0
  %3737 = vmatprep.subr.mxu0 0.0
  %3738 = vmatpush1.xpose.msra.mxu0 0.0
  %3739 = vmatprep.subr.mxu0 0.0
  %3740 = vmatpush1.xpose.msra.mxu0 0.0
  %3741 = vmatprep.subr.mxu0 0.0
  %3742 = vmatpush1.xpose.msra.mxu0 0.0
  %3743 = vmatprep.subr.mxu0 0.0
  %3744 = vmatpush1.xpose.msra.mxu0 0.0
  %3745 = vmatprep.subr.mxu0 0.0
  %3746 = vmatpush1.xpose.msra.mxu0 0.0
  %3747 = vmatprep.subr.mxu0 0.0
  %3748 = vmatpush1.xpose.msra.mxu0 0.0
  %3749 = vmatprep.subr.mxu0 0.0
  %3750 = vmatpush1.xpose.msra.mxu0 0.0
  %3751 = vmatprep.subr.mxu0 0.0
  %3752 = vmatpush1.xpose.msra.mxu0 %v3721
  %3753 = vmatprep.subr.mxu0 0.0
  %3754 = vmatpush1.xpose.msra.mxu0 %v3719
  %3755 = vmatprep.subr.mxu0 0.0
  %3756 = vmatpush2.xpose.msra.mxu0 0.0
  %3757 = vmatprep.subr.mxu0 0.0
  %3758 = vmatpush2.xpose.msra.mxu0 0.0
  %3759 = vmatprep.subr.mxu0 0.0
  %3760 = vmatpush2.xpose.msra.mxu0 0.0
  %3761 = vmatprep.subr.mxu0 0.0
  %3762 = vmatpush2.xpose.msra.mxu0 0.0
  %3763 = vmatprep.subr.mxu0 0.0
  %3764 = vmatpush2.xpose.msra.mxu0 0.0
  %3765 = vmatprep.subr.mxu0 0.0
  %3766 = vmatpush2.xpose.msra.mxu0 0.0
  %3767 = vmatprep.subr.mxu0 0.0
  %3768 = vmatpush2.xpose.msra.mxu0 0.0
  %3769 = vmatprep.subr.mxu0 0.0
  %3770 = vmatpush2.xpose.msra.mxu0 0.0
  %3771 = vmatprep.subr.mxu0 0.0
  %3772 = vmatpush2.xpose.msra.mxu0 0.0
  %3773 = vmatprep.subr.mxu0 0.0
  %3774 = vmatpush2.xpose.msra.mxu0 0.0
  %3775 = vmatprep.subr.mxu0 0.0
  %3776 = vmatpush2.xpose.msra.mxu0 0.0
  %3777 = vmatprep.subr.mxu0 0.0
  %3778 = vmatpush2.xpose.msra.mxu0 0.0
  %3779 = vmatprep.subr.mxu0 0.0
  %3780 = vmatpush2.xpose.msra.mxu0 0.0
  %3781 = vmatprep.subr.mxu0 0.0
  %3782 = vmatpush2.xpose.msra.mxu0 0.0
  %3783 = vmatprep.subr.mxu0 0.0
  %3784 = vmatpush2.xpose.msra.mxu0 0.0
  %3785 = vmatprep.subr.mxu0 0.0
  %3786 = vmatpush2.xpose.msra.mxu0 0.0
  %3787 = vmatprep.mubr.f32.mxu0 0.0
  %3788 = vmatmul.mubr.f32.gmra.mxu0 %v3715
  %v3789 = vpop.f32.mrf.mxu0
  %v3790 = vadd.f32 %v3523, %v3789
  %v3791 = vpop.f32.mrf.mxu0
  %3792 = vmatprep.mubr.f32.mxu0 0.0
  %3793 = vmatmul.mubr.f32.gmra.mxu0 %v3717
  %v3794 = vpop.f32.mrf.mxu0
  %v3795 = vadd.f32 %v3524, %v3794
  %v3796 = vpop.f32.mrf.mxu0
  %3797 = vdwg.mxu0
  %3798 = vrot.lane.b32.xlu0 %v186, 112
  %v3799 = vpop.permute.xlu0 %3798
  %3800 = vrot.lane.b32.xlu0 %v191, 112
  %v3801 = vpop.permute.xlu0 %3800
  %3802 = vrot.lane.b32.xlu0 %v186, 80
  %v3803 = vpop.permute.xlu0 %3802
  %3804 = vrot.lane.b32.xlu0 %v191, 80
  %v3805 = vpop.permute.xlu0 %3804
  %v3806 = vsel %vm242, %v3799, 0
  %v3808 = vsel %vm242, %v3801, 0
  %v3810 = vsel %vm242, %v3803, 0
  %v3812 = vsel %vm242, %v3805, 0
  %3814 = vmatprep.subr.mxu0 0.0
  %3815 = vmatpush1.xpose.msra.mxu0 0.0
  %3816 = vmatprep.subr.mxu0 0.0
  %3817 = vmatpush1.xpose.msra.mxu0 0.0
  %3818 = vmatprep.subr.mxu0 0.0
  %3819 = vmatpush1.xpose.msra.mxu0 0.0
  %3820 = vmatprep.subr.mxu0 0.0
  %3821 = vmatpush1.xpose.msra.mxu0 0.0
  %3822 = vmatprep.subr.mxu0 0.0
  %3823 = vmatpush1.xpose.msra.mxu0 0.0
  %3824 = vmatprep.subr.mxu0 0.0
  %3825 = vmatpush1.xpose.msra.mxu0 0.0
  %3826 = vmatprep.subr.mxu0 0.0
  %3827 = vmatpush1.xpose.msra.mxu0 0.0
  %3828 = vmatprep.subr.mxu0 0.0
  %3829 = vmatpush1.xpose.msra.mxu0 0.0
  %3830 = vmatprep.subr.mxu0 0.0
  %3831 = vmatpush1.xpose.msra.mxu0 0.0
  %3832 = vmatprep.subr.mxu0 0.0
  %3833 = vmatpush1.xpose.msra.mxu0 0.0
  %3834 = vmatprep.subr.mxu0 0.0
  %3835 = vmatpush1.xpose.msra.mxu0 0.0
  %3836 = vmatprep.subr.mxu0 0.0
  %3837 = vmatpush1.xpose.msra.mxu0 0.0
  %3838 = vmatprep.subr.mxu0 0.0
  %3839 = vmatpush1.xpose.msra.mxu0 0.0
  %3840 = vmatprep.subr.mxu0 0.0
  %3841 = vmatpush1.xpose.msra.mxu0 0.0
  %3842 = vmatprep.subr.mxu0 0.0
  %3843 = vmatpush1.xpose.msra.mxu0 %v3812
  %3844 = vmatprep.subr.mxu0 0.0
  %3845 = vmatpush1.xpose.msra.mxu0 %v3810
  %3846 = vmatprep.subr.mxu0 0.0
  %3847 = vmatpush2.xpose.msra.mxu0 0.0
  %3848 = vmatprep.subr.mxu0 0.0
  %3849 = vmatpush2.xpose.msra.mxu0 0.0
  %3850 = vmatprep.subr.mxu0 0.0
  %3851 = vmatpush2.xpose.msra.mxu0 0.0
  %3852 = vmatprep.subr.mxu0 0.0
  %3853 = vmatpush2.xpose.msra.mxu0 0.0
  %3854 = vmatprep.subr.mxu0 0.0
  %3855 = vmatpush2.xpose.msra.mxu0 0.0
  %3856 = vmatprep.subr.mxu0 0.0
  %3857 = vmatpush2.xpose.msra.mxu0 0.0
  %3858 = vmatprep.subr.mxu0 0.0
  %3859 = vmatpush2.xpose.msra.mxu0 0.0
  %3860 = vmatprep.subr.mxu0 0.0
  %3861 = vmatpush2.xpose.msra.mxu0 0.0
  %3862 = vmatprep.subr.mxu0 0.0
  %3863 = vmatpush2.xpose.msra.mxu0 0.0
  %3864 = vmatprep.subr.mxu0 0.0
  %3865 = vmatpush2.xpose.msra.mxu0 0.0
  %3866 = vmatprep.subr.mxu0 0.0
  %3867 = vmatpush2.xpose.msra.mxu0 0.0
  %3868 = vmatprep.subr.mxu0 0.0
  %3869 = vmatpush2.xpose.msra.mxu0 0.0
  %3870 = vmatprep.subr.mxu0 0.0
  %3871 = vmatpush2.xpose.msra.mxu0 0.0
  %3872 = vmatprep.subr.mxu0 0.0
  %3873 = vmatpush2.xpose.msra.mxu0 0.0
  %3874 = vmatprep.subr.mxu0 0.0
  %3875 = vmatpush2.xpose.msra.mxu0 0.0
  %3876 = vmatprep.subr.mxu0 0.0
  %3877 = vmatpush2.xpose.msra.mxu0 0.0
  %3878 = vmatprep.mubr.f32.mxu0 0.0
  %3879 = vmatmul.mubr.f32.gmra.mxu0 %v3806
  %v3880 = vpop.f32.mrf.mxu0
  %v3881 = vadd.f32 %v3523, %v3880
  %v3882 = vpop.f32.mrf.mxu0
  %3883 = vmatprep.mubr.f32.mxu0 0.0
  %3884 = vmatmul.mubr.f32.gmra.mxu0 %v3808
  %v3885 = vpop.f32.mrf.mxu0
  %v3886 = vadd.f32 %v3524, %v3885
  %v3887 = vpop.f32.mrf.mxu0
  %3888 = vdwg.mxu0
  %3889 = vrot.lane.b32.xlu0 %v196, 112
  %v3890 = vpop.permute.xlu0 %3889
  %3891 = vrot.lane.b32.xlu0 %v201, 112
  %v3892 = vpop.permute.xlu0 %3891
  %3893 = vrot.lane.b32.xlu0 %v196, 80
  %v3894 = vpop.permute.xlu0 %3893
  %3895 = vrot.lane.b32.xlu0 %v201, 80
  %v3896 = vpop.permute.xlu0 %3895
  %v3897 = vsel %vm242, %v3890, 0
  %v3899 = vsel %vm242, %v3892, 0
  %v3901 = vsel %vm242, %v3894, 0
  %v3903 = vsel %vm242, %v3896, 0
  %3905 = vmatprep.subr.mxu0 0.0
  %3906 = vmatpush1.xpose.msra.mxu0 0.0
  %3907 = vmatprep.subr.mxu0 0.0
  %3908 = vmatpush1.xpose.msra.mxu0 0.0
  %3909 = vmatprep.subr.mxu0 0.0
  %3910 = vmatpush1.xpose.msra.mxu0 0.0
  %3911 = vmatprep.subr.mxu0 0.0
  %3912 = vmatpush1.xpose.msra.mxu0 0.0
  %3913 = vmatprep.subr.mxu0 0.0
  %3914 = vmatpush1.xpose.msra.mxu0 0.0
  %3915 = vmatprep.subr.mxu0 0.0
  %3916 = vmatpush1.xpose.msra.mxu0 0.0
  %3917 = vmatprep.subr.mxu0 0.0
  %3918 = vmatpush1.xpose.msra.mxu0 0.0
  %3919 = vmatprep.subr.mxu0 0.0
  %3920 = vmatpush1.xpose.msra.mxu0 0.0
  %3921 = vmatprep.subr.mxu0 0.0
  %3922 = vmatpush1.xpose.msra.mxu0 0.0
  %3923 = vmatprep.subr.mxu0 0.0
  %3924 = vmatpush1.xpose.msra.mxu0 0.0
  %3925 = vmatprep.subr.mxu0 0.0
  %3926 = vmatpush1.xpose.msra.mxu0 0.0
  %3927 = vmatprep.subr.mxu0 0.0
  %3928 = vmatpush1.xpose.msra.mxu0 0.0
  %3929 = vmatprep.subr.mxu0 0.0
  %3930 = vmatpush1.xpose.msra.mxu0 0.0
  %3931 = vmatprep.subr.mxu0 0.0
  %3932 = vmatpush1.xpose.msra.mxu0 0.0
  %3933 = vmatprep.subr.mxu0 0.0
  %3934 = vmatpush1.xpose.msra.mxu0 %v3903
  %3935 = vmatprep.subr.mxu0 0.0
  %3936 = vmatpush1.xpose.msra.mxu0 %v3901
  %3937 = vmatprep.subr.mxu0 0.0
  %3938 = vmatpush2.xpose.msra.mxu0 0.0
  %3939 = vmatprep.subr.mxu0 0.0
  %3940 = vmatpush2.xpose.msra.mxu0 0.0
  %3941 = vmatprep.subr.mxu0 0.0
  %3942 = vmatpush2.xpose.msra.mxu0 0.0
  %3943 = vmatprep.subr.mxu0 0.0
  %3944 = vmatpush2.xpose.msra.mxu0 0.0
  %3945 = vmatprep.subr.mxu0 0.0
  %3946 = vmatpush2.xpose.msra.mxu0 0.0
  %3947 = vmatprep.subr.mxu0 0.0
  %3948 = vmatpush2.xpose.msra.mxu0 0.0
  %3949 = vmatprep.subr.mxu0 0.0
  %3950 = vmatpush2.xpose.msra.mxu0 0.0
  %3951 = vmatprep.subr.mxu0 0.0
  %3952 = vmatpush2.xpose.msra.mxu0 0.0
  %3953 = vmatprep.subr.mxu0 0.0
  %3954 = vmatpush2.xpose.msra.mxu0 0.0
  %3955 = vmatprep.subr.mxu0 0.0
  %3956 = vmatpush2.xpose.msra.mxu0 0.0
  %3957 = vmatprep.subr.mxu0 0.0
  %3958 = vmatpush2.xpose.msra.mxu0 0.0
  %3959 = vmatprep.subr.mxu0 0.0
  %3960 = vmatpush2.xpose.msra.mxu0 0.0
  %3961 = vmatprep.subr.mxu0 0.0
  %3962 = vmatpush2.xpose.msra.mxu0 0.0
  %3963 = vmatprep.subr.mxu0 0.0
  %3964 = vmatpush2.xpose.msra.mxu0 0.0
  %3965 = vmatprep.subr.mxu0 0.0
  %3966 = vmatpush2.xpose.msra.mxu0 0.0
  %3967 = vmatprep.subr.mxu0 0.0
  %3968 = vmatpush2.xpose.msra.mxu0 0.0
  %3969 = vmatprep.mubr.f32.mxu0 0.0
  %3970 = vmatmul.mubr.f32.gmra.mxu0 %v3897
  %v3971 = vpop.f32.mrf.mxu0
  %v3972 = vadd.f32 %v3523, %v3971
  %v3973 = vpop.f32.mrf.mxu0
  %3974 = vmatprep.mubr.f32.mxu0 0.0
  %3975 = vmatmul.mubr.f32.gmra.mxu0 %v3899
  %v3976 = vpop.f32.mrf.mxu0
  %v3977 = vadd.f32 %v3524, %v3976
  %v3978 = vpop.f32.mrf.mxu0
  %3979 = vdwg.mxu0
  %3980 = vrot.lane.b32.xlu0 %v206, 112
  %v3981 = vpop.permute.xlu0 %3980
  %3982 = vrot.lane.b32.xlu0 %v211, 112
  %v3983 = vpop.permute.xlu0 %3982
  %3984 = vrot.lane.b32.xlu0 %v206, 80
  %v3985 = vpop.permute.xlu0 %3984
  %3986 = vrot.lane.b32.xlu0 %v211, 80
  %v3987 = vpop.permute.xlu0 %3986
  %v3988 = vsel %vm242, %v3981, 0
  %v3990 = vsel %vm242, %v3983, 0
  %v3992 = vsel %vm242, %v3985, 0
  %v3994 = vsel %vm242, %v3987, 0
  %3996 = vmatprep.subr.mxu0 0.0
  %3997 = vmatpush1.xpose.msra.mxu0 0.0
  %3998 = vmatprep.subr.mxu0 0.0
  %3999 = vmatpush1.xpose.msra.mxu0 0.0
  %4000 = vmatprep.subr.mxu0 0.0
  %4001 = vmatpush1.xpose.msra.mxu0 0.0
  %4002 = vmatprep.subr.mxu0 0.0
  %4003 = vmatpush1.xpose.msra.mxu0 0.0
  %4004 = vmatprep.subr.mxu0 0.0
  %4005 = vmatpush1.xpose.msra.mxu0 0.0
  %4006 = vmatprep.subr.mxu0 0.0
  %4007 = vmatpush1.xpose.msra.mxu0 0.0
  %4008 = vmatprep.subr.mxu0 0.0
  %4009 = vmatpush1.xpose.msra.mxu0 0.0
  %4010 = vmatprep.subr.mxu0 0.0
  %4011 = vmatpush1.xpose.msra.mxu0 0.0
  %4012 = vmatprep.subr.mxu0 0.0
  %4013 = vmatpush1.xpose.msra.mxu0 0.0
  %4014 = vmatprep.subr.mxu0 0.0
  %4015 = vmatpush1.xpose.msra.mxu0 0.0
  %4016 = vmatprep.subr.mxu0 0.0
  %4017 = vmatpush1.xpose.msra.mxu0 0.0
  %4018 = vmatprep.subr.mxu0 0.0
  %4019 = vmatpush1.xpose.msra.mxu0 0.0
  %4020 = vmatprep.subr.mxu0 0.0
  %4021 = vmatpush1.xpose.msra.mxu0 0.0
  %4022 = vmatprep.subr.mxu0 0.0
  %4023 = vmatpush1.xpose.msra.mxu0 0.0
  %4024 = vmatprep.subr.mxu0 0.0
  %4025 = vmatpush1.xpose.msra.mxu0 %v3994
  %4026 = vmatprep.subr.mxu0 0.0
  %4027 = vmatpush1.xpose.msra.mxu0 %v3992
  %4028 = vmatprep.subr.mxu0 0.0
  %4029 = vmatpush2.xpose.msra.mxu0 0.0
  %4030 = vmatprep.subr.mxu0 0.0
  %4031 = vmatpush2.xpose.msra.mxu0 0.0
  %4032 = vmatprep.subr.mxu0 0.0
  %4033 = vmatpush2.xpose.msra.mxu0 0.0
  %4034 = vmatprep.subr.mxu0 0.0
  %4035 = vmatpush2.xpose.msra.mxu0 0.0
  %4036 = vmatprep.subr.mxu0 0.0
  %4037 = vmatpush2.xpose.msra.mxu0 0.0
  %4038 = vmatprep.subr.mxu0 0.0
  %4039 = vmatpush2.xpose.msra.mxu0 0.0
  %4040 = vmatprep.subr.mxu0 0.0
  %4041 = vmatpush2.xpose.msra.mxu0 0.0
  %4042 = vmatprep.subr.mxu0 0.0
  %4043 = vmatpush2.xpose.msra.mxu0 0.0
  %4044 = vmatprep.subr.mxu0 0.0
  %4045 = vmatpush2.xpose.msra.mxu0 0.0
  %4046 = vmatprep.subr.mxu0 0.0
  %4047 = vmatpush2.xpose.msra.mxu0 0.0
  %4048 = vmatprep.subr.mxu0 0.0
  %4049 = vmatpush2.xpose.msra.mxu0 0.0
  %4050 = vmatprep.subr.mxu0 0.0
  %4051 = vmatpush2.xpose.msra.mxu0 0.0
  %4052 = vmatprep.subr.mxu0 0.0
  %4053 = vmatpush2.xpose.msra.mxu0 0.0
  %4054 = vmatprep.subr.mxu0 0.0
  %4055 = vmatpush2.xpose.msra.mxu0 0.0
  %4056 = vmatprep.subr.mxu0 0.0
  %4057 = vmatpush2.xpose.msra.mxu0 0.0
  %4058 = vmatprep.subr.mxu0 0.0
  %4059 = vmatpush2.xpose.msra.mxu0 0.0
  %4060 = vmatprep.mubr.f32.mxu0 0.0
  %4061 = vmatmul.mubr.f32.gmra.mxu0 %v3988
  %v4062 = vpop.f32.mrf.mxu0
  %v4063 = vadd.f32 %v3523, %v4062
  %v4064 = vpop.f32.mrf.mxu0
  %4065 = vmatprep.mubr.f32.mxu0 0.0
  %4066 = vmatmul.mubr.f32.gmra.mxu0 %v3990
  %v4067 = vpop.f32.mrf.mxu0
  %v4068 = vadd.f32 %v3524, %v4067
  %v4069 = vpop.f32.mrf.mxu0
  %4070 = vdwg.mxu0
  %4071 = vrot.lane.b32.xlu0 %v216, 112
  %v4072 = vpop.permute.xlu0 %4071
  %4073 = vrot.lane.b32.xlu0 %v221, 112
  %v4074 = vpop.permute.xlu0 %4073
  %4075 = vrot.lane.b32.xlu0 %v216, 80
  %v4076 = vpop.permute.xlu0 %4075
  %4077 = vrot.lane.b32.xlu0 %v221, 80
  %v4078 = vpop.permute.xlu0 %4077
  %v4079 = vsel %vm242, %v4072, 0
  %v4081 = vsel %vm242, %v4074, 0
  %v4083 = vsel %vm242, %v4076, 0
  %v4085 = vsel %vm242, %v4078, 0
  %4087 = vmatprep.subr.mxu0 0.0
  %4088 = vmatpush1.xpose.msra.mxu0 0.0
  %4089 = vmatprep.subr.mxu0 0.0
  %4090 = vmatpush1.xpose.msra.mxu0 0.0
  %4091 = vmatprep.subr.mxu0 0.0
  %4092 = vmatpush1.xpose.msra.mxu0 0.0
  %4093 = vmatprep.subr.mxu0 0.0
  %4094 = vmatpush1.xpose.msra.mxu0 0.0
  %4095 = vmatprep.subr.mxu0 0.0
  %4096 = vmatpush1.xpose.msra.mxu0 0.0
  %4097 = vmatprep.subr.mxu0 0.0
  %4098 = vmatpush1.xpose.msra.mxu0 0.0
  %4099 = vmatprep.subr.mxu0 0.0
  %4100 = vmatpush1.xpose.msra.mxu0 0.0
  %4101 = vmatprep.subr.mxu0 0.0
  %4102 = vmatpush1.xpose.msra.mxu0 0.0
  %4103 = vmatprep.subr.mxu0 0.0
  %4104 = vmatpush1.xpose.msra.mxu0 0.0
  %4105 = vmatprep.subr.mxu0 0.0
  %4106 = vmatpush1.xpose.msra.mxu0 0.0
  %4107 = vmatprep.subr.mxu0 0.0
  %4108 = vmatpush1.xpose.msra.mxu0 0.0
  %4109 = vmatprep.subr.mxu0 0.0
  %4110 = vmatpush1.xpose.msra.mxu0 0.0
  %4111 = vmatprep.subr.mxu0 0.0
  %4112 = vmatpush1.xpose.msra.mxu0 0.0
  %4113 = vmatprep.subr.mxu0 0.0
  %4114 = vmatpush1.xpose.msra.mxu0 0.0
  %4115 = vmatprep.subr.mxu0 0.0
  %4116 = vmatpush1.xpose.msra.mxu0 %v4085
  %4117 = vmatprep.subr.mxu0 0.0
  %4118 = vmatpush1.xpose.msra.mxu0 %v4083
  %4119 = vmatprep.subr.mxu0 0.0
  %4120 = vmatpush2.xpose.msra.mxu0 0.0
  %4121 = vmatprep.subr.mxu0 0.0
  %4122 = vmatpush2.xpose.msra.mxu0 0.0
  %4123 = vmatprep.subr.mxu0 0.0
  %4124 = vmatpush2.xpose.msra.mxu0 0.0
  %4125 = vmatprep.subr.mxu0 0.0
  %4126 = vmatpush2.xpose.msra.mxu0 0.0
  %4127 = vmatprep.subr.mxu0 0.0
  %4128 = vmatpush2.xpose.msra.mxu0 0.0
  %4129 = vmatprep.subr.mxu0 0.0
  %4130 = vmatpush2.xpose.msra.mxu0 0.0
  %4131 = vmatprep.subr.mxu0 0.0
  %4132 = vmatpush2.xpose.msra.mxu0 0.0
  %4133 = vmatprep.subr.mxu0 0.0
  %4134 = vmatpush2.xpose.msra.mxu0 0.0
  %4135 = vmatprep.subr.mxu0 0.0
  %4136 = vmatpush2.xpose.msra.mxu0 0.0
  %4137 = vmatprep.subr.mxu0 0.0
  %4138 = vmatpush2.xpose.msra.mxu0 0.0
  %4139 = vmatprep.subr.mxu0 0.0
  %4140 = vmatpush2.xpose.msra.mxu0 0.0
  %4141 = vmatprep.subr.mxu0 0.0
  %4142 = vmatpush2.xpose.msra.mxu0 0.0
  %4143 = vmatprep.subr.mxu0 0.0
  %4144 = vmatpush2.xpose.msra.mxu0 0.0
  %4145 = vmatprep.subr.mxu0 0.0
  %4146 = vmatpush2.xpose.msra.mxu0 0.0
  %4147 = vmatprep.subr.mxu0 0.0
  %4148 = vmatpush2.xpose.msra.mxu0 0.0
  %4149 = vmatprep.subr.mxu0 0.0
  %4150 = vmatpush2.xpose.msra.mxu0 0.0
  %4151 = vmatprep.mubr.f32.mxu0 0.0
  %4152 = vmatmul.mubr.f32.gmra.mxu0 %v4079
  %v4153 = vpop.f32.mrf.mxu0
  %v4154 = vadd.f32 %v3523, %v4153
  %v4155 = vpop.f32.mrf.mxu0
  %4156 = vmatprep.mubr.f32.mxu0 0.0
  %4157 = vmatmul.mubr.f32.gmra.mxu0 %v4081
  %v4158 = vpop.f32.mrf.mxu0
  %v4159 = vadd.f32 %v3524, %v4158
  %v4160 = vpop.f32.mrf.mxu0
  %4161 = vdwg.mxu0
  %4162 = vrot.lane.b32.xlu0 %v226, 112
  %v4163 = vpop.permute.xlu0 %4162
  %4164 = vrot.lane.b32.xlu0 %v231, 112
  %v4165 = vpop.permute.xlu0 %4164
  %4166 = vrot.lane.b32.xlu0 %v226, 80
  %v4167 = vpop.permute.xlu0 %4166
  %4168 = vrot.lane.b32.xlu0 %v231, 80
  %v4169 = vpop.permute.xlu0 %4168
  %v4170 = vsel %vm242, %v4163, 0
  %v4172 = vsel %vm242, %v4165, 0
  %v4174 = vsel %vm242, %v4167, 0
  %v4176 = vsel %vm242, %v4169, 0
  %4178 = vmatprep.subr.mxu0 0.0
  %4179 = vmatpush1.xpose.msra.mxu0 0.0
  %4180 = vmatprep.subr.mxu0 0.0
  %4181 = vmatpush1.xpose.msra.mxu0 0.0
  %4182 = vmatprep.subr.mxu0 0.0
  %4183 = vmatpush1.xpose.msra.mxu0 0.0
  %4184 = vmatprep.subr.mxu0 0.0
  %4185 = vmatpush1.xpose.msra.mxu0 0.0
  %4186 = vmatprep.subr.mxu0 0.0
  %4187 = vmatpush1.xpose.msra.mxu0 0.0
  %4188 = vmatprep.subr.mxu0 0.0
  %4189 = vmatpush1.xpose.msra.mxu0 0.0
  %4190 = vmatprep.subr.mxu0 0.0
  %4191 = vmatpush1.xpose.msra.mxu0 0.0
  %4192 = vmatprep.subr.mxu0 0.0
  %4193 = vmatpush1.xpose.msra.mxu0 0.0
  %4194 = vmatprep.subr.mxu0 0.0
  %4195 = vmatpush1.xpose.msra.mxu0 0.0
  %4196 = vmatprep.subr.mxu0 0.0
  %4197 = vmatpush1.xpose.msra.mxu0 0.0
  %4198 = vmatprep.subr.mxu0 0.0
  %4199 = vmatpush1.xpose.msra.mxu0 0.0
  %4200 = vmatprep.subr.mxu0 0.0
  %4201 = vmatpush1.xpose.msra.mxu0 0.0
  %4202 = vmatprep.subr.mxu0 0.0
  %4203 = vmatpush1.xpose.msra.mxu0 0.0
  %4204 = vmatprep.subr.mxu0 0.0
  %4205 = vmatpush1.xpose.msra.mxu0 0.0
  %4206 = vmatprep.subr.mxu0 0.0
  %4207 = vmatpush1.xpose.msra.mxu0 %v4176
  %4208 = vmatprep.subr.mxu0 0.0
  %4209 = vmatpush1.xpose.msra.mxu0 %v4174
  %4210 = vmatprep.subr.mxu0 0.0
  %4211 = vmatpush2.xpose.msra.mxu0 0.0
  %4212 = vmatprep.subr.mxu0 0.0
  %4213 = vmatpush2.xpose.msra.mxu0 0.0
  %4214 = vmatprep.subr.mxu0 0.0
  %4215 = vmatpush2.xpose.msra.mxu0 0.0
  %4216 = vmatprep.subr.mxu0 0.0
  %4217 = vmatpush2.xpose.msra.mxu0 0.0
  %4218 = vmatprep.subr.mxu0 0.0
  %4219 = vmatpush2.xpose.msra.mxu0 0.0
  %4220 = vmatprep.subr.mxu0 0.0
  %4221 = vmatpush2.xpose.msra.mxu0 0.0
  %4222 = vmatprep.subr.mxu0 0.0
  %4223 = vmatpush2.xpose.msra.mxu0 0.0
  %4224 = vmatprep.subr.mxu0 0.0
  %4225 = vmatpush2.xpose.msra.mxu0 0.0
  %4226 = vmatprep.subr.mxu0 0.0
  %4227 = vmatpush2.xpose.msra.mxu0 0.0
  %4228 = vmatprep.subr.mxu0 0.0
  %4229 = vmatpush2.xpose.msra.mxu0 0.0
  %4230 = vmatprep.subr.mxu0 0.0
  %4231 = vmatpush2.xpose.msra.mxu0 0.0
  %4232 = vmatprep.subr.mxu0 0.0
  %4233 = vmatpush2.xpose.msra.mxu0 0.0
  %4234 = vmatprep.subr.mxu0 0.0
  %4235 = vmatpush2.xpose.msra.mxu0 0.0
  %4236 = vmatprep.subr.mxu0 0.0
  %4237 = vmatpush2.xpose.msra.mxu0 0.0
  %4238 = vmatprep.subr.mxu0 0.0
  %4239 = vmatpush2.xpose.msra.mxu0 0.0
  %4240 = vmatprep.subr.mxu0 0.0
  %4241 = vmatpush2.xpose.msra.mxu0 0.0
  %4242 = vmatprep.mubr.f32.mxu0 0.0
  %4243 = vmatmul.mubr.f32.gmra.mxu0 %v4170
  %v4244 = vpop.f32.mrf.mxu0
  %v4245 = vadd.f32 %v3523, %v4244
  %v4246 = vpop.f32.mrf.mxu0
  %4247 = vmatprep.mubr.f32.mxu0 0.0
  %4248 = vmatmul.mubr.f32.gmra.mxu0 %v4172
  %v4249 = vpop.f32.mrf.mxu0
  %v4250 = vadd.f32 %v3524, %v4249
  %v4251 = vpop.f32.mrf.mxu0
  %4252 = vdwg.mxu0
  %v4253 = vsel %vm949, %v3608, -inf
  %4254 = vmax.xlane.f32.xlu0 %v4253
  %v4255 = vpop.xlane.xlu0 %4254
  %v4256 = vsel %vm949, %v3613, -inf
  %4257 = vmax.xlane.f32.xlu0 %v4256
  %v4258 = vpop.xlane.xlu0 %4257
  %v4259 = vsel %vm949, %v3699, -inf
  %4260 = vmax.xlane.f32.xlu0 %v4259
  %v4261 = vpop.xlane.xlu0 %4260
  %v4262 = vsel %vm949, %v3704, -inf
  %4263 = vmax.xlane.f32.xlu0 %v4262
  %v4264 = vpop.xlane.xlu0 %4263
  %v4265 = vsel %vm949, %v3790, -inf
  %4266 = vmax.xlane.f32.xlu0 %v4265
  %v4267 = vpop.xlane.xlu0 %4266
  %v4268 = vsel %vm949, %v3795, -inf
  %4269 = vmax.xlane.f32.xlu0 %v4268
  %v4270 = vpop.xlane.xlu0 %4269
  %v4271 = vsel %vm949, %v3881, -inf
  %4272 = vmax.xlane.f32.xlu0 %v4271
  %v4273 = vpop.xlane.xlu0 %4272
  %v4274 = vsel %vm949, %v3886, -inf
  %4275 = vmax.xlane.f32.xlu0 %v4274
  %v4276 = vpop.xlane.xlu0 %4275
  %v4277 = vsel %vm949, %v3972, -inf
  %4278 = vmax.xlane.f32.xlu0 %v4277
  %v4279 = vpop.xlane.xlu0 %4278
  %v4280 = vsel %vm949, %v3977, -inf
  %4281 = vmax.xlane.f32.xlu0 %v4280
  %v4282 = vpop.xlane.xlu0 %4281
  %v4283 = vsel %vm949, %v4063, -inf
  %4284 = vmax.xlane.f32.xlu0 %v4283
  %v4285 = vpop.xlane.xlu0 %4284
  %v4286 = vsel %vm949, %v4068, -inf
  %4287 = vmax.xlane.f32.xlu0 %v4286
  %v4288 = vpop.xlane.xlu0 %4287
  %v4289 = vsel %vm949, %v4154, -inf
  %4290 = vmax.xlane.f32.xlu0 %v4289
  %v4291 = vpop.xlane.xlu0 %4290
  %v4292 = vsel %vm949, %v4159, -inf
  %4293 = vmax.xlane.f32.xlu0 %v4292
  %v4294 = vpop.xlane.xlu0 %4293
  %v4295 = vsel %vm949, %v4245, -inf
  %4296 = vmax.xlane.f32.xlu0 %v4295
  %v4297 = vpop.xlane.xlu0 %4296
  %v4298 = vsel %vm949, %v4250, -inf
  %4299 = vmax.xlane.f32.xlu0 %v4298
  %v4300 = vpop.xlane.xlu0 %4299
  %v4301 = vsub.f32 %v3608, %v4255
  %v4302 = vsub.f32 %v3613, %v4258
  %v4303 = vsub.f32 %v3699, %v4261
  %v4304 = vsub.f32 %v3704, %v4264
  %v4305 = vsub.f32 %v3790, %v4267
  %v4306 = vsub.f32 %v3795, %v4270
  %v4307 = vsub.f32 %v3881, %v4273
  %v4308 = vsub.f32 %v3886, %v4276
  %v4309 = vsub.f32 %v3972, %v4279
  %v4310 = vsub.f32 %v3977, %v4282
  %v4311 = vsub.f32 %v4063, %v4285
  %v4312 = vsub.f32 %v4068, %v4288
  %v4313 = vsub.f32 %v4154, %v4291
  %v4314 = vsub.f32 %v4159, %v4294
  %v4315 = vsub.f32 %v4245, %v4297
  %v4316 = vsub.f32 %v4250, %v4300
  %v4317 = vmul.f32 %v4301, 1.442695
  %v4318 = vpow.pop %v4317
  %v4319 = vmul.f32 %v4302, 1.442695
  %v4320 = vpow.pop %v4319
  %v4321 = vmul.f32 %v4303, 1.442695
  %v4322 = vpow.pop %v4321
  %v4323 = vmul.f32 %v4304, 1.442695
  %v4324 = vpow.pop %v4323
  %v4325 = vmul.f32 %v4305, 1.442695
  %v4326 = vpow.pop %v4325
  %v4327 = vmul.f32 %v4306, 1.442695
  %v4328 = vpow.pop %v4327
  %v4329 = vmul.f32 %v4307, 1.442695
  %v4330 = vpow.pop %v4329
  %v4331 = vmul.f32 %v4308, 1.442695
  %v4332 = vpow.pop %v4331
  %v4333 = vmul.f32 %v4309, 1.442695
  %v4334 = vpow.pop %v4333
  %v4335 = vmul.f32 %v4310, 1.442695
  %v4336 = vpow.pop %v4335
  %v4337 = vmul.f32 %v4311, 1.442695
  %v4338 = vpow.pop %v4337
  %v4339 = vmul.f32 %v4312, 1.442695
  %v4340 = vpow.pop %v4339
  %v4341 = vmul.f32 %v4313, 1.442695
  %v4342 = vpow.pop %v4341
  %v4343 = vmul.f32 %v4314, 1.442695
  %v4344 = vpow.pop %v4343
  %v4345 = vmul.f32 %v4315, 1.442695
  %v4346 = vpow.pop %v4345
  %v4347 = vmul.f32 %v4316, 1.442695
  %v4348 = vpow.pop %v4347
  %v4349 = vsel %vm949, %v4318, 0.0
  %4350 = vadd.xlane.f32.xlu0 %v4349
  %v4351 = vpop.xlane.xlu0 %4350
  %v4352 = vsel %vm949, %v4320, 0.0
  %4353 = vadd.xlane.f32.xlu0 %v4352
  %v4354 = vpop.xlane.xlu0 %4353
  %v4355 = vsel %vm949, %v4322, 0.0
  %4356 = vadd.xlane.f32.xlu0 %v4355
  %v4357 = vpop.xlane.xlu0 %4356
  %v4358 = vsel %vm949, %v4324, 0.0
  %4359 = vadd.xlane.f32.xlu0 %v4358
  %v4360 = vpop.xlane.xlu0 %4359
  %v4361 = vsel %vm949, %v4326, 0.0
  %4362 = vadd.xlane.f32.xlu0 %v4361
  %v4363 = vpop.xlane.xlu0 %4362
  %v4364 = vsel %vm949, %v4328, 0.0
  %4365 = vadd.xlane.f32.xlu0 %v4364
  %v4366 = vpop.xlane.xlu0 %4365
  %v4367 = vsel %vm949, %v4330, 0.0
  %4368 = vadd.xlane.f32.xlu0 %v4367
  %v4369 = vpop.xlane.xlu0 %4368
  %v4370 = vsel %vm949, %v4332, 0.0
  %4371 = vadd.xlane.f32.xlu0 %v4370
  %v4372 = vpop.xlane.xlu0 %4371
  %v4373 = vsel %vm949, %v4334, 0.0
  %4374 = vadd.xlane.f32.xlu0 %v4373
  %v4375 = vpop.xlane.xlu0 %4374
  %v4376 = vsel %vm949, %v4336, 0.0
  %4377 = vadd.xlane.f32.xlu0 %v4376
  %v4378 = vpop.xlane.xlu0 %4377
  %v4379 = vsel %vm949, %v4338, 0.0
  %4380 = vadd.xlane.f32.xlu0 %v4379
  %v4381 = vpop.xlane.xlu0 %4380
  %v4382 = vsel %vm949, %v4340, 0.0
  %4383 = vadd.xlane.f32.xlu0 %v4382
  %v4384 = vpop.xlane.xlu0 %4383
  %v4385 = vsel %vm949, %v4342, 0.0
  %4386 = vadd.xlane.f32.xlu0 %v4385
  %v4387 = vpop.xlane.xlu0 %4386
  %v4388 = vsel %vm949, %v4344, 0.0
  %4389 = vadd.xlane.f32.xlu0 %v4388
  %v4390 = vpop.xlane.xlu0 %4389
  %v4391 = vsel %vm949, %v4346, 0.0
  %4392 = vadd.xlane.f32.xlu0 %v4391
  %v4393 = vpop.xlane.xlu0 %4392
  %v4394 = vsel %vm949, %v4348, 0.0
  %4395 = vadd.xlane.f32.xlu0 %v4394
  %v4396 = vpop.xlane.xlu0 %4395
  %v4397 = vrcp.pop %v4351
  %v4398 = vrcp.pop %v4354
  %v4399 = vrcp.pop %v4357
  %v4400 = vrcp.pop %v4360
  %v4401 = vrcp.pop %v4363
  %v4402 = vrcp.pop %v4366
  %v4403 = vrcp.pop %v4369
  %v4404 = vrcp.pop %v4372
  %v4405 = vrcp.pop %v4375
  %v4406 = vrcp.pop %v4378
  %v4407 = vrcp.pop %v4381
  %v4408 = vrcp.pop %v4384
  %v4409 = vrcp.pop %v4387
  %v4410 = vrcp.pop %v4390
  %v4411 = vrcp.pop %v4393
  %v4412 = vrcp.pop %v4396
  %v4413 = vmul.f32 %v4318, %v4397
  %v4414 = vmul.f32 %v4320, %v4398
  %v4415 = vmul.f32 %v4322, %v4399
  %v4416 = vmul.f32 %v4324, %v4400
  %v4417 = vmul.f32 %v4326, %v4401
  %v4418 = vmul.f32 %v4328, %v4402
  %v4419 = vmul.f32 %v4330, %v4403
  %v4420 = vmul.f32 %v4332, %v4404
  %v4421 = vmul.f32 %v4334, %v4405
  %v4422 = vmul.f32 %v4336, %v4406
  %v4423 = vmul.f32 %v4338, %v4407
  %v4424 = vmul.f32 %v4340, %v4408
  %v4425 = vmul.f32 %v4342, %v4409
  %v4426 = vmul.f32 %v4344, %v4410
  %v4427 = vmul.f32 %v4346, %v4411
  %v4428 = vmul.f32 %v4348, %v4412
  %4429 = vrot.lane.b32.xlu0 %v156, 48
  %v4430 = vpop.permute.xlu0 %4429
  %4431 = vrot.lane.b32.xlu0 %v161, 48
  %v4432 = vpop.permute.xlu0 %4431
  %v4436 = vsel %vm949, %v4413, 0
  %v4439 = vsel %vm949, %v4414, 0
  %4441 = vmatprep.subr.mxu0 0.0
  %4442 = vmatpush1.msra.mxu0 0.0
  %4443 = vmatprep.subr.mxu0 0.0
  %4444 = vmatpush1.msra.mxu0 0.0
  %4445 = vmatprep.subr.mxu0 0.0
  %4446 = vmatpush1.msra.mxu0 0.0
  %4447 = vmatprep.subr.mxu0 0.0
  %4448 = vmatpush1.msra.mxu0 0.0
  %4449 = vmatprep.subr.mxu0 0.0
  %4450 = vmatpush1.msra.mxu0 0.0
  %4451 = vmatprep.subr.mxu0 0.0
  %4452 = vmatpush1.msra.mxu0 0.0
  %4453 = vmatprep.subr.mxu0 0.0
  %4454 = vmatpush1.msra.mxu0 0.0
  %4455 = vmatprep.subr.mxu0 0.0
  %4456 = vmatpush1.msra.mxu0 0.0
  %4457 = vmatprep.subr.mxu0 0.0
  %4458 = vmatpush1.msra.mxu0 0.0
  %4459 = vmatprep.subr.mxu0 0.0
  %4460 = vmatpush1.msra.mxu0 0.0
  %4461 = vmatprep.subr.mxu0 0.0
  %4462 = vmatpush1.msra.mxu0 0.0
  %4463 = vmatprep.subr.mxu0 0.0
  %4464 = vmatpush1.msra.mxu0 0.0
  %4465 = vmatprep.subr.mxu0 0.0
  %4466 = vmatpush1.msra.mxu0 0.0
  %4467 = vmatprep.subr.mxu0 0.0
  %4468 = vmatpush1.msra.mxu0 0.0
  %4469 = vmatprep.subr.mxu0 0.0
  %4470 = vmatpush1.msra.mxu0 %v4432
  %4471 = vmatprep.subr.mxu0 0.0
  %4472 = vmatpush1.msra.mxu0 %v4430
  %4473 = vmatprep.subr.mxu0 0.0
  %4474 = vmatpush2.msra.mxu0 0.0
  %4475 = vmatprep.subr.mxu0 0.0
  %4476 = vmatpush2.msra.mxu0 0.0
  %4477 = vmatprep.subr.mxu0 0.0
  %4478 = vmatpush2.msra.mxu0 0.0
  %4479 = vmatprep.subr.mxu0 0.0
  %4480 = vmatpush2.msra.mxu0 0.0
  %4481 = vmatprep.subr.mxu0 0.0
  %4482 = vmatpush2.msra.mxu0 0.0
  %4483 = vmatprep.subr.mxu0 0.0
  %4484 = vmatpush2.msra.mxu0 0.0
  %4485 = vmatprep.subr.mxu0 0.0
  %4486 = vmatpush2.msra.mxu0 0.0
  %4487 = vmatprep.subr.mxu0 0.0
  %4488 = vmatpush2.msra.mxu0 0.0
  %4489 = vmatprep.subr.mxu0 0.0
  %4490 = vmatpush2.msra.mxu0 0.0
  %4491 = vmatprep.subr.mxu0 0.0
  %4492 = vmatpush2.msra.mxu0 0.0
  %4493 = vmatprep.subr.mxu0 0.0
  %4494 = vmatpush2.msra.mxu0 0.0
  %4495 = vmatprep.subr.mxu0 0.0
  %4496 = vmatpush2.msra.mxu0 0.0
  %4497 = vmatprep.subr.mxu0 0.0
  %4498 = vmatpush2.msra.mxu0 0.0
  %4499 = vmatprep.subr.mxu0 0.0
  %4500 = vmatpush2.msra.mxu0 0.0
  %4501 = vmatprep.subr.mxu0 0.0
  %4502 = vmatpush2.msra.mxu0 0.0
  %4503 = vmatprep.subr.mxu0 0.0
  %4504 = vmatpush2.msra.mxu0 0.0
  %4505 = vmatprep.mubr.f32.mxu0 0.0
  %4506 = vmatmul.mubr.f32.gmra.mxu0 %v4436
  %v4507 = vpop.f32.mrf.mxu0
  %v4508 = vadd.f32 0.0, %v4507
  %v4509 = vpop.f32.mrf.mxu0
  %4510 = vmatprep.mubr.f32.mxu0 0.0
  %4511 = vmatmul.mubr.f32.gmra.mxu0 %v4439
  %v4512 = vpop.f32.mrf.mxu0
  %v4513 = vadd.f32 0.0, %v4512
  %v4514 = vpop.f32.mrf.mxu0
  %4515 = vdwg.mxu0
  %4516 = vrot.lane.b32.xlu0 %v166, 48
  %v4517 = vpop.permute.xlu0 %4516
  %4518 = vrot.lane.b32.xlu0 %v171, 48
  %v4519 = vpop.permute.xlu0 %4518
  %v4523 = vsel %vm949, %v4415, 0
  %v4526 = vsel %vm949, %v4416, 0
  %4528 = vmatprep.subr.mxu0 0.0
  %4529 = vmatpush1.msra.mxu0 0.0
  %4530 = vmatprep.subr.mxu0 0.0
  %4531 = vmatpush1.msra.mxu0 0.0
  %4532 = vmatprep.subr.mxu0 0.0
  %4533 = vmatpush1.msra.mxu0 0.0
  %4534 = vmatprep.subr.mxu0 0.0
  %4535 = vmatpush1.msra.mxu0 0.0
  %4536 = vmatprep.subr.mxu0 0.0
  %4537 = vmatpush1.msra.mxu0 0.0
  %4538 = vmatprep.subr.mxu0 0.0
  %4539 = vmatpush1.msra.mxu0 0.0
  %4540 = vmatprep.subr.mxu0 0.0
  %4541 = vmatpush1.msra.mxu0 0.0
  %4542 = vmatprep.subr.mxu0 0.0
  %4543 = vmatpush1.msra.mxu0 0.0
  %4544 = vmatprep.subr.mxu0 0.0
  %4545 = vmatpush1.msra.mxu0 0.0
  %4546 = vmatprep.subr.mxu0 0.0
  %4547 = vmatpush1.msra.mxu0 0.0
  %4548 = vmatprep.subr.mxu0 0.0
  %4549 = vmatpush1.msra.mxu0 0.0
  %4550 = vmatprep.subr.mxu0 0.0
  %4551 = vmatpush1.msra.mxu0 0.0
  %4552 = vmatprep.subr.mxu0 0.0
  %4553 = vmatpush1.msra.mxu0 0.0
  %4554 = vmatprep.subr.mxu0 0.0
  %4555 = vmatpush1.msra.mxu0 0.0
  %4556 = vmatprep.subr.mxu0 0.0
  %4557 = vmatpush1.msra.mxu0 %v4519
  %4558 = vmatprep.subr.mxu0 0.0
  %4559 = vmatpush1.msra.mxu0 %v4517
  %4560 = vmatprep.subr.mxu0 0.0
  %4561 = vmatpush2.msra.mxu0 0.0
  %4562 = vmatprep.subr.mxu0 0.0
  %4563 = vmatpush2.msra.mxu0 0.0
  %4564 = vmatprep.subr.mxu0 0.0
  %4565 = vmatpush2.msra.mxu0 0.0
  %4566 = vmatprep.subr.mxu0 0.0
  %4567 = vmatpush2.msra.mxu0 0.0
  %4568 = vmatprep.subr.mxu0 0.0
  %4569 = vmatpush2.msra.mxu0 0.0
  %4570 = vmatprep.subr.mxu0 0.0
  %4571 = vmatpush2.msra.mxu0 0.0
  %4572 = vmatprep.subr.mxu0 0.0
  %4573 = vmatpush2.msra.mxu0 0.0
  %4574 = vmatprep.subr.mxu0 0.0
  %4575 = vmatpush2.msra.mxu0 0.0
  %4576 = vmatprep.subr.mxu0 0.0
  %4577 = vmatpush2.msra.mxu0 0.0
  %4578 = vmatprep.subr.mxu0 0.0
  %4579 = vmatpush2.msra.mxu0 0.0
  %4580 = vmatprep.subr.mxu0 0.0
  %4581 = vmatpush2.msra.mxu0 0.0
  %4582 = vmatprep.subr.mxu0 0.0
  %4583 = vmatpush2.msra.mxu0 0.0
  %4584 = vmatprep.subr.mxu0 0.0
  %4585 = vmatpush2.msra.mxu0 0.0
  %4586 = vmatprep.subr.mxu0 0.0
  %4587 = vmatpush2.msra.mxu0 0.0
  %4588 = vmatprep.subr.mxu0 0.0
  %4589 = vmatpush2.msra.mxu0 0.0
  %4590 = vmatprep.subr.mxu0 0.0
  %4591 = vmatpush2.msra.mxu0 0.0
  %4592 = vmatprep.mubr.f32.mxu0 0.0
  %4593 = vmatmul.mubr.f32.gmra.mxu0 %v4523
  %v4594 = vpop.f32.mrf.mxu0
  %v4595 = vadd.f32 0.0, %v4594
  %v4596 = vpop.f32.mrf.mxu0
  %4597 = vmatprep.mubr.f32.mxu0 0.0
  %4598 = vmatmul.mubr.f32.gmra.mxu0 %v4526
  %v4599 = vpop.f32.mrf.mxu0
  %v4600 = vadd.f32 0.0, %v4599
  %v4601 = vpop.f32.mrf.mxu0
  %4602 = vdwg.mxu0
  %4603 = vrot.lane.b32.xlu0 %v176, 48
  %v4604 = vpop.permute.xlu0 %4603
  %4605 = vrot.lane.b32.xlu0 %v181, 48
  %v4606 = vpop.permute.xlu0 %4605
  %v4610 = vsel %vm949, %v4417, 0
  %v4613 = vsel %vm949, %v4418, 0
  %4615 = vmatprep.subr.mxu0 0.0
  %4616 = vmatpush1.msra.mxu0 0.0
  %4617 = vmatprep.subr.mxu0 0.0
  %4618 = vmatpush1.msra.mxu0 0.0
  %4619 = vmatprep.subr.mxu0 0.0
  %4620 = vmatpush1.msra.mxu0 0.0
  %4621 = vmatprep.subr.mxu0 0.0
  %4622 = vmatpush1.msra.mxu0 0.0
  %4623 = vmatprep.subr.mxu0 0.0
  %4624 = vmatpush1.msra.mxu0 0.0
  %4625 = vmatprep.subr.mxu0 0.0
  %4626 = vmatpush1.msra.mxu0 0.0
  %4627 = vmatprep.subr.mxu0 0.0
  %4628 = vmatpush1.msra.mxu0 0.0
  %4629 = vmatprep.subr.mxu0 0.0
  %4630 = vmatpush1.msra.mxu0 0.0
  %4631 = vmatprep.subr.mxu0 0.0
  %4632 = vmatpush1.msra.mxu0 0.0
  %4633 = vmatprep.subr.mxu0 0.0
  %4634 = vmatpush1.msra.mxu0 0.0
  %4635 = vmatprep.subr.mxu0 0.0
  %4636 = vmatpush1.msra.mxu0 0.0
  %4637 = vmatprep.subr.mxu0 0.0
  %4638 = vmatpush1.msra.mxu0 0.0
  %4639 = vmatprep.subr.mxu0 0.0
  %4640 = vmatpush1.msra.mxu0 0.0
  %4641 = vmatprep.subr.mxu0 0.0
  %4642 = vmatpush1.msra.mxu0 0.0
  %4643 = vmatprep.subr.mxu0 0.0
  %4644 = vmatpush1.msra.mxu0 %v4606
  %4645 = vmatprep.subr.mxu0 0.0
  %4646 = vmatpush1.msra.mxu0 %v4604
  %4647 = vmatprep.subr.mxu0 0.0
  %4648 = vmatpush2.msra.mxu0 0.0
  %4649 = vmatprep.subr.mxu0 0.0
  %4650 = vmatpush2.msra.mxu0 0.0
  %4651 = vmatprep.subr.mxu0 0.0
  %4652 = vmatpush2.msra.mxu0 0.0
  %4653 = vmatprep.subr.mxu0 0.0
  %4654 = vmatpush2.msra.mxu0 0.0
  %4655 = vmatprep.subr.mxu0 0.0
  %4656 = vmatpush2.msra.mxu0 0.0
  %4657 = vmatprep.subr.mxu0 0.0
  %4658 = vmatpush2.msra.mxu0 0.0
  %4659 = vmatprep.subr.mxu0 0.0
  %4660 = vmatpush2.msra.mxu0 0.0
  %4661 = vmatprep.subr.mxu0 0.0
  %4662 = vmatpush2.msra.mxu0 0.0
  %4663 = vmatprep.subr.mxu0 0.0
  %4664 = vmatpush2.msra.mxu0 0.0
  %4665 = vmatprep.subr.mxu0 0.0
  %4666 = vmatpush2.msra.mxu0 0.0
  %4667 = vmatprep.subr.mxu0 0.0
  %4668 = vmatpush2.msra.mxu0 0.0
  %4669 = vmatprep.subr.mxu0 0.0
  %4670 = vmatpush2.msra.mxu0 0.0
  %4671 = vmatprep.subr.mxu0 0.0
  %4672 = vmatpush2.msra.mxu0 0.0
  %4673 = vmatprep.subr.mxu0 0.0
  %4674 = vmatpush2.msra.mxu0 0.0
  %4675 = vmatprep.subr.mxu0 0.0
  %4676 = vmatpush2.msra.mxu0 0.0
  %4677 = vmatprep.subr.mxu0 0.0
  %4678 = vmatpush2.msra.mxu0 0.0
  %4679 = vmatprep.mubr.f32.mxu0 0.0
  %4680 = vmatmul.mubr.f32.gmra.mxu0 %v4610
  %v4681 = vpop.f32.mrf.mxu0
  %v4682 = vadd.f32 0.0, %v4681
  %v4683 = vpop.f32.mrf.mxu0
  %4684 = vmatprep.mubr.f32.mxu0 0.0
  %4685 = vmatmul.mubr.f32.gmra.mxu0 %v4613
  %v4686 = vpop.f32.mrf.mxu0
  %v4687 = vadd.f32 0.0, %v4686
  %v4688 = vpop.f32.mrf.mxu0
  %4689 = vdwg.mxu0
  %4690 = vrot.lane.b32.xlu0 %v186, 48
  %v4691 = vpop.permute.xlu0 %4690
  %4692 = vrot.lane.b32.xlu0 %v191, 48
  %v4693 = vpop.permute.xlu0 %4692
  %v4697 = vsel %vm949, %v4419, 0
  %v4700 = vsel %vm949, %v4420, 0
  %4702 = vmatprep.subr.mxu0 0.0
  %4703 = vmatpush1.msra.mxu0 0.0
  %4704 = vmatprep.subr.mxu0 0.0
  %4705 = vmatpush1.msra.mxu0 0.0
  %4706 = vmatprep.subr.mxu0 0.0
  %4707 = vmatpush1.msra.mxu0 0.0
  %4708 = vmatprep.subr.mxu0 0.0
  %4709 = vmatpush1.msra.mxu0 0.0
  %4710 = vmatprep.subr.mxu0 0.0
  %4711 = vmatpush1.msra.mxu0 0.0
  %4712 = vmatprep.subr.mxu0 0.0
  %4713 = vmatpush1.msra.mxu0 0.0
  %4714 = vmatprep.subr.mxu0 0.0
  %4715 = vmatpush1.msra.mxu0 0.0
  %4716 = vmatprep.subr.mxu0 0.0
  %4717 = vmatpush1.msra.mxu0 0.0
  %4718 = vmatprep.subr.mxu0 0.0
  %4719 = vmatpush1.msra.mxu0 0.0
  %4720 = vmatprep.subr.mxu0 0.0
  %4721 = vmatpush1.msra.mxu0 0.0
  %4722 = vmatprep.subr.mxu0 0.0
  %4723 = vmatpush1.msra.mxu0 0.0
  %4724 = vmatprep.subr.mxu0 0.0
  %4725 = vmatpush1.msra.mxu0 0.0
  %4726 = vmatprep.subr.mxu0 0.0
  %4727 = vmatpush1.msra.mxu0 0.0
  %4728 = vmatprep.subr.mxu0 0.0
  %4729 = vmatpush1.msra.mxu0 0.0
  %4730 = vmatprep.subr.mxu0 0.0
  %4731 = vmatpush1.msra.mxu0 %v4693
  %4732 = vmatprep.subr.mxu0 0.0
  %4733 = vmatpush1.msra.mxu0 %v4691
  %4734 = vmatprep.subr.mxu0 0.0
  %4735 = vmatpush2.msra.mxu0 0.0
  %4736 = vmatprep.subr.mxu0 0.0
  %4737 = vmatpush2.msra.mxu0 0.0
  %4738 = vmatprep.subr.mxu0 0.0
  %4739 = vmatpush2.msra.mxu0 0.0
  %4740 = vmatprep.subr.mxu0 0.0
  %4741 = vmatpush2.msra.mxu0 0.0
  %4742 = vmatprep.subr.mxu0 0.0
  %4743 = vmatpush2.msra.mxu0 0.0
  %4744 = vmatprep.subr.mxu0 0.0
  %4745 = vmatpush2.msra.mxu0 0.0
  %4746 = vmatprep.subr.mxu0 0.0
  %4747 = vmatpush2.msra.mxu0 0.0
  %4748 = vmatprep.subr.mxu0 0.0
  %4749 = vmatpush2.msra.mxu0 0.0
  %4750 = vmatprep.subr.mxu0 0.0
  %4751 = vmatpush2.msra.mxu0 0.0
  %4752 = vmatprep.subr.mxu0 0.0
  %4753 = vmatpush2.msra.mxu0 0.0
  %4754 = vmatprep.subr.mxu0 0.0
  %4755 = vmatpush2.msra.mxu0 0.0
  %4756 = vmatprep.subr.mxu0 0.0
  %4757 = vmatpush2.msra.mxu0 0.0
  %4758 = vmatprep.subr.mxu0 0.0
  %4759 = vmatpush2.msra.mxu0 0.0
  %4760 = vmatprep.subr.mxu0 0.0
  %4761 = vmatpush2.msra.mxu0 0.0
  %4762 = vmatprep.subr.mxu0 0.0
  %4763 = vmatpush2.msra.mxu0 0.0
  %4764 = vmatprep.subr.mxu0 0.0
  %4765 = vmatpush2.msra.mxu0 0.0
  %4766 = vmatprep.mubr.f32.mxu0 0.0
  %4767 = vmatmul.mubr.f32.gmra.mxu0 %v4697
  %v4768 = vpop.f32.mrf.mxu0
  %v4769 = vadd.f32 0.0, %v4768
  %v4770 = vpop.f32.mrf.mxu0
  %4771 = vmatprep.mubr.f32.mxu0 0.0
  %4772 = vmatmul.mubr.f32.gmra.mxu0 %v4700
  %v4773 = vpop.f32.mrf.mxu0
  %v4774 = vadd.f32 0.0, %v4773
  %v4775 = vpop.f32.mrf.mxu0
  %4776 = vdwg.mxu0
  %4777 = vrot.lane.b32.xlu0 %v196, 48
  %v4778 = vpop.permute.xlu0 %4777
  %4779 = vrot.lane.b32.xlu0 %v201, 48
  %v4780 = vpop.permute.xlu0 %4779
  %v4784 = vsel %vm949, %v4421, 0
  %v4787 = vsel %vm949, %v4422, 0
  %4789 = vmatprep.subr.mxu0 0.0
  %4790 = vmatpush1.msra.mxu0 0.0
  %4791 = vmatprep.subr.mxu0 0.0
  %4792 = vmatpush1.msra.mxu0 0.0
  %4793 = vmatprep.subr.mxu0 0.0
  %4794 = vmatpush1.msra.mxu0 0.0
  %4795 = vmatprep.subr.mxu0 0.0
  %4796 = vmatpush1.msra.mxu0 0.0
  %4797 = vmatprep.subr.mxu0 0.0
  %4798 = vmatpush1.msra.mxu0 0.0
  %4799 = vmatprep.subr.mxu0 0.0
  %4800 = vmatpush1.msra.mxu0 0.0
  %4801 = vmatprep.subr.mxu0 0.0
  %4802 = vmatpush1.msra.mxu0 0.0
  %4803 = vmatprep.subr.mxu0 0.0
  %4804 = vmatpush1.msra.mxu0 0.0
  %4805 = vmatprep.subr.mxu0 0.0
  %4806 = vmatpush1.msra.mxu0 0.0
  %4807 = vmatprep.subr.mxu0 0.0
  %4808 = vmatpush1.msra.mxu0 0.0
  %4809 = vmatprep.subr.mxu0 0.0
  %4810 = vmatpush1.msra.mxu0 0.0
  %4811 = vmatprep.subr.mxu0 0.0
  %4812 = vmatpush1.msra.mxu0 0.0
  %4813 = vmatprep.subr.mxu0 0.0
  %4814 = vmatpush1.msra.mxu0 0.0
  %4815 = vmatprep.subr.mxu0 0.0
  %4816 = vmatpush1.msra.mxu0 0.0
  %4817 = vmatprep.subr.mxu0 0.0
  %4818 = vmatpush1.msra.mxu0 %v4780
  %4819 = vmatprep.subr.mxu0 0.0
  %4820 = vmatpush1.msra.mxu0 %v4778
  %4821 = vmatprep.subr.mxu0 0.0
  %4822 = vmatpush2.msra.mxu0 0.0
  %4823 = vmatprep.subr.mxu0 0.0
  %4824 = vmatpush2.msra.mxu0 0.0
  %4825 = vmatprep.subr.mxu0 0.0
  %4826 = vmatpush2.msra.mxu0 0.0
  %4827 = vmatprep.subr.mxu0 0.0
  %4828 = vmatpush2.msra.mxu0 0.0
  %4829 = vmatprep.subr.mxu0 0.0
  %4830 = vmatpush2.msra.mxu0 0.0
  %4831 = vmatprep.subr.mxu0 0.0
  %4832 = vmatpush2.msra.mxu0 0.0
  %4833 = vmatprep.subr.mxu0 0.0
  %4834 = vmatpush2.msra.mxu0 0.0
  %4835 = vmatprep.subr.mxu0 0.0
  %4836 = vmatpush2.msra.mxu0 0.0
  %4837 = vmatprep.subr.mxu0 0.0
  %4838 = vmatpush2.msra.mxu0 0.0
  %4839 = vmatprep.subr.mxu0 0.0
  %4840 = vmatpush2.msra.mxu0 0.0
  %4841 = vmatprep.subr.mxu0 0.0
  %4842 = vmatpush2.msra.mxu0 0.0
  %4843 = vmatprep.subr.mxu0 0.0
  %4844 = vmatpush2.msra.mxu0 0.0
  %4845 = vmatprep.subr.mxu0 0.0
  %4846 = vmatpush2.msra.mxu0 0.0
  %4847 = vmatprep.subr.mxu0 0.0
  %4848 = vmatpush2.msra.mxu0 0.0
  %4849 = vmatprep.subr.mxu0 0.0
  %4850 = vmatpush2.msra.mxu0 0.0
  %4851 = vmatprep.subr.mxu0 0.0
  %4852 = vmatpush2.msra.mxu0 0.0
  %4853 = vmatprep.mubr.f32.mxu0 0.0
  %4854 = vmatmul.mubr.f32.gmra.mxu0 %v4784
  %v4855 = vpop.f32.mrf.mxu0
  %v4856 = vadd.f32 0.0, %v4855
  %v4857 = vpop.f32.mrf.mxu0
  %4858 = vmatprep.mubr.f32.mxu0 0.0
  %4859 = vmatmul.mubr.f32.gmra.mxu0 %v4787
  %v4860 = vpop.f32.mrf.mxu0
  %v4861 = vadd.f32 0.0, %v4860
  %v4862 = vpop.f32.mrf.mxu0
  %4863 = vdwg.mxu0
  %4864 = vrot.lane.b32.xlu0 %v206, 48
  %v4865 = vpop.permute.xlu0 %4864
  %4866 = vrot.lane.b32.xlu0 %v211, 48
  %v4867 = vpop.permute.xlu0 %4866
  %v4871 = vsel %vm949, %v4423, 0
  %v4874 = vsel %vm949, %v4424, 0
  %4876 = vmatprep.subr.mxu0 0.0
  %4877 = vmatpush1.msra.mxu0 0.0
  %4878 = vmatprep.subr.mxu0 0.0
  %4879 = vmatpush1.msra.mxu0 0.0
  %4880 = vmatprep.subr.mxu0 0.0
  %4881 = vmatpush1.msra.mxu0 0.0
  %4882 = vmatprep.subr.mxu0 0.0
  %4883 = vmatpush1.msra.mxu0 0.0
  %4884 = vmatprep.subr.mxu0 0.0
  %4885 = vmatpush1.msra.mxu0 0.0
  %4886 = vmatprep.subr.mxu0 0.0
  %4887 = vmatpush1.msra.mxu0 0.0
  %4888 = vmatprep.subr.mxu0 0.0
  %4889 = vmatpush1.msra.mxu0 0.0
  %4890 = vmatprep.subr.mxu0 0.0
  %4891 = vmatpush1.msra.mxu0 0.0
  %4892 = vmatprep.subr.mxu0 0.0
  %4893 = vmatpush1.msra.mxu0 0.0
  %4894 = vmatprep.subr.mxu0 0.0
  %4895 = vmatpush1.msra.mxu0 0.0
  %4896 = vmatprep.subr.mxu0 0.0
  %4897 = vmatpush1.msra.mxu0 0.0
  %4898 = vmatprep.subr.mxu0 0.0
  %4899 = vmatpush1.msra.mxu0 0.0
  %4900 = vmatprep.subr.mxu0 0.0
  %4901 = vmatpush1.msra.mxu0 0.0
  %4902 = vmatprep.subr.mxu0 0.0
  %4903 = vmatpush1.msra.mxu0 0.0
  %4904 = vmatprep.subr.mxu0 0.0
  %4905 = vmatpush1.msra.mxu0 %v4867
  %4906 = vmatprep.subr.mxu0 0.0
  %4907 = vmatpush1.msra.mxu0 %v4865
  %4908 = vmatprep.subr.mxu0 0.0
  %4909 = vmatpush2.msra.mxu0 0.0
  %4910 = vmatprep.subr.mxu0 0.0
  %4911 = vmatpush2.msra.mxu0 0.0
  %4912 = vmatprep.subr.mxu0 0.0
  %4913 = vmatpush2.msra.mxu0 0.0
  %4914 = vmatprep.subr.mxu0 0.0
  %4915 = vmatpush2.msra.mxu0 0.0
  %4916 = vmatprep.subr.mxu0 0.0
  %4917 = vmatpush2.msra.mxu0 0.0
  %4918 = vmatprep.subr.mxu0 0.0
  %4919 = vmatpush2.msra.mxu0 0.0
  %4920 = vmatprep.subr.mxu0 0.0
  %4921 = vmatpush2.msra.mxu0 0.0
  %4922 = vmatprep.subr.mxu0 0.0
  %4923 = vmatpush2.msra.mxu0 0.0
  %4924 = vmatprep.subr.mxu0 0.0
  %4925 = vmatpush2.msra.mxu0 0.0
  %4926 = vmatprep.subr.mxu0 0.0
  %4927 = vmatpush2.msra.mxu0 0.0
  %4928 = vmatprep.subr.mxu0 0.0
  %4929 = vmatpush2.msra.mxu0 0.0
  %4930 = vmatprep.subr.mxu0 0.0
  %4931 = vmatpush2.msra.mxu0 0.0
  %4932 = vmatprep.subr.mxu0 0.0
  %4933 = vmatpush2.msra.mxu0 0.0
  %4934 = vmatprep.subr.mxu0 0.0
  %4935 = vmatpush2.msra.mxu0 0.0
  %4936 = vmatprep.subr.mxu0 0.0
  %4937 = vmatpush2.msra.mxu0 0.0
  %4938 = vmatprep.subr.mxu0 0.0
  %4939 = vmatpush2.msra.mxu0 0.0
  %4940 = vmatprep.mubr.f32.mxu0 0.0
  %4941 = vmatmul.mubr.f32.gmra.mxu0 %v4871
  %v4942 = vpop.f32.mrf.mxu0
  %v4943 = vadd.f32 0.0, %v4942
  %v4944 = vpop.f32.mrf.mxu0
  %4945 = vmatprep.mubr.f32.mxu0 0.0
  %4946 = vmatmul.mubr.f32.gmra.mxu0 %v4874
  %v4947 = vpop.f32.mrf.mxu0
  %v4948 = vadd.f32 0.0, %v4947
  %v4949 = vpop.f32.mrf.mxu0
  %4950 = vdwg.mxu0
  %4951 = vrot.lane.b32.xlu0 %v216, 48
  %v4952 = vpop.permute.xlu0 %4951
  %4953 = vrot.lane.b32.xlu0 %v221, 48
  %v4954 = vpop.permute.xlu0 %4953
  %v4958 = vsel %vm949, %v4425, 0
  %v4961 = vsel %vm949, %v4426, 0
  %4963 = vmatprep.subr.mxu0 0.0
  %4964 = vmatpush1.msra.mxu0 0.0
  %4965 = vmatprep.subr.mxu0 0.0
  %4966 = vmatpush1.msra.mxu0 0.0
  %4967 = vmatprep.subr.mxu0 0.0
  %4968 = vmatpush1.msra.mxu0 0.0
  %4969 = vmatprep.subr.mxu0 0.0
  %4970 = vmatpush1.msra.mxu0 0.0
  %4971 = vmatprep.subr.mxu0 0.0
  %4972 = vmatpush1.msra.mxu0 0.0
  %4973 = vmatprep.subr.mxu0 0.0
  %4974 = vmatpush1.msra.mxu0 0.0
  %4975 = vmatprep.subr.mxu0 0.0
  %4976 = vmatpush1.msra.mxu0 0.0
  %4977 = vmatprep.subr.mxu0 0.0
  %4978 = vmatpush1.msra.mxu0 0.0
  %4979 = vmatprep.subr.mxu0 0.0
  %4980 = vmatpush1.msra.mxu0 0.0
  %4981 = vmatprep.subr.mxu0 0.0
  %4982 = vmatpush1.msra.mxu0 0.0
  %4983 = vmatprep.subr.mxu0 0.0
  %4984 = vmatpush1.msra.mxu0 0.0
  %4985 = vmatprep.subr.mxu0 0.0
  %4986 = vmatpush1.msra.mxu0 0.0
  %4987 = vmatprep.subr.mxu0 0.0
  %4988 = vmatpush1.msra.mxu0 0.0
  %4989 = vmatprep.subr.mxu0 0.0
  %4990 = vmatpush1.msra.mxu0 0.0
  %4991 = vmatprep.subr.mxu0 0.0
  %4992 = vmatpush1.msra.mxu0 %v4954
  %4993 = vmatprep.subr.mxu0 0.0
  %4994 = vmatpush1.msra.mxu0 %v4952
  %4995 = vmatprep.subr.mxu0 0.0
  %4996 = vmatpush2.msra.mxu0 0.0
  %4997 = vmatprep.subr.mxu0 0.0
  %4998 = vmatpush2.msra.mxu0 0.0
  %4999 = vmatprep.subr.mxu0 0.0
  %5000 = vmatpush2.msra.mxu0 0.0
  %5001 = vmatprep.subr.mxu0 0.0
  %5002 = vmatpush2.msra.mxu0 0.0
  %5003 = vmatprep.subr.mxu0 0.0
  %5004 = vmatpush2.msra.mxu0 0.0
  %5005 = vmatprep.subr.mxu0 0.0
  %5006 = vmatpush2.msra.mxu0 0.0
  %5007 = vmatprep.subr.mxu0 0.0
  %5008 = vmatpush2.msra.mxu0 0.0
  %5009 = vmatprep.subr.mxu0 0.0
  %5010 = vmatpush2.msra.mxu0 0.0
  %5011 = vmatprep.subr.mxu0 0.0
  %5012 = vmatpush2.msra.mxu0 0.0
  %5013 = vmatprep.subr.mxu0 0.0
  %5014 = vmatpush2.msra.mxu0 0.0
  %5015 = vmatprep.subr.mxu0 0.0
  %5016 = vmatpush2.msra.mxu0 0.0
  %5017 = vmatprep.subr.mxu0 0.0
  %5018 = vmatpush2.msra.mxu0 0.0
  %5019 = vmatprep.subr.mxu0 0.0
  %5020 = vmatpush2.msra.mxu0 0.0
  %5021 = vmatprep.subr.mxu0 0.0
  %5022 = vmatpush2.msra.mxu0 0.0
  %5023 = vmatprep.subr.mxu0 0.0
  %5024 = vmatpush2.msra.mxu0 0.0
  %5025 = vmatprep.subr.mxu0 0.0
  %5026 = vmatpush2.msra.mxu0 0.0
  %5027 = vmatprep.mubr.f32.mxu0 0.0
  %5028 = vmatmul.mubr.f32.gmra.mxu0 %v4958
  %v5029 = vpop.f32.mrf.mxu0
  %v5030 = vadd.f32 0.0, %v5029
  %v5031 = vpop.f32.mrf.mxu0
  %5032 = vmatprep.mubr.f32.mxu0 0.0
  %5033 = vmatmul.mubr.f32.gmra.mxu0 %v4961
  %v5034 = vpop.f32.mrf.mxu0
  %v5035 = vadd.f32 0.0, %v5034
  %v5036 = vpop.f32.mrf.mxu0
  %5037 = vdwg.mxu0
  %5038 = vrot.lane.b32.xlu0 %v226, 48
  %v5039 = vpop.permute.xlu0 %5038
  %5040 = vrot.lane.b32.xlu0 %v231, 48
  %v5041 = vpop.permute.xlu0 %5040
  %v5045 = vsel %vm949, %v4427, 0
  %v5048 = vsel %vm949, %v4428, 0
  %5050 = vmatprep.subr.mxu0 0.0
  %5051 = vmatpush1.msra.mxu0 0.0
  %5052 = vmatprep.subr.mxu0 0.0
  %5053 = vmatpush1.msra.mxu0 0.0
  %5054 = vmatprep.subr.mxu0 0.0
  %5055 = vmatpush1.msra.mxu0 0.0
  %5056 = vmatprep.subr.mxu0 0.0
  %5057 = vmatpush1.msra.mxu0 0.0
  %5058 = vmatprep.subr.mxu0 0.0
  %5059 = vmatpush1.msra.mxu0 0.0
  %5060 = vmatprep.subr.mxu0 0.0
  %5061 = vmatpush1.msra.mxu0 0.0
  %5062 = vmatprep.subr.mxu0 0.0
  %5063 = vmatpush1.msra.mxu0 0.0
  %5064 = vmatprep.subr.mxu0 0.0
  %5065 = vmatpush1.msra.mxu0 0.0
  %5066 = vmatprep.subr.mxu0 0.0
  %5067 = vmatpush1.msra.mxu0 0.0
  %5068 = vmatprep.subr.mxu0 0.0
  %5069 = vmatpush1.msra.mxu0 0.0
  %5070 = vmatprep.subr.mxu0 0.0
  %5071 = vmatpush1.msra.mxu0 0.0
  %5072 = vmatprep.subr.mxu0 0.0
  %5073 = vmatpush1.msra.mxu0 0.0
  %5074 = vmatprep.subr.mxu0 0.0
  %5075 = vmatpush1.msra.mxu0 0.0
  %5076 = vmatprep.subr.mxu0 0.0
  %5077 = vmatpush1.msra.mxu0 0.0
  %5078 = vmatprep.subr.mxu0 0.0
  %5079 = vmatpush1.msra.mxu0 %v5041
  %5080 = vmatprep.subr.mxu0 0.0
  %5081 = vmatpush1.msra.mxu0 %v5039
  %5082 = vmatprep.subr.mxu0 0.0
  %5083 = vmatpush2.msra.mxu0 0.0
  %5084 = vmatprep.subr.mxu0 0.0
  %5085 = vmatpush2.msra.mxu0 0.0
  %5086 = vmatprep.subr.mxu0 0.0
  %5087 = vmatpush2.msra.mxu0 0.0
  %5088 = vmatprep.subr.mxu0 0.0
  %5089 = vmatpush2.msra.mxu0 0.0
  %5090 = vmatprep.subr.mxu0 0.0
  %5091 = vmatpush2.msra.mxu0 0.0
  %5092 = vmatprep.subr.mxu0 0.0
  %5093 = vmatpush2.msra.mxu0 0.0
  %5094 = vmatprep.subr.mxu0 0.0
  %5095 = vmatpush2.msra.mxu0 0.0
  %5096 = vmatprep.subr.mxu0 0.0
  %5097 = vmatpush2.msra.mxu0 0.0
  %5098 = vmatprep.subr.mxu0 0.0
  %5099 = vmatpush2.msra.mxu0 0.0
  %5100 = vmatprep.subr.mxu0 0.0
  %5101 = vmatpush2.msra.mxu0 0.0
  %5102 = vmatprep.subr.mxu0 0.0
  %5103 = vmatpush2.msra.mxu0 0.0
  %5104 = vmatprep.subr.mxu0 0.0
  %5105 = vmatpush2.msra.mxu0 0.0
  %5106 = vmatprep.subr.mxu0 0.0
  %5107 = vmatpush2.msra.mxu0 0.0
  %5108 = vmatprep.subr.mxu0 0.0
  %5109 = vmatpush2.msra.mxu0 0.0
  %5110 = vmatprep.subr.mxu0 0.0
  %5111 = vmatpush2.msra.mxu0 0.0
  %5112 = vmatprep.subr.mxu0 0.0
  %5113 = vmatpush2.msra.mxu0 0.0
  %5114 = vmatprep.mubr.f32.mxu0 0.0
  %5115 = vmatmul.mubr.f32.gmra.mxu0 %v5045
  %v5116 = vpop.f32.mrf.mxu0
  %v5117 = vadd.f32 0.0, %v5116
  %v5118 = vpop.f32.mrf.mxu0
  %5119 = vmatprep.mubr.f32.mxu0 0.0
  %5120 = vmatmul.mubr.f32.gmra.mxu0 %v5048
  %v5121 = vpop.f32.mrf.mxu0
  %v5122 = vadd.f32 0.0, %v5121
  %v5123 = vpop.f32.mrf.mxu0
  %5124 = vdwg.mxu0
  %5141 = vrot.lane.b32.xlu0 %v4508, 16
  %v5142 = vpop.permute.xlu0 %5141
  %5143 = vrot.lane.b32.xlu0 %v4513, 16
  %v5144 = vpop.permute.xlu0 %5143
  %5145 = vrot.lane.b32.xlu0 %v4595, 16
  %v5146 = vpop.permute.xlu0 %5145
  %5147 = vrot.lane.b32.xlu0 %v4600, 16
  %v5148 = vpop.permute.xlu0 %5147
  %5149 = vrot.lane.b32.xlu0 %v4682, 16
  %v5150 = vpop.permute.xlu0 %5149
  %5151 = vrot.lane.b32.xlu0 %v4687, 16
  %v5152 = vpop.permute.xlu0 %5151
  %5153 = vrot.lane.b32.xlu0 %v4769, 16
  %v5154 = vpop.permute.xlu0 %5153
  %5155 = vrot.lane.b32.xlu0 %v4774, 16
  %v5156 = vpop.permute.xlu0 %5155
  %5157 = vrot.lane.b32.xlu0 %v4856, 16
  %v5158 = vpop.permute.xlu0 %5157
  %5159 = vrot.lane.b32.xlu0 %v4861, 16
  %v5160 = vpop.permute.xlu0 %5159
  %5161 = vrot.lane.b32.xlu0 %v4943, 16
  %v5162 = vpop.permute.xlu0 %5161
  %5163 = vrot.lane.b32.xlu0 %v4948, 16
  %v5164 = vpop.permute.xlu0 %5163
  %5165 = vrot.lane.b32.xlu0 %v5030, 16
  %v5166 = vpop.permute.xlu0 %5165
  %5167 = vrot.lane.b32.xlu0 %v5035, 16
  %v5168 = vpop.permute.xlu0 %5167
  %5169 = vrot.lane.b32.xlu0 %v5117, 16
  %v5170 = vpop.permute.xlu0 %5169
  %5171 = vrot.lane.b32.xlu0 %v5122, 16
  %v5172 = vpop.permute.xlu0 %5171
  %vm5189 = vcmask 195712
  %5190 = vst.msk [vmem:[#allocation2] sm:$0xff] %vm5189, %v5142
  %5191 = vst.msk [vmem:[#allocation2 + $0x8] sm:$0xff] %vm5189, %v5144
  %5192 = vst.msk [vmem:[#allocation2 + $0x10] sm:$0xff] %vm5189, %v5146
  %5193 = vst.msk [vmem:[#allocation2 + $0x18] sm:$0xff] %vm5189, %v5148
  %5194 = vst.msk [vmem:[#allocation2 + $0x20] sm:$0xff] %vm5189, %v5150
  %5195 = vst.msk [vmem:[#allocation2 + $0x28] sm:$0xff] %vm5189, %v5152
  %5196 = vst.msk [vmem:[#allocation2 + $0x30] sm:$0xff] %vm5189, %v5154
  %5197 = vst.msk [vmem:[#allocation2 + $0x38] sm:$0xff] %vm5189, %v5156
  %5198 = vst.msk [vmem:[#allocation2 + $0x40] sm:$0xff] %vm5189, %v5158
  %5199 = vst.msk [vmem:[#allocation2 + $0x48] sm:$0xff] %vm5189, %v5160
  %5200 = vst.msk [vmem:[#allocation2 + $0x50] sm:$0xff] %vm5189, %v5162
  %5201 = vst.msk [vmem:[#allocation2 + $0x58] sm:$0xff] %vm5189, %v5164
  %5202 = vst.msk [vmem:[#allocation2 + $0x60] sm:$0xff] %vm5189, %v5166
  %5203 = vst.msk [vmem:[#allocation2 + $0x68] sm:$0xff] %vm5189, %v5168
  %5204 = vst.msk [vmem:[#allocation2 + $0x70] sm:$0xff] %vm5189, %v5170
  %5205 = vst.msk [vmem:[#allocation2 + $0x78] sm:$0xff] %vm5189, %v5172
  %s5206 = scalar_lea.vmem %s4, 48
  %v5207 = vld [vmem:[%s5206] sm:$0xff]
  %v5208 = vld [vmem:[%s5206 + $0x8] sm:$0xff]
  %5209 = vrot.lane.b32.xlu0 %v156, 104
  %v5210 = vpop.permute.xlu0 %5209
  %5211 = vrot.lane.b32.xlu0 %v161, 104
  %v5212 = vpop.permute.xlu0 %5211
  %5213 = vrot.lane.b32.xlu0 %v156, 72
  %v5214 = vpop.permute.xlu0 %5213
  %5215 = vrot.lane.b32.xlu0 %v161, 72
  %v5216 = vpop.permute.xlu0 %5215
  %v5217 = vsel %vm242, %v5210, 0
  %v5219 = vsel %vm242, %v5212, 0
  %v5221 = vsel %vm242, %v5214, 0
  %v5223 = vsel %vm242, %v5216, 0
  %5225 = vmatprep.subr.mxu0 0.0
  %5226 = vmatpush1.xpose.msra.mxu0 0.0
  %5227 = vmatprep.subr.mxu0 0.0
  %5228 = vmatpush1.xpose.msra.mxu0 0.0
  %5229 = vmatprep.subr.mxu0 0.0
  %5230 = vmatpush1.xpose.msra.mxu0 0.0
  %5231 = vmatprep.subr.mxu0 0.0
  %5232 = vmatpush1.xpose.msra.mxu0 0.0
  %5233 = vmatprep.subr.mxu0 0.0
  %5234 = vmatpush1.xpose.msra.mxu0 0.0
  %5235 = vmatprep.subr.mxu0 0.0
  %5236 = vmatpush1.xpose.msra.mxu0 0.0
  %5237 = vmatprep.subr.mxu0 0.0
  %5238 = vmatpush1.xpose.msra.mxu0 0.0
  %5239 = vmatprep.subr.mxu0 0.0
  %5240 = vmatpush1.xpose.msra.mxu0 0.0
  %5241 = vmatprep.subr.mxu0 0.0
  %5242 = vmatpush1.xpose.msra.mxu0 0.0
  %5243 = vmatprep.subr.mxu0 0.0
  %5244 = vmatpush1.xpose.msra.mxu0 0.0
  %5245 = vmatprep.subr.mxu0 0.0
  %5246 = vmatpush1.xpose.msra.mxu0 0.0
  %5247 = vmatprep.subr.mxu0 0.0
  %5248 = vmatpush1.xpose.msra.mxu0 0.0
  %5249 = vmatprep.subr.mxu0 0.0
  %5250 = vmatpush1.xpose.msra.mxu0 0.0
  %5251 = vmatprep.subr.mxu0 0.0
  %5252 = vmatpush1.xpose.msra.mxu0 0.0
  %5253 = vmatprep.subr.mxu0 0.0
  %5254 = vmatpush1.xpose.msra.mxu0 %v5223
  %5255 = vmatprep.subr.mxu0 0.0
  %5256 = vmatpush1.xpose.msra.mxu0 %v5221
  %5257 = vmatprep.subr.mxu0 0.0
  %5258 = vmatpush2.xpose.msra.mxu0 0.0
  %5259 = vmatprep.subr.mxu0 0.0
  %5260 = vmatpush2.xpose.msra.mxu0 0.0
  %5261 = vmatprep.subr.mxu0 0.0
  %5262 = vmatpush2.xpose.msra.mxu0 0.0
  %5263 = vmatprep.subr.mxu0 0.0
  %5264 = vmatpush2.xpose.msra.mxu0 0.0
  %5265 = vmatprep.subr.mxu0 0.0
  %5266 = vmatpush2.xpose.msra.mxu0 0.0
  %5267 = vmatprep.subr.mxu0 0.0
  %5268 = vmatpush2.xpose.msra.mxu0 0.0
  %5269 = vmatprep.subr.mxu0 0.0
  %5270 = vmatpush2.xpose.msra.mxu0 0.0
  %5271 = vmatprep.subr.mxu0 0.0
  %5272 = vmatpush2.xpose.msra.mxu0 0.0
  %5273 = vmatprep.subr.mxu0 0.0
  %5274 = vmatpush2.xpose.msra.mxu0 0.0
  %5275 = vmatprep.subr.mxu0 0.0
  %5276 = vmatpush2.xpose.msra.mxu0 0.0
  %5277 = vmatprep.subr.mxu0 0.0
  %5278 = vmatpush2.xpose.msra.mxu0 0.0
  %5279 = vmatprep.subr.mxu0 0.0
  %5280 = vmatpush2.xpose.msra.mxu0 0.0
  %5281 = vmatprep.subr.mxu0 0.0
  %5282 = vmatpush2.xpose.msra.mxu0 0.0
  %5283 = vmatprep.subr.mxu0 0.0
  %5284 = vmatpush2.xpose.msra.mxu0 0.0
  %5285 = vmatprep.subr.mxu0 0.0
  %5286 = vmatpush2.xpose.msra.mxu0 0.0
  %5287 = vmatprep.subr.mxu0 0.0
  %5288 = vmatpush2.xpose.msra.mxu0 0.0
  %5289 = vmatprep.mubr.f32.mxu0 0.0
  %5290 = vmatmul.mubr.f32.gmra.mxu0 %v5217
  %v5291 = vpop.f32.mrf.mxu0
  %v5292 = vadd.f32 %v5207, %v5291
  %v5293 = vpop.f32.mrf.mxu0
  %5294 = vmatprep.mubr.f32.mxu0 0.0
  %5295 = vmatmul.mubr.f32.gmra.mxu0 %v5219
  %v5296 = vpop.f32.mrf.mxu0
  %v5297 = vadd.f32 %v5208, %v5296
  %v5298 = vpop.f32.mrf.mxu0
  %5299 = vdwg.mxu0
  %5300 = vrot.lane.b32.xlu0 %v166, 104
  %v5301 = vpop.permute.xlu0 %5300
  %5302 = vrot.lane.b32.xlu0 %v171, 104
  %v5303 = vpop.permute.xlu0 %5302
  %5304 = vrot.lane.b32.xlu0 %v166, 72
  %v5305 = vpop.permute.xlu0 %5304
  %5306 = vrot.lane.b32.xlu0 %v171, 72
  %v5307 = vpop.permute.xlu0 %5306
  %v5308 = vsel %vm242, %v5301, 0
  %v5310 = vsel %vm242, %v5303, 0
  %v5312 = vsel %vm242, %v5305, 0
  %v5314 = vsel %vm242, %v5307, 0
  %5316 = vmatprep.subr.mxu0 0.0
  %5317 = vmatpush1.xpose.msra.mxu0 0.0
  %5318 = vmatprep.subr.mxu0 0.0
  %5319 = vmatpush1.xpose.msra.mxu0 0.0
  %5320 = vmatprep.subr.mxu0 0.0
  %5321 = vmatpush1.xpose.msra.mxu0 0.0
  %5322 = vmatprep.subr.mxu0 0.0
  %5323 = vmatpush1.xpose.msra.mxu0 0.0
  %5324 = vmatprep.subr.mxu0 0.0
  %5325 = vmatpush1.xpose.msra.mxu0 0.0
  %5326 = vmatprep.subr.mxu0 0.0
  %5327 = vmatpush1.xpose.msra.mxu0 0.0
  %5328 = vmatprep.subr.mxu0 0.0
  %5329 = vmatpush1.xpose.msra.mxu0 0.0
  %5330 = vmatprep.subr.mxu0 0.0
  %5331 = vmatpush1.xpose.msra.mxu0 0.0
  %5332 = vmatprep.subr.mxu0 0.0
  %5333 = vmatpush1.xpose.msra.mxu0 0.0
  %5334 = vmatprep.subr.mxu0 0.0
  %5335 = vmatpush1.xpose.msra.mxu0 0.0
  %5336 = vmatprep.subr.mxu0 0.0
  %5337 = vmatpush1.xpose.msra.mxu0 0.0
  %5338 = vmatprep.subr.mxu0 0.0
  %5339 = vmatpush1.xpose.msra.mxu0 0.0
  %5340 = vmatprep.subr.mxu0 0.0
  %5341 = vmatpush1.xpose.msra.mxu0 0.0
  %5342 = vmatprep.subr.mxu0 0.0
  %5343 = vmatpush1.xpose.msra.mxu0 0.0
  %5344 = vmatprep.subr.mxu0 0.0
  %5345 = vmatpush1.xpose.msra.mxu0 %v5314
  %5346 = vmatprep.subr.mxu0 0.0
  %5347 = vmatpush1.xpose.msra.mxu0 %v5312
  %5348 = vmatprep.subr.mxu0 0.0
  %5349 = vmatpush2.xpose.msra.mxu0 0.0
  %5350 = vmatprep.subr.mxu0 0.0
  %5351 = vmatpush2.xpose.msra.mxu0 0.0
  %5352 = vmatprep.subr.mxu0 0.0
  %5353 = vmatpush2.xpose.msra.mxu0 0.0
  %5354 = vmatprep.subr.mxu0 0.0
  %5355 = vmatpush2.xpose.msra.mxu0 0.0
  %5356 = vmatprep.subr.mxu0 0.0
  %5357 = vmatpush2.xpose.msra.mxu0 0.0
  %5358 = vmatprep.subr.mxu0 0.0
  %5359 = vmatpush2.xpose.msra.mxu0 0.0
  %5360 = vmatprep.subr.mxu0 0.0
  %5361 = vmatpush2.xpose.msra.mxu0 0.0
  %5362 = vmatprep.subr.mxu0 0.0
  %5363 = vmatpush2.xpose.msra.mxu0 0.0
  %5364 = vmatprep.subr.mxu0 0.0
  %5365 = vmatpush2.xpose.msra.mxu0 0.0
  %5366 = vmatprep.subr.mxu0 0.0
  %5367 = vmatpush2.xpose.msra.mxu0 0.0
  %5368 = vmatprep.subr.mxu0 0.0
  %5369 = vmatpush2.xpose.msra.mxu0 0.0
  %5370 = vmatprep.subr.mxu0 0.0
  %5371 = vmatpush2.xpose.msra.mxu0 0.0
  %5372 = vmatprep.subr.mxu0 0.0
  %5373 = vmatpush2.xpose.msra.mxu0 0.0
  %5374 = vmatprep.subr.mxu0 0.0
  %5375 = vmatpush2.xpose.msra.mxu0 0.0
  %5376 = vmatprep.subr.mxu0 0.0
  %5377 = vmatpush2.xpose.msra.mxu0 0.0
  %5378 = vmatprep.subr.mxu0 0.0
  %5379 = vmatpush2.xpose.msra.mxu0 0.0
  %5380 = vmatprep.mubr.f32.mxu0 0.0
  %5381 = vmatmul.mubr.f32.gmra.mxu0 %v5308
  %v5382 = vpop.f32.mrf.mxu0
  %v5383 = vadd.f32 %v5207, %v5382
  %v5384 = vpop.f32.mrf.mxu0
  %5385 = vmatprep.mubr.f32.mxu0 0.0
  %5386 = vmatmul.mubr.f32.gmra.mxu0 %v5310
  %v5387 = vpop.f32.mrf.mxu0
  %v5388 = vadd.f32 %v5208, %v5387
  %v5389 = vpop.f32.mrf.mxu0
  %5390 = vdwg.mxu0
  %5391 = vrot.lane.b32.xlu0 %v176, 104
  %v5392 = vpop.permute.xlu0 %5391
  %5393 = vrot.lane.b32.xlu0 %v181, 104
  %v5394 = vpop.permute.xlu0 %5393
  %5395 = vrot.lane.b32.xlu0 %v176, 72
  %v5396 = vpop.permute.xlu0 %5395
  %5397 = vrot.lane.b32.xlu0 %v181, 72
  %v5398 = vpop.permute.xlu0 %5397
  %v5399 = vsel %vm242, %v5392, 0
  %v5401 = vsel %vm242, %v5394, 0
  %v5403 = vsel %vm242, %v5396, 0
  %v5405 = vsel %vm242, %v5398, 0
  %5407 = vmatprep.subr.mxu0 0.0
  %5408 = vmatpush1.xpose.msra.mxu0 0.0
  %5409 = vmatprep.subr.mxu0 0.0
  %5410 = vmatpush1.xpose.msra.mxu0 0.0
  %5411 = vmatprep.subr.mxu0 0.0
  %5412 = vmatpush1.xpose.msra.mxu0 0.0
  %5413 = vmatprep.subr.mxu0 0.0
  %5414 = vmatpush1.xpose.msra.mxu0 0.0
  %5415 = vmatprep.subr.mxu0 0.0
  %5416 = vmatpush1.xpose.msra.mxu0 0.0
  %5417 = vmatprep.subr.mxu0 0.0
  %5418 = vmatpush1.xpose.msra.mxu0 0.0
  %5419 = vmatprep.subr.mxu0 0.0
  %5420 = vmatpush1.xpose.msra.mxu0 0.0
  %5421 = vmatprep.subr.mxu0 0.0
  %5422 = vmatpush1.xpose.msra.mxu0 0.0
  %5423 = vmatprep.subr.mxu0 0.0
  %5424 = vmatpush1.xpose.msra.mxu0 0.0
  %5425 = vmatprep.subr.mxu0 0.0
  %5426 = vmatpush1.xpose.msra.mxu0 0.0
  %5427 = vmatprep.subr.mxu0 0.0
  %5428 = vmatpush1.xpose.msra.mxu0 0.0
  %5429 = vmatprep.subr.mxu0 0.0
  %5430 = vmatpush1.xpose.msra.mxu0 0.0
  %5431 = vmatprep.subr.mxu0 0.0
  %5432 = vmatpush1.xpose.msra.mxu0 0.0
  %5433 = vmatprep.subr.mxu0 0.0
  %5434 = vmatpush1.xpose.msra.mxu0 0.0
  %5435 = vmatprep.subr.mxu0 0.0
  %5436 = vmatpush1.xpose.msra.mxu0 %v5405
  %5437 = vmatprep.subr.mxu0 0.0
  %5438 = vmatpush1.xpose.msra.mxu0 %v5403
  %5439 = vmatprep.subr.mxu0 0.0
  %5440 = vmatpush2.xpose.msra.mxu0 0.0
  %5441 = vmatprep.subr.mxu0 0.0
  %5442 = vmatpush2.xpose.msra.mxu0 0.0
  %5443 = vmatprep.subr.mxu0 0.0
  %5444 = vmatpush2.xpose.msra.mxu0 0.0
  %5445 = vmatprep.subr.mxu0 0.0
  %5446 = vmatpush2.xpose.msra.mxu0 0.0
  %5447 = vmatprep.subr.mxu0 0.0
  %5448 = vmatpush2.xpose.msra.mxu0 0.0
  %5449 = vmatprep.subr.mxu0 0.0
  %5450 = vmatpush2.xpose.msra.mxu0 0.0
  %5451 = vmatprep.subr.mxu0 0.0
  %5452 = vmatpush2.xpose.msra.mxu0 0.0
  %5453 = vmatprep.subr.mxu0 0.0
  %5454 = vmatpush2.xpose.msra.mxu0 0.0
  %5455 = vmatprep.subr.mxu0 0.0
  %5456 = vmatpush2.xpose.msra.mxu0 0.0
  %5457 = vmatprep.subr.mxu0 0.0
  %5458 = vmatpush2.xpose.msra.mxu0 0.0
  %5459 = vmatprep.subr.mxu0 0.0
  %5460 = vmatpush2.xpose.msra.mxu0 0.0
  %5461 = vmatprep.subr.mxu0 0.0
  %5462 = vmatpush2.xpose.msra.mxu0 0.0
  %5463 = vmatprep.subr.mxu0 0.0
  %5464 = vmatpush2.xpose.msra.mxu0 0.0
  %5465 = vmatprep.subr.mxu0 0.0
  %5466 = vmatpush2.xpose.msra.mxu0 0.0
  %5467 = vmatprep.subr.mxu0 0.0
  %5468 = vmatpush2.xpose.msra.mxu0 0.0
  %5469 = vmatprep.subr.mxu0 0.0
  %5470 = vmatpush2.xpose.msra.mxu0 0.0
  %5471 = vmatprep.mubr.f32.mxu0 0.0
  %5472 = vmatmul.mubr.f32.gmra.mxu0 %v5399
  %v5473 = vpop.f32.mrf.mxu0
  %v5474 = vadd.f32 %v5207, %v5473
  %v5475 = vpop.f32.mrf.mxu0
  %5476 = vmatprep.mubr.f32.mxu0 0.0
  %5477 = vmatmul.mubr.f32.gmra.mxu0 %v5401
  %v5478 = vpop.f32.mrf.mxu0
  %v5479 = vadd.f32 %v5208, %v5478
  %v5480 = vpop.f32.mrf.mxu0
  %5481 = vdwg.mxu0
  %5482 = vrot.lane.b32.xlu0 %v186, 104
  %v5483 = vpop.permute.xlu0 %5482
  %5484 = vrot.lane.b32.xlu0 %v191, 104
  %v5485 = vpop.permute.xlu0 %5484
  %5486 = vrot.lane.b32.xlu0 %v186, 72
  %v5487 = vpop.permute.xlu0 %5486
  %5488 = vrot.lane.b32.xlu0 %v191, 72
  %v5489 = vpop.permute.xlu0 %5488
  %v5490 = vsel %vm242, %v5483, 0
  %v5492 = vsel %vm242, %v5485, 0
  %v5494 = vsel %vm242, %v5487, 0
  %v5496 = vsel %vm242, %v5489, 0
  %5498 = vmatprep.subr.mxu0 0.0
  %5499 = vmatpush1.xpose.msra.mxu0 0.0
  %5500 = vmatprep.subr.mxu0 0.0
  %5501 = vmatpush1.xpose.msra.mxu0 0.0
  %5502 = vmatprep.subr.mxu0 0.0
  %5503 = vmatpush1.xpose.msra.mxu0 0.0
  %5504 = vmatprep.subr.mxu0 0.0
  %5505 = vmatpush1.xpose.msra.mxu0 0.0
  %5506 = vmatprep.subr.mxu0 0.0
  %5507 = vmatpush1.xpose.msra.mxu0 0.0
  %5508 = vmatprep.subr.mxu0 0.0
  %5509 = vmatpush1.xpose.msra.mxu0 0.0
  %5510 = vmatprep.subr.mxu0 0.0
  %5511 = vmatpush1.xpose.msra.mxu0 0.0
  %5512 = vmatprep.subr.mxu0 0.0
  %5513 = vmatpush1.xpose.msra.mxu0 0.0
  %5514 = vmatprep.subr.mxu0 0.0
  %5515 = vmatpush1.xpose.msra.mxu0 0.0
  %5516 = vmatprep.subr.mxu0 0.0
  %5517 = vmatpush1.xpose.msra.mxu0 0.0
  %5518 = vmatprep.subr.mxu0 0.0
  %5519 = vmatpush1.xpose.msra.mxu0 0.0
  %5520 = vmatprep.subr.mxu0 0.0
  %5521 = vmatpush1.xpose.msra.mxu0 0.0
  %5522 = vmatprep.subr.mxu0 0.0
  %5523 = vmatpush1.xpose.msra.mxu0 0.0
  %5524 = vmatprep.subr.mxu0 0.0
  %5525 = vmatpush1.xpose.msra.mxu0 0.0
  %5526 = vmatprep.subr.mxu0 0.0
  %5527 = vmatpush1.xpose.msra.mxu0 %v5496
  %5528 = vmatprep.subr.mxu0 0.0
  %5529 = vmatpush1.xpose.msra.mxu0 %v5494
  %5530 = vmatprep.subr.mxu0 0.0
  %5531 = vmatpush2.xpose.msra.mxu0 0.0
  %5532 = vmatprep.subr.mxu0 0.0
  %5533 = vmatpush2.xpose.msra.mxu0 0.0
  %5534 = vmatprep.subr.mxu0 0.0
  %5535 = vmatpush2.xpose.msra.mxu0 0.0
  %5536 = vmatprep.subr.mxu0 0.0
  %5537 = vmatpush2.xpose.msra.mxu0 0.0
  %5538 = vmatprep.subr.mxu0 0.0
  %5539 = vmatpush2.xpose.msra.mxu0 0.0
  %5540 = vmatprep.subr.mxu0 0.0
  %5541 = vmatpush2.xpose.msra.mxu0 0.0
  %5542 = vmatprep.subr.mxu0 0.0
  %5543 = vmatpush2.xpose.msra.mxu0 0.0
  %5544 = vmatprep.subr.mxu0 0.0
  %5545 = vmatpush2.xpose.msra.mxu0 0.0
  %5546 = vmatprep.subr.mxu0 0.0
  %5547 = vmatpush2.xpose.msra.mxu0 0.0
  %5548 = vmatprep.subr.mxu0 0.0
  %5549 = vmatpush2.xpose.msra.mxu0 0.0
  %5550 = vmatprep.subr.mxu0 0.0
  %5551 = vmatpush2.xpose.msra.mxu0 0.0
  %5552 = vmatprep.subr.mxu0 0.0
  %5553 = vmatpush2.xpose.msra.mxu0 0.0
  %5554 = vmatprep.subr.mxu0 0.0
  %5555 = vmatpush2.xpose.msra.mxu0 0.0
  %5556 = vmatprep.subr.mxu0 0.0
  %5557 = vmatpush2.xpose.msra.mxu0 0.0
  %5558 = vmatprep.subr.mxu0 0.0
  %5559 = vmatpush2.xpose.msra.mxu0 0.0
  %5560 = vmatprep.subr.mxu0 0.0
  %5561 = vmatpush2.xpose.msra.mxu0 0.0
  %5562 = vmatprep.mubr.f32.mxu0 0.0
  %5563 = vmatmul.mubr.f32.gmra.mxu0 %v5490
  %v5564 = vpop.f32.mrf.mxu0
  %v5565 = vadd.f32 %v5207, %v5564
  %v5566 = vpop.f32.mrf.mxu0
  %5567 = vmatprep.mubr.f32.mxu0 0.0
  %5568 = vmatmul.mubr.f32.gmra.mxu0 %v5492
  %v5569 = vpop.f32.mrf.mxu0
  %v5570 = vadd.f32 %v5208, %v5569
  %v5571 = vpop.f32.mrf.mxu0
  %5572 = vdwg.mxu0
  %5573 = vrot.lane.b32.xlu0 %v196, 104
  %v5574 = vpop.permute.xlu0 %5573
  %5575 = vrot.lane.b32.xlu0 %v201, 104
  %v5576 = vpop.permute.xlu0 %5575
  %5577 = vrot.lane.b32.xlu0 %v196, 72
  %v5578 = vpop.permute.xlu0 %5577
  %5579 = vrot.lane.b32.xlu0 %v201, 72
  %v5580 = vpop.permute.xlu0 %5579
  %v5581 = vsel %vm242, %v5574, 0
  %v5583 = vsel %vm242, %v5576, 0
  %v5585 = vsel %vm242, %v5578, 0
  %v5587 = vsel %vm242, %v5580, 0
  %5589 = vmatprep.subr.mxu0 0.0
  %5590 = vmatpush1.xpose.msra.mxu0 0.0
  %5591 = vmatprep.subr.mxu0 0.0
  %5592 = vmatpush1.xpose.msra.mxu0 0.0
  %5593 = vmatprep.subr.mxu0 0.0
  %5594 = vmatpush1.xpose.msra.mxu0 0.0
  %5595 = vmatprep.subr.mxu0 0.0
  %5596 = vmatpush1.xpose.msra.mxu0 0.0
  %5597 = vmatprep.subr.mxu0 0.0
  %5598 = vmatpush1.xpose.msra.mxu0 0.0
  %5599 = vmatprep.subr.mxu0 0.0
  %5600 = vmatpush1.xpose.msra.mxu0 0.0
  %5601 = vmatprep.subr.mxu0 0.0
  %5602 = vmatpush1.xpose.msra.mxu0 0.0
  %5603 = vmatprep.subr.mxu0 0.0
  %5604 = vmatpush1.xpose.msra.mxu0 0.0
  %5605 = vmatprep.subr.mxu0 0.0
  %5606 = vmatpush1.xpose.msra.mxu0 0.0
  %5607 = vmatprep.subr.mxu0 0.0
  %5608 = vmatpush1.xpose.msra.mxu0 0.0
  %5609 = vmatprep.subr.mxu0 0.0
  %5610 = vmatpush1.xpose.msra.mxu0 0.0
  %5611 = vmatprep.subr.mxu0 0.0
  %5612 = vmatpush1.xpose.msra.mxu0 0.0
  %5613 = vmatprep.subr.mxu0 0.0
  %5614 = vmatpush1.xpose.msra.mxu0 0.0
  %5615 = vmatprep.subr.mxu0 0.0
  %5616 = vmatpush1.xpose.msra.mxu0 0.0
  %5617 = vmatprep.subr.mxu0 0.0
  %5618 = vmatpush1.xpose.msra.mxu0 %v5587
  %5619 = vmatprep.subr.mxu0 0.0
  %5620 = vmatpush1.xpose.msra.mxu0 %v5585
  %5621 = vmatprep.subr.mxu0 0.0
  %5622 = vmatpush2.xpose.msra.mxu0 0.0
  %5623 = vmatprep.subr.mxu0 0.0
  %5624 = vmatpush2.xpose.msra.mxu0 0.0
  %5625 = vmatprep.subr.mxu0 0.0
  %5626 = vmatpush2.xpose.msra.mxu0 0.0
  %5627 = vmatprep.subr.mxu0 0.0
  %5628 = vmatpush2.xpose.msra.mxu0 0.0
  %5629 = vmatprep.subr.mxu0 0.0
  %5630 = vmatpush2.xpose.msra.mxu0 0.0
  %5631 = vmatprep.subr.mxu0 0.0
  %5632 = vmatpush2.xpose.msra.mxu0 0.0
  %5633 = vmatprep.subr.mxu0 0.0
  %5634 = vmatpush2.xpose.msra.mxu0 0.0
  %5635 = vmatprep.subr.mxu0 0.0
  %5636 = vmatpush2.xpose.msra.mxu0 0.0
  %5637 = vmatprep.subr.mxu0 0.0
  %5638 = vmatpush2.xpose.msra.mxu0 0.0
  %5639 = vmatprep.subr.mxu0 0.0
  %5640 = vmatpush2.xpose.msra.mxu0 0.0
  %5641 = vmatprep.subr.mxu0 0.0
  %5642 = vmatpush2.xpose.msra.mxu0 0.0
  %5643 = vmatprep.subr.mxu0 0.0
  %5644 = vmatpush2.xpose.msra.mxu0 0.0
  %5645 = vmatprep.subr.mxu0 0.0
  %5646 = vmatpush2.xpose.msra.mxu0 0.0
  %5647 = vmatprep.subr.mxu0 0.0
  %5648 = vmatpush2.xpose.msra.mxu0 0.0
  %5649 = vmatprep.subr.mxu0 0.0
  %5650 = vmatpush2.xpose.msra.mxu0 0.0
  %5651 = vmatprep.subr.mxu0 0.0
  %5652 = vmatpush2.xpose.msra.mxu0 0.0
  %5653 = vmatprep.mubr.f32.mxu0 0.0
  %5654 = vmatmul.mubr.f32.gmra.mxu0 %v5581
  %v5655 = vpop.f32.mrf.mxu0
  %v5656 = vadd.f32 %v5207, %v5655
  %v5657 = vpop.f32.mrf.mxu0
  %5658 = vmatprep.mubr.f32.mxu0 0.0
  %5659 = vmatmul.mubr.f32.gmra.mxu0 %v5583
  %v5660 = vpop.f32.mrf.mxu0
  %v5661 = vadd.f32 %v5208, %v5660
  %v5662 = vpop.f32.mrf.mxu0
  %5663 = vdwg.mxu0
  %5664 = vrot.lane.b32.xlu0 %v206, 104
  %v5665 = vpop.permute.xlu0 %5664
  %5666 = vrot.lane.b32.xlu0 %v211, 104
  %v5667 = vpop.permute.xlu0 %5666
  %5668 = vrot.lane.b32.xlu0 %v206, 72
  %v5669 = vpop.permute.xlu0 %5668
  %5670 = vrot.lane.b32.xlu0 %v211, 72
  %v5671 = vpop.permute.xlu0 %5670
  %v5672 = vsel %vm242, %v5665, 0
  %v5674 = vsel %vm242, %v5667, 0
  %v5676 = vsel %vm242, %v5669, 0
  %v5678 = vsel %vm242, %v5671, 0
  %5680 = vmatprep.subr.mxu0 0.0
  %5681 = vmatpush1.xpose.msra.mxu0 0.0
  %5682 = vmatprep.subr.mxu0 0.0
  %5683 = vmatpush1.xpose.msra.mxu0 0.0
  %5684 = vmatprep.subr.mxu0 0.0
  %5685 = vmatpush1.xpose.msra.mxu0 0.0
  %5686 = vmatprep.subr.mxu0 0.0
  %5687 = vmatpush1.xpose.msra.mxu0 0.0
  %5688 = vmatprep.subr.mxu0 0.0
  %5689 = vmatpush1.xpose.msra.mxu0 0.0
  %5690 = vmatprep.subr.mxu0 0.0
  %5691 = vmatpush1.xpose.msra.mxu0 0.0
  %5692 = vmatprep.subr.mxu0 0.0
  %5693 = vmatpush1.xpose.msra.mxu0 0.0
  %5694 = vmatprep.subr.mxu0 0.0
  %5695 = vmatpush1.xpose.msra.mxu0 0.0
  %5696 = vmatprep.subr.mxu0 0.0
  %5697 = vmatpush1.xpose.msra.mxu0 0.0
  %5698 = vmatprep.subr.mxu0 0.0
  %5699 = vmatpush1.xpose.msra.mxu0 0.0
  %5700 = vmatprep.subr.mxu0 0.0
  %5701 = vmatpush1.xpose.msra.mxu0 0.0
  %5702 = vmatprep.subr.mxu0 0.0
  %5703 = vmatpush1.xpose.msra.mxu0 0.0
  %5704 = vmatprep.subr.mxu0 0.0
  %5705 = vmatpush1.xpose.msra.mxu0 0.0
  %5706 = vmatprep.subr.mxu0 0.0
  %5707 = vmatpush1.xpose.msra.mxu0 0.0
  %5708 = vmatprep.subr.mxu0 0.0
  %5709 = vmatpush1.xpose.msra.mxu0 %v5678
  %5710 = vmatprep.subr.mxu0 0.0
  %5711 = vmatpush1.xpose.msra.mxu0 %v5676
  %5712 = vmatprep.subr.mxu0 0.0
  %5713 = vmatpush2.xpose.msra.mxu0 0.0
  %5714 = vmatprep.subr.mxu0 0.0
  %5715 = vmatpush2.xpose.msra.mxu0 0.0
  %5716 = vmatprep.subr.mxu0 0.0
  %5717 = vmatpush2.xpose.msra.mxu0 0.0
  %5718 = vmatprep.subr.mxu0 0.0
  %5719 = vmatpush2.xpose.msra.mxu0 0.0
  %5720 = vmatprep.subr.mxu0 0.0
  %5721 = vmatpush2.xpose.msra.mxu0 0.0
  %5722 = vmatprep.subr.mxu0 0.0
  %5723 = vmatpush2.xpose.msra.mxu0 0.0
  %5724 = vmatprep.subr.mxu0 0.0
  %5725 = vmatpush2.xpose.msra.mxu0 0.0
  %5726 = vmatprep.subr.mxu0 0.0
  %5727 = vmatpush2.xpose.msra.mxu0 0.0
  %5728 = vmatprep.subr.mxu0 0.0
  %5729 = vmatpush2.xpose.msra.mxu0 0.0
  %5730 = vmatprep.subr.mxu0 0.0
  %5731 = vmatpush2.xpose.msra.mxu0 0.0
  %5732 = vmatprep.subr.mxu0 0.0
  %5733 = vmatpush2.xpose.msra.mxu0 0.0
  %5734 = vmatprep.subr.mxu0 0.0
  %5735 = vmatpush2.xpose.msra.mxu0 0.0
  %5736 = vmatprep.subr.mxu0 0.0
  %5737 = vmatpush2.xpose.msra.mxu0 0.0
  %5738 = vmatprep.subr.mxu0 0.0
  %5739 = vmatpush2.xpose.msra.mxu0 0.0
  %5740 = vmatprep.subr.mxu0 0.0
  %5741 = vmatpush2.xpose.msra.mxu0 0.0
  %5742 = vmatprep.subr.mxu0 0.0
  %5743 = vmatpush2.xpose.msra.mxu0 0.0
  %5744 = vmatprep.mubr.f32.mxu0 0.0
  %5745 = vmatmul.mubr.f32.gmra.mxu0 %v5672
  %v5746 = vpop.f32.mrf.mxu0
  %v5747 = vadd.f32 %v5207, %v5746
  %v5748 = vpop.f32.mrf.mxu0
  %5749 = vmatprep.mubr.f32.mxu0 0.0
  %5750 = vmatmul.mubr.f32.gmra.mxu0 %v5674
  %v5751 = vpop.f32.mrf.mxu0
  %v5752 = vadd.f32 %v5208, %v5751
  %v5753 = vpop.f32.mrf.mxu0
  %5754 = vdwg.mxu0
  %5755 = vrot.lane.b32.xlu0 %v216, 104
  %v5756 = vpop.permute.xlu0 %5755
  %5757 = vrot.lane.b32.xlu0 %v221, 104
  %v5758 = vpop.permute.xlu0 %5757
  %5759 = vrot.lane.b32.xlu0 %v216, 72
  %v5760 = vpop.permute.xlu0 %5759
  %5761 = vrot.lane.b32.xlu0 %v221, 72
  %v5762 = vpop.permute.xlu0 %5761
  %v5763 = vsel %vm242, %v5756, 0
  %v5765 = vsel %vm242, %v5758, 0
  %v5767 = vsel %vm242, %v5760, 0
  %v5769 = vsel %vm242, %v5762, 0
  %5771 = vmatprep.subr.mxu0 0.0
  %5772 = vmatpush1.xpose.msra.mxu0 0.0
  %5773 = vmatprep.subr.mxu0 0.0
  %5774 = vmatpush1.xpose.msra.mxu0 0.0
  %5775 = vmatprep.subr.mxu0 0.0
  %5776 = vmatpush1.xpose.msra.mxu0 0.0
  %5777 = vmatprep.subr.mxu0 0.0
  %5778 = vmatpush1.xpose.msra.mxu0 0.0
  %5779 = vmatprep.subr.mxu0 0.0
  %5780 = vmatpush1.xpose.msra.mxu0 0.0
  %5781 = vmatprep.subr.mxu0 0.0
  %5782 = vmatpush1.xpose.msra.mxu0 0.0
  %5783 = vmatprep.subr.mxu0 0.0
  %5784 = vmatpush1.xpose.msra.mxu0 0.0
  %5785 = vmatprep.subr.mxu0 0.0
  %5786 = vmatpush1.xpose.msra.mxu0 0.0
  %5787 = vmatprep.subr.mxu0 0.0
  %5788 = vmatpush1.xpose.msra.mxu0 0.0
  %5789 = vmatprep.subr.mxu0 0.0
  %5790 = vmatpush1.xpose.msra.mxu0 0.0
  %5791 = vmatprep.subr.mxu0 0.0
  %5792 = vmatpush1.xpose.msra.mxu0 0.0
  %5793 = vmatprep.subr.mxu0 0.0
  %5794 = vmatpush1.xpose.msra.mxu0 0.0
  %5795 = vmatprep.subr.mxu0 0.0
  %5796 = vmatpush1.xpose.msra.mxu0 0.0
  %5797 = vmatprep.subr.mxu0 0.0
  %5798 = vmatpush1.xpose.msra.mxu0 0.0
  %5799 = vmatprep.subr.mxu0 0.0
  %5800 = vmatpush1.xpose.msra.mxu0 %v5769
  %5801 = vmatprep.subr.mxu0 0.0
  %5802 = vmatpush1.xpose.msra.mxu0 %v5767
  %5803 = vmatprep.subr.mxu0 0.0
  %5804 = vmatpush2.xpose.msra.mxu0 0.0
  %5805 = vmatprep.subr.mxu0 0.0
  %5806 = vmatpush2.xpose.msra.mxu0 0.0
  %5807 = vmatprep.subr.mxu0 0.0
  %5808 = vmatpush2.xpose.msra.mxu0 0.0
  %5809 = vmatprep.subr.mxu0 0.0
  %5810 = vmatpush2.xpose.msra.mxu0 0.0
  %5811 = vmatprep.subr.mxu0 0.0
  %5812 = vmatpush2.xpose.msra.mxu0 0.0
  %5813 = vmatprep.subr.mxu0 0.0
  %5814 = vmatpush2.xpose.msra.mxu0 0.0
  %5815 = vmatprep.subr.mxu0 0.0
  %5816 = vmatpush2.xpose.msra.mxu0 0.0
  %5817 = vmatprep.subr.mxu0 0.0
  %5818 = vmatpush2.xpose.msra.mxu0 0.0
  %5819 = vmatprep.subr.mxu0 0.0
  %5820 = vmatpush2.xpose.msra.mxu0 0.0
  %5821 = vmatprep.subr.mxu0 0.0
  %5822 = vmatpush2.xpose.msra.mxu0 0.0
  %5823 = vmatprep.subr.mxu0 0.0
  %5824 = vmatpush2.xpose.msra.mxu0 0.0
  %5825 = vmatprep.subr.mxu0 0.0
  %5826 = vmatpush2.xpose.msra.mxu0 0.0
  %5827 = vmatprep.subr.mxu0 0.0
  %5828 = vmatpush2.xpose.msra.mxu0 0.0
  %5829 = vmatprep.subr.mxu0 0.0
  %5830 = vmatpush2.xpose.msra.mxu0 0.0
  %5831 = vmatprep.subr.mxu0 0.0
  %5832 = vmatpush2.xpose.msra.mxu0 0.0
  %5833 = vmatprep.subr.mxu0 0.0
  %5834 = vmatpush2.xpose.msra.mxu0 0.0
  %5835 = vmatprep.mubr.f32.mxu0 0.0
  %5836 = vmatmul.mubr.f32.gmra.mxu0 %v5763
  %v5837 = vpop.f32.mrf.mxu0
  %v5838 = vadd.f32 %v5207, %v5837
  %v5839 = vpop.f32.mrf.mxu0
  %5840 = vmatprep.mubr.f32.mxu0 0.0
  %5841 = vmatmul.mubr.f32.gmra.mxu0 %v5765
  %v5842 = vpop.f32.mrf.mxu0
  %v5843 = vadd.f32 %v5208, %v5842
  %v5844 = vpop.f32.mrf.mxu0
  %5845 = vdwg.mxu0
  %5846 = vrot.lane.b32.xlu0 %v226, 104
  %v5847 = vpop.permute.xlu0 %5846
  %5848 = vrot.lane.b32.xlu0 %v231, 104
  %v5849 = vpop.permute.xlu0 %5848
  %5850 = vrot.lane.b32.xlu0 %v226, 72
  %v5851 = vpop.permute.xlu0 %5850
  %5852 = vrot.lane.b32.xlu0 %v231, 72
  %v5853 = vpop.permute.xlu0 %5852
  %v5854 = vsel %vm242, %v5847, 0
  %v5856 = vsel %vm242, %v5849, 0
  %v5858 = vsel %vm242, %v5851, 0
  %v5860 = vsel %vm242, %v5853, 0
  %5862 = vmatprep.subr.mxu0 0.0
  %5863 = vmatpush1.xpose.msra.mxu0 0.0
  %5864 = vmatprep.subr.mxu0 0.0
  %5865 = vmatpush1.xpose.msra.mxu0 0.0
  %5866 = vmatprep.subr.mxu0 0.0
  %5867 = vmatpush1.xpose.msra.mxu0 0.0
  %5868 = vmatprep.subr.mxu0 0.0
  %5869 = vmatpush1.xpose.msra.mxu0 0.0
  %5870 = vmatprep.subr.mxu0 0.0
  %5871 = vmatpush1.xpose.msra.mxu0 0.0
  %5872 = vmatprep.subr.mxu0 0.0
  %5873 = vmatpush1.xpose.msra.mxu0 0.0
  %5874 = vmatprep.subr.mxu0 0.0
  %5875 = vmatpush1.xpose.msra.mxu0 0.0
  %5876 = vmatprep.subr.mxu0 0.0
  %5877 = vmatpush1.xpose.msra.mxu0 0.0
  %5878 = vmatprep.subr.mxu0 0.0
  %5879 = vmatpush1.xpose.msra.mxu0 0.0
  %5880 = vmatprep.subr.mxu0 0.0
  %5881 = vmatpush1.xpose.msra.mxu0 0.0
  %5882 = vmatprep.subr.mxu0 0.0
  %5883 = vmatpush1.xpose.msra.mxu0 0.0
  %5884 = vmatprep.subr.mxu0 0.0
  %5885 = vmatpush1.xpose.msra.mxu0 0.0
  %5886 = vmatprep.subr.mxu0 0.0
  %5887 = vmatpush1.xpose.msra.mxu0 0.0
  %5888 = vmatprep.subr.mxu0 0.0
  %5889 = vmatpush1.xpose.msra.mxu0 0.0
  %5890 = vmatprep.subr.mxu0 0.0
  %5891 = vmatpush1.xpose.msra.mxu0 %v5860
  %5892 = vmatprep.subr.mxu0 0.0
  %5893 = vmatpush1.xpose.msra.mxu0 %v5858
  %5894 = vmatprep.subr.mxu0 0.0
  %5895 = vmatpush2.xpose.msra.mxu0 0.0
  %5896 = vmatprep.subr.mxu0 0.0
  %5897 = vmatpush2.xpose.msra.mxu0 0.0
  %5898 = vmatprep.subr.mxu0 0.0
  %5899 = vmatpush2.xpose.msra.mxu0 0.0
  %5900 = vmatprep.subr.mxu0 0.0
  %5901 = vmatpush2.xpose.msra.mxu0 0.0
  %5902 = vmatprep.subr.mxu0 0.0
  %5903 = vmatpush2.xpose.msra.mxu0 0.0
  %5904 = vmatprep.subr.mxu0 0.0
  %5905 = vmatpush2.xpose.msra.mxu0 0.0
  %5906 = vmatprep.subr.mxu0 0.0
  %5907 = vmatpush2.xpose.msra.mxu0 0.0
  %5908 = vmatprep.subr.mxu0 0.0
  %5909 = vmatpush2.xpose.msra.mxu0 0.0
  %5910 = vmatprep.subr.mxu0 0.0
  %5911 = vmatpush2.xpose.msra.mxu0 0.0
  %5912 = vmatprep.subr.mxu0 0.0
  %5913 = vmatpush2.xpose.msra.mxu0 0.0
  %5914 = vmatprep.subr.mxu0 0.0
  %5915 = vmatpush2.xpose.msra.mxu0 0.0
  %5916 = vmatprep.subr.mxu0 0.0
  %5917 = vmatpush2.xpose.msra.mxu0 0.0
  %5918 = vmatprep.subr.mxu0 0.0
  %5919 = vmatpush2.xpose.msra.mxu0 0.0
  %5920 = vmatprep.subr.mxu0 0.0
  %5921 = vmatpush2.xpose.msra.mxu0 0.0
  %5922 = vmatprep.subr.mxu0 0.0
  %5923 = vmatpush2.xpose.msra.mxu0 0.0
  %5924 = vmatprep.subr.mxu0 0.0
  %5925 = vmatpush2.xpose.msra.mxu0 0.0
  %5926 = vmatprep.mubr.f32.mxu0 0.0
  %5927 = vmatmul.mubr.f32.gmra.mxu0 %v5854
  %v5928 = vpop.f32.mrf.mxu0
  %v5929 = vadd.f32 %v5207, %v5928
  %v5930 = vpop.f32.mrf.mxu0
  %5931 = vmatprep.mubr.f32.mxu0 0.0
  %5932 = vmatmul.mubr.f32.gmra.mxu0 %v5856
  %v5933 = vpop.f32.mrf.mxu0
  %v5934 = vadd.f32 %v5208, %v5933
  %v5935 = vpop.f32.mrf.mxu0
  %5936 = vdwg.mxu0
  %v5937 = vsel %vm949, %v5292, -inf
  %5938 = vmax.xlane.f32.xlu0 %v5937
  %v5939 = vpop.xlane.xlu0 %5938
  %v5940 = vsel %vm949, %v5297, -inf
  %5941 = vmax.xlane.f32.xlu0 %v5940
  %v5942 = vpop.xlane.xlu0 %5941
  %v5943 = vsel %vm949, %v5383, -inf
  %5944 = vmax.xlane.f32.xlu0 %v5943
  %v5945 = vpop.xlane.xlu0 %5944
  %v5946 = vsel %vm949, %v5388, -inf
  %5947 = vmax.xlane.f32.xlu0 %v5946
  %v5948 = vpop.xlane.xlu0 %5947
  %v5949 = vsel %vm949, %v5474, -inf
  %5950 = vmax.xlane.f32.xlu0 %v5949
  %v5951 = vpop.xlane.xlu0 %5950
  %v5952 = vsel %vm949, %v5479, -inf
  %5953 = vmax.xlane.f32.xlu0 %v5952
  %v5954 = vpop.xlane.xlu0 %5953
  %v5955 = vsel %vm949, %v5565, -inf
  %5956 = vmax.xlane.f32.xlu0 %v5955
  %v5957 = vpop.xlane.xlu0 %5956
  %v5958 = vsel %vm949, %v5570, -inf
  %5959 = vmax.xlane.f32.xlu0 %v5958
  %v5960 = vpop.xlane.xlu0 %5959
  %v5961 = vsel %vm949, %v5656, -inf
  %5962 = vmax.xlane.f32.xlu0 %v5961
  %v5963 = vpop.xlane.xlu0 %5962
  %v5964 = vsel %vm949, %v5661, -inf
  %5965 = vmax.xlane.f32.xlu0 %v5964
  %v5966 = vpop.xlane.xlu0 %5965
  %v5967 = vsel %vm949, %v5747, -inf
  %5968 = vmax.xlane.f32.xlu0 %v5967
  %v5969 = vpop.xlane.xlu0 %5968
  %v5970 = vsel %vm949, %v5752, -inf
  %5971 = vmax.xlane.f32.xlu0 %v5970
  %v5972 = vpop.xlane.xlu0 %5971
  %v5973 = vsel %vm949, %v5838, -inf
  %5974 = vmax.xlane.f32.xlu0 %v5973
  %v5975 = vpop.xlane.xlu0 %5974
  %v5976 = vsel %vm949, %v5843, -inf
  %5977 = vmax.xlane.f32.xlu0 %v5976
  %v5978 = vpop.xlane.xlu0 %5977
  %v5979 = vsel %vm949, %v5929, -inf
  %5980 = vmax.xlane.f32.xlu0 %v5979
  %v5981 = vpop.xlane.xlu0 %5980
  %v5982 = vsel %vm949, %v5934, -inf
  %5983 = vmax.xlane.f32.xlu0 %v5982
  %v5984 = vpop.xlane.xlu0 %5983
  %v5985 = vsub.f32 %v5292, %v5939
  %v5986 = vsub.f32 %v5297, %v5942
  %v5987 = vsub.f32 %v5383, %v5945
  %v5988 = vsub.f32 %v5388, %v5948
  %v5989 = vsub.f32 %v5474, %v5951
  %v5990 = vsub.f32 %v5479, %v5954
  %v5991 = vsub.f32 %v5565, %v5957
  %v5992 = vsub.f32 %v5570, %v5960
  %v5993 = vsub.f32 %v5656, %v5963
  %v5994 = vsub.f32 %v5661, %v5966
  %v5995 = vsub.f32 %v5747, %v5969
  %v5996 = vsub.f32 %v5752, %v5972
  %v5997 = vsub.f32 %v5838, %v5975
  %v5998 = vsub.f32 %v5843, %v5978
  %v5999 = vsub.f32 %v5929, %v5981
  %v6000 = vsub.f32 %v5934, %v5984
  %v6001 = vmul.f32 %v5985, 1.442695
  %v6002 = vpow.pop %v6001
  %v6003 = vmul.f32 %v5986, 1.442695
  %v6004 = vpow.pop %v6003
  %v6005 = vmul.f32 %v5987, 1.442695
  %v6006 = vpow.pop %v6005
  %v6007 = vmul.f32 %v5988, 1.442695
  %v6008 = vpow.pop %v6007
  %v6009 = vmul.f32 %v5989, 1.442695
  %v6010 = vpow.pop %v6009
  %v6011 = vmul.f32 %v5990, 1.442695
  %v6012 = vpow.pop %v6011
  %v6013 = vmul.f32 %v5991, 1.442695
  %v6014 = vpow.pop %v6013
  %v6015 = vmul.f32 %v5992, 1.442695
  %v6016 = vpow.pop %v6015
  %v6017 = vmul.f32 %v5993, 1.442695
  %v6018 = vpow.pop %v6017
  %v6019 = vmul.f32 %v5994, 1.442695
  %v6020 = vpow.pop %v6019
  %v6021 = vmul.f32 %v5995, 1.442695
  %v6022 = vpow.pop %v6021
  %v6023 = vmul.f32 %v5996, 1.442695
  %v6024 = vpow.pop %v6023
  %v6025 = vmul.f32 %v5997, 1.442695
  %v6026 = vpow.pop %v6025
  %v6027 = vmul.f32 %v5998, 1.442695
  %v6028 = vpow.pop %v6027
  %v6029 = vmul.f32 %v5999, 1.442695
  %v6030 = vpow.pop %v6029
  %v6031 = vmul.f32 %v6000, 1.442695
  %v6032 = vpow.pop %v6031
  %v6033 = vsel %vm949, %v6002, 0.0
  %6034 = vadd.xlane.f32.xlu0 %v6033
  %v6035 = vpop.xlane.xlu0 %6034
  %v6036 = vsel %vm949, %v6004, 0.0
  %6037 = vadd.xlane.f32.xlu0 %v6036
  %v6038 = vpop.xlane.xlu0 %6037
  %v6039 = vsel %vm949, %v6006, 0.0
  %6040 = vadd.xlane.f32.xlu0 %v6039
  %v6041 = vpop.xlane.xlu0 %6040
  %v6042 = vsel %vm949, %v6008, 0.0
  %6043 = vadd.xlane.f32.xlu0 %v6042
  %v6044 = vpop.xlane.xlu0 %6043
  %v6045 = vsel %vm949, %v6010, 0.0
  %6046 = vadd.xlane.f32.xlu0 %v6045
  %v6047 = vpop.xlane.xlu0 %6046
  %v6048 = vsel %vm949, %v6012, 0.0
  %6049 = vadd.xlane.f32.xlu0 %v6048
  %v6050 = vpop.xlane.xlu0 %6049
  %v6051 = vsel %vm949, %v6014, 0.0
  %6052 = vadd.xlane.f32.xlu0 %v6051
  %v6053 = vpop.xlane.xlu0 %6052
  %v6054 = vsel %vm949, %v6016, 0.0
  %6055 = vadd.xlane.f32.xlu0 %v6054
  %v6056 = vpop.xlane.xlu0 %6055
  %v6057 = vsel %vm949, %v6018, 0.0
  %6058 = vadd.xlane.f32.xlu0 %v6057
  %v6059 = vpop.xlane.xlu0 %6058
  %v6060 = vsel %vm949, %v6020, 0.0
  %6061 = vadd.xlane.f32.xlu0 %v6060
  %v6062 = vpop.xlane.xlu0 %6061
  %v6063 = vsel %vm949, %v6022, 0.0
  %6064 = vadd.xlane.f32.xlu0 %v6063
  %v6065 = vpop.xlane.xlu0 %6064
  %v6066 = vsel %vm949, %v6024, 0.0
  %6067 = vadd.xlane.f32.xlu0 %v6066
  %v6068 = vpop.xlane.xlu0 %6067
  %v6069 = vsel %vm949, %v6026, 0.0
  %6070 = vadd.xlane.f32.xlu0 %v6069
  %v6071 = vpop.xlane.xlu0 %6070
  %v6072 = vsel %vm949, %v6028, 0.0
  %6073 = vadd.xlane.f32.xlu0 %v6072
  %v6074 = vpop.xlane.xlu0 %6073
  %v6075 = vsel %vm949, %v6030, 0.0
  %6076 = vadd.xlane.f32.xlu0 %v6075
  %v6077 = vpop.xlane.xlu0 %6076
  %v6078 = vsel %vm949, %v6032, 0.0
  %6079 = vadd.xlane.f32.xlu0 %v6078
  %v6080 = vpop.xlane.xlu0 %6079
  %v6081 = vrcp.pop %v6035
  %v6082 = vrcp.pop %v6038
  %v6083 = vrcp.pop %v6041
  %v6084 = vrcp.pop %v6044
  %v6085 = vrcp.pop %v6047
  %v6086 = vrcp.pop %v6050
  %v6087 = vrcp.pop %v6053
  %v6088 = vrcp.pop %v6056
  %v6089 = vrcp.pop %v6059
  %v6090 = vrcp.pop %v6062
  %v6091 = vrcp.pop %v6065
  %v6092 = vrcp.pop %v6068
  %v6093 = vrcp.pop %v6071
  %v6094 = vrcp.pop %v6074
  %v6095 = vrcp.pop %v6077
  %v6096 = vrcp.pop %v6080
  %v6097 = vmul.f32 %v6002, %v6081
  %v6098 = vmul.f32 %v6004, %v6082
  %v6099 = vmul.f32 %v6006, %v6083
  %v6100 = vmul.f32 %v6008, %v6084
  %v6101 = vmul.f32 %v6010, %v6085
  %v6102 = vmul.f32 %v6012, %v6086
  %v6103 = vmul.f32 %v6014, %v6087
  %v6104 = vmul.f32 %v6016, %v6088
  %v6105 = vmul.f32 %v6018, %v6089
  %v6106 = vmul.f32 %v6020, %v6090
  %v6107 = vmul.f32 %v6022, %v6091
  %v6108 = vmul.f32 %v6024, %v6092
  %v6109 = vmul.f32 %v6026, %v6093
  %v6110 = vmul.f32 %v6028, %v6094
  %v6111 = vmul.f32 %v6030, %v6095
  %v6112 = vmul.f32 %v6032, %v6096
  %6113 = vrot.lane.b32.xlu0 %v156, 40
  %v6114 = vpop.permute.xlu0 %6113
  %6115 = vrot.lane.b32.xlu0 %v161, 40
  %v6116 = vpop.permute.xlu0 %6115
  %v6120 = vsel %vm949, %v6097, 0
  %v6123 = vsel %vm949, %v6098, 0
  %6125 = vmatprep.subr.mxu0 0.0
  %6126 = vmatpush1.msra.mxu0 0.0
  %6127 = vmatprep.subr.mxu0 0.0
  %6128 = vmatpush1.msra.mxu0 0.0
  %6129 = vmatprep.subr.mxu0 0.0
  %6130 = vmatpush1.msra.mxu0 0.0
  %6131 = vmatprep.subr.mxu0 0.0
  %6132 = vmatpush1.msra.mxu0 0.0
  %6133 = vmatprep.subr.mxu0 0.0
  %6134 = vmatpush1.msra.mxu0 0.0
  %6135 = vmatprep.subr.mxu0 0.0
  %6136 = vmatpush1.msra.mxu0 0.0
  %6137 = vmatprep.subr.mxu0 0.0
  %6138 = vmatpush1.msra.mxu0 0.0
  %6139 = vmatprep.subr.mxu0 0.0
  %6140 = vmatpush1.msra.mxu0 0.0
  %6141 = vmatprep.subr.mxu0 0.0
  %6142 = vmatpush1.msra.mxu0 0.0
  %6143 = vmatprep.subr.mxu0 0.0
  %6144 = vmatpush1.msra.mxu0 0.0
  %6145 = vmatprep.subr.mxu0 0.0
  %6146 = vmatpush1.msra.mxu0 0.0
  %6147 = vmatprep.subr.mxu0 0.0
  %6148 = vmatpush1.msra.mxu0 0.0
  %6149 = vmatprep.subr.mxu0 0.0
  %6150 = vmatpush1.msra.mxu0 0.0
  %6151 = vmatprep.subr.mxu0 0.0
  %6152 = vmatpush1.msra.mxu0 0.0
  %6153 = vmatprep.subr.mxu0 0.0
  %6154 = vmatpush1.msra.mxu0 %v6116
  %6155 = vmatprep.subr.mxu0 0.0
  %6156 = vmatpush1.msra.mxu0 %v6114
  %6157 = vmatprep.subr.mxu0 0.0
  %6158 = vmatpush2.msra.mxu0 0.0
  %6159 = vmatprep.subr.mxu0 0.0
  %6160 = vmatpush2.msra.mxu0 0.0
  %6161 = vmatprep.subr.mxu0 0.0
  %6162 = vmatpush2.msra.mxu0 0.0
  %6163 = vmatprep.subr.mxu0 0.0
  %6164 = vmatpush2.msra.mxu0 0.0
  %6165 = vmatprep.subr.mxu0 0.0
  %6166 = vmatpush2.msra.mxu0 0.0
  %6167 = vmatprep.subr.mxu0 0.0
  %6168 = vmatpush2.msra.mxu0 0.0
  %6169 = vmatprep.subr.mxu0 0.0
  %6170 = vmatpush2.msra.mxu0 0.0
  %6171 = vmatprep.subr.mxu0 0.0
  %6172 = vmatpush2.msra.mxu0 0.0
  %6173 = vmatprep.subr.mxu0 0.0
  %6174 = vmatpush2.msra.mxu0 0.0
  %6175 = vmatprep.subr.mxu0 0.0
  %6176 = vmatpush2.msra.mxu0 0.0
  %6177 = vmatprep.subr.mxu0 0.0
  %6178 = vmatpush2.msra.mxu0 0.0
  %6179 = vmatprep.subr.mxu0 0.0
  %6180 = vmatpush2.msra.mxu0 0.0
  %6181 = vmatprep.subr.mxu0 0.0
  %6182 = vmatpush2.msra.mxu0 0.0
  %6183 = vmatprep.subr.mxu0 0.0
  %6184 = vmatpush2.msra.mxu0 0.0
  %6185 = vmatprep.subr.mxu0 0.0
  %6186 = vmatpush2.msra.mxu0 0.0
  %6187 = vmatprep.subr.mxu0 0.0
  %6188 = vmatpush2.msra.mxu0 0.0
  %6189 = vmatprep.mubr.f32.mxu0 0.0
  %6190 = vmatmul.mubr.f32.gmra.mxu0 %v6120
  %v6191 = vpop.f32.mrf.mxu0
  %v6192 = vadd.f32 0.0, %v6191
  %v6193 = vpop.f32.mrf.mxu0
  %6194 = vmatprep.mubr.f32.mxu0 0.0
  %6195 = vmatmul.mubr.f32.gmra.mxu0 %v6123
  %v6196 = vpop.f32.mrf.mxu0
  %v6197 = vadd.f32 0.0, %v6196
  %v6198 = vpop.f32.mrf.mxu0
  %6199 = vdwg.mxu0
  %6200 = vrot.lane.b32.xlu0 %v166, 40
  %v6201 = vpop.permute.xlu0 %6200
  %6202 = vrot.lane.b32.xlu0 %v171, 40
  %v6203 = vpop.permute.xlu0 %6202
  %v6207 = vsel %vm949, %v6099, 0
  %v6210 = vsel %vm949, %v6100, 0
  %6212 = vmatprep.subr.mxu0 0.0
  %6213 = vmatpush1.msra.mxu0 0.0
  %6214 = vmatprep.subr.mxu0 0.0
  %6215 = vmatpush1.msra.mxu0 0.0
  %6216 = vmatprep.subr.mxu0 0.0
  %6217 = vmatpush1.msra.mxu0 0.0
  %6218 = vmatprep.subr.mxu0 0.0
  %6219 = vmatpush1.msra.mxu0 0.0
  %6220 = vmatprep.subr.mxu0 0.0
  %6221 = vmatpush1.msra.mxu0 0.0
  %6222 = vmatprep.subr.mxu0 0.0
  %6223 = vmatpush1.msra.mxu0 0.0
  %6224 = vmatprep.subr.mxu0 0.0
  %6225 = vmatpush1.msra.mxu0 0.0
  %6226 = vmatprep.subr.mxu0 0.0
  %6227 = vmatpush1.msra.mxu0 0.0
  %6228 = vmatprep.subr.mxu0 0.0
  %6229 = vmatpush1.msra.mxu0 0.0
  %6230 = vmatprep.subr.mxu0 0.0
  %6231 = vmatpush1.msra.mxu0 0.0
  %6232 = vmatprep.subr.mxu0 0.0
  %6233 = vmatpush1.msra.mxu0 0.0
  %6234 = vmatprep.subr.mxu0 0.0
  %6235 = vmatpush1.msra.mxu0 0.0
  %6236 = vmatprep.subr.mxu0 0.0
  %6237 = vmatpush1.msra.mxu0 0.0
  %6238 = vmatprep.subr.mxu0 0.0
  %6239 = vmatpush1.msra.mxu0 0.0
  %6240 = vmatprep.subr.mxu0 0.0
  %6241 = vmatpush1.msra.mxu0 %v6203
  %6242 = vmatprep.subr.mxu0 0.0
  %6243 = vmatpush1.msra.mxu0 %v6201
  %6244 = vmatprep.subr.mxu0 0.0
  %6245 = vmatpush2.msra.mxu0 0.0
  %6246 = vmatprep.subr.mxu0 0.0
  %6247 = vmatpush2.msra.mxu0 0.0
  %6248 = vmatprep.subr.mxu0 0.0
  %6249 = vmatpush2.msra.mxu0 0.0
  %6250 = vmatprep.subr.mxu0 0.0
  %6251 = vmatpush2.msra.mxu0 0.0
  %6252 = vmatprep.subr.mxu0 0.0
  %6253 = vmatpush2.msra.mxu0 0.0
  %6254 = vmatprep.subr.mxu0 0.0
  %6255 = vmatpush2.msra.mxu0 0.0
  %6256 = vmatprep.subr.mxu0 0.0
  %6257 = vmatpush2.msra.mxu0 0.0
  %6258 = vmatprep.subr.mxu0 0.0
  %6259 = vmatpush2.msra.mxu0 0.0
  %6260 = vmatprep.subr.mxu0 0.0
  %6261 = vmatpush2.msra.mxu0 0.0
  %6262 = vmatprep.subr.mxu0 0.0
  %6263 = vmatpush2.msra.mxu0 0.0
  %6264 = vmatprep.subr.mxu0 0.0
  %6265 = vmatpush2.msra.mxu0 0.0
  %6266 = vmatprep.subr.mxu0 0.0
  %6267 = vmatpush2.msra.mxu0 0.0
  %6268 = vmatprep.subr.mxu0 0.0
  %6269 = vmatpush2.msra.mxu0 0.0
  %6270 = vmatprep.subr.mxu0 0.0
  %6271 = vmatpush2.msra.mxu0 0.0
  %6272 = vmatprep.subr.mxu0 0.0
  %6273 = vmatpush2.msra.mxu0 0.0
  %6274 = vmatprep.subr.mxu0 0.0
  %6275 = vmatpush2.msra.mxu0 0.0
  %6276 = vmatprep.mubr.f32.mxu0 0.0
  %6277 = vmatmul.mubr.f32.gmra.mxu0 %v6207
  %v6278 = vpop.f32.mrf.mxu0
  %v6279 = vadd.f32 0.0, %v6278
  %v6280 = vpop.f32.mrf.mxu0
  %6281 = vmatprep.mubr.f32.mxu0 0.0
  %6282 = vmatmul.mubr.f32.gmra.mxu0 %v6210
  %v6283 = vpop.f32.mrf.mxu0
  %v6284 = vadd.f32 0.0, %v6283
  %v6285 = vpop.f32.mrf.mxu0
  %6286 = vdwg.mxu0
  %6287 = vrot.lane.b32.xlu0 %v176, 40
  %v6288 = vpop.permute.xlu0 %6287
  %6289 = vrot.lane.b32.xlu0 %v181, 40
  %v6290 = vpop.permute.xlu0 %6289
  %v6294 = vsel %vm949, %v6101, 0
  %v6297 = vsel %vm949, %v6102, 0
  %6299 = vmatprep.subr.mxu0 0.0
  %6300 = vmatpush1.msra.mxu0 0.0
  %6301 = vmatprep.subr.mxu0 0.0
  %6302 = vmatpush1.msra.mxu0 0.0
  %6303 = vmatprep.subr.mxu0 0.0
  %6304 = vmatpush1.msra.mxu0 0.0
  %6305 = vmatprep.subr.mxu0 0.0
  %6306 = vmatpush1.msra.mxu0 0.0
  %6307 = vmatprep.subr.mxu0 0.0
  %6308 = vmatpush1.msra.mxu0 0.0
  %6309 = vmatprep.subr.mxu0 0.0
  %6310 = vmatpush1.msra.mxu0 0.0
  %6311 = vmatprep.subr.mxu0 0.0
  %6312 = vmatpush1.msra.mxu0 0.0
  %6313 = vmatprep.subr.mxu0 0.0
  %6314 = vmatpush1.msra.mxu0 0.0
  %6315 = vmatprep.subr.mxu0 0.0
  %6316 = vmatpush1.msra.mxu0 0.0
  %6317 = vmatprep.subr.mxu0 0.0
  %6318 = vmatpush1.msra.mxu0 0.0
  %6319 = vmatprep.subr.mxu0 0.0
  %6320 = vmatpush1.msra.mxu0 0.0
  %6321 = vmatprep.subr.mxu0 0.0
  %6322 = vmatpush1.msra.mxu0 0.0
  %6323 = vmatprep.subr.mxu0 0.0
  %6324 = vmatpush1.msra.mxu0 0.0
  %6325 = vmatprep.subr.mxu0 0.0
  %6326 = vmatpush1.msra.mxu0 0.0
  %6327 = vmatprep.subr.mxu0 0.0
  %6328 = vmatpush1.msra.mxu0 %v6290
  %6329 = vmatprep.subr.mxu0 0.0
  %6330 = vmatpush1.msra.mxu0 %v6288
  %6331 = vmatprep.subr.mxu0 0.0
  %6332 = vmatpush2.msra.mxu0 0.0
  %6333 = vmatprep.subr.mxu0 0.0
  %6334 = vmatpush2.msra.mxu0 0.0
  %6335 = vmatprep.subr.mxu0 0.0
  %6336 = vmatpush2.msra.mxu0 0.0
  %6337 = vmatprep.subr.mxu0 0.0
  %6338 = vmatpush2.msra.mxu0 0.0
  %6339 = vmatprep.subr.mxu0 0.0
  %6340 = vmatpush2.msra.mxu0 0.0
  %6341 = vmatprep.subr.mxu0 0.0
  %6342 = vmatpush2.msra.mxu0 0.0
  %6343 = vmatprep.subr.mxu0 0.0
  %6344 = vmatpush2.msra.mxu0 0.0
  %6345 = vmatprep.subr.mxu0 0.0
  %6346 = vmatpush2.msra.mxu0 0.0
  %6347 = vmatprep.subr.mxu0 0.0
  %6348 = vmatpush2.msra.mxu0 0.0
  %6349 = vmatprep.subr.mxu0 0.0
  %6350 = vmatpush2.msra.mxu0 0.0
  %6351 = vmatprep.subr.mxu0 0.0
  %6352 = vmatpush2.msra.mxu0 0.0
  %6353 = vmatprep.subr.mxu0 0.0
  %6354 = vmatpush2.msra.mxu0 0.0
  %6355 = vmatprep.subr.mxu0 0.0
  %6356 = vmatpush2.msra.mxu0 0.0
  %6357 = vmatprep.subr.mxu0 0.0
  %6358 = vmatpush2.msra.mxu0 0.0
  %6359 = vmatprep.subr.mxu0 0.0
  %6360 = vmatpush2.msra.mxu0 0.0
  %6361 = vmatprep.subr.mxu0 0.0
  %6362 = vmatpush2.msra.mxu0 0.0
  %6363 = vmatprep.mubr.f32.mxu0 0.0
  %6364 = vmatmul.mubr.f32.gmra.mxu0 %v6294
  %v6365 = vpop.f32.mrf.mxu0
  %v6366 = vadd.f32 0.0, %v6365
  %v6367 = vpop.f32.mrf.mxu0
  %6368 = vmatprep.mubr.f32.mxu0 0.0
  %6369 = vmatmul.mubr.f32.gmra.mxu0 %v6297
  %v6370 = vpop.f32.mrf.mxu0
  %v6371 = vadd.f32 0.0, %v6370
  %v6372 = vpop.f32.mrf.mxu0
  %6373 = vdwg.mxu0
  %6374 = vrot.lane.b32.xlu0 %v186, 40
  %v6375 = vpop.permute.xlu0 %6374
  %6376 = vrot.lane.b32.xlu0 %v191, 40
  %v6377 = vpop.permute.xlu0 %6376
  %v6381 = vsel %vm949, %v6103, 0
  %v6384 = vsel %vm949, %v6104, 0
  %6386 = vmatprep.subr.mxu0 0.0
  %6387 = vmatpush1.msra.mxu0 0.0
  %6388 = vmatprep.subr.mxu0 0.0
  %6389 = vmatpush1.msra.mxu0 0.0
  %6390 = vmatprep.subr.mxu0 0.0
  %6391 = vmatpush1.msra.mxu0 0.0
  %6392 = vmatprep.subr.mxu0 0.0
  %6393 = vmatpush1.msra.mxu0 0.0
  %6394 = vmatprep.subr.mxu0 0.0
  %6395 = vmatpush1.msra.mxu0 0.0
  %6396 = vmatprep.subr.mxu0 0.0
  %6397 = vmatpush1.msra.mxu0 0.0
  %6398 = vmatprep.subr.mxu0 0.0
  %6399 = vmatpush1.msra.mxu0 0.0
  %6400 = vmatprep.subr.mxu0 0.0
  %6401 = vmatpush1.msra.mxu0 0.0
  %6402 = vmatprep.subr.mxu0 0.0
  %6403 = vmatpush1.msra.mxu0 0.0
  %6404 = vmatprep.subr.mxu0 0.0
  %6405 = vmatpush1.msra.mxu0 0.0
  %6406 = vmatprep.subr.mxu0 0.0
  %6407 = vmatpush1.msra.mxu0 0.0
  %6408 = vmatprep.subr.mxu0 0.0
  %6409 = vmatpush1.msra.mxu0 0.0
  %6410 = vmatprep.subr.mxu0 0.0
  %6411 = vmatpush1.msra.mxu0 0.0
  %6412 = vmatprep.subr.mxu0 0.0
  %6413 = vmatpush1.msra.mxu0 0.0
  %6414 = vmatprep.subr.mxu0 0.0
  %6415 = vmatpush1.msra.mxu0 %v6377
  %6416 = vmatprep.subr.mxu0 0.0
  %6417 = vmatpush1.msra.mxu0 %v6375
  %6418 = vmatprep.subr.mxu0 0.0
  %6419 = vmatpush2.msra.mxu0 0.0
  %6420 = vmatprep.subr.mxu0 0.0
  %6421 = vmatpush2.msra.mxu0 0.0
  %6422 = vmatprep.subr.mxu0 0.0
  %6423 = vmatpush2.msra.mxu0 0.0
  %6424 = vmatprep.subr.mxu0 0.0
  %6425 = vmatpush2.msra.mxu0 0.0
  %6426 = vmatprep.subr.mxu0 0.0
  %6427 = vmatpush2.msra.mxu0 0.0
  %6428 = vmatprep.subr.mxu0 0.0
  %6429 = vmatpush2.msra.mxu0 0.0
  %6430 = vmatprep.subr.mxu0 0.0
  %6431 = vmatpush2.msra.mxu0 0.0
  %6432 = vmatprep.subr.mxu0 0.0
  %6433 = vmatpush2.msra.mxu0 0.0
  %6434 = vmatprep.subr.mxu0 0.0
  %6435 = vmatpush2.msra.mxu0 0.0
  %6436 = vmatprep.subr.mxu0 0.0
  %6437 = vmatpush2.msra.mxu0 0.0
  %6438 = vmatprep.subr.mxu0 0.0
  %6439 = vmatpush2.msra.mxu0 0.0
  %6440 = vmatprep.subr.mxu0 0.0
  %6441 = vmatpush2.msra.mxu0 0.0
  %6442 = vmatprep.subr.mxu0 0.0
  %6443 = vmatpush2.msra.mxu0 0.0
  %6444 = vmatprep.subr.mxu0 0.0
  %6445 = vmatpush2.msra.mxu0 0.0
  %6446 = vmatprep.subr.mxu0 0.0
  %6447 = vmatpush2.msra.mxu0 0.0
  %6448 = vmatprep.subr.mxu0 0.0
  %6449 = vmatpush2.msra.mxu0 0.0
  %6450 = vmatprep.mubr.f32.mxu0 0.0
  %6451 = vmatmul.mubr.f32.gmra.mxu0 %v6381
  %v6452 = vpop.f32.mrf.mxu0
  %v6453 = vadd.f32 0.0, %v6452
  %v6454 = vpop.f32.mrf.mxu0
  %6455 = vmatprep.mubr.f32.mxu0 0.0
  %6456 = vmatmul.mubr.f32.gmra.mxu0 %v6384
  %v6457 = vpop.f32.mrf.mxu0
  %v6458 = vadd.f32 0.0, %v6457
  %v6459 = vpop.f32.mrf.mxu0
  %6460 = vdwg.mxu0
  %6461 = vrot.lane.b32.xlu0 %v196, 40
  %v6462 = vpop.permute.xlu0 %6461
  %6463 = vrot.lane.b32.xlu0 %v201, 40
  %v6464 = vpop.permute.xlu0 %6463
  %v6468 = vsel %vm949, %v6105, 0
  %v6471 = vsel %vm949, %v6106, 0
  %6473 = vmatprep.subr.mxu0 0.0
  %6474 = vmatpush1.msra.mxu0 0.0
  %6475 = vmatprep.subr.mxu0 0.0
  %6476 = vmatpush1.msra.mxu0 0.0
  %6477 = vmatprep.subr.mxu0 0.0
  %6478 = vmatpush1.msra.mxu0 0.0
  %6479 = vmatprep.subr.mxu0 0.0
  %6480 = vmatpush1.msra.mxu0 0.0
  %6481 = vmatprep.subr.mxu0 0.0
  %6482 = vmatpush1.msra.mxu0 0.0
  %6483 = vmatprep.subr.mxu0 0.0
  %6484 = vmatpush1.msra.mxu0 0.0
  %6485 = vmatprep.subr.mxu0 0.0
  %6486 = vmatpush1.msra.mxu0 0.0
  %6487 = vmatprep.subr.mxu0 0.0
  %6488 = vmatpush1.msra.mxu0 0.0
  %6489 = vmatprep.subr.mxu0 0.0
  %6490 = vmatpush1.msra.mxu0 0.0
  %6491 = vmatprep.subr.mxu0 0.0
  %6492 = vmatpush1.msra.mxu0 0.0
  %6493 = vmatprep.subr.mxu0 0.0
  %6494 = vmatpush1.msra.mxu0 0.0
  %6495 = vmatprep.subr.mxu0 0.0
  %6496 = vmatpush1.msra.mxu0 0.0
  %6497 = vmatprep.subr.mxu0 0.0
  %6498 = vmatpush1.msra.mxu0 0.0
  %6499 = vmatprep.subr.mxu0 0.0
  %6500 = vmatpush1.msra.mxu0 0.0
  %6501 = vmatprep.subr.mxu0 0.0
  %6502 = vmatpush1.msra.mxu0 %v6464
  %6503 = vmatprep.subr.mxu0 0.0
  %6504 = vmatpush1.msra.mxu0 %v6462
  %6505 = vmatprep.subr.mxu0 0.0
  %6506 = vmatpush2.msra.mxu0 0.0
  %6507 = vmatprep.subr.mxu0 0.0
  %6508 = vmatpush2.msra.mxu0 0.0
  %6509 = vmatprep.subr.mxu0 0.0
  %6510 = vmatpush2.msra.mxu0 0.0
  %6511 = vmatprep.subr.mxu0 0.0
  %6512 = vmatpush2.msra.mxu0 0.0
  %6513 = vmatprep.subr.mxu0 0.0
  %6514 = vmatpush2.msra.mxu0 0.0
  %6515 = vmatprep.subr.mxu0 0.0
  %6516 = vmatpush2.msra.mxu0 0.0
  %6517 = vmatprep.subr.mxu0 0.0
  %6518 = vmatpush2.msra.mxu0 0.0
  %6519 = vmatprep.subr.mxu0 0.0
  %6520 = vmatpush2.msra.mxu0 0.0
  %6521 = vmatprep.subr.mxu0 0.0
  %6522 = vmatpush2.msra.mxu0 0.0
  %6523 = vmatprep.subr.mxu0 0.0
  %6524 = vmatpush2.msra.mxu0 0.0
  %6525 = vmatprep.subr.mxu0 0.0
  %6526 = vmatpush2.msra.mxu0 0.0
  %6527 = vmatprep.subr.mxu0 0.0
  %6528 = vmatpush2.msra.mxu0 0.0
  %6529 = vmatprep.subr.mxu0 0.0
  %6530 = vmatpush2.msra.mxu0 0.0
  %6531 = vmatprep.subr.mxu0 0.0
  %6532 = vmatpush2.msra.mxu0 0.0
  %6533 = vmatprep.subr.mxu0 0.0
  %6534 = vmatpush2.msra.mxu0 0.0
  %6535 = vmatprep.subr.mxu0 0.0
  %6536 = vmatpush2.msra.mxu0 0.0
  %6537 = vmatprep.mubr.f32.mxu0 0.0
  %6538 = vmatmul.mubr.f32.gmra.mxu0 %v6468
  %v6539 = vpop.f32.mrf.mxu0
  %v6540 = vadd.f32 0.0, %v6539
  %v6541 = vpop.f32.mrf.mxu0
  %6542 = vmatprep.mubr.f32.mxu0 0.0
  %6543 = vmatmul.mubr.f32.gmra.mxu0 %v6471
  %v6544 = vpop.f32.mrf.mxu0
  %v6545 = vadd.f32 0.0, %v6544
  %v6546 = vpop.f32.mrf.mxu0
  %6547 = vdwg.mxu0
  %6548 = vrot.lane.b32.xlu0 %v206, 40
  %v6549 = vpop.permute.xlu0 %6548
  %6550 = vrot.lane.b32.xlu0 %v211, 40
  %v6551 = vpop.permute.xlu0 %6550
  %v6555 = vsel %vm949, %v6107, 0
  %v6558 = vsel %vm949, %v6108, 0
  %6560 = vmatprep.subr.mxu0 0.0
  %6561 = vmatpush1.msra.mxu0 0.0
  %6562 = vmatprep.subr.mxu0 0.0
  %6563 = vmatpush1.msra.mxu0 0.0
  %6564 = vmatprep.subr.mxu0 0.0
  %6565 = vmatpush1.msra.mxu0 0.0
  %6566 = vmatprep.subr.mxu0 0.0
  %6567 = vmatpush1.msra.mxu0 0.0
  %6568 = vmatprep.subr.mxu0 0.0
  %6569 = vmatpush1.msra.mxu0 0.0
  %6570 = vmatprep.subr.mxu0 0.0
  %6571 = vmatpush1.msra.mxu0 0.0
  %6572 = vmatprep.subr.mxu0 0.0
  %6573 = vmatpush1.msra.mxu0 0.0
  %6574 = vmatprep.subr.mxu0 0.0
  %6575 = vmatpush1.msra.mxu0 0.0
  %6576 = vmatprep.subr.mxu0 0.0
  %6577 = vmatpush1.msra.mxu0 0.0
  %6578 = vmatprep.subr.mxu0 0.0
  %6579 = vmatpush1.msra.mxu0 0.0
  %6580 = vmatprep.subr.mxu0 0.0
  %6581 = vmatpush1.msra.mxu0 0.0
  %6582 = vmatprep.subr.mxu0 0.0
  %6583 = vmatpush1.msra.mxu0 0.0
  %6584 = vmatprep.subr.mxu0 0.0
  %6585 = vmatpush1.msra.mxu0 0.0
  %6586 = vmatprep.subr.mxu0 0.0
  %6587 = vmatpush1.msra.mxu0 0.0
  %6588 = vmatprep.subr.mxu0 0.0
  %6589 = vmatpush1.msra.mxu0 %v6551
  %6590 = vmatprep.subr.mxu0 0.0
  %6591 = vmatpush1.msra.mxu0 %v6549
  %6592 = vmatprep.subr.mxu0 0.0
  %6593 = vmatpush2.msra.mxu0 0.0
  %6594 = vmatprep.subr.mxu0 0.0
  %6595 = vmatpush2.msra.mxu0 0.0
  %6596 = vmatprep.subr.mxu0 0.0
  %6597 = vmatpush2.msra.mxu0 0.0
  %6598 = vmatprep.subr.mxu0 0.0
  %6599 = vmatpush2.msra.mxu0 0.0
  %6600 = vmatprep.subr.mxu0 0.0
  %6601 = vmatpush2.msra.mxu0 0.0
  %6602 = vmatprep.subr.mxu0 0.0
  %6603 = vmatpush2.msra.mxu0 0.0
  %6604 = vmatprep.subr.mxu0 0.0
  %6605 = vmatpush2.msra.mxu0 0.0
  %6606 = vmatprep.subr.mxu0 0.0
  %6607 = vmatpush2.msra.mxu0 0.0
  %6608 = vmatprep.subr.mxu0 0.0
  %6609 = vmatpush2.msra.mxu0 0.0
  %6610 = vmatprep.subr.mxu0 0.0
  %6611 = vmatpush2.msra.mxu0 0.0
  %6612 = vmatprep.subr.mxu0 0.0
  %6613 = vmatpush2.msra.mxu0 0.0
  %6614 = vmatprep.subr.mxu0 0.0
  %6615 = vmatpush2.msra.mxu0 0.0
  %6616 = vmatprep.subr.mxu0 0.0
  %6617 = vmatpush2.msra.mxu0 0.0
  %6618 = vmatprep.subr.mxu0 0.0
  %6619 = vmatpush2.msra.mxu0 0.0
  %6620 = vmatprep.subr.mxu0 0.0
  %6621 = vmatpush2.msra.mxu0 0.0
  %6622 = vmatprep.subr.mxu0 0.0
  %6623 = vmatpush2.msra.mxu0 0.0
  %6624 = vmatprep.mubr.f32.mxu0 0.0
  %6625 = vmatmul.mubr.f32.gmra.mxu0 %v6555
  %v6626 = vpop.f32.mrf.mxu0
  %v6627 = vadd.f32 0.0, %v6626
  %v6628 = vpop.f32.mrf.mxu0
  %6629 = vmatprep.mubr.f32.mxu0 0.0
  %6630 = vmatmul.mubr.f32.gmra.mxu0 %v6558
  %v6631 = vpop.f32.mrf.mxu0
  %v6632 = vadd.f32 0.0, %v6631
  %v6633 = vpop.f32.mrf.mxu0
  %6634 = vdwg.mxu0
  %6635 = vrot.lane.b32.xlu0 %v216, 40
  %v6636 = vpop.permute.xlu0 %6635
  %6637 = vrot.lane.b32.xlu0 %v221, 40
  %v6638 = vpop.permute.xlu0 %6637
  %v6642 = vsel %vm949, %v6109, 0
  %v6645 = vsel %vm949, %v6110, 0
  %6647 = vmatprep.subr.mxu0 0.0
  %6648 = vmatpush1.msra.mxu0 0.0
  %6649 = vmatprep.subr.mxu0 0.0
  %6650 = vmatpush1.msra.mxu0 0.0
  %6651 = vmatprep.subr.mxu0 0.0
  %6652 = vmatpush1.msra.mxu0 0.0
  %6653 = vmatprep.subr.mxu0 0.0
  %6654 = vmatpush1.msra.mxu0 0.0
  %6655 = vmatprep.subr.mxu0 0.0
  %6656 = vmatpush1.msra.mxu0 0.0
  %6657 = vmatprep.subr.mxu0 0.0
  %6658 = vmatpush1.msra.mxu0 0.0
  %6659 = vmatprep.subr.mxu0 0.0
  %6660 = vmatpush1.msra.mxu0 0.0
  %6661 = vmatprep.subr.mxu0 0.0
  %6662 = vmatpush1.msra.mxu0 0.0
  %6663 = vmatprep.subr.mxu0 0.0
  %6664 = vmatpush1.msra.mxu0 0.0
  %6665 = vmatprep.subr.mxu0 0.0
  %6666 = vmatpush1.msra.mxu0 0.0
  %6667 = vmatprep.subr.mxu0 0.0
  %6668 = vmatpush1.msra.mxu0 0.0
  %6669 = vmatprep.subr.mxu0 0.0
  %6670 = vmatpush1.msra.mxu0 0.0
  %6671 = vmatprep.subr.mxu0 0.0
  %6672 = vmatpush1.msra.mxu0 0.0
  %6673 = vmatprep.subr.mxu0 0.0
  %6674 = vmatpush1.msra.mxu0 0.0
  %6675 = vmatprep.subr.mxu0 0.0
  %6676 = vmatpush1.msra.mxu0 %v6638
  %6677 = vmatprep.subr.mxu0 0.0
  %6678 = vmatpush1.msra.mxu0 %v6636
  %6679 = vmatprep.subr.mxu0 0.0
  %6680 = vmatpush2.msra.mxu0 0.0
  %6681 = vmatprep.subr.mxu0 0.0
  %6682 = vmatpush2.msra.mxu0 0.0
  %6683 = vmatprep.subr.mxu0 0.0
  %6684 = vmatpush2.msra.mxu0 0.0
  %6685 = vmatprep.subr.mxu0 0.0
  %6686 = vmatpush2.msra.mxu0 0.0
  %6687 = vmatprep.subr.mxu0 0.0
  %6688 = vmatpush2.msra.mxu0 0.0
  %6689 = vmatprep.subr.mxu0 0.0
  %6690 = vmatpush2.msra.mxu0 0.0
  %6691 = vmatprep.subr.mxu0 0.0
  %6692 = vmatpush2.msra.mxu0 0.0
  %6693 = vmatprep.subr.mxu0 0.0
  %6694 = vmatpush2.msra.mxu0 0.0
  %6695 = vmatprep.subr.mxu0 0.0
  %6696 = vmatpush2.msra.mxu0 0.0
  %6697 = vmatprep.subr.mxu0 0.0
  %6698 = vmatpush2.msra.mxu0 0.0
  %6699 = vmatprep.subr.mxu0 0.0
  %6700 = vmatpush2.msra.mxu0 0.0
  %6701 = vmatprep.subr.mxu0 0.0
  %6702 = vmatpush2.msra.mxu0 0.0
  %6703 = vmatprep.subr.mxu0 0.0
  %6704 = vmatpush2.msra.mxu0 0.0
  %6705 = vmatprep.subr.mxu0 0.0
  %6706 = vmatpush2.msra.mxu0 0.0
  %6707 = vmatprep.subr.mxu0 0.0
  %6708 = vmatpush2.msra.mxu0 0.0
  %6709 = vmatprep.subr.mxu0 0.0
  %6710 = vmatpush2.msra.mxu0 0.0
  %6711 = vmatprep.mubr.f32.mxu0 0.0
  %6712 = vmatmul.mubr.f32.gmra.mxu0 %v6642
  %v6713 = vpop.f32.mrf.mxu0
  %v6714 = vadd.f32 0.0, %v6713
  %v6715 = vpop.f32.mrf.mxu0
  %6716 = vmatprep.mubr.f32.mxu0 0.0
  %6717 = vmatmul.mubr.f32.gmra.mxu0 %v6645
  %v6718 = vpop.f32.mrf.mxu0
  %v6719 = vadd.f32 0.0, %v6718
  %v6720 = vpop.f32.mrf.mxu0
  %6721 = vdwg.mxu0
  %6722 = vrot.lane.b32.xlu0 %v226, 40
  %v6723 = vpop.permute.xlu0 %6722
  %6724 = vrot.lane.b32.xlu0 %v231, 40
  %v6725 = vpop.permute.xlu0 %6724
  %v6729 = vsel %vm949, %v6111, 0
  %v6732 = vsel %vm949, %v6112, 0
  %6734 = vmatprep.subr.mxu0 0.0
  %6735 = vmatpush1.msra.mxu0 0.0
  %6736 = vmatprep.subr.mxu0 0.0
  %6737 = vmatpush1.msra.mxu0 0.0
  %6738 = vmatprep.subr.mxu0 0.0
  %6739 = vmatpush1.msra.mxu0 0.0
  %6740 = vmatprep.subr.mxu0 0.0
  %6741 = vmatpush1.msra.mxu0 0.0
  %6742 = vmatprep.subr.mxu0 0.0
  %6743 = vmatpush1.msra.mxu0 0.0
  %6744 = vmatprep.subr.mxu0 0.0
  %6745 = vmatpush1.msra.mxu0 0.0
  %6746 = vmatprep.subr.mxu0 0.0
  %6747 = vmatpush1.msra.mxu0 0.0
  %6748 = vmatprep.subr.mxu0 0.0
  %6749 = vmatpush1.msra.mxu0 0.0
  %6750 = vmatprep.subr.mxu0 0.0
  %6751 = vmatpush1.msra.mxu0 0.0
  %6752 = vmatprep.subr.mxu0 0.0
  %6753 = vmatpush1.msra.mxu0 0.0
  %6754 = vmatprep.subr.mxu0 0.0
  %6755 = vmatpush1.msra.mxu0 0.0
  %6756 = vmatprep.subr.mxu0 0.0
  %6757 = vmatpush1.msra.mxu0 0.0
  %6758 = vmatprep.subr.mxu0 0.0
  %6759 = vmatpush1.msra.mxu0 0.0
  %6760 = vmatprep.subr.mxu0 0.0
  %6761 = vmatpush1.msra.mxu0 0.0
  %6762 = vmatprep.subr.mxu0 0.0
  %6763 = vmatpush1.msra.mxu0 %v6725
  %6764 = vmatprep.subr.mxu0 0.0
  %6765 = vmatpush1.msra.mxu0 %v6723
  %6766 = vmatprep.subr.mxu0 0.0
  %6767 = vmatpush2.msra.mxu0 0.0
  %6768 = vmatprep.subr.mxu0 0.0
  %6769 = vmatpush2.msra.mxu0 0.0
  %6770 = vmatprep.subr.mxu0 0.0
  %6771 = vmatpush2.msra.mxu0 0.0
  %6772 = vmatprep.subr.mxu0 0.0
  %6773 = vmatpush2.msra.mxu0 0.0
  %6774 = vmatprep.subr.mxu0 0.0
  %6775 = vmatpush2.msra.mxu0 0.0
  %6776 = vmatprep.subr.mxu0 0.0
  %6777 = vmatpush2.msra.mxu0 0.0
  %6778 = vmatprep.subr.mxu0 0.0
  %6779 = vmatpush2.msra.mxu0 0.0
  %6780 = vmatprep.subr.mxu0 0.0
  %6781 = vmatpush2.msra.mxu0 0.0
  %6782 = vmatprep.subr.mxu0 0.0
  %6783 = vmatpush2.msra.mxu0 0.0
  %6784 = vmatprep.subr.mxu0 0.0
  %6785 = vmatpush2.msra.mxu0 0.0
  %6786 = vmatprep.subr.mxu0 0.0
  %6787 = vmatpush2.msra.mxu0 0.0
  %6788 = vmatprep.subr.mxu0 0.0
  %6789 = vmatpush2.msra.mxu0 0.0
  %6790 = vmatprep.subr.mxu0 0.0
  %6791 = vmatpush2.msra.mxu0 0.0
  %6792 = vmatprep.subr.mxu0 0.0
  %6793 = vmatpush2.msra.mxu0 0.0
  %6794 = vmatprep.subr.mxu0 0.0
  %6795 = vmatpush2.msra.mxu0 0.0
  %6796 = vmatprep.subr.mxu0 0.0
  %6797 = vmatpush2.msra.mxu0 0.0
  %6798 = vmatprep.mubr.f32.mxu0 0.0
  %6799 = vmatmul.mubr.f32.gmra.mxu0 %v6729
  %v6800 = vpop.f32.mrf.mxu0
  %v6801 = vadd.f32 0.0, %v6800
  %v6802 = vpop.f32.mrf.mxu0
  %6803 = vmatprep.mubr.f32.mxu0 0.0
  %6804 = vmatmul.mubr.f32.gmra.mxu0 %v6732
  %v6805 = vpop.f32.mrf.mxu0
  %v6806 = vadd.f32 0.0, %v6805
  %v6807 = vpop.f32.mrf.mxu0
  %6808 = vdwg.mxu0
  %6825 = vrot.lane.b32.xlu0 %v6192, 24
  %v6826 = vpop.permute.xlu0 %6825
  %6827 = vrot.lane.b32.xlu0 %v6197, 24
  %v6828 = vpop.permute.xlu0 %6827
  %6829 = vrot.lane.b32.xlu0 %v6279, 24
  %v6830 = vpop.permute.xlu0 %6829
  %6831 = vrot.lane.b32.xlu0 %v6284, 24
  %v6832 = vpop.permute.xlu0 %6831
  %6833 = vrot.lane.b32.xlu0 %v6366, 24
  %v6834 = vpop.permute.xlu0 %6833
  %6835 = vrot.lane.b32.xlu0 %v6371, 24
  %v6836 = vpop.permute.xlu0 %6835
  %6837 = vrot.lane.b32.xlu0 %v6453, 24
  %v6838 = vpop.permute.xlu0 %6837
  %6839 = vrot.lane.b32.xlu0 %v6458, 24
  %v6840 = vpop.permute.xlu0 %6839
  %6841 = vrot.lane.b32.xlu0 %v6540, 24
  %v6842 = vpop.permute.xlu0 %6841
  %6843 = vrot.lane.b32.xlu0 %v6545, 24
  %v6844 = vpop.permute.xlu0 %6843
  %6845 = vrot.lane.b32.xlu0 %v6627, 24
  %v6846 = vpop.permute.xlu0 %6845
  %6847 = vrot.lane.b32.xlu0 %v6632, 24
  %v6848 = vpop.permute.xlu0 %6847
  %6849 = vrot.lane.b32.xlu0 %v6714, 24
  %v6850 = vpop.permute.xlu0 %6849
  %6851 = vrot.lane.b32.xlu0 %v6719, 24
  %v6852 = vpop.permute.xlu0 %6851
  %6853 = vrot.lane.b32.xlu0 %v6801, 24
  %v6854 = vpop.permute.xlu0 %6853
  %6855 = vrot.lane.b32.xlu0 %v6806, 24
  %v6856 = vpop.permute.xlu0 %6855
  %vm6873 = vcmask 261312
  %6874 = vst.msk [vmem:[#allocation2] sm:$0xff] %vm6873, %v6826
  %6875 = vst.msk [vmem:[#allocation2 + $0x8] sm:$0xff] %vm6873, %v6828
  %6876 = vst.msk [vmem:[#allocation2 + $0x10] sm:$0xff] %vm6873, %v6830
  %6877 = vst.msk [vmem:[#allocation2 + $0x18] sm:$0xff] %vm6873, %v6832
  %6878 = vst.msk [vmem:[#allocation2 + $0x20] sm:$0xff] %vm6873, %v6834
  %6879 = vst.msk [vmem:[#allocation2 + $0x28] sm:$0xff] %vm6873, %v6836
  %6880 = vst.msk [vmem:[#allocation2 + $0x30] sm:$0xff] %vm6873, %v6838
  %6881 = vst.msk [vmem:[#allocation2 + $0x38] sm:$0xff] %vm6873, %v6840
  %6882 = vst.msk [vmem:[#allocation2 + $0x40] sm:$0xff] %vm6873, %v6842
  %6883 = vst.msk [vmem:[#allocation2 + $0x48] sm:$0xff] %vm6873, %v6844
  %6884 = vst.msk [vmem:[#allocation2 + $0x50] sm:$0xff] %vm6873, %v6846
  %6885 = vst.msk [vmem:[#allocation2 + $0x58] sm:$0xff] %vm6873, %v6848
  %6886 = vst.msk [vmem:[#allocation2 + $0x60] sm:$0xff] %vm6873, %v6850
  %6887 = vst.msk [vmem:[#allocation2 + $0x68] sm:$0xff] %vm6873, %v6852
  %6888 = vst.msk [vmem:[#allocation2 + $0x70] sm:$0xff] %vm6873, %v6854
  %6889 = vst.msk [vmem:[#allocation2 + $0x78] sm:$0xff] %vm6873, %v6856
  %v6890 = vld [vmem:[#allocation2] sm:$0xff]
  %v6891 = vld [vmem:[#allocation2 + $0x8] sm:$0xff]
  %v6892 = vld [vmem:[#allocation2 + $0x10] sm:$0xff]
  %v6893 = vld [vmem:[#allocation2 + $0x18] sm:$0xff]
  %v6894 = vld [vmem:[#allocation2 + $0x20] sm:$0xff]
  %v6895 = vld [vmem:[#allocation2 + $0x28] sm:$0xff]
  %v6896 = vld [vmem:[#allocation2 + $0x30] sm:$0xff]
  %v6897 = vld [vmem:[#allocation2 + $0x38] sm:$0xff]
  %v6898 = vld [vmem:[#allocation2 + $0x40] sm:$0xff]
  %v6899 = vld [vmem:[#allocation2 + $0x48] sm:$0xff]
  %v6900 = vld [vmem:[#allocation2 + $0x50] sm:$0xff]
  %v6901 = vld [vmem:[#allocation2 + $0x58] sm:$0xff]
  %v6902 = vld [vmem:[#allocation2 + $0x60] sm:$0xff]
  %v6903 = vld [vmem:[#allocation2 + $0x68] sm:$0xff]
  %v6904 = vld [vmem:[#allocation2 + $0x70] sm:$0xff]
  %v6905 = vld [vmem:[#allocation2 + $0x78] sm:$0xff]
  %v6906 = vld [vmem:[%s2] sm:$0xff]
  %v6907 = vld [vmem:[%s2 + $0x8] sm:$0xff]
  %v6908 = vld [vmem:[%s2 + $0x10] sm:$0xff]
  %v6909 = vld [vmem:[%s2 + $0x18] sm:$0xff]
  %v6910 = vld [vmem:[%s3] sm:$0x1]
  %v6912 = vlaneseq
  %v6913 = vshrl.u32 %v6912, 7
  %v6914 = vsub.s32 0, %v6913
  %v6915 = vrot.slane %v6910, %v6914
  %v6918 = vsel %vm40, %v6890, 0
  %v6921 = vsel %vm40, %v6891, 0
  %v6924 = vsel %vm40, %v6892, 0
  %v6927 = vsel %vm40, %v6893, 0
  %v6930 = vsel %vm40, %v6894, 0
  %v6933 = vsel %vm40, %v6895, 0
  %v6936 = vsel %vm40, %v6896, 0
  %v6939 = vsel %vm40, %v6897, 0
  %v6942 = vsel %vm40, %v6898, 0
  %v6945 = vsel %vm40, %v6899, 0
  %v6948 = vsel %vm40, %v6900, 0
  %v6951 = vsel %vm40, %v6901, 0
  %v6954 = vsel %vm40, %v6902, 0
  %v6957 = vsel %vm40, %v6903, 0
  %v6960 = vsel %vm40, %v6904, 0
  %v6963 = vsel %vm40, %v6905, 0
  %6965 = vmatprep.subr.mxu0 0.0
  %6966 = vmatpush1.msra.mxu0 0.0
  %6967 = vmatprep.subr.mxu0 0.0
  %6968 = vmatpush1.msra.mxu0 0.0
  %6969 = vmatprep.subr.mxu0 0.0
  %6970 = vmatpush1.msra.mxu0 0.0
  %6971 = vmatprep.subr.mxu0 0.0
  %6972 = vmatpush1.msra.mxu0 0.0
  %6973 = vmatprep.subr.mxu0 0.0
  %6974 = vmatpush1.msra.mxu0 0.0
  %6975 = vmatprep.subr.mxu0 0.0
  %6976 = vmatpush1.msra.mxu0 0.0
  %6977 = vmatprep.subr.mxu0 0.0
  %6978 = vmatpush1.msra.mxu0 0.0
  %6979 = vmatprep.subr.mxu0 0.0
  %6980 = vmatpush1.msra.mxu0 0.0
  %6981 = vmatprep.subr.mxu0 0.0
  %6982 = vmatpush1.msra.mxu0 0.0
  %6983 = vmatprep.subr.mxu0 0.0
  %6984 = vmatpush1.msra.mxu0 0.0
  %6985 = vmatprep.subr.mxu0 0.0
  %6986 = vmatpush1.msra.mxu0 0.0
  %6987 = vmatprep.subr.mxu0 0.0
  %6988 = vmatpush1.msra.mxu0 0.0
  %6989 = vmatprep.subr.mxu0 0.0
  %6990 = vmatpush1.msra.mxu0 %v6909
  %6991 = vmatprep.subr.mxu0 0.0
  %6992 = vmatpush1.msra.mxu0 %v6908
  %6993 = vmatprep.subr.mxu0 0.0
  %6994 = vmatpush1.msra.mxu0 %v6907
  %6995 = vmatprep.subr.mxu0 0.0
  %6996 = vmatpush1.msra.mxu0 %v6906
  %6997 = vmatprep.subr.mxu0 0.0
  %6998 = vmatpush2.msra.mxu0 0.0
  %6999 = vmatprep.subr.mxu0 0.0
  %7000 = vmatpush2.msra.mxu0 0.0
  %7001 = vmatprep.subr.mxu0 0.0
  %7002 = vmatpush2.msra.mxu0 0.0
  %7003 = vmatprep.subr.mxu0 0.0
  %7004 = vmatpush2.msra.mxu0 0.0
  %7005 = vmatprep.subr.mxu0 0.0
  %7006 = vmatpush2.msra.mxu0 0.0
  %7007 = vmatprep.subr.mxu0 0.0
  %7008 = vmatpush2.msra.mxu0 0.0
  %7009 = vmatprep.subr.mxu0 0.0
  %7010 = vmatpush2.msra.mxu0 0.0
  %7011 = vmatprep.subr.mxu0 0.0
  %7012 = vmatpush2.msra.mxu0 0.0
  %7013 = vmatprep.subr.mxu0 0.0
  %7014 = vmatpush2.msra.mxu0 0.0
  %7015 = vmatprep.subr.mxu0 0.0
  %7016 = vmatpush2.msra.mxu0 0.0
  %7017 = vmatprep.subr.mxu0 0.0
  %7018 = vmatpush2.msra.mxu0 0.0
  %7019 = vmatprep.subr.mxu0 0.0
  %7020 = vmatpush2.msra.mxu0 0.0
  %7021 = vmatprep.subr.mxu0 0.0
  %7022 = vmatpush2.msra.mxu0 0.0
  %7023 = vmatprep.subr.mxu0 0.0
  %7024 = vmatpush2.msra.mxu0 0.0
  %7025 = vmatprep.subr.mxu0 0.0
  %7026 = vmatpush2.msra.mxu0 0.0
  %7027 = vmatprep.subr.mxu0 0.0
  %7028 = vmatpush2.msra.mxu0 0.0
  %7029 = vmatprep.mubr.f32.mxu0 0.0
  %7030 = vmatmul.mubr.f32.gmra.mxu0 %v6918
  %v7031 = vpop.f32.mrf.mxu0
  %v7032 = vadd.f32 %v6915, %v7031
  %v7033 = vpop.f32.mrf.mxu0
  %7034 = vmatprep.mubr.f32.mxu0 0.0
  %7035 = vmatmul.mubr.f32.gmra.mxu0 %v6921
  %v7036 = vpop.f32.mrf.mxu0
  %v7037 = vadd.f32 %v6915, %v7036
  %v7038 = vpop.f32.mrf.mxu0
  %7039 = vmatprep.mubr.f32.mxu0 0.0
  %7040 = vmatmul.mubr.f32.gmra.mxu0 %v6924
  %v7041 = vpop.f32.mrf.mxu0
  %v7042 = vadd.f32 %v6915, %v7041
  %v7043 = vpop.f32.mrf.mxu0
  %7044 = vmatprep.mubr.f32.mxu0 0.0
  %7045 = vmatmul.mubr.f32.gmra.mxu0 %v6927
  %v7046 = vpop.f32.mrf.mxu0
  %v7047 = vadd.f32 %v6915, %v7046
  %v7048 = vpop.f32.mrf.mxu0
  %7049 = vmatprep.mubr.f32.mxu0 0.0
  %7050 = vmatmul.mubr.f32.gmra.mxu0 %v6930
  %v7051 = vpop.f32.mrf.mxu0
  %v7052 = vadd.f32 %v6915, %v7051
  %v7053 = vpop.f32.mrf.mxu0
  %7054 = vmatprep.mubr.f32.mxu0 0.0
  %7055 = vmatmul.mubr.f32.gmra.mxu0 %v6933
  %v7056 = vpop.f32.mrf.mxu0
  %v7057 = vadd.f32 %v6915, %v7056
  %v7058 = vpop.f32.mrf.mxu0
  %7059 = vmatprep.mubr.f32.mxu0 0.0
  %7060 = vmatmul.mubr.f32.gmra.mxu0 %v6936
  %v7061 = vpop.f32.mrf.mxu0
  %v7062 = vadd.f32 %v6915, %v7061
  %v7063 = vpop.f32.mrf.mxu0
  %7064 = vmatprep.mubr.f32.mxu0 0.0
  %7065 = vmatmul.mubr.f32.gmra.mxu0 %v6939
  %v7066 = vpop.f32.mrf.mxu0
  %v7067 = vadd.f32 %v6915, %v7066
  %v7068 = vpop.f32.mrf.mxu0
  %7069 = vmatprep.mubr.f32.mxu0 0.0
  %7070 = vmatmul.mubr.f32.gmra.mxu0 %v6942
  %v7071 = vpop.f32.mrf.mxu0
  %v7072 = vadd.f32 %v6915, %v7071
  %v7073 = vpop.f32.mrf.mxu0
  %7074 = vmatprep.mubr.f32.mxu0 0.0
  %7075 = vmatmul.mubr.f32.gmra.mxu0 %v6945
  %v7076 = vpop.f32.mrf.mxu0
  %v7077 = vadd.f32 %v6915, %v7076
  %v7078 = vpop.f32.mrf.mxu0
  %7079 = vmatprep.mubr.f32.mxu0 0.0
  %7080 = vmatmul.mubr.f32.gmra.mxu0 %v6948
  %v7081 = vpop.f32.mrf.mxu0
  %v7082 = vadd.f32 %v6915, %v7081
  %v7083 = vpop.f32.mrf.mxu0
  %7084 = vmatprep.mubr.f32.mxu0 0.0
  %7085 = vmatmul.mubr.f32.gmra.mxu0 %v6951
  %v7086 = vpop.f32.mrf.mxu0
  %v7087 = vadd.f32 %v6915, %v7086
  %v7088 = vpop.f32.mrf.mxu0
  %7089 = vmatprep.mubr.f32.mxu0 0.0
  %7090 = vmatmul.mubr.f32.gmra.mxu0 %v6954
  %v7091 = vpop.f32.mrf.mxu0
  %v7092 = vadd.f32 %v6915, %v7091
  %v7093 = vpop.f32.mrf.mxu0
  %7094 = vmatprep.mubr.f32.mxu0 0.0
  %7095 = vmatmul.mubr.f32.gmra.mxu0 %v6957
  %v7096 = vpop.f32.mrf.mxu0
  %v7097 = vadd.f32 %v6915, %v7096
  %v7098 = vpop.f32.mrf.mxu0
  %7099 = vmatprep.mubr.f32.mxu0 0.0
  %7100 = vmatmul.mubr.f32.gmra.mxu0 %v6960
  %v7101 = vpop.f32.mrf.mxu0
  %v7102 = vadd.f32 %v6915, %v7101
  %v7103 = vpop.f32.mrf.mxu0
  %7104 = vmatprep.mubr.f32.mxu0 0.0
  %7105 = vmatmul.mubr.f32.gmra.mxu0 %v6963
  %v7106 = vpop.f32.mrf.mxu0
  %v7107 = vadd.f32 %v6915, %v7106
  %v7108 = vpop.f32.mrf.mxu0
  %7109 = vdwg.mxu0
  %7110 = vst.msk [vmem:[%s5] sm:$0xff] %vm40, %v7032
  %7111 = vst.msk [vmem:[%s5 + $0x8] sm:$0xff] %vm40, %v7037
  %7112 = vst.msk [vmem:[%s5 + $0x10] sm:$0xff] %vm40, %v7042
  %7113 = vst.msk [vmem:[%s5 + $0x18] sm:$0xff] %vm40, %v7047
  %7114 = vst.msk [vmem:[%s5 + $0x20] sm:$0xff] %vm40, %v7052
  %7115 = vst.msk [vmem:[%s5 + $0x28] sm:$0xff] %vm40, %v7057
  %7116 = vst.msk [vmem:[%s5 + $0x30] sm:$0xff] %vm40, %v7062
  %7117 = vst.msk [vmem:[%s5 + $0x38] sm:$0xff] %vm40, %v7067
  %7118 = vst.msk [vmem:[%s5 + $0x40] sm:$0xff] %vm40, %v7072
  %7119 = vst.msk [vmem:[%s5 + $0x48] sm:$0xff] %vm40, %v7077
  %7120 = vst.msk [vmem:[%s5 + $0x50] sm:$0xff] %vm40, %v7082
  %7121 = vst.msk [vmem:[%s5 + $0x58] sm:$0xff] %vm40, %v7087
  %7122 = vst.msk [vmem:[%s5 + $0x60] sm:$0xff] %vm40, %v7092
  %7123 = vst.msk [vmem:[%s5 + $0x68] sm:$0xff] %vm40, %v7097
  %7124 = vst.msk [vmem:[%s5 + $0x70] sm:$0xff] %vm40, %v7102
  %7125 = vst.msk [vmem:[%s5 + $0x78] sm:$0xff] %vm40, %v7107
  // Predicated region
  $region22: #{tpu_custom_call.1} parent=0 // pred_check
    _
  $region23: #{tpu_custom_call.1} parent=0 // pred_check_branch
    %7127 = sbr.rel (0) target = $region25
  $region24: #{tpu_custom_call.1} parent=0 // pred_region
    _
  $region25: #{tpu_custom_call.1} parent=0 // pred_fallthru
    _
  // Predicated region
  $region26: #{tpu_custom_call.1} parent=0 // pred_check
    _
  $region27: #{tpu_custom_call.1} parent=0 // pred_check_branch
    %7129 = sbr.rel (0) target = $region29
  $region28: #{tpu_custom_call.1} parent=0 // pred_region
    _
  $region29: #{tpu_custom_call.1} parent=0 // pred_fallthru
    _

</llo_original>
